<compile_context>
chip_gen: v6e
topology: v6e:2x2x1
jax: 0.10.0
libtpu: 0.0.40
codegen_flags: <defaults>
</compile_context>

<pallas_src>
import functools

import jax
import jax.numpy as jnp
from jax import lax
from jax.experimental import pallas as pl
from jax.experimental.pallas import tpu as pltpu

# Model dims (embedding_dim = num_can_ids in the original module)
NUM_CAN_IDS = 19
EMBEDDING_DIM = NUM_CAN_IDS            # 19
NUM_EMBEDDINGS = 32                    # max(unique_can_ids) + 1
NUM_FEATURES = 45
D_IN = EMBEDDING_DIM + NUM_FEATURES    # 64
DENSE_UNITS = 256
LSTM_UNITS = 128
GATE_DIM = 4 * LSTM_UNITS              # 512
OUT_PAD = 128                          # lane-padded decoder head width
SEQ_LEN = 8                            # timesteps per CAN window (demo value)
DROPOUT_RATE = 0.2                     # eval-mode identity (see TODO below)


def cannolo_kernel(x_ref, w_enc_ref, b_enc_ref, w_ih0_ref, w_ihr_ref,
                   w_hh_ref, b_lstm_ref, w_dec_ref, b_dec_ref,
                   out_ref, pre_s, hseq_a, hseq_b, *, seq_len):
    """One grid step = one block of `bw` windows. Rows are time-major:
    row index = t * bw + window, so per-timestep slices are contiguous and
    sublane-aligned (bw is a multiple of 16)."""
    m = x_ref.shape[0]                 # seq_len * bw
    bw = m // seq_len
    H = LSTM_UNITS

    # encoder dense + tanh (x already bf16 from the wrapper)
    xe = jnp.tanh(jnp.dot(x_ref[...], w_enc_ref[...],
                          preferred_element_type=jnp.float32) + b_enc_ref[...])
    # TODO(synk): nn.Dropout(0.2) is stochastic only in train mode; eval-mode
    # identity is implemented here (matches module.eval()).

    def lstm_layer(xs_bf16, w_ih, layer, out_seq):
        # Hoisted input projection for ALL timesteps at once (fills MXU rows);
        # only the small h @ W_hh stays on the serial dependency chain.
        pre_s[...] = (jnp.dot(xs_bf16, w_ih,
                              preferred_element_type=jnp.float32)
                      + b_lstm_ref[layer])                     # (m, 4H) f32
        w_hh = w_hh_ref[layer]                                 # (H, 4H) bf16

        def step(t, carry):
            h_bf, c = carry                                    # bf16, f32
            r0 = pl.multiple_of(t * bw, bw)
            gates = pre_s[pl.ds(r0, bw), :] + jnp.dot(
                h_bf, w_hh, preferred_element_type=jnp.float32)  # (bw, 4H)
            # packed gate order (i, f, o, g): 1 sigmoid slab + 1 tanh slab
            ifo = jax.nn.sigmoid(gates[:, :3 * H])
            g_g = jnp.tanh(gates[:, 3 * H:])
            c = ifo[:, H:2 * H] * c + ifo[:, :H] * g_g
            h_bf = (ifo[:, 2 * H:] * jnp.tanh(c)).astype(jnp.bfloat16)
            out_seq[pl.ds(r0, bw), :] = h_bf                   # aligned bf16 store
            return h_bf, c

        lax.fori_loop(0, seq_len, step,
                      (jnp.zeros((bw, H), jnp.bfloat16),
                       jnp.zeros((bw, H), jnp.float32)))

    # Ping-pong the h-sequence scratch between layers (no aliasing hazard).
    lstm_layer(xe.astype(jnp.bfloat16), w_ih0_ref[...], 0, hseq_a)  # enc L0
    lstm_layer(hseq_a[...], w_ihr_ref[0], 1, hseq_b)                # enc L1
    lstm_layer(hseq_b[...], w_ihr_ref[1], 2, hseq_a)                # dec L0
    lstm_layer(hseq_a[...], w_ihr_ref[2], 3, hseq_b)                # dec L1

    # decoder dense (lane-padded to 128) + sigmoid; lane-dense bf16 store.
    y = jnp.dot(hseq_b[...], w_dec_ref[...],
                preferred_element_type=jnp.float32) + b_dec_ref[...]
    out_ref[...] = jax.nn.sigmoid(y).astype(out_ref.dtype)


def _round_up(x, mult):
    return ((x + mult - 1) // mult) * mult


def _default_max_bw():
    """~128 rows fills the v5e MXU; 256 fills v6e/v7x."""
    try:
        kind = jax.devices()[0].device_kind.lower()
    except Exception:
        return 128
    if "v6" in kind or "v7" in kind:
        return 256
    return 128


def _choose_bw(num_windows, max_bw):
    """bw is a multiple of 16 (bf16 sublane alignment); keep >= 2 blocks when
    the batch allows so v7x's 2 TensorCores both get work."""
    padded = _round_up(num_windows, 16)
    if padded <= max_bw:
        return padded
    if padded <= 2 * max_bw:
        return _round_up((padded + 1) // 2, 16)
    return max_bw


@functools.partial(jax.jit, static_argnames=("max_bw",))
def cannolo_forward_windows(can_ids, features, params, max_bw=None):
    """Batched forward over independent windows.

    can_ids: (B, N) int32, features: (B, N, 45) -> (B, N, 45) float32.
    """
    B, N = can_ids.shape
    bw = _choose_bw(B, max_bw if max_bw is not None else _default_max_bw())
    Bp = _round_up(B, bw)
    if Bp != B:   # zero-pad to a whole number of aligned window blocks
        can_ids = jnp.pad(can_ids, ((0, Bp - B), (0, 0)))
        features = jnp.pad(features, ((0, Bp - B), (0, 0), (0, 0)))
    nblk = Bp // bw
    m = N * bw

    # Glue: embedding gather + concat (plain JAX), cast to bf16 for the DMA.
    emb = params["embedding"][can_ids].astype(jnp.float32)              # (Bp,N,19)
    x = jnp.concatenate([emb, features.astype(jnp.float32)], axis=-1)   # (Bp,N,64)
    x = x.astype(jnp.bfloat16)
    # Group windows per grid block, time-major inside each block:
    # (Bp,N,D) -> (nblk,bw,N,D) -> (nblk,N,bw,D) -> (nblk, N*bw, D)
    x = jnp.transpose(x.reshape(nblk, bw, N, D_IN), (0, 2, 1, 3))
    x = x.reshape(nblk, m, D_IN)

    weight_args = (params["w_enc"], params["b_enc"], params["w_ih0"],
                   params["w_ih_rest"], params["w_hh"], params["b_lstm"],
                   params["w_dec"], params["b_dec"])

    def full_spec(a):
        nd = a.ndim
        # full-array block + constant index_map -> DMA'd once, VMEM-resident
        return pl.BlockSpec(a.shape, lambda i, _nd=nd: (0,) * _nd)

    out = pl.pallas_call(
        functools.partial(cannolo_kernel, seq_len=N),
        out_shape=jax.ShapeDtypeStruct((nblk, m, OUT_PAD), jnp.bfloat16),
        grid_spec=pltpu.PrefetchScalarGridSpec(
            num_scalar_prefetch=0,
            grid=(nblk,),
            in_specs=[pl.BlockSpec((None, m, D_IN), lambda i: (i, 0, 0))]
                     + [full_spec(a) for a in weight_args],
            out_specs=pl.BlockSpec((None, m, OUT_PAD), lambda i: (i, 0, 0)),
            scratch_shapes=[pltpu.VMEM((m, GATE_DIM), jnp.float32),     # pre_s
                            pltpu.VMEM((m, LSTM_UNITS), jnp.bfloat16),  # hseq_a
                            pltpu.VMEM((m, LSTM_UNITS), jnp.bfloat16),  # hseq_b
                            ]),
        compiler_params=pltpu.CompilerParams(
            dimension_semantics=("parallel",),
            vmem_limit_bytes=32 * 1024 * 1024),
    )(x, *weight_args)

    # Undo block/time-major permutation, drop batch padding and lane padding.
    out = jnp.transpose(out.reshape(nblk, N, bw, OUT_PAD), (0, 2, 1, 3))
    out = out.reshape(Bp, N, OUT_PAD)[:B, :, :NUM_FEATURES]
    return out.astype(jnp.float32)


def cannolo_forward(can_ids, features, params):
    """Matches the PyTorch module interface: can_ids (N,), features (N, 45)."""
    return cannolo_forward_windows(can_ids[None], features[None], params)[0]


def _pack_lstm(w_ih_t, w_hh_t, b_ih, b_hh):
    """torch nn.LSTM layout -> kernel layout.

    torch:  w_ih (4H, in), w_hh (4H, H), b_ih/b_hh (4H,), gate order (i,f,g,o).
    kernel: transposed (in, 4H)/(H, 4H), combined bias (1, 4H), gate columns
            repacked to (i, f, o, g) so the 3 sigmoid gates are contiguous."""
    H = LSTM_UNITS
    perm = jnp.concatenate([jnp.arange(0, 2 * H),        # i, f
                            jnp.arange(3 * H, 4 * H),    # o
                            jnp.arange(2 * H, 3 * H)])   # g
    w_ih = w_ih_t.T[:, perm]
    w_hh = w_hh_t.T[:, perm]
    b = (b_ih + b_hh)[perm][None, :]
    return w_ih, w_hh, b


def init_params(key):
    """Deterministic synthetic parameters (same shapes as the nn.Module),
    packed into few arrays; matmul operands stored in bf16, biases in f32."""
    ks = jax.random.split(key, 10)

    def u(k, shape, fan_in):
        bound = 1.0 / float(fan_in) ** 0.5
        return jax.random.uniform(k, shape, jnp.float32, -bound, bound)

    def torch_lstm(k, in_dim):
        k1, k2, k3, k4 = jax.random.split(k, 4)
        return (u(k1, (GATE_DIM, in_dim), LSTM_UNITS),
                u(k2, (GATE_DIM, LSTM_UNITS), LSTM_UNITS),
                u(k3, (GATE_DIM,), LSTM_UNITS),
                u(k4, (GATE_DIM,), LSTM_UNITS))

    l_e0 = _pack_lstm(*torch_lstm(ks[3], DENSE_UNITS))
    l_e1 = _pack_lstm(*torch_lstm(ks[4], LSTM_UNITS))
    l_d0 = _pack_lstm(*torch_lstm(ks[5], LSTM_UNITS))
    l_d1 = _pack_lstm(*torch_lstm(ks[6], LSTM_UNITS))

    # lane-pad the decoder head to 128 (padded columns are sliced off outside)
    w_dec = jnp.pad(u(ks[7], (LSTM_UNITS, NUM_FEATURES), LSTM_UNITS),
                    ((0, 0), (0, OUT_PAD - NUM_FEATURES)))
    b_dec = jnp.pad(u(ks[8], (1, NUM_FEATURES), LSTM_UNITS),
                    ((0, 0), (0, OUT_PAD - NUM_FEATURES)))

    return {
        "embedding": jax.random.normal(ks[0], (NUM_EMBEDDINGS, EMBEDDING_DIM),
                                       jnp.float32),
        "w_enc": u(ks[1], (D_IN, DENSE_UNITS), D_IN).astype(jnp.bfloat16),
        "b_enc": u(ks[2], (1, DENSE_UNITS), D_IN),
        "w_ih0": l_e0[0].astype(jnp.bfloat16),                       # (256, 512)
        "w_ih_rest": jnp.stack([l_e1[0], l_d0[0], l_d1[0]]
                               ).astype(jnp.bfloat16),               # (3,128,512)
        "w_hh": jnp.stack([l_e0[1], l_e1[1], l_d0[1], l_d1[1]]
                          ).astype(jnp.bfloat16),                    # (4,128,512)
        "b_lstm": jnp.stack([l_e0[2], l_e1[2], l_d0[2], l_d1[2]]),   # (4,1,512) f32
        "w_dec": w_dec.astype(jnp.bfloat16),                         # (128,128)
        "b_dec": b_dec,                                              # (1,128) f32
    }


def cannolo_ref(can_ids, features, params):
    """Pure-JAX f32 reference of the same math (packed i,f,o,g gate order)."""
    H = LSTM_UNITS
    f32 = jnp.float32
    emb = params["embedding"][can_ids].astype(f32)
    x = jnp.concatenate([emb, features.astype(f32)], axis=-1)
    x = jnp.tanh(x @ params["w_enc"].astype(f32) + params["b_enc"])

    def run_layer(xs, w_ih, w_hh, b):
        def step(carry, xt):
            h, c = carry
            gates = xt @ w_ih + h @ w_hh + b[0]
            ifo = jax.nn.sigmoid(gates[:, :3 * H])
            g = jnp.tanh(gates[:, 3 * H:])
            c = ifo[:, H:2 * H] * c + ifo[:, :H] * g
            h = ifo[:, 2 * H:] * jnp.tanh(c)
            return (h, c), h
        h0 = jnp.zeros((xs.shape[0], H), f32)
        _, hs = lax.scan(step, (h0, h0), jnp.swapaxes(xs, 0, 1))
        return jnp.swapaxes(hs, 0, 1)

    hs = run_layer(x, params["w_ih0"].astype(f32),
                   params["w_hh"][0].astype(f32), params["b_lstm"][0])
    for layer in range(3):
        hs = run_layer(hs, params["w_ih_rest"][layer].astype(f32),
                       params["w_hh"][layer + 1].astype(f32),
                       params["b_lstm"][layer + 1])
    y = hs @ params["w_dec"].astype(f32) + params["b_dec"]
    return jax.nn.sigmoid(y)[:, :, :NUM_FEATURES]


if __name__ == "__main__":
    key = jax.random.PRNGKey(0)
    k_ids, k_feat, k_params = jax.random.split(key, 3)
    params = init_params(k_params)

    # 20 independent CAN windows: exercises batch padding (20 -> 32 windows).
    B = 20
    can_ids = jax.random.randint(k_ids, (B, SEQ_LEN), 0, NUM_EMBEDDINGS, jnp.int32)
    features = jax.random.uniform(k_feat, (B, SEQ_LEN, NUM_FEATURES), jnp.float32)

    ref = cannolo_ref(can_ids, features, params)

    # Default path: single large window-block.
    out_b = cannolo_forward_windows(can_ids, features, params)
    jax.block_until_ready(out_b)
    assert out_b.shape == (B, SEQ_LEN, NUM_FEATURES)
    assert bool(jnp.all((out_b >= 0.0) & (out_b <= 1.0)))
    assert bool(jnp.max(jnp.abs(out_b - ref)) < 5e-2)

    # Multi-block path: forces a 2-step grid (the "parallel" window-block axis
    # that v7x shards across its 2 TensorCores).
    out_mb = cannolo_forward_windows(can_ids, features, params, max_bw=16)
    jax.block_until_ready(out_mb)
    assert bool(jnp.max(jnp.abs(out_mb - ref)) < 5e-2)

    # Single-window path, matching the PyTorch module interface exactly.
    out_1 = cannolo_forward(can_ids[0], features[0], params)
    jax.block_until_ready(out_1)
    assert out_1.shape == (SEQ_LEN, NUM_FEATURES)
    assert bool(jnp.all((out_1 >= 0.0) & (out_1 <= 1.0)))
    assert bool(jnp.max(jnp.abs(out_1 - ref[0])) < 5e-2)

    print("KERNEL_OK")
</pallas_src>

<mosaic_0001>
module attributes {stable_mosaic.version = 11 : i64} {
  func.func @cannolo_kernel(%arg0: i32, %arg1: memref<1x256x64xbf16, #tpu.memory_space<vmem>>, %arg2: memref<64x256xbf16, #tpu.memory_space<vmem>>, %arg3: memref<1x256xf32, #tpu.memory_space<vmem>>, %arg4: memref<256x512xbf16, #tpu.memory_space<vmem>>, %arg5: memref<3x128x512xbf16, #tpu.memory_space<vmem>>, %arg6: memref<4x128x512xbf16, #tpu.memory_space<vmem>>, %arg7: memref<4x1x512xf32, #tpu.memory_space<vmem>>, %arg8: memref<128x128xbf16, #tpu.memory_space<vmem>>, %arg9: memref<1x128xf32, #tpu.memory_space<vmem>>, %arg10: memref<1x256x128xbf16, #tpu.memory_space<vmem>>, %arg11: memref<256x512xf32, #tpu.memory_space<vmem>>, %arg12: memref<256x128xbf16, #tpu.memory_space<vmem>>, %arg13: memref<256x128xbf16, #tpu.memory_space<vmem>>) attributes {dimension_semantics = [#tpu.dimension_semantics<parallel>], iteration_bounds = array<i64: 1>, scalar_prefetch = 0 : i64, scratch_operands = 3 : i64, tpu.core_type = #tpu.core_type<tc>, window_params = [{transform_indices = @transform_0, window_bounds = array<i64: 1, 256, 64>}, {pipeline_mode = #tpu.pipeline_mode<synchronous>, transform_indices = @transform_1, window_bounds = array<i64: 64, 256>}, {pipeline_mode = #tpu.pipeline_mode<synchronous>, transform_indices = @transform_2, window_bounds = array<i64: 1, 256>}, {pipeline_mode = #tpu.pipeline_mode<synchronous>, transform_indices = @transform_3, window_bounds = array<i64: 256, 512>}, {pipeline_mode = #tpu.pipeline_mode<synchronous>, transform_indices = @transform_4, window_bounds = array<i64: 3, 128, 512>}, {pipeline_mode = #tpu.pipeline_mode<synchronous>, transform_indices = @transform_5, window_bounds = array<i64: 4, 128, 512>}, {pipeline_mode = #tpu.pipeline_mode<synchronous>, transform_indices = @transform_6, window_bounds = array<i64: 4, 1, 512>}, {pipeline_mode = #tpu.pipeline_mode<synchronous>, transform_indices = @transform_7, window_bounds = array<i64: 128, 128>}, {pipeline_mode = #tpu.pipeline_mode<synchronous>, transform_indices = @transform_8, window_bounds = array<i64: 1, 128>}, {transform_indices = @transform_9, window_bounds = array<i64: 1, 256, 128>}]} {
    %c0 = arith.constant 0 : index
    %c0_0 = arith.constant 0 : index
    %c0_1 = arith.constant 0 : index
    %0 = vector.load %arg1[%c0, %c0_0, %c0_1] : memref<1x256x64xbf16, #tpu.memory_space<vmem>>, vector<1x256x64xbf16>
    %1 = vector.shape_cast %0 : vector<1x256x64xbf16> to vector<256x64xbf16>
    %c0_2 = arith.constant 0 : index
    %c0_3 = arith.constant 0 : index
    %2 = vector.load %arg2[%c0_2, %c0_3] : memref<64x256xbf16, #tpu.memory_space<vmem>>, vector<64x256xbf16>
    %cst = arith.constant dense<0.000000e+00> : vector<256x256xf32>
    %3 = tpu.matmul %1, %2, %cst {dimension_numbers = #tpu.dot_dimension_numbers<[1], [0], [0], [1], [0, 0, 1, 1], [], []>} : vector<256x64xbf16>, vector<64x256xbf16>, vector<256x256xf32> -> vector<256x256xf32>
    %c0_4 = arith.constant 0 : index
    %c0_5 = arith.constant 0 : index
    %4 = vector.load %arg3[%c0_4, %c0_5] : memref<1x256xf32, #tpu.memory_space<vmem>>, vector<1x256xf32>
    %5 = vector.broadcast %4 : vector<1x256xf32> to vector<256x256xf32>
    %6 = arith.addf %3, %5 : vector<256x256xf32>
    %7 = math.tanh %6 : vector<256x256xf32>
    %8 = arith.truncf %7 : vector<256x256xf32> to vector<256x256xbf16>
    %c0_6 = arith.constant 0 : index
    %c0_7 = arith.constant 0 : index
    %9 = vector.load %arg4[%c0_6, %c0_7] : memref<256x512xbf16, #tpu.memory_space<vmem>>, vector<256x512xbf16>
    %cst_8 = arith.constant dense<0.000000e+00> : vector<256x512xf32>
    %10 = tpu.matmul %8, %9, %cst_8 {dimension_numbers = #tpu.dot_dimension_numbers<[1], [0], [0], [1], [0, 0, 1, 1], [], []>} : vector<256x256xbf16>, vector<256x512xbf16>, vector<256x512xf32> -> vector<256x512xf32>
    %c0_9 = arith.constant 0 : index
    %c0_10 = arith.constant 0 : index
    %c0_11 = arith.constant 0 : index
    %11 = vector.load %arg7[%c0_9, %c0_10, %c0_11] : memref<4x1x512xf32, #tpu.memory_space<vmem>>, vector<1x1x512xf32>
    %12 = vector.shape_cast %11 : vector<1x1x512xf32> to vector<1x512xf32>
    %13 = vector.broadcast %12 : vector<1x512xf32> to vector<256x512xf32>
    %14 = arith.addf %10, %13 : vector<256x512xf32>
    %c0_12 = arith.constant 0 : index
    %c0_13 = arith.constant 0 : index
    %15 = vector.load %arg11[%c0_12, %c0_13] : memref<256x512xf32, #tpu.memory_space<vmem>>, vector<256x512xf32>
    tpu.vector_store %arg11[%c0_12, %c0_13], %14 {strides = array<i32>} : memref<256x512xf32, #tpu.memory_space<vmem>>, vector<256x512xf32>,
    %c0_14 = arith.constant 0 : index
    %c0_15 = arith.constant 0 : index
    %c0_16 = arith.constant 0 : index
    %16 = vector.load %arg6[%c0_14, %c0_15, %c0_16] : memref<4x128x512xbf16, #tpu.memory_space<vmem>>, vector<1x128x512xbf16>
    %17 = vector.shape_cast %16 : vector<1x128x512xbf16> to vector<128x512xbf16>
    %cst_17 = arith.constant 0.000000e+00 : bf16
    %18 = vector.broadcast %cst_17 : bf16 to vector<32x128xbf16>
    %cst_18 = arith.constant 0.000000e+00 : f32
    %19 = vector.broadcast %cst_18 : f32 to vector<32x128xf32>
    %c0_i32 = arith.constant 0 : i32
    %c8_i32 = arith.constant 8 : i32
    %20 = arith.addi %c0_i32, %c8_i32 : i32
    %c1_i32 = arith.constant 1 : i32
    %21:2 = scf.for %arg14 = %c0_i32 to %20 step %c1_i32 iter_args(%arg15 = %18, %arg16 = %19) -> (vector<32x128xbf16>, vector<32x128xf32>)  : i32 {
      %c32_i32 = arith.constant 32 : i32
      %82 = arith.muli %arg14, %c32_i32 : i32
      %83 = tpu.assume_multiple %82, 32 : i32
      %84 = arith.index_cast %83 : i32 to index
      %c0_88 = arith.constant 0 : index
      %85 = vector.load %arg11[%84, %c0_88] : memref<256x512xf32, #tpu.memory_space<vmem>>, vector<32x512xf32>
      %cst_89 = arith.constant dense<0.000000e+00> : vector<32x512xf32>
      %86 = tpu.matmul %arg15, %17, %cst_89 {dimension_numbers = #tpu.dot_dimension_numbers<[1], [0], [0], [1], [0, 0, 1, 1], [], []>} : vector<32x128xbf16>, vector<128x512xbf16>, vector<32x512xf32> -> vector<32x512xf32>
      %87 = arith.addf %85, %86 : vector<32x512xf32>
      %88 = vector.extract_strided_slice %87 {offsets = [0, 0], sizes = [32, 384], strides = [1, 1]} : vector<32x512xf32> to vector<32x384xf32>
      %89 = arith.negf %88 : vector<32x384xf32>
      %90 = math.exp %89 : vector<32x384xf32>
      %cst_90 = arith.constant 1.000000e+00 : f32
      %91 = vector.broadcast %cst_90 : f32 to vector<32x384xf32>
      %92 = arith.addf %91, %90 : vector<32x384xf32>
      %93 = arith.divf %91, %92 : vector<32x384xf32>
      %94 = vector.extract_strided_slice %87 {offsets = [0, 384], sizes = [32, 128], strides = [1, 1]} : vector<32x512xf32> to vector<32x128xf32>
      %95 = math.tanh %94 : vector<32x128xf32>
      %96 = vector.extract_strided_slice %93 {offsets = [0, 128], sizes = [32, 128], strides = [1, 1]} : vector<32x384xf32> to vector<32x128xf32>
      %97 = arith.mulf %96, %arg16 : vector<32x128xf32>
      %98 = vector.extract_strided_slice %93 {offsets = [0, 0], sizes = [32, 128], strides = [1, 1]} : vector<32x384xf32> to vector<32x128xf32>
      %99 = arith.mulf %98, %95 : vector<32x128xf32>
      %100 = arith.addf %97, %99 : vector<32x128xf32>
      %101 = vector.extract_strided_slice %93 {offsets = [0, 256], sizes = [32, 128], strides = [1, 1]} : vector<32x384xf32> to vector<32x128xf32>
      %102 = math.tanh %100 : vector<32x128xf32>
      %103 = arith.mulf %101, %102 : vector<32x128xf32>
      %104 = arith.truncf %103 : vector<32x128xf32> to vector<32x128xbf16>
      %105 = arith.index_cast %83 : i32 to index
      %c0_91 = arith.constant 0 : index
      %106 = vector.load %arg12[%105, %c0_91] : memref<256x128xbf16, #tpu.memory_space<vmem>>, vector<32x128xbf16>
      tpu.vector_store %arg12[%105, %c0_91], %104 {strides = array<i32>} : memref<256x128xbf16, #tpu.memory_space<vmem>>, vector<32x128xbf16>,
      scf.yield %104, %100 : vector<32x128xbf16>, vector<32x128xf32>
    }
    %c8_i32_19 = arith.constant 8 : i32
    %c0_20 = arith.constant 0 : index
    %c0_21 = arith.constant 0 : index
    %22 = vector.load %arg12[%c0_20, %c0_21] : memref<256x128xbf16, #tpu.memory_space<vmem>>, vector<256x128xbf16>
    %c0_22 = arith.constant 0 : index
    %c0_23 = arith.constant 0 : index
    %c0_24 = arith.constant 0 : index
    %23 = vector.load %arg5[%c0_22, %c0_23, %c0_24] : memref<3x128x512xbf16, #tpu.memory_space<vmem>>, vector<1x128x512xbf16>
    %24 = vector.shape_cast %23 : vector<1x128x512xbf16> to vector<128x512xbf16>
    %cst_25 = arith.constant dense<0.000000e+00> : vector<256x512xf32>
    %25 = tpu.matmul %22, %24, %cst_25 {dimension_numbers = #tpu.dot_dimension_numbers<[1], [0], [0], [1], [0, 0, 1, 1], [], []>} : vector<256x128xbf16>, vector<128x512xbf16>, vector<256x512xf32> -> vector<256x512xf32>
    %c1 = arith.constant 1 : index
    %c0_26 = arith.constant 0 : index
    %c0_27 = arith.constant 0 : index
    %26 = vector.load %arg7[%c1, %c0_26, %c0_27] : memref<4x1x512xf32, #tpu.memory_space<vmem>>, vector<1x1x512xf32>
    %27 = vector.shape_cast %26 : vector<1x1x512xf32> to vector<1x512xf32>
    %28 = vector.broadcast %27 : vector<1x512xf32> to vector<256x512xf32>
    %29 = arith.addf %25, %28 : vector<256x512xf32>
    %c0_28 = arith.constant 0 : index
    %c0_29 = arith.constant 0 : index
    %30 = vector.load %arg11[%c0_28, %c0_29] : memref<256x512xf32, #tpu.memory_space<vmem>>, vector<256x512xf32>
    tpu.vector_store %arg11[%c0_28, %c0_29], %29 {strides = array<i32>} : memref<256x512xf32, #tpu.memory_space<vmem>>, vector<256x512xf32>,
    %c1_30 = arith.constant 1 : index
    %c0_31 = arith.constant 0 : index
    %c0_32 = arith.constant 0 : index
    %31 = vector.load %arg6[%c1_30, %c0_31, %c0_32] : memref<4x128x512xbf16, #tpu.memory_space<vmem>>, vector<1x128x512xbf16>
    %32 = vector.shape_cast %31 : vector<1x128x512xbf16> to vector<128x512xbf16>
    %cst_33 = arith.constant 0.000000e+00 : bf16
    %33 = vector.broadcast %cst_33 : bf16 to vector<32x128xbf16>
    %cst_34 = arith.constant 0.000000e+00 : f32
    %34 = vector.broadcast %cst_34 : f32 to vector<32x128xf32>
    %c0_i32_35 = arith.constant 0 : i32
    %c8_i32_36 = arith.constant 8 : i32
    %35 = arith.addi %c0_i32_35, %c8_i32_36 : i32
    %c1_i32_37 = arith.constant 1 : i32
    %36:2 = scf.for %arg14 = %c0_i32_35 to %35 step %c1_i32_37 iter_args(%arg15 = %33, %arg16 = %34) -> (vector<32x128xbf16>, vector<32x128xf32>)  : i32 {
      %c32_i32 = arith.constant 32 : i32
      %82 = arith.muli %arg14, %c32_i32 : i32
      %83 = tpu.assume_multiple %82, 32 : i32
      %84 = arith.index_cast %83 : i32 to index
      %c0_88 = arith.constant 0 : index
      %85 = vector.load %arg11[%84, %c0_88] : memref<256x512xf32, #tpu.memory_space<vmem>>, vector<32x512xf32>
      %cst_89 = arith.constant dense<0.000000e+00> : vector<32x512xf32>
      %86 = tpu.matmul %arg15, %32, %cst_89 {dimension_numbers = #tpu.dot_dimension_numbers<[1], [0], [0], [1], [0, 0, 1, 1], [], []>} : vector<32x128xbf16>, vector<128x512xbf16>, vector<32x512xf32> -> vector<32x512xf32>
      %87 = arith.addf %85, %86 : vector<32x512xf32>
      %88 = vector.extract_strided_slice %87 {offsets = [0, 0], sizes = [32, 384], strides = [1, 1]} : vector<32x512xf32> to vector<32x384xf32>
      %89 = arith.negf %88 : vector<32x384xf32>
      %90 = math.exp %89 : vector<32x384xf32>
      %cst_90 = arith.constant 1.000000e+00 : f32
      %91 = vector.broadcast %cst_90 : f32 to vector<32x384xf32>
      %92 = arith.addf %91, %90 : vector<32x384xf32>
      %93 = arith.divf %91, %92 : vector<32x384xf32>
      %94 = vector.extract_strided_slice %87 {offsets = [0, 384], sizes = [32, 128], strides = [1, 1]} : vector<32x512xf32> to vector<32x128xf32>
      %95 = math.tanh %94 : vector<32x128xf32>
      %96 = vector.extract_strided_slice %93 {offsets = [0, 128], sizes = [32, 128], strides = [1, 1]} : vector<32x384xf32> to vector<32x128xf32>
      %97 = arith.mulf %96, %arg16 : vector<32x128xf32>
      %98 = vector.extract_strided_slice %93 {offsets = [0, 0], sizes = [32, 128], strides = [1, 1]} : vector<32x384xf32> to vector<32x128xf32>
      %99 = arith.mulf %98, %95 : vector<32x128xf32>
      %100 = arith.addf %97, %99 : vector<32x128xf32>
      %101 = vector.extract_strided_slice %93 {offsets = [0, 256], sizes = [32, 128], strides = [1, 1]} : vector<32x384xf32> to vector<32x128xf32>
      %102 = math.tanh %100 : vector<32x128xf32>
      %103 = arith.mulf %101, %102 : vector<32x128xf32>
      %104 = arith.truncf %103 : vector<32x128xf32> to vector<32x128xbf16>
      %105 = arith.index_cast %83 : i32 to index
      %c0_91 = arith.constant 0 : index
      %106 = vector.load %arg13[%105, %c0_91] : memref<256x128xbf16, #tpu.memory_space<vmem>>, vector<32x128xbf16>
      tpu.vector_store %arg13[%105, %c0_91], %104 {strides = array<i32>} : memref<256x128xbf16, #tpu.memory_space<vmem>>, vector<32x128xbf16>,
      scf.yield %104, %100 : vector<32x128xbf16>, vector<32x128xf32>
    }
    %c8_i32_38 = arith.constant 8 : i32
    %c0_39 = arith.constant 0 : index
    %c0_40 = arith.constant 0 : index
    %37 = vector.load %arg13[%c0_39, %c0_40] : memref<256x128xbf16, #tpu.memory_space<vmem>>, vector<256x128xbf16>
    %c1_41 = arith.constant 1 : index
    %c0_42 = arith.constant 0 : index
    %c0_43 = arith.constant 0 : index
    %38 = vector.load %arg5[%c1_41, %c0_42, %c0_43] : memref<3x128x512xbf16, #tpu.memory_space<vmem>>, vector<1x128x512xbf16>
    %39 = vector.shape_cast %38 : vector<1x128x512xbf16> to vector<128x512xbf16>
    %cst_44 = arith.constant dense<0.000000e+00> : vector<256x512xf32>
    %40 = tpu.matmul %37, %39, %cst_44 {dimension_numbers = #tpu.dot_dimension_numbers<[1], [0], [0], [1], [0, 0, 1, 1], [], []>} : vector<256x128xbf16>, vector<128x512xbf16>, vector<256x512xf32> -> vector<256x512xf32>
    %c2 = arith.constant 2 : index
    %c0_45 = arith.constant 0 : index
    %c0_46 = arith.constant 0 : index
    %41 = vector.load %arg7[%c2, %c0_45, %c0_46] : memref<4x1x512xf32, #tpu.memory_space<vmem>>, vector<1x1x512xf32>
    %42 = vector.shape_cast %41 : vector<1x1x512xf32> to vector<1x512xf32>
    %43 = vector.broadcast %42 : vector<1x512xf32> to vector<256x512xf32>
    %44 = arith.addf %40, %43 : vector<256x512xf32>
    %c0_47 = arith.constant 0 : index
    %c0_48 = arith.constant 0 : index
    %45 = vector.load %arg11[%c0_47, %c0_48] : memref<256x512xf32, #tpu.memory_space<vmem>>, vector<256x512xf32>
    tpu.vector_store %arg11[%c0_47, %c0_48], %44 {strides = array<i32>} : memref<256x512xf32, #tpu.memory_space<vmem>>, vector<256x512xf32>,
    %c2_49 = arith.constant 2 : index
    %c0_50 = arith.constant 0 : index
    %c0_51 = arith.constant 0 : index
    %46 = vector.load %arg6[%c2_49, %c0_50, %c0_51] : memref<4x128x512xbf16, #tpu.memory_space<vmem>>, vector<1x128x512xbf16>
    %47 = vector.shape_cast %46 : vector<1x128x512xbf16> to vector<128x512xbf16>
    %cst_52 = arith.constant 0.000000e+00 : bf16
    %48 = vector.broadcast %cst_52 : bf16 to vector<32x128xbf16>
    %cst_53 = arith.constant 0.000000e+00 : f32
    %49 = vector.broadcast %cst_53 : f32 to vector<32x128xf32>
    %c0_i32_54 = arith.constant 0 : i32
    %c8_i32_55 = arith.constant 8 : i32
    %50 = arith.addi %c0_i32_54, %c8_i32_55 : i32
    %c1_i32_56 = arith.constant 1 : i32
    %51:2 = scf.for %arg14 = %c0_i32_54 to %50 step %c1_i32_56 iter_args(%arg15 = %48, %arg16 = %49) -> (vector<32x128xbf16>, vector<32x128xf32>)  : i32 {
      %c32_i32 = arith.constant 32 : i32
      %82 = arith.muli %arg14, %c32_i32 : i32
      %83 = tpu.assume_multiple %82, 32 : i32
      %84 = arith.index_cast %83 : i32 to index
      %c0_88 = arith.constant 0 : index
      %85 = vector.load %arg11[%84, %c0_88] : memref<256x512xf32, #tpu.memory_space<vmem>>, vector<32x512xf32>
      %cst_89 = arith.constant dense<0.000000e+00> : vector<32x512xf32>
      %86 = tpu.matmul %arg15, %47, %cst_89 {dimension_numbers = #tpu.dot_dimension_numbers<[1], [0], [0], [1], [0, 0, 1, 1], [], []>} : vector<32x128xbf16>, vector<128x512xbf16>, vector<32x512xf32> -> vector<32x512xf32>
      %87 = arith.addf %85, %86 : vector<32x512xf32>
      %88 = vector.extract_strided_slice %87 {offsets = [0, 0], sizes = [32, 384], strides = [1, 1]} : vector<32x512xf32> to vector<32x384xf32>
      %89 = arith.negf %88 : vector<32x384xf32>
      %90 = math.exp %89 : vector<32x384xf32>
      %cst_90 = arith.constant 1.000000e+00 : f32
      %91 = vector.broadcast %cst_90 : f32 to vector<32x384xf32>
      %92 = arith.addf %91, %90 : vector<32x384xf32>
      %93 = arith.divf %91, %92 : vector<32x384xf32>
      %94 = vector.extract_strided_slice %87 {offsets = [0, 384], sizes = [32, 128], strides = [1, 1]} : vector<32x512xf32> to vector<32x128xf32>
      %95 = math.tanh %94 : vector<32x128xf32>
      %96 = vector.extract_strided_slice %93 {offsets = [0, 128], sizes = [32, 128], strides = [1, 1]} : vector<32x384xf32> to vector<32x128xf32>
      %97 = arith.mulf %96, %arg16 : vector<32x128xf32>
      %98 = vector.extract_strided_slice %93 {offsets = [0, 0], sizes = [32, 128], strides = [1, 1]} : vector<32x384xf32> to vector<32x128xf32>
      %99 = arith.mulf %98, %95 : vector<32x128xf32>
      %100 = arith.addf %97, %99 : vector<32x128xf32>
      %101 = vector.extract_strided_slice %93 {offsets = [0, 256], sizes = [32, 128], strides = [1, 1]} : vector<32x384xf32> to vector<32x128xf32>
      %102 = math.tanh %100 : vector<32x128xf32>
      %103 = arith.mulf %101, %102 : vector<32x128xf32>
      %104 = arith.truncf %103 : vector<32x128xf32> to vector<32x128xbf16>
      %105 = arith.index_cast %83 : i32 to index
      %c0_91 = arith.constant 0 : index
      %106 = vector.load %arg12[%105, %c0_91] : memref<256x128xbf16, #tpu.memory_space<vmem>>, vector<32x128xbf16>
      tpu.vector_store %arg12[%105, %c0_91], %104 {strides = array<i32>} : memref<256x128xbf16, #tpu.memory_space<vmem>>, vector<32x128xbf16>,
      scf.yield %104, %100 : vector<32x128xbf16>, vector<32x128xf32>
    }
    %c8_i32_57 = arith.constant 8 : i32
    %c0_58 = arith.constant 0 : index
    %c0_59 = arith.constant 0 : index
    %52 = vector.load %arg12[%c0_58, %c0_59] : memref<256x128xbf16, #tpu.memory_space<vmem>>, vector<256x128xbf16>
    %c2_60 = arith.constant 2 : index
    %c0_61 = arith.constant 0 : index
    %c0_62 = arith.constant 0 : index
    %53 = vector.load %arg5[%c2_60, %c0_61, %c0_62] : memref<3x128x512xbf16, #tpu.memory_space<vmem>>, vector<1x128x512xbf16>
    %54 = vector.shape_cast %53 : vector<1x128x512xbf16> to vector<128x512xbf16>
    %cst_63 = arith.constant dense<0.000000e+00> : vector<256x512xf32>
    %55 = tpu.matmul %52, %54, %cst_63 {dimension_numbers = #tpu.dot_dimension_numbers<[1], [0], [0], [1], [0, 0, 1, 1], [], []>} : vector<256x128xbf16>, vector<128x512xbf16>, vector<256x512xf32> -> vector<256x512xf32>
    %c3 = arith.constant 3 : index
    %c0_64 = arith.constant 0 : index
    %c0_65 = arith.constant 0 : index
    %56 = vector.load %arg7[%c3, %c0_64, %c0_65] : memref<4x1x512xf32, #tpu.memory_space<vmem>>, vector<1x1x512xf32>
    %57 = vector.shape_cast %56 : vector<1x1x512xf32> to vector<1x512xf32>
    %58 = vector.broadcast %57 : vector<1x512xf32> to vector<256x512xf32>
    %59 = arith.addf %55, %58 : vector<256x512xf32>
    %c0_66 = arith.constant 0 : index
    %c0_67 = arith.constant 0 : index
    %60 = vector.load %arg11[%c0_66, %c0_67] : memref<256x512xf32, #tpu.memory_space<vmem>>, vector<256x512xf32>
    tpu.vector_store %arg11[%c0_66, %c0_67], %59 {strides = array<i32>} : memref<256x512xf32, #tpu.memory_space<vmem>>, vector<256x512xf32>,
    %c3_68 = arith.constant 3 : index
    %c0_69 = arith.constant 0 : index
    %c0_70 = arith.constant 0 : index
    %61 = vector.load %arg6[%c3_68, %c0_69, %c0_70] : memref<4x128x512xbf16, #tpu.memory_space<vmem>>, vector<1x128x512xbf16>
    %62 = vector.shape_cast %61 : vector<1x128x512xbf16> to vector<128x512xbf16>
    %cst_71 = arith.constant 0.000000e+00 : bf16
    %63 = vector.broadcast %cst_71 : bf16 to vector<32x128xbf16>
    %cst_72 = arith.constant 0.000000e+00 : f32
    %64 = vector.broadcast %cst_72 : f32 to vector<32x128xf32>
    %c0_i32_73 = arith.constant 0 : i32
    %c8_i32_74 = arith.constant 8 : i32
    %65 = arith.addi %c0_i32_73, %c8_i32_74 : i32
    %c1_i32_75 = arith.constant 1 : i32
    %66:2 = scf.for %arg14 = %c0_i32_73 to %65 step %c1_i32_75 iter_args(%arg15 = %63, %arg16 = %64) -> (vector<32x128xbf16>, vector<32x128xf32>)  : i32 {
      %c32_i32 = arith.constant 32 : i32
      %82 = arith.muli %arg14, %c32_i32 : i32
      %83 = tpu.assume_multiple %82, 32 : i32
      %84 = arith.index_cast %83 : i32 to index
      %c0_88 = arith.constant 0 : index
      %85 = vector.load %arg11[%84, %c0_88] : memref<256x512xf32, #tpu.memory_space<vmem>>, vector<32x512xf32>
      %cst_89 = arith.constant dense<0.000000e+00> : vector<32x512xf32>
      %86 = tpu.matmul %arg15, %62, %cst_89 {dimension_numbers = #tpu.dot_dimension_numbers<[1], [0], [0], [1], [0, 0, 1, 1], [], []>} : vector<32x128xbf16>, vector<128x512xbf16>, vector<32x512xf32> -> vector<32x512xf32>
      %87 = arith.addf %85, %86 : vector<32x512xf32>
      %88 = vector.extract_strided_slice %87 {offsets = [0, 0], sizes = [32, 384], strides = [1, 1]} : vector<32x512xf32> to vector<32x384xf32>
      %89 = arith.negf %88 : vector<32x384xf32>
      %90 = math.exp %89 : vector<32x384xf32>
      %cst_90 = arith.constant 1.000000e+00 : f32
      %91 = vector.broadcast %cst_90 : f32 to vector<32x384xf32>
      %92 = arith.addf %91, %90 : vector<32x384xf32>
      %93 = arith.divf %91, %92 : vector<32x384xf32>
      %94 = vector.extract_strided_slice %87 {offsets = [0, 384], sizes = [32, 128], strides = [1, 1]} : vector<32x512xf32> to vector<32x128xf32>
      %95 = math.tanh %94 : vector<32x128xf32>
      %96 = vector.extract_strided_slice %93 {offsets = [0, 128], sizes = [32, 128], strides = [1, 1]} : vector<32x384xf32> to vector<32x128xf32>
      %97 = arith.mulf %96, %arg16 : vector<32x128xf32>
      %98 = vector.extract_strided_slice %93 {offsets = [0, 0], sizes = [32, 128], strides = [1, 1]} : vector<32x384xf32> to vector<32x128xf32>
      %99 = arith.mulf %98, %95 : vector<32x128xf32>
      %100 = arith.addf %97, %99 : vector<32x128xf32>
      %101 = vector.extract_strided_slice %93 {offsets = [0, 256], sizes = [32, 128], strides = [1, 1]} : vector<32x384xf32> to vector<32x128xf32>
      %102 = math.tanh %100 : vector<32x128xf32>
      %103 = arith.mulf %101, %102 : vector<32x128xf32>
      %104 = arith.truncf %103 : vector<32x128xf32> to vector<32x128xbf16>
      %105 = arith.index_cast %83 : i32 to index
      %c0_91 = arith.constant 0 : index
      %106 = vector.load %arg13[%105, %c0_91] : memref<256x128xbf16, #tpu.memory_space<vmem>>, vector<32x128xbf16>
      tpu.vector_store %arg13[%105, %c0_91], %104 {strides = array<i32>} : memref<256x128xbf16, #tpu.memory_space<vmem>>, vector<32x128xbf16>,
      scf.yield %104, %100 : vector<32x128xbf16>, vector<32x128xf32>
    }
    %c8_i32_76 = arith.constant 8 : i32
    %c0_77 = arith.constant 0 : index
    %c0_78 = arith.constant 0 : index
    %67 = vector.load %arg13[%c0_77, %c0_78] : memref<256x128xbf16, #tpu.memory_space<vmem>>, vector<256x128xbf16>
    %c0_79 = arith.constant 0 : index
    %c0_80 = arith.constant 0 : index
    %68 = vector.load %arg8[%c0_79, %c0_80] : memref<128x128xbf16, #tpu.memory_space<vmem>>, vector<128x128xbf16>
    %cst_81 = arith.constant dense<0.000000e+00> : vector<256x128xf32>
    %69 = tpu.matmul %67, %68, %cst_81 {dimension_numbers = #tpu.dot_dimension_numbers<[1], [0], [0], [1], [0, 0, 1, 1], [], []>} : vector<256x128xbf16>, vector<128x128xbf16>, vector<256x128xf32> -> vector<256x128xf32>
    %c0_82 = arith.constant 0 : index
    %c0_83 = arith.constant 0 : index
    %70 = vector.load %arg9[%c0_82, %c0_83] : memref<1x128xf32, #tpu.memory_space<vmem>>, vector<1x128xf32>
    %71 = vector.broadcast %70 : vector<1x128xf32> to vector<256x128xf32>
    %72 = arith.addf %69, %71 : vector<256x128xf32>
    %73 = arith.negf %72 : vector<256x128xf32>
    %74 = math.exp %73 : vector<256x128xf32>
    %cst_84 = arith.constant 1.000000e+00 : f32
    %75 = vector.broadcast %cst_84 : f32 to vector<256x128xf32>
    %76 = arith.addf %75, %74 : vector<256x128xf32>
    %77 = arith.divf %75, %76 : vector<256x128xf32>
    %78 = arith.truncf %77 : vector<256x128xf32> to vector<256x128xbf16>
    %c0_85 = arith.constant 0 : index
    %c0_86 = arith.constant 0 : index
    %c0_87 = arith.constant 0 : index
    %79 = vector.load %arg10[%c0_85, %c0_86, %c0_87] : memref<1x256x128xbf16, #tpu.memory_space<vmem>>, vector<1x256x128xbf16>
    %80 = vector.shape_cast %79 : vector<1x256x128xbf16> to vector<256x128xbf16>
    %81 = vector.shape_cast %78 : vector<256x128xbf16> to vector<1x256x128xbf16>
    tpu.vector_store %arg10[%c0_85, %c0_86, %c0_87], %81 {strides = array<i32>} : memref<1x256x128xbf16, #tpu.memory_space<vmem>>, vector<1x256x128xbf16>,
    return
  }
  func.func @transform_0(%arg0: i32) -> (i32, i32, i32) {
    %c0_i32 = arith.constant 0 : i32
    %c0_i32_0 = arith.constant 0 : i32
    %c0_i32_1 = arith.constant 0 : i32
    return %arg0, %c0_i32, %c0_i32_0 : i32, i32, i32
  }
  func.func @transform_1(%arg0: i32) -> (i32, i32) {
    %c0_i32 = arith.constant 0 : i32
    %c0_i32_0 = arith.constant 0 : i32
    %c0_i32_1 = arith.constant 0 : i32
    return %c0_i32, %c0_i32_0 : i32, i32
  }
  func.func @transform_2(%arg0: i32) -> (i32, i32) {
    %c0_i32 = arith.constant 0 : i32
    %c0_i32_0 = arith.constant 0 : i32
    %c0_i32_1 = arith.constant 0 : i32
    return %c0_i32, %c0_i32_0 : i32, i32
  }
  func.func @transform_3(%arg0: i32) -> (i32, i32) {
    %c0_i32 = arith.constant 0 : i32
    %c0_i32_0 = arith.constant 0 : i32
    %c0_i32_1 = arith.constant 0 : i32
    return %c0_i32, %c0_i32_0 : i32, i32
  }
  func.func @transform_4(%arg0: i32) -> (i32, i32, i32) {
    %c0_i32 = arith.constant 0 : i32
    %c0_i32_0 = arith.constant 0 : i32
    %c0_i32_1 = arith.constant 0 : i32
    %c0_i32_2 = arith.constant 0 : i32
    return %c0_i32, %c0_i32_0, %c0_i32_1 : i32, i32, i32
  }
  func.func @transform_5(%arg0: i32) -> (i32, i32, i32) {
    %c0_i32 = arith.constant 0 : i32
    %c0_i32_0 = arith.constant 0 : i32
    %c0_i32_1 = arith.constant 0 : i32
    %c0_i32_2 = arith.constant 0 : i32
    return %c0_i32, %c0_i32_0, %c0_i32_1 : i32, i32, i32
  }
  func.func @transform_6(%arg0: i32) -> (i32, i32, i32) {
    %c0_i32 = arith.constant 0 : i32
    %c0_i32_0 = arith.constant 0 : i32
    %c0_i32_1 = arith.constant 0 : i32
    %c0_i32_2 = arith.constant 0 : i32
    return %c0_i32, %c0_i32_0, %c0_i32_1 : i32, i32, i32
  }
  func.func @transform_7(%arg0: i32) -> (i32, i32) {
    %c0_i32 = arith.constant 0 : i32
    %c0_i32_0 = arith.constant 0 : i32
    %c0_i32_1 = arith.constant 0 : i32
    return %c0_i32, %c0_i32_0 : i32, i32
  }
  func.func @transform_8(%arg0: i32) -> (i32, i32) {
    %c0_i32 = arith.constant 0 : i32
    %c0_i32_0 = arith.constant 0 : i32
    %c0_i32_1 = arith.constant 0 : i32
    return %c0_i32, %c0_i32_0 : i32, i32
  }
  func.func @transform_9(%arg0: i32) -> (i32, i32, i32) {
    %c0_i32 = arith.constant 0 : i32
    %c0_i32_0 = arith.constant 0 : i32
    %c0_i32_1 = arith.constant 0 : i32
    return %arg0, %c0_i32, %c0_i32_0 : i32, i32, i32
  }
}

</mosaic_0001>

<llo_original>
// kernel: cannolo_forward_windows.1
$region0: #{cannolo_forward_windows.1}
  #allocation0 [shape = 'u32[]', space=smem, size = 0x4, offset = 0x4, fixed_abs, tag = 'smem constant byte address 0x4 - core index']
  #allocation1 [shape = 'u32[144,128]{1,0:T(1,128)}', space=vmem, size = 0x12000, scoped, tag = 'internal scratch']
  #allocation2 [shape = 'f32[256,512]{1,0:T(8,128)}', space=vmem, size = 0x80000, scoped, tag = 'scratch operand']
  #allocation3 [shape = 'bf16[256,128]{1,0:T(8,128)(2,1)}', space=vmem, size = 0x10000, scoped, tag = 'scratch operand']
  #allocation4 [shape = 'bf16[256,128]{1,0:T(8,128)(2,1)}', space=vmem, size = 0x10000, scoped, tag = 'scratch operand']
  %s0 = inlined_call_operand.vmem [shape: bf16[1,256,64], index: 0, kind: input, shape index: {}]
  %s1 = inlined_call_operand.vmem [shape: bf16[64,256], index: 1, kind: input, shape index: {}]
  %s2 = inlined_call_operand.vmem [shape: f32[1,256], index: 2, kind: input, shape index: {}]
  %s3 = inlined_call_operand.vmem [shape: bf16[256,512], index: 3, kind: input, shape index: {}]
  %s4 = inlined_call_operand.vmem [shape: bf16[3,128,512], index: 4, kind: input, shape index: {}]
  %s5 = inlined_call_operand.vmem [shape: bf16[4,128,512], index: 5, kind: input, shape index: {}]
  %s6 = inlined_call_operand.vmem [shape: f32[4,1,512], index: 6, kind: input, shape index: {}]
  %s7 = inlined_call_operand.hbm [shape: bf16[128,128], index: 7, kind: input, shape index: {}]
  %s8 = inlined_call_operand.vmem [shape: f32[1,128], index: 8, kind: input, shape index: {}]
  %s9 = inlined_call_operand.vmem [shape: bf16[1,256,128], index: 9, kind: output, shape index: {}]
  %s10 = sld [smem:[#allocation0]]
  $region78: #{cannolo_forward_windows.1} parent=0
    _
  %s12 = ssub.s32 1, %s10
  %s13 = scalar_select 0, %s12, %s10
  $region1: #{cannolo_forward_windows.1} parent=0
    #allocation5 [shape = 'u8[32768]{0}', space=vmem, size = 0x8000, scoped, tag = 'input window, operand 7, single buffered']
    #allocation6 [shape = 's32[1]{0}', space=sflag, size = 0x4, scoped, tag = 'scoped memory for cannolo_forward_windows.1']
    %14 = vsyncpa [#allocation6], 0
    // Predicated region
    $region2: #{cannolo_forward_windows.1} parent=1 // pred_check
      _
    $region3: #{cannolo_forward_windows.1} parent=1 // pred_check_branch
      %16 = sbr.rel (0) target = $region5
    $region4: #{cannolo_forward_windows.1} parent=1 // pred_region
      _
    $region5: #{cannolo_forward_windows.1} parent=1 // pred_fallthru
      _
    // Predicated region
    $region6: #{cannolo_forward_windows.1} parent=1 // pred_check
      _
    $region7: #{cannolo_forward_windows.1} parent=1 // pred_check_branch
      %18 = sbr.rel (0) target = $region9
    $region8: #{cannolo_forward_windows.1} parent=1 // pred_region
      _
    $region9: #{cannolo_forward_windows.1} parent=1 // pred_fallthru
      _
    // Predicated region
    $region10: #{cannolo_forward_windows.1} parent=1 // pred_check
      _
    $region11: #{cannolo_forward_windows.1} parent=1 // pred_check_branch
      %20 = sbr.rel (0) target = $region13
    $region12: #{cannolo_forward_windows.1} parent=1 // pred_region
      _
    $region13: #{cannolo_forward_windows.1} parent=1 // pred_fallthru
      _
    // Predicated region
    $region14: #{cannolo_forward_windows.1} parent=1 // pred_check
      _
    $region15: #{cannolo_forward_windows.1} parent=1 // pred_check_branch
      %22 = sbr.rel (0) target = $region17
    $region16: #{cannolo_forward_windows.1} parent=1 // pred_region
      _
    $region17: #{cannolo_forward_windows.1} parent=1 // pred_fallthru
      _
    // Predicated region
    $region18: #{cannolo_forward_windows.1} parent=1 // pred_check
      _
    $region19: #{cannolo_forward_windows.1} parent=1 // pred_check_branch
      %24 = sbr.rel (0) target = $region21
    $region20: #{cannolo_forward_windows.1} parent=1 // pred_region
      _
    $region21: #{cannolo_forward_windows.1} parent=1 // pred_fallthru
      _
    // Predicated region
    $region22: #{cannolo_forward_windows.1} parent=1 // pred_check
      _
    $region23: #{cannolo_forward_windows.1} parent=1 // pred_check_branch
      %26 = sbr.rel (0) target = $region25
    $region24: #{cannolo_forward_windows.1} parent=1 // pred_region
      _
    $region25: #{cannolo_forward_windows.1} parent=1 // pred_fallthru
      _
    // Predicated region
    $region26: #{cannolo_forward_windows.1} parent=1 // pred_check
      _
    $region27: #{cannolo_forward_windows.1} parent=1 // pred_check_branch
      %28 = sbr.rel (0) target = $region29
    $region28: #{cannolo_forward_windows.1} parent=1 // pred_region
      _
    $region29: #{cannolo_forward_windows.1} parent=1 // pred_fallthru
      _
    // Predicated region
    $region30: #{cannolo_forward_windows.1} parent=1 // pred_check
      _
    $region31: #{cannolo_forward_windows.1} parent=1 // pred_check_branch
      %30 = sbr.rel (0) target = $region33
    $region32: #{cannolo_forward_windows.1} parent=1 // pred_region
      %s32 = ssub.s32 1024, 1024
      %33 = vsyncadd [#allocation6], %s32
      %s34 = sshll.u32 [#allocation5], 4
      %s35 = int_to_ptr.vmem [resolvable:$true] %s34
      %40 = dma.hbm_to_vmem [thread:$0]  %s7, 1024, %s35, [#allocation6], 64, 64, 4
    $region33: #{cannolo_forward_windows.1} parent=1 // pred_fallthru
      _
    // Predicated region
    $region34: #{cannolo_forward_windows.1} parent=1 // pred_check
      _
    $region35: #{cannolo_forward_windows.1} parent=1 // pred_check_branch
      %42 = sbr.rel (0) target = $region37
    $region36: #{cannolo_forward_windows.1} parent=1 // pred_region
      _
    $region37: #{cannolo_forward_windows.1} parent=1 // pred_fallthru
      _
    // Predicated region
    $region38: #{cannolo_forward_windows.1} parent=1 // pred_check
      _
    $region39: #{cannolo_forward_windows.1} parent=1 // pred_check_branch
      %44 = sbr.rel (0) target = $region41
    $region40: #{cannolo_forward_windows.1} parent=1 // pred_region
      %45 = dma.done [#allocation6], 1024
    $region41: #{cannolo_forward_windows.1} parent=1 // pred_fallthru
      _
    %v47 = vld [vmem:[%s0] sm:$0xf]
    %v48 = vld [vmem:[%s0 + $0x4] sm:$0xf]
    %v49 = vld [vmem:[%s0 + $0x8] sm:$0xf]
    %v50 = vld [vmem:[%s0 + $0xc] sm:$0xf]
    %v51 = vld [vmem:[%s0 + $0x10] sm:$0xf]
    %v52 = vld [vmem:[%s0 + $0x14] sm:$0xf]
    %v53 = vld [vmem:[%s0 + $0x18] sm:$0xf]
    %v54 = vld [vmem:[%s0 + $0x1c] sm:$0xf]
    %v55 = vld [vmem:[%s0 + $0x20] sm:$0xf]
    %v56 = vld [vmem:[%s0 + $0x24] sm:$0xf]
    %v57 = vld [vmem:[%s0 + $0x28] sm:$0xf]
    %v58 = vld [vmem:[%s0 + $0x2c] sm:$0xf]
    %v59 = vld [vmem:[%s0 + $0x30] sm:$0xf]
    %v60 = vld [vmem:[%s0 + $0x34] sm:$0xf]
    %v61 = vld [vmem:[%s0 + $0x38] sm:$0xf]
    %v62 = vld [vmem:[%s0 + $0x3c] sm:$0xf]
    %v63 = vld [vmem:[%s0 + $0x40] sm:$0xf]
    %v64 = vld [vmem:[%s0 + $0x44] sm:$0xf]
    %v65 = vld [vmem:[%s0 + $0x48] sm:$0xf]
    %v66 = vld [vmem:[%s0 + $0x4c] sm:$0xf]
    %v67 = vld [vmem:[%s0 + $0x50] sm:$0xf]
    %v68 = vld [vmem:[%s0 + $0x54] sm:$0xf]
    %v69 = vld [vmem:[%s0 + $0x58] sm:$0xf]
    %v70 = vld [vmem:[%s0 + $0x5c] sm:$0xf]
    %v71 = vld [vmem:[%s0 + $0x60] sm:$0xf]
    %v72 = vld [vmem:[%s0 + $0x64] sm:$0xf]
    %v73 = vld [vmem:[%s0 + $0x68] sm:$0xf]
    %v74 = vld [vmem:[%s0 + $0x6c] sm:$0xf]
    %v75 = vld [vmem:[%s0 + $0x70] sm:$0xf]
    %v76 = vld [vmem:[%s0 + $0x74] sm:$0xf]
    %v77 = vld [vmem:[%s0 + $0x78] sm:$0xf]
    %v78 = vld [vmem:[%s0 + $0x7c] sm:$0xf]
    %v79 = vld [vmem:[%s1] sm:$0xff]
    %v80 = vld [vmem:[%s1 + $0x8] sm:$0xff]
    %v81 = vld [vmem:[%s1 + $0x10] sm:$0xff]
    %v82 = vld [vmem:[%s1 + $0x18] sm:$0xff]
    %v83 = vld [vmem:[%s1 + $0x20] sm:$0xff]
    %v84 = vld [vmem:[%s1 + $0x28] sm:$0xff]
    %v85 = vld [vmem:[%s1 + $0x30] sm:$0xff]
    %v86 = vld [vmem:[%s1 + $0x38] sm:$0xff]
    %v87 = vld [vmem:[%s2] sm:$0x3]
    %v89 = vlaneseq
    %v90 = vshrl.u32 %v89, 7
    %v91 = vsub.s32 0, %v90
    %v92 = vrot.slane %v87, %v91
    %v93 = vlaneseq
    %v94 = vshrl.u32 %v93, 7
    %v95 = vsub.s32 1, %v94
    %v96 = vrot.slane %v87, %v95
    %v131 = vunpack.c.l.b16 %v47
    %v132 = vunpack.c.l.b16 %v48
    %v133 = vunpack.c.l.b16 %v49
    %v134 = vunpack.c.l.b16 %v50
    %v135 = vunpack.c.l.b16 %v51
    %v136 = vunpack.c.l.b16 %v52
    %v137 = vunpack.c.l.b16 %v53
    %v138 = vunpack.c.l.b16 %v54
    %v139 = vunpack.c.l.b16 %v55
    %v140 = vunpack.c.l.b16 %v56
    %v141 = vunpack.c.l.b16 %v57
    %v142 = vunpack.c.l.b16 %v58
    %v143 = vunpack.c.l.b16 %v59
    %v144 = vunpack.c.l.b16 %v60
    %v145 = vunpack.c.l.b16 %v61
    %v146 = vunpack.c.l.b16 %v62
    %v147 = vunpack.c.l.b16 %v63
    %v148 = vunpack.c.l.b16 %v64
    %v149 = vunpack.c.l.b16 %v65
    %v150 = vunpack.c.l.b16 %v66
    %v151 = vunpack.c.l.b16 %v67
    %v152 = vunpack.c.l.b16 %v68
    %v153 = vunpack.c.l.b16 %v69
    %v154 = vunpack.c.l.b16 %v70
    %v155 = vunpack.c.l.b16 %v71
    %v156 = vunpack.c.l.b16 %v72
    %v157 = vunpack.c.l.b16 %v73
    %v158 = vunpack.c.l.b16 %v74
    %v159 = vunpack.c.l.b16 %v75
    %v160 = vunpack.c.l.b16 %v76
    %v161 = vunpack.c.l.b16 %v77
    %v162 = vunpack.c.l.b16 %v78
    %v163 = vpack.c.b16 %v132, %v131
    %v164 = vpack.c.b16 %v134, %v133
    %v165 = vpack.c.b16 %v136, %v135
    %v166 = vpack.c.b16 %v138, %v137
    %v167 = vpack.c.b16 %v140, %v139
    %v168 = vpack.c.b16 %v142, %v141
    %v169 = vpack.c.b16 %v144, %v143
    %v170 = vpack.c.b16 %v146, %v145
    %v171 = vpack.c.b16 %v148, %v147
    %v172 = vpack.c.b16 %v150, %v149
    %v173 = vpack.c.b16 %v152, %v151
    %v174 = vpack.c.b16 %v154, %v153
    %v175 = vpack.c.b16 %v156, %v155
    %v176 = vpack.c.b16 %v158, %v157
    %v177 = vpack.c.b16 %v160, %v159
    %v178 = vpack.c.b16 %v162, %v161
    %v187 = vunpack.c.l.b16 %v79
    %v188 = vunpack.c.h.b16 %v79
    %v189 = vunpack.c.l.b16 %v80
    %v190 = vunpack.c.h.b16 %v80
    %v191 = vunpack.c.l.b16 %v81
    %v192 = vunpack.c.h.b16 %v81
    %v193 = vunpack.c.l.b16 %v82
    %v194 = vunpack.c.h.b16 %v82
    %v195 = vunpack.c.l.b16 %v83
    %v196 = vunpack.c.h.b16 %v83
    %v197 = vunpack.c.l.b16 %v84
    %v198 = vunpack.c.h.b16 %v84
    %v199 = vunpack.c.l.b16 %v85
    %v200 = vunpack.c.h.b16 %v85
    %v201 = vunpack.c.l.b16 %v86
    %v202 = vunpack.c.h.b16 %v86
    %v203 = vpack.c.b16 %v189, %v187
    %v204 = vpack.c.b16 %v190, %v188
    %v205 = vpack.c.b16 %v193, %v191
    %v206 = vpack.c.b16 %v194, %v192
    %v207 = vpack.c.b16 %v197, %v195
    %v208 = vpack.c.b16 %v198, %v196
    %v209 = vpack.c.b16 %v201, %v199
    %v210 = vpack.c.b16 %v202, %v200
    %vm219 = vcmask 523264
    %v221 = vsel %vm219, %v163, 0
    %v224 = vsel %vm219, %v164, 0
    %v227 = vsel %vm219, %v165, 0
    %v230 = vsel %vm219, %v166, 0
    %v233 = vsel %vm219, %v167, 0
    %v236 = vsel %vm219, %v168, 0
    %v239 = vsel %vm219, %v169, 0
    %v242 = vsel %vm219, %v170, 0
    %v245 = vsel %vm219, %v171, 0
    %v248 = vsel %vm219, %v172, 0
    %v251 = vsel %vm219, %v173, 0
    %v254 = vsel %vm219, %v174, 0
    %v257 = vsel %vm219, %v175, 0
    %v260 = vsel %vm219, %v176, 0
    %v263 = vsel %vm219, %v177, 0
    %v266 = vsel %vm219, %v178, 0
    %268 = vmatprep.subr.bf16.mxu0 0
    %269 = vmatpush1.bf16.msra.mxu0 0
    %270 = vmatprep.subr.bf16.mxu0 0
    %271 = vmatpush1.bf16.msra.mxu0 0
    %272 = vmatprep.subr.bf16.mxu0 0
    %273 = vmatpush1.bf16.msra.mxu0 0
    %274 = vmatprep.subr.bf16.mxu0 0
    %275 = vmatpush1.bf16.msra.mxu0 0
    %276 = vmatprep.subr.bf16.mxu0 %v210
    %277 = vmatpush1.bf16.msra.mxu0 %v209
    %278 = vmatprep.subr.bf16.mxu0 %v208
    %279 = vmatpush1.bf16.msra.mxu0 %v207
    %280 = vmatprep.subr.bf16.mxu0 %v206
    %281 = vmatpush1.bf16.msra.mxu0 %v205
    %282 = vmatprep.subr.bf16.mxu0 %v204
    %283 = vmatpush1.bf16.msra.mxu0 %v203
    %284 = vmatprep.subr.bf16.mxu0 0
    %285 = vmatpush2.bf16.msra.mxu0 0
    %286 = vmatprep.subr.bf16.mxu0 0
    %287 = vmatpush2.bf16.msra.mxu0 0
    %288 = vmatprep.subr.bf16.mxu0 0
    %289 = vmatpush2.bf16.msra.mxu0 0
    %290 = vmatprep.subr.bf16.mxu0 0
    %291 = vmatpush2.bf16.msra.mxu0 0
    %292 = vmatprep.subr.bf16.mxu0 0
    %293 = vmatpush2.bf16.msra.mxu0 0
    %294 = vmatprep.subr.bf16.mxu0 0
    %295 = vmatpush2.bf16.msra.mxu0 0
    %296 = vmatprep.subr.bf16.mxu0 0
    %297 = vmatpush2.bf16.msra.mxu0 0
    %298 = vmatprep.subr.bf16.mxu0 0
    %299 = vmatpush2.bf16.msra.mxu0 0
    %300 = vmatprep.mubr.bf16.mxu0 0
    %301 = vmatmul.mubr.bf16.gmra.mxu0 %v221
    %v302 = vpop.f32.mrf.mxu0
    %v303 = vadd.f32 %v92, %v302
    %v304 = vpop.f32.mrf.mxu0
    %v305 = vadd.f32 %v96, %v304
    %v306 = vpop.f32.mrf.mxu0
    %v307 = vadd.f32 %v92, %v306
    %v308 = vpop.f32.mrf.mxu0
    %v309 = vadd.f32 %v96, %v308
    %310 = vmatprep.mubr.bf16.mxu0 0
    %311 = vmatmul.mubr.bf16.gmra.mxu0 %v224
    %v312 = vpop.f32.mrf.mxu0
    %v313 = vadd.f32 %v92, %v312
    %v314 = vpop.f32.mrf.mxu0
    %v315 = vadd.f32 %v96, %v314
    %v316 = vpop.f32.mrf.mxu0
    %v317 = vadd.f32 %v92, %v316
    %v318 = vpop.f32.mrf.mxu0
    %v319 = vadd.f32 %v96, %v318
    %320 = vmatprep.mubr.bf16.mxu0 0
    %321 = vmatmul.mubr.bf16.gmra.mxu0 %v227
    %v322 = vpop.f32.mrf.mxu0
    %v323 = vadd.f32 %v92, %v322
    %v324 = vpop.f32.mrf.mxu0
    %v325 = vadd.f32 %v96, %v324
    %v326 = vpop.f32.mrf.mxu0
    %v327 = vadd.f32 %v92, %v326
    %v328 = vpop.f32.mrf.mxu0
    %v329 = vadd.f32 %v96, %v328
    %330 = vmatprep.mubr.bf16.mxu0 0
    %331 = vmatmul.mubr.bf16.gmra.mxu0 %v230
    %v332 = vpop.f32.mrf.mxu0
    %v333 = vadd.f32 %v92, %v332
    %v334 = vpop.f32.mrf.mxu0
    %v335 = vadd.f32 %v96, %v334
    %v336 = vpop.f32.mrf.mxu0
    %v337 = vadd.f32 %v92, %v336
    %v338 = vpop.f32.mrf.mxu0
    %v339 = vadd.f32 %v96, %v338
    %340 = vmatprep.mubr.bf16.mxu0 0
    %341 = vmatmul.mubr.bf16.gmra.mxu0 %v233
    %v342 = vpop.f32.mrf.mxu0
    %v343 = vadd.f32 %v92, %v342
    %v344 = vpop.f32.mrf.mxu0
    %v345 = vadd.f32 %v96, %v344
    %v346 = vpop.f32.mrf.mxu0
    %v347 = vadd.f32 %v92, %v346
    %v348 = vpop.f32.mrf.mxu0
    %v349 = vadd.f32 %v96, %v348
    %350 = vmatprep.mubr.bf16.mxu0 0
    %351 = vmatmul.mubr.bf16.gmra.mxu0 %v236
    %v352 = vpop.f32.mrf.mxu0
    %v353 = vadd.f32 %v92, %v352
    %v354 = vpop.f32.mrf.mxu0
    %v355 = vadd.f32 %v96, %v354
    %v356 = vpop.f32.mrf.mxu0
    %v357 = vadd.f32 %v92, %v356
    %v358 = vpop.f32.mrf.mxu0
    %v359 = vadd.f32 %v96, %v358
    %360 = vmatprep.mubr.bf16.mxu0 0
    %361 = vmatmul.mubr.bf16.gmra.mxu0 %v239
    %v362 = vpop.f32.mrf.mxu0
    %v363 = vadd.f32 %v92, %v362
    %v364 = vpop.f32.mrf.mxu0
    %v365 = vadd.f32 %v96, %v364
    %v366 = vpop.f32.mrf.mxu0
    %v367 = vadd.f32 %v92, %v366
    %v368 = vpop.f32.mrf.mxu0
    %v369 = vadd.f32 %v96, %v368
    %370 = vmatprep.mubr.bf16.mxu0 0
    %371 = vmatmul.mubr.bf16.gmra.mxu0 %v242
    %v372 = vpop.f32.mrf.mxu0
    %v373 = vadd.f32 %v92, %v372
    %v374 = vpop.f32.mrf.mxu0
    %v375 = vadd.f32 %v96, %v374
    %v376 = vpop.f32.mrf.mxu0
    %v377 = vadd.f32 %v92, %v376
    %v378 = vpop.f32.mrf.mxu0
    %v379 = vadd.f32 %v96, %v378
    %380 = vmatprep.mubr.bf16.mxu0 0
    %381 = vmatmul.mubr.bf16.gmra.mxu0 %v245
    %v382 = vpop.f32.mrf.mxu0
    %v383 = vadd.f32 %v92, %v382
    %v384 = vpop.f32.mrf.mxu0
    %v385 = vadd.f32 %v96, %v384
    %v386 = vpop.f32.mrf.mxu0
    %v387 = vadd.f32 %v92, %v386
    %v388 = vpop.f32.mrf.mxu0
    %v389 = vadd.f32 %v96, %v388
    %390 = vmatprep.mubr.bf16.mxu0 0
    %391 = vmatmul.mubr.bf16.gmra.mxu0 %v248
    %v392 = vpop.f32.mrf.mxu0
    %v393 = vadd.f32 %v92, %v392
    %v394 = vpop.f32.mrf.mxu0
    %v395 = vadd.f32 %v96, %v394
    %v396 = vpop.f32.mrf.mxu0
    %v397 = vadd.f32 %v92, %v396
    %v398 = vpop.f32.mrf.mxu0
    %v399 = vadd.f32 %v96, %v398
    %400 = vmatprep.mubr.bf16.mxu0 0
    %401 = vmatmul.mubr.bf16.gmra.mxu0 %v251
    %v402 = vpop.f32.mrf.mxu0
    %v403 = vadd.f32 %v92, %v402
    %v404 = vpop.f32.mrf.mxu0
    %v405 = vadd.f32 %v96, %v404
    %v406 = vpop.f32.mrf.mxu0
    %v407 = vadd.f32 %v92, %v406
    %v408 = vpop.f32.mrf.mxu0
    %v409 = vadd.f32 %v96, %v408
    %410 = vmatprep.mubr.bf16.mxu0 0
    %411 = vmatmul.mubr.bf16.gmra.mxu0 %v254
    %v412 = vpop.f32.mrf.mxu0
    %v413 = vadd.f32 %v92, %v412
    %v414 = vpop.f32.mrf.mxu0
    %v415 = vadd.f32 %v96, %v414
    %v416 = vpop.f32.mrf.mxu0
    %v417 = vadd.f32 %v92, %v416
    %v418 = vpop.f32.mrf.mxu0
    %v419 = vadd.f32 %v96, %v418
    %420 = vmatprep.mubr.bf16.mxu0 0
    %421 = vmatmul.mubr.bf16.gmra.mxu0 %v257
    %v422 = vpop.f32.mrf.mxu0
    %v423 = vadd.f32 %v92, %v422
    %v424 = vpop.f32.mrf.mxu0
    %v425 = vadd.f32 %v96, %v424
    %v426 = vpop.f32.mrf.mxu0
    %v427 = vadd.f32 %v92, %v426
    %v428 = vpop.f32.mrf.mxu0
    %v429 = vadd.f32 %v96, %v428
    %430 = vmatprep.mubr.bf16.mxu0 0
    %431 = vmatmul.mubr.bf16.gmra.mxu0 %v260
    %v432 = vpop.f32.mrf.mxu0
    %v433 = vadd.f32 %v92, %v432
    %v434 = vpop.f32.mrf.mxu0
    %v435 = vadd.f32 %v96, %v434
    %v436 = vpop.f32.mrf.mxu0
    %v437 = vadd.f32 %v92, %v436
    %v438 = vpop.f32.mrf.mxu0
    %v439 = vadd.f32 %v96, %v438
    %440 = vmatprep.mubr.bf16.mxu0 0
    %441 = vmatmul.mubr.bf16.gmra.mxu0 %v263
    %v442 = vpop.f32.mrf.mxu0
    %v443 = vadd.f32 %v92, %v442
    %v444 = vpop.f32.mrf.mxu0
    %v445 = vadd.f32 %v96, %v444
    %v446 = vpop.f32.mrf.mxu0
    %v447 = vadd.f32 %v92, %v446
    %v448 = vpop.f32.mrf.mxu0
    %v449 = vadd.f32 %v96, %v448
    %450 = vmatprep.mubr.bf16.mxu0 0
    %451 = vmatmul.mubr.bf16.gmra.mxu0 %v266
    %v452 = vpop.f32.mrf.mxu0
    %v453 = vadd.f32 %v92, %v452
    %v454 = vpop.f32.mrf.mxu0
    %v455 = vadd.f32 %v96, %v454
    %v456 = vpop.f32.mrf.mxu0
    %v457 = vadd.f32 %v92, %v456
    %v458 = vpop.f32.mrf.mxu0
    %v459 = vadd.f32 %v96, %v458
    %460 = vdwg.mxu0
    %v461 = vtanh.pop %v303
    %v462 = vtanh.pop %v305
    %v463 = vtanh.pop %v307
    %v464 = vtanh.pop %v309
    %v465 = vtanh.pop %v313
    %v466 = vtanh.pop %v315
    %v467 = vtanh.pop %v317
    %v468 = vtanh.pop %v319
    %v469 = vtanh.pop %v323
    %v470 = vtanh.pop %v325
    %v471 = vtanh.pop %v327
    %v472 = vtanh.pop %v329
    %v473 = vtanh.pop %v333
    %v474 = vtanh.pop %v335
    %v475 = vtanh.pop %v337
    %v476 = vtanh.pop %v339
    %v477 = vtanh.pop %v343
    %v478 = vtanh.pop %v345
    %v479 = vtanh.pop %v347
    %v480 = vtanh.pop %v349
    %v481 = vtanh.pop %v353
    %v482 = vtanh.pop %v355
    %v483 = vtanh.pop %v357
    %v484 = vtanh.pop %v359
    %v485 = vtanh.pop %v363
    %v486 = vtanh.pop %v365
    %v487 = vtanh.pop %v367
    %v488 = vtanh.pop %v369
    %v489 = vtanh.pop %v373
    %v490 = vtanh.pop %v375
    %v491 = vtanh.pop %v377
    %v492 = vtanh.pop %v379
    %v493 = vtanh.pop %v383
    %v494 = vtanh.pop %v385
    %v495 = vtanh.pop %v387
    %v496 = vtanh.pop %v389
    %v497 = vtanh.pop %v393
    %v498 = vtanh.pop %v395
    %v499 = vtanh.pop %v397
    %v500 = vtanh.pop %v399
    %v501 = vtanh.pop %v403
    %v502 = vtanh.pop %v405
    %v503 = vtanh.pop %v407
    %v504 = vtanh.pop %v409
    %v505 = vtanh.pop %v413
    %v506 = vtanh.pop %v415
    %v507 = vtanh.pop %v417
    %v508 = vtanh.pop %v419
    %v509 = vtanh.pop %v423
    %v510 = vtanh.pop %v425
    %v511 = vtanh.pop %v427
    %v512 = vtanh.pop %v429
    %v513 = vtanh.pop %v433
    %v514 = vtanh.pop %v435
    %v515 = vtanh.pop %v437
    %v516 = vtanh.pop %v439
    %v517 = vtanh.pop %v443
    %v518 = vtanh.pop %v445
    %v519 = vtanh.pop %v447
    %v520 = vtanh.pop %v449
    %v521 = vtanh.pop %v453
    %v522 = vtanh.pop %v455
    %v523 = vtanh.pop %v457
    %v524 = vtanh.pop %v459
    %v525 = vpack.c.bf16 %v463, %v461
    %v526 = vpack.c.bf16 %v464, %v462
    %v527 = vpack.c.bf16 %v467, %v465
    %v528 = vpack.c.bf16 %v468, %v466
    %v529 = vpack.c.bf16 %v471, %v469
    %v530 = vpack.c.bf16 %v472, %v470
    %v531 = vpack.c.bf16 %v475, %v473
    %v532 = vpack.c.bf16 %v476, %v474
    %v533 = vpack.c.bf16 %v479, %v477
    %v534 = vpack.c.bf16 %v480, %v478
    %v535 = vpack.c.bf16 %v483, %v481
    %v536 = vpack.c.bf16 %v484, %v482
    %v537 = vpack.c.bf16 %v487, %v485
    %v538 = vpack.c.bf16 %v488, %v486
    %v539 = vpack.c.bf16 %v491, %v489
    %v540 = vpack.c.bf16 %v492, %v490
    %v541 = vpack.c.bf16 %v495, %v493
    %v542 = vpack.c.bf16 %v496, %v494
    %v543 = vpack.c.bf16 %v499, %v497
    %v544 = vpack.c.bf16 %v500, %v498
    %v545 = vpack.c.bf16 %v503, %v501
    %v546 = vpack.c.bf16 %v504, %v502
    %v547 = vpack.c.bf16 %v507, %v505
    %v548 = vpack.c.bf16 %v508, %v506
    %v549 = vpack.c.bf16 %v511, %v509
    %v550 = vpack.c.bf16 %v512, %v510
    %v551 = vpack.c.bf16 %v515, %v513
    %v552 = vpack.c.bf16 %v516, %v514
    %v553 = vpack.c.bf16 %v519, %v517
    %v554 = vpack.c.bf16 %v520, %v518
    %v555 = vpack.c.bf16 %v523, %v521
    %v556 = vpack.c.bf16 %v524, %v522
    %v557 = vld [vmem:[%s3] sm:$0xff]
    %v558 = vld [vmem:[%s3 + $0x8] sm:$0xff]
    %v559 = vld [vmem:[%s3 + $0x10] sm:$0xff]
    %v560 = vld [vmem:[%s3 + $0x18] sm:$0xff]
    %v561 = vld [vmem:[%s3 + $0x20] sm:$0xff]
    %v562 = vld [vmem:[%s3 + $0x28] sm:$0xff]
    %v563 = vld [vmem:[%s3 + $0x30] sm:$0xff]
    %v564 = vld [vmem:[%s3 + $0x38] sm:$0xff]
    %v565 = vld [vmem:[%s3 + $0x40] sm:$0xff]
    %v566 = vld [vmem:[%s3 + $0x48] sm:$0xff]
    %v567 = vld [vmem:[%s3 + $0x50] sm:$0xff]
    %v568 = vld [vmem:[%s3 + $0x58] sm:$0xff]
    %v569 = vld [vmem:[%s3 + $0x60] sm:$0xff]
    %v570 = vld [vmem:[%s3 + $0x68] sm:$0xff]
    %v571 = vld [vmem:[%s3 + $0x70] sm:$0xff]
    %v572 = vld [vmem:[%s3 + $0x78] sm:$0xff]
    %v573 = vld [vmem:[%s3 + $0x80] sm:$0xff]
    %v574 = vld [vmem:[%s3 + $0x88] sm:$0xff]
    %v575 = vld [vmem:[%s3 + $0x90] sm:$0xff]
    %v576 = vld [vmem:[%s3 + $0x98] sm:$0xff]
    %v577 = vld [vmem:[%s3 + $0xa0] sm:$0xff]
    %v578 = vld [vmem:[%s3 + $0xa8] sm:$0xff]
    %v579 = vld [vmem:[%s3 + $0xb0] sm:$0xff]
    %v580 = vld [vmem:[%s3 + $0xb8] sm:$0xff]
    %v581 = vld [vmem:[%s3 + $0xc0] sm:$0xff]
    %v582 = vld [vmem:[%s3 + $0xc8] sm:$0xff]
    %v583 = vld [vmem:[%s3 + $0xd0] sm:$0xff]
    %v584 = vld [vmem:[%s3 + $0xd8] sm:$0xff]
    %v585 = vld [vmem:[%s3 + $0xe0] sm:$0xff]
    %v586 = vld [vmem:[%s3 + $0xe8] sm:$0xff]
    %v587 = vld [vmem:[%s3 + $0xf0] sm:$0xff]
    %v588 = vld [vmem:[%s3 + $0xf8] sm:$0xff]
    %v589 = vld [vmem:[%s3 + $0x100] sm:$0xff]
    %v590 = vld [vmem:[%s3 + $0x108] sm:$0xff]
    %v591 = vld [vmem:[%s3 + $0x110] sm:$0xff]
    %v592 = vld [vmem:[%s3 + $0x118] sm:$0xff]
    %v593 = vld [vmem:[%s3 + $0x120] sm:$0xff]
    %v594 = vld [vmem:[%s3 + $0x128] sm:$0xff]
    %v595 = vld [vmem:[%s3 + $0x130] sm:$0xff]
    %v596 = vld [vmem:[%s3 + $0x138] sm:$0xff]
    %v597 = vld [vmem:[%s3 + $0x140] sm:$0xff]
    %v598 = vld [vmem:[%s3 + $0x148] sm:$0xff]
    %v599 = vld [vmem:[%s3 + $0x150] sm:$0xff]
    %v600 = vld [vmem:[%s3 + $0x158] sm:$0xff]
    %v601 = vld [vmem:[%s3 + $0x160] sm:$0xff]
    %v602 = vld [vmem:[%s3 + $0x168] sm:$0xff]
    %v603 = vld [vmem:[%s3 + $0x170] sm:$0xff]
    %v604 = vld [vmem:[%s3 + $0x178] sm:$0xff]
    %v605 = vld [vmem:[%s3 + $0x180] sm:$0xff]
    %v606 = vld [vmem:[%s3 + $0x188] sm:$0xff]
    %v607 = vld [vmem:[%s3 + $0x190] sm:$0xff]
    %v608 = vld [vmem:[%s3 + $0x198] sm:$0xff]
    %v609 = vld [vmem:[%s3 + $0x1a0] sm:$0xff]
    %v610 = vld [vmem:[%s3 + $0x1a8] sm:$0xff]
    %v611 = vld [vmem:[%s3 + $0x1b0] sm:$0xff]
    %v612 = vld [vmem:[%s3 + $0x1b8] sm:$0xff]
    %v613 = vld [vmem:[%s3 + $0x1c0] sm:$0xff]
    %v614 = vld [vmem:[%s3 + $0x1c8] sm:$0xff]
    %v615 = vld [vmem:[%s3 + $0x1d0] sm:$0xff]
    %v616 = vld [vmem:[%s3 + $0x1d8] sm:$0xff]
    %v617 = vld [vmem:[%s3 + $0x1e0] sm:$0xff]
    %v618 = vld [vmem:[%s3 + $0x1e8] sm:$0xff]
    %v619 = vld [vmem:[%s3 + $0x1f0] sm:$0xff]
    %v620 = vld [vmem:[%s3 + $0x1f8] sm:$0xff]
    %v621 = vld [vmem:[%s6] sm:$0xf]
    %v623 = vlaneseq
    %v624 = vshrl.u32 %v623, 7
    %v625 = vsub.s32 0, %v624
    %v626 = vrot.slane %v621, %v625
    %v627 = vlaneseq
    %v628 = vshrl.u32 %v627, 7
    %v629 = vsub.s32 1, %v628
    %v630 = vrot.slane %v621, %v629
    %v631 = vlaneseq
    %v632 = vshrl.u32 %v631, 7
    %v633 = vsub.s32 2, %v632
    %v634 = vrot.slane %v621, %v633
    %v635 = vlaneseq
    %v636 = vshrl.u32 %v635, 7
    %v637 = vsub.s32 3, %v636
    %v638 = vrot.slane %v621, %v637
    %v707 = vunpack.c.l.b16 %v557
    %v708 = vunpack.c.h.b16 %v557
    %v709 = vunpack.c.l.b16 %v558
    %v710 = vunpack.c.h.b16 %v558
    %v711 = vunpack.c.l.b16 %v559
    %v712 = vunpack.c.h.b16 %v559
    %v713 = vunpack.c.l.b16 %v560
    %v714 = vunpack.c.h.b16 %v560
    %v715 = vunpack.c.l.b16 %v561
    %v716 = vunpack.c.h.b16 %v561
    %v717 = vunpack.c.l.b16 %v562
    %v718 = vunpack.c.h.b16 %v562
    %v719 = vunpack.c.l.b16 %v563
    %v720 = vunpack.c.h.b16 %v563
    %v721 = vunpack.c.l.b16 %v564
    %v722 = vunpack.c.h.b16 %v564
    %v723 = vunpack.c.l.b16 %v565
    %v724 = vunpack.c.h.b16 %v565
    %v725 = vunpack.c.l.b16 %v566
    %v726 = vunpack.c.h.b16 %v566
    %v727 = vunpack.c.l.b16 %v567
    %v728 = vunpack.c.h.b16 %v567
    %v729 = vunpack.c.l.b16 %v568
    %v730 = vunpack.c.h.b16 %v568
    %v731 = vunpack.c.l.b16 %v569
    %v732 = vunpack.c.h.b16 %v569
    %v733 = vunpack.c.l.b16 %v570
    %v734 = vunpack.c.h.b16 %v570
    %v735 = vunpack.c.l.b16 %v571
    %v736 = vunpack.c.h.b16 %v571
    %v737 = vunpack.c.l.b16 %v572
    %v738 = vunpack.c.h.b16 %v572
    %v739 = vunpack.c.l.b16 %v573
    %v740 = vunpack.c.h.b16 %v573
    %v741 = vunpack.c.l.b16 %v574
    %v742 = vunpack.c.h.b16 %v574
    %v743 = vunpack.c.l.b16 %v575
    %v744 = vunpack.c.h.b16 %v575
    %v745 = vunpack.c.l.b16 %v576
    %v746 = vunpack.c.h.b16 %v576
    %v747 = vunpack.c.l.b16 %v577
    %v748 = vunpack.c.h.b16 %v577
    %v749 = vunpack.c.l.b16 %v578
    %v750 = vunpack.c.h.b16 %v578
    %v751 = vunpack.c.l.b16 %v579
    %v752 = vunpack.c.h.b16 %v579
    %v753 = vunpack.c.l.b16 %v580
    %v754 = vunpack.c.h.b16 %v580
    %v755 = vunpack.c.l.b16 %v581
    %v756 = vunpack.c.h.b16 %v581
    %v757 = vunpack.c.l.b16 %v582
    %v758 = vunpack.c.h.b16 %v582
    %v759 = vunpack.c.l.b16 %v583
    %v760 = vunpack.c.h.b16 %v583
    %v761 = vunpack.c.l.b16 %v584
    %v762 = vunpack.c.h.b16 %v584
    %v763 = vunpack.c.l.b16 %v585
    %v764 = vunpack.c.h.b16 %v585
    %v765 = vunpack.c.l.b16 %v586
    %v766 = vunpack.c.h.b16 %v586
    %v767 = vunpack.c.l.b16 %v587
    %v768 = vunpack.c.h.b16 %v587
    %v769 = vunpack.c.l.b16 %v588
    %v770 = vunpack.c.h.b16 %v588
    %v771 = vunpack.c.l.b16 %v589
    %v772 = vunpack.c.h.b16 %v589
    %v773 = vunpack.c.l.b16 %v590
    %v774 = vunpack.c.h.b16 %v590
    %v775 = vunpack.c.l.b16 %v591
    %v776 = vunpack.c.h.b16 %v591
    %v777 = vunpack.c.l.b16 %v592
    %v778 = vunpack.c.h.b16 %v592
    %v779 = vunpack.c.l.b16 %v593
    %v780 = vunpack.c.h.b16 %v593
    %v781 = vunpack.c.l.b16 %v594
    %v782 = vunpack.c.h.b16 %v594
    %v783 = vunpack.c.l.b16 %v595
    %v784 = vunpack.c.h.b16 %v595
    %v785 = vunpack.c.l.b16 %v596
    %v786 = vunpack.c.h.b16 %v596
    %v787 = vunpack.c.l.b16 %v597
    %v788 = vunpack.c.h.b16 %v597
    %v789 = vunpack.c.l.b16 %v598
    %v790 = vunpack.c.h.b16 %v598
    %v791 = vunpack.c.l.b16 %v599
    %v792 = vunpack.c.h.b16 %v599
    %v793 = vunpack.c.l.b16 %v600
    %v794 = vunpack.c.h.b16 %v600
    %v795 = vunpack.c.l.b16 %v601
    %v796 = vunpack.c.h.b16 %v601
    %v797 = vunpack.c.l.b16 %v602
    %v798 = vunpack.c.h.b16 %v602
    %v799 = vunpack.c.l.b16 %v603
    %v800 = vunpack.c.h.b16 %v603
    %v801 = vunpack.c.l.b16 %v604
    %v802 = vunpack.c.h.b16 %v604
    %v803 = vunpack.c.l.b16 %v605
    %v804 = vunpack.c.h.b16 %v605
    %v805 = vunpack.c.l.b16 %v606
    %v806 = vunpack.c.h.b16 %v606
    %v807 = vunpack.c.l.b16 %v607
    %v808 = vunpack.c.h.b16 %v607
    %v809 = vunpack.c.l.b16 %v608
    %v810 = vunpack.c.h.b16 %v608
    %v811 = vunpack.c.l.b16 %v609
    %v812 = vunpack.c.h.b16 %v609
    %v813 = vunpack.c.l.b16 %v610
    %v814 = vunpack.c.h.b16 %v610
    %v815 = vunpack.c.l.b16 %v611
    %v816 = vunpack.c.h.b16 %v611
    %v817 = vunpack.c.l.b16 %v612
    %v818 = vunpack.c.h.b16 %v612
    %v819 = vunpack.c.l.b16 %v613
    %v820 = vunpack.c.h.b16 %v613
    %v821 = vunpack.c.l.b16 %v614
    %v822 = vunpack.c.h.b16 %v614
    %v823 = vunpack.c.l.b16 %v615
    %v824 = vunpack.c.h.b16 %v615
    %v825 = vunpack.c.l.b16 %v616
    %v826 = vunpack.c.h.b16 %v616
    %v827 = vunpack.c.l.b16 %v617
    %v828 = vunpack.c.h.b16 %v617
    %v829 = vunpack.c.l.b16 %v618
    %v830 = vunpack.c.h.b16 %v618
    %v831 = vunpack.c.l.b16 %v619
    %v832 = vunpack.c.h.b16 %v619
    %v833 = vunpack.c.l.b16 %v620
    %v834 = vunpack.c.h.b16 %v620
    %v835 = vpack.c.b16 %v711, %v707
    %v836 = vpack.c.b16 %v712, %v708
    %v837 = vpack.c.b16 %v713, %v709
    %v838 = vpack.c.b16 %v714, %v710
    %v839 = vpack.c.b16 %v719, %v715
    %v840 = vpack.c.b16 %v720, %v716
    %v841 = vpack.c.b16 %v721, %v717
    %v842 = vpack.c.b16 %v722, %v718
    %v843 = vpack.c.b16 %v727, %v723
    %v844 = vpack.c.b16 %v728, %v724
    %v845 = vpack.c.b16 %v729, %v725
    %v846 = vpack.c.b16 %v730, %v726
    %v847 = vpack.c.b16 %v735, %v731
    %v848 = vpack.c.b16 %v736, %v732
    %v849 = vpack.c.b16 %v737, %v733
    %v850 = vpack.c.b16 %v738, %v734
    %v851 = vpack.c.b16 %v743, %v739
    %v852 = vpack.c.b16 %v744, %v740
    %v853 = vpack.c.b16 %v745, %v741
    %v854 = vpack.c.b16 %v746, %v742
    %v855 = vpack.c.b16 %v751, %v747
    %v856 = vpack.c.b16 %v752, %v748
    %v857 = vpack.c.b16 %v753, %v749
    %v858 = vpack.c.b16 %v754, %v750
    %v859 = vpack.c.b16 %v759, %v755
    %v860 = vpack.c.b16 %v760, %v756
    %v861 = vpack.c.b16 %v761, %v757
    %v862 = vpack.c.b16 %v762, %v758
    %v863 = vpack.c.b16 %v767, %v763
    %v864 = vpack.c.b16 %v768, %v764
    %v865 = vpack.c.b16 %v769, %v765
    %v866 = vpack.c.b16 %v770, %v766
    %v867 = vpack.c.b16 %v775, %v771
    %v868 = vpack.c.b16 %v776, %v772
    %v869 = vpack.c.b16 %v777, %v773
    %v870 = vpack.c.b16 %v778, %v774
    %v871 = vpack.c.b16 %v783, %v779
    %v872 = vpack.c.b16 %v784, %v780
    %v873 = vpack.c.b16 %v785, %v781
    %v874 = vpack.c.b16 %v786, %v782
    %v875 = vpack.c.b16 %v791, %v787
    %v876 = vpack.c.b16 %v792, %v788
    %v877 = vpack.c.b16 %v793, %v789
    %v878 = vpack.c.b16 %v794, %v790
    %v879 = vpack.c.b16 %v799, %v795
    %v880 = vpack.c.b16 %v800, %v796
    %v881 = vpack.c.b16 %v801, %v797
    %v882 = vpack.c.b16 %v802, %v798
    %v883 = vpack.c.b16 %v807, %v803
    %v884 = vpack.c.b16 %v808, %v804
    %v885 = vpack.c.b16 %v809, %v805
    %v886 = vpack.c.b16 %v810, %v806
    %v887 = vpack.c.b16 %v815, %v811
    %v888 = vpack.c.b16 %v816, %v812
    %v889 = vpack.c.b16 %v817, %v813
    %v890 = vpack.c.b16 %v818, %v814
    %v891 = vpack.c.b16 %v823, %v819
    %v892 = vpack.c.b16 %v824, %v820
    %v893 = vpack.c.b16 %v825, %v821
    %v894 = vpack.c.b16 %v826, %v822
    %v895 = vpack.c.b16 %v831, %v827
    %v896 = vpack.c.b16 %v832, %v828
    %v897 = vpack.c.b16 %v833, %v829
    %v898 = vpack.c.b16 %v834, %v830
    %963 = vmatprep.subr.bf16.mxu0 %v864
    %964 = vmatpush1.bf16.msra.mxu0 %v863
    %965 = vmatprep.subr.bf16.mxu0 %v860
    %966 = vmatpush1.bf16.msra.mxu0 %v859
    %967 = vmatprep.subr.bf16.mxu0 %v856
    %968 = vmatpush1.bf16.msra.mxu0 %v855
    %969 = vmatprep.subr.bf16.mxu0 %v852
    %970 = vmatpush1.bf16.msra.mxu0 %v851
    %971 = vmatprep.subr.bf16.mxu0 %v848
    %972 = vmatpush1.bf16.msra.mxu0 %v847
    %973 = vmatprep.subr.bf16.mxu0 %v844
    %974 = vmatpush1.bf16.msra.mxu0 %v843
    %975 = vmatprep.subr.bf16.mxu0 %v840
    %976 = vmatpush1.bf16.msra.mxu0 %v839
    %977 = vmatprep.subr.bf16.mxu0 %v836
    %978 = vmatpush1.bf16.msra.mxu0 %v835
    %979 = vmatprep.subr.bf16.mxu0 %v896
    %980 = vmatpush2.bf16.msra.mxu0 %v895
    %981 = vmatprep.subr.bf16.mxu0 %v892
    %982 = vmatpush2.bf16.msra.mxu0 %v891
    %983 = vmatprep.subr.bf16.mxu0 %v888
    %984 = vmatpush2.bf16.msra.mxu0 %v887
    %985 = vmatprep.subr.bf16.mxu0 %v884
    %986 = vmatpush2.bf16.msra.mxu0 %v883
    %987 = vmatprep.subr.bf16.mxu0 %v880
    %988 = vmatpush2.bf16.msra.mxu0 %v879
    %989 = vmatprep.subr.bf16.mxu0 %v876
    %990 = vmatpush2.bf16.msra.mxu0 %v875
    %991 = vmatprep.subr.bf16.mxu0 %v872
    %992 = vmatpush2.bf16.msra.mxu0 %v871
    %993 = vmatprep.subr.bf16.mxu0 %v868
    %994 = vmatpush2.bf16.msra.mxu0 %v867
    %995 = vmatprep.mubr.bf16.mxu0 %v526
    %996 = vmatmul.mubr.bf16.gmra.mxu0 %v525
    %v997 = vpop.f32.mrf.mxu0
    %v998 = vadd.f32 %v626, %v997
    %v999 = vpop.f32.mrf.mxu0
    %v1000 = vadd.f32 %v630, %v999
    %v1001 = vpop.f32.mrf.mxu0
    %v1002 = vadd.f32 %v626, %v1001
    %v1003 = vpop.f32.mrf.mxu0
    %v1004 = vadd.f32 %v630, %v1003
    %1005 = vmatprep.mubr.bf16.mxu0 %v528
    %1006 = vmatmul.mubr.bf16.gmra.mxu0 %v527
    %v1007 = vpop.f32.mrf.mxu0
    %v1008 = vadd.f32 %v626, %v1007
    %v1009 = vpop.f32.mrf.mxu0
    %v1010 = vadd.f32 %v630, %v1009
    %v1011 = vpop.f32.mrf.mxu0
    %v1012 = vadd.f32 %v626, %v1011
    %v1013 = vpop.f32.mrf.mxu0
    %v1014 = vadd.f32 %v630, %v1013
    %1015 = vmatprep.mubr.bf16.mxu0 %v530
    %1016 = vmatmul.mubr.bf16.gmra.mxu0 %v529
    %v1017 = vpop.f32.mrf.mxu0
    %v1018 = vadd.f32 %v626, %v1017
    %v1019 = vpop.f32.mrf.mxu0
    %v1020 = vadd.f32 %v630, %v1019
    %v1021 = vpop.f32.mrf.mxu0
    %v1022 = vadd.f32 %v626, %v1021
    %v1023 = vpop.f32.mrf.mxu0
    %v1024 = vadd.f32 %v630, %v1023
    %1025 = vmatprep.mubr.bf16.mxu0 %v532
    %1026 = vmatmul.mubr.bf16.gmra.mxu0 %v531
    %v1027 = vpop.f32.mrf.mxu0
    %v1028 = vadd.f32 %v626, %v1027
    %v1029 = vpop.f32.mrf.mxu0
    %v1030 = vadd.f32 %v630, %v1029
    %v1031 = vpop.f32.mrf.mxu0
    %v1032 = vadd.f32 %v626, %v1031
    %v1033 = vpop.f32.mrf.mxu0
    %v1034 = vadd.f32 %v630, %v1033
    %1035 = vmatprep.mubr.bf16.mxu0 %v534
    %1036 = vmatmul.mubr.bf16.gmra.mxu0 %v533
    %v1037 = vpop.f32.mrf.mxu0
    %v1038 = vadd.f32 %v626, %v1037
    %v1039 = vpop.f32.mrf.mxu0
    %v1040 = vadd.f32 %v630, %v1039
    %v1041 = vpop.f32.mrf.mxu0
    %v1042 = vadd.f32 %v626, %v1041
    %v1043 = vpop.f32.mrf.mxu0
    %v1044 = vadd.f32 %v630, %v1043
    %1045 = vmatprep.mubr.bf16.mxu0 %v536
    %1046 = vmatmul.mubr.bf16.gmra.mxu0 %v535
    %v1047 = vpop.f32.mrf.mxu0
    %v1048 = vadd.f32 %v626, %v1047
    %v1049 = vpop.f32.mrf.mxu0
    %v1050 = vadd.f32 %v630, %v1049
    %v1051 = vpop.f32.mrf.mxu0
    %v1052 = vadd.f32 %v626, %v1051
    %v1053 = vpop.f32.mrf.mxu0
    %v1054 = vadd.f32 %v630, %v1053
    %1055 = vmatprep.mubr.bf16.mxu0 %v538
    %1056 = vmatmul.mubr.bf16.gmra.mxu0 %v537
    %v1057 = vpop.f32.mrf.mxu0
    %v1058 = vadd.f32 %v626, %v1057
    %v1059 = vpop.f32.mrf.mxu0
    %v1060 = vadd.f32 %v630, %v1059
    %v1061 = vpop.f32.mrf.mxu0
    %v1062 = vadd.f32 %v626, %v1061
    %v1063 = vpop.f32.mrf.mxu0
    %v1064 = vadd.f32 %v630, %v1063
    %1065 = vmatprep.mubr.bf16.mxu0 %v540
    %1066 = vmatmul.mubr.bf16.gmra.mxu0 %v539
    %v1067 = vpop.f32.mrf.mxu0
    %v1068 = vadd.f32 %v626, %v1067
    %v1069 = vpop.f32.mrf.mxu0
    %v1070 = vadd.f32 %v630, %v1069
    %v1071 = vpop.f32.mrf.mxu0
    %v1072 = vadd.f32 %v626, %v1071
    %v1073 = vpop.f32.mrf.mxu0
    %v1074 = vadd.f32 %v630, %v1073
    %1075 = vmatprep.mubr.bf16.mxu0 %v542
    %1076 = vmatmul.mubr.bf16.gmra.mxu0 %v541
    %v1077 = vpop.f32.mrf.mxu0
    %v1078 = vadd.f32 %v626, %v1077
    %v1079 = vpop.f32.mrf.mxu0
    %v1080 = vadd.f32 %v630, %v1079
    %v1081 = vpop.f32.mrf.mxu0
    %v1082 = vadd.f32 %v626, %v1081
    %v1083 = vpop.f32.mrf.mxu0
    %v1084 = vadd.f32 %v630, %v1083
    %1085 = vmatprep.mubr.bf16.mxu0 %v544
    %1086 = vmatmul.mubr.bf16.gmra.mxu0 %v543
    %v1087 = vpop.f32.mrf.mxu0
    %v1088 = vadd.f32 %v626, %v1087
    %v1089 = vpop.f32.mrf.mxu0
    %v1090 = vadd.f32 %v630, %v1089
    %v1091 = vpop.f32.mrf.mxu0
    %v1092 = vadd.f32 %v626, %v1091
    %v1093 = vpop.f32.mrf.mxu0
    %v1094 = vadd.f32 %v630, %v1093
    %1095 = vmatprep.mubr.bf16.mxu0 %v546
    %1096 = vmatmul.mubr.bf16.gmra.mxu0 %v545
    %v1097 = vpop.f32.mrf.mxu0
    %v1098 = vadd.f32 %v626, %v1097
    %v1099 = vpop.f32.mrf.mxu0
    %v1100 = vadd.f32 %v630, %v1099
    %v1101 = vpop.f32.mrf.mxu0
    %v1102 = vadd.f32 %v626, %v1101
    %v1103 = vpop.f32.mrf.mxu0
    %v1104 = vadd.f32 %v630, %v1103
    %1105 = vmatprep.mubr.bf16.mxu0 %v548
    %1106 = vmatmul.mubr.bf16.gmra.mxu0 %v547
    %v1107 = vpop.f32.mrf.mxu0
    %v1108 = vadd.f32 %v626, %v1107
    %v1109 = vpop.f32.mrf.mxu0
    %v1110 = vadd.f32 %v630, %v1109
    %v1111 = vpop.f32.mrf.mxu0
    %v1112 = vadd.f32 %v626, %v1111
    %v1113 = vpop.f32.mrf.mxu0
    %v1114 = vadd.f32 %v630, %v1113
    %1115 = vmatprep.mubr.bf16.mxu0 %v550
    %1116 = vmatmul.mubr.bf16.gmra.mxu0 %v549
    %v1117 = vpop.f32.mrf.mxu0
    %v1118 = vadd.f32 %v626, %v1117
    %v1119 = vpop.f32.mrf.mxu0
    %v1120 = vadd.f32 %v630, %v1119
    %v1121 = vpop.f32.mrf.mxu0
    %v1122 = vadd.f32 %v626, %v1121
    %v1123 = vpop.f32.mrf.mxu0
    %v1124 = vadd.f32 %v630, %v1123
    %1125 = vmatprep.mubr.bf16.mxu0 %v552
    %1126 = vmatmul.mubr.bf16.gmra.mxu0 %v551
    %v1127 = vpop.f32.mrf.mxu0
    %v1128 = vadd.f32 %v626, %v1127
    %v1129 = vpop.f32.mrf.mxu0
    %v1130 = vadd.f32 %v630, %v1129
    %v1131 = vpop.f32.mrf.mxu0
    %v1132 = vadd.f32 %v626, %v1131
    %v1133 = vpop.f32.mrf.mxu0
    %v1134 = vadd.f32 %v630, %v1133
    %1135 = vmatprep.mubr.bf16.mxu0 %v554
    %1136 = vmatmul.mubr.bf16.gmra.mxu0 %v553
    %v1137 = vpop.f32.mrf.mxu0
    %v1138 = vadd.f32 %v626, %v1137
    %v1139 = vpop.f32.mrf.mxu0
    %v1140 = vadd.f32 %v630, %v1139
    %v1141 = vpop.f32.mrf.mxu0
    %v1142 = vadd.f32 %v626, %v1141
    %v1143 = vpop.f32.mrf.mxu0
    %v1144 = vadd.f32 %v630, %v1143
    %1145 = vmatprep.mubr.bf16.mxu0 %v556
    %1146 = vmatmul.mubr.bf16.gmra.mxu0 %v555
    %v1147 = vpop.f32.mrf.mxu0
    %v1148 = vadd.f32 %v626, %v1147
    %v1149 = vpop.f32.mrf.mxu0
    %v1150 = vadd.f32 %v630, %v1149
    %v1151 = vpop.f32.mrf.mxu0
    %v1152 = vadd.f32 %v626, %v1151
    %v1153 = vpop.f32.mrf.mxu0
    %v1154 = vadd.f32 %v630, %v1153
    %1155 = vdwg.mxu0
    %1156 = vmatprep.subr.bf16.mxu0 %v866
    %1157 = vmatpush1.bf16.msra.mxu0 %v865
    %1158 = vmatprep.subr.bf16.mxu0 %v862
    %1159 = vmatpush1.bf16.msra.mxu0 %v861
    %1160 = vmatprep.subr.bf16.mxu0 %v858
    %1161 = vmatpush1.bf16.msra.mxu0 %v857
    %1162 = vmatprep.subr.bf16.mxu0 %v854
    %1163 = vmatpush1.bf16.msra.mxu0 %v853
    %1164 = vmatprep.subr.bf16.mxu0 %v850
    %1165 = vmatpush1.bf16.msra.mxu0 %v849
    %1166 = vmatprep.subr.bf16.mxu0 %v846
    %1167 = vmatpush1.bf16.msra.mxu0 %v845
    %1168 = vmatprep.subr.bf16.mxu0 %v842
    %1169 = vmatpush1.bf16.msra.mxu0 %v841
    %1170 = vmatprep.subr.bf16.mxu0 %v838
    %1171 = vmatpush1.bf16.msra.mxu0 %v837
    %1172 = vmatprep.subr.bf16.mxu0 %v898
    %1173 = vmatpush2.bf16.msra.mxu0 %v897
    %1174 = vmatprep.subr.bf16.mxu0 %v894
    %1175 = vmatpush2.bf16.msra.mxu0 %v893
    %1176 = vmatprep.subr.bf16.mxu0 %v890
    %1177 = vmatpush2.bf16.msra.mxu0 %v889
    %1178 = vmatprep.subr.bf16.mxu0 %v886
    %1179 = vmatpush2.bf16.msra.mxu0 %v885
    %1180 = vmatprep.subr.bf16.mxu0 %v882
    %1181 = vmatpush2.bf16.msra.mxu0 %v881
    %1182 = vmatprep.subr.bf16.mxu0 %v878
    %1183 = vmatpush2.bf16.msra.mxu0 %v877
    %1184 = vmatprep.subr.bf16.mxu0 %v874
    %1185 = vmatpush2.bf16.msra.mxu0 %v873
    %1186 = vmatprep.subr.bf16.mxu0 %v870
    %1187 = vmatpush2.bf16.msra.mxu0 %v869
    %1188 = vmatprep.mubr.bf16.mxu0 %v526
    %1189 = vmatmul.mubr.bf16.gmra.mxu0 %v525
    %v1190 = vpop.f32.mrf.mxu0
    %v1191 = vadd.f32 %v634, %v1190
    %v1192 = vpop.f32.mrf.mxu0
    %v1193 = vadd.f32 %v638, %v1192
    %v1194 = vpop.f32.mrf.mxu0
    %v1195 = vadd.f32 %v634, %v1194
    %v1196 = vpop.f32.mrf.mxu0
    %v1197 = vadd.f32 %v638, %v1196
    %1198 = vmatprep.mubr.bf16.mxu0 %v528
    %1199 = vmatmul.mubr.bf16.gmra.mxu0 %v527
    %v1200 = vpop.f32.mrf.mxu0
    %v1201 = vadd.f32 %v634, %v1200
    %v1202 = vpop.f32.mrf.mxu0
    %v1203 = vadd.f32 %v638, %v1202
    %v1204 = vpop.f32.mrf.mxu0
    %v1205 = vadd.f32 %v634, %v1204
    %v1206 = vpop.f32.mrf.mxu0
    %v1207 = vadd.f32 %v638, %v1206
    %1208 = vmatprep.mubr.bf16.mxu0 %v530
    %1209 = vmatmul.mubr.bf16.gmra.mxu0 %v529
    %v1210 = vpop.f32.mrf.mxu0
    %v1211 = vadd.f32 %v634, %v1210
    %v1212 = vpop.f32.mrf.mxu0
    %v1213 = vadd.f32 %v638, %v1212
    %v1214 = vpop.f32.mrf.mxu0
    %v1215 = vadd.f32 %v634, %v1214
    %v1216 = vpop.f32.mrf.mxu0
    %v1217 = vadd.f32 %v638, %v1216
    %1218 = vmatprep.mubr.bf16.mxu0 %v532
    %1219 = vmatmul.mubr.bf16.gmra.mxu0 %v531
    %v1220 = vpop.f32.mrf.mxu0
    %v1221 = vadd.f32 %v634, %v1220
    %v1222 = vpop.f32.mrf.mxu0
    %v1223 = vadd.f32 %v638, %v1222
    %v1224 = vpop.f32.mrf.mxu0
    %v1225 = vadd.f32 %v634, %v1224
    %v1226 = vpop.f32.mrf.mxu0
    %v1227 = vadd.f32 %v638, %v1226
    %1228 = vmatprep.mubr.bf16.mxu0 %v534
    %1229 = vmatmul.mubr.bf16.gmra.mxu0 %v533
    %v1230 = vpop.f32.mrf.mxu0
    %v1231 = vadd.f32 %v634, %v1230
    %v1232 = vpop.f32.mrf.mxu0
    %v1233 = vadd.f32 %v638, %v1232
    %v1234 = vpop.f32.mrf.mxu0
    %v1235 = vadd.f32 %v634, %v1234
    %v1236 = vpop.f32.mrf.mxu0
    %v1237 = vadd.f32 %v638, %v1236
    %1238 = vmatprep.mubr.bf16.mxu0 %v536
    %1239 = vmatmul.mubr.bf16.gmra.mxu0 %v535
    %v1240 = vpop.f32.mrf.mxu0
    %v1241 = vadd.f32 %v634, %v1240
    %v1242 = vpop.f32.mrf.mxu0
    %v1243 = vadd.f32 %v638, %v1242
    %v1244 = vpop.f32.mrf.mxu0
    %v1245 = vadd.f32 %v634, %v1244
    %v1246 = vpop.f32.mrf.mxu0
    %v1247 = vadd.f32 %v638, %v1246
    %1248 = vmatprep.mubr.bf16.mxu0 %v538
    %1249 = vmatmul.mubr.bf16.gmra.mxu0 %v537
    %v1250 = vpop.f32.mrf.mxu0
    %v1251 = vadd.f32 %v634, %v1250
    %v1252 = vpop.f32.mrf.mxu0
    %v1253 = vadd.f32 %v638, %v1252
    %v1254 = vpop.f32.mrf.mxu0
    %v1255 = vadd.f32 %v634, %v1254
    %v1256 = vpop.f32.mrf.mxu0
    %v1257 = vadd.f32 %v638, %v1256
    %1258 = vmatprep.mubr.bf16.mxu0 %v540
    %1259 = vmatmul.mubr.bf16.gmra.mxu0 %v539
    %v1260 = vpop.f32.mrf.mxu0
    %v1261 = vadd.f32 %v634, %v1260
    %v1262 = vpop.f32.mrf.mxu0
    %v1263 = vadd.f32 %v638, %v1262
    %v1264 = vpop.f32.mrf.mxu0
    %v1265 = vadd.f32 %v634, %v1264
    %v1266 = vpop.f32.mrf.mxu0
    %v1267 = vadd.f32 %v638, %v1266
    %1268 = vmatprep.mubr.bf16.mxu0 %v542
    %1269 = vmatmul.mubr.bf16.gmra.mxu0 %v541
    %v1270 = vpop.f32.mrf.mxu0
    %v1271 = vadd.f32 %v634, %v1270
    %v1272 = vpop.f32.mrf.mxu0
    %v1273 = vadd.f32 %v638, %v1272
    %v1274 = vpop.f32.mrf.mxu0
    %v1275 = vadd.f32 %v634, %v1274
    %v1276 = vpop.f32.mrf.mxu0
    %v1277 = vadd.f32 %v638, %v1276
    %1278 = vmatprep.mubr.bf16.mxu0 %v544
    %1279 = vmatmul.mubr.bf16.gmra.mxu0 %v543
    %v1280 = vpop.f32.mrf.mxu0
    %v1281 = vadd.f32 %v634, %v1280
    %v1282 = vpop.f32.mrf.mxu0
    %v1283 = vadd.f32 %v638, %v1282
    %v1284 = vpop.f32.mrf.mxu0
    %v1285 = vadd.f32 %v634, %v1284
    %v1286 = vpop.f32.mrf.mxu0
    %v1287 = vadd.f32 %v638, %v1286
    %1288 = vmatprep.mubr.bf16.mxu0 %v546
    %1289 = vmatmul.mubr.bf16.gmra.mxu0 %v545
    %v1290 = vpop.f32.mrf.mxu0
    %v1291 = vadd.f32 %v634, %v1290
    %v1292 = vpop.f32.mrf.mxu0
    %v1293 = vadd.f32 %v638, %v1292
    %v1294 = vpop.f32.mrf.mxu0
    %v1295 = vadd.f32 %v634, %v1294
    %v1296 = vpop.f32.mrf.mxu0
    %v1297 = vadd.f32 %v638, %v1296
    %1298 = vmatprep.mubr.bf16.mxu0 %v548
    %1299 = vmatmul.mubr.bf16.gmra.mxu0 %v547
    %v1300 = vpop.f32.mrf.mxu0
    %v1301 = vadd.f32 %v634, %v1300
    %v1302 = vpop.f32.mrf.mxu0
    %v1303 = vadd.f32 %v638, %v1302
    %v1304 = vpop.f32.mrf.mxu0
    %v1305 = vadd.f32 %v634, %v1304
    %v1306 = vpop.f32.mrf.mxu0
    %v1307 = vadd.f32 %v638, %v1306
    %1308 = vmatprep.mubr.bf16.mxu0 %v550
    %1309 = vmatmul.mubr.bf16.gmra.mxu0 %v549
    %v1310 = vpop.f32.mrf.mxu0
    %v1311 = vadd.f32 %v634, %v1310
    %v1312 = vpop.f32.mrf.mxu0
    %v1313 = vadd.f32 %v638, %v1312
    %v1314 = vpop.f32.mrf.mxu0
    %v1315 = vadd.f32 %v634, %v1314
    %v1316 = vpop.f32.mrf.mxu0
    %v1317 = vadd.f32 %v638, %v1316
    %1318 = vmatprep.mubr.bf16.mxu0 %v552
    %1319 = vmatmul.mubr.bf16.gmra.mxu0 %v551
    %v1320 = vpop.f32.mrf.mxu0
    %v1321 = vadd.f32 %v634, %v1320
    %v1322 = vpop.f32.mrf.mxu0
    %v1323 = vadd.f32 %v638, %v1322
    %v1324 = vpop.f32.mrf.mxu0
    %v1325 = vadd.f32 %v634, %v1324
    %v1326 = vpop.f32.mrf.mxu0
    %v1327 = vadd.f32 %v638, %v1326
    %1328 = vmatprep.mubr.bf16.mxu0 %v554
    %1329 = vmatmul.mubr.bf16.gmra.mxu0 %v553
    %v1330 = vpop.f32.mrf.mxu0
    %v1331 = vadd.f32 %v634, %v1330
    %v1332 = vpop.f32.mrf.mxu0
    %v1333 = vadd.f32 %v638, %v1332
    %v1334 = vpop.f32.mrf.mxu0
    %v1335 = vadd.f32 %v634, %v1334
    %v1336 = vpop.f32.mrf.mxu0
    %v1337 = vadd.f32 %v638, %v1336
    %1338 = vmatprep.mubr.bf16.mxu0 %v556
    %1339 = vmatmul.mubr.bf16.gmra.mxu0 %v555
    %v1340 = vpop.f32.mrf.mxu0
    %v1341 = vadd.f32 %v634, %v1340
    %v1342 = vpop.f32.mrf.mxu0
    %v1343 = vadd.f32 %v638, %v1342
    %v1344 = vpop.f32.mrf.mxu0
    %v1345 = vadd.f32 %v634, %v1344
    %v1346 = vpop.f32.mrf.mxu0
    %v1347 = vadd.f32 %v638, %v1346
    %1348 = vdwg.mxu0
    %1349 = vst [vmem:[#allocation2] sm:$0xff] %v998
    %1350 = vst [vmem:[#allocation2 + $0x8] sm:$0xff] %v1000
    %1351 = vst [vmem:[#allocation2 + $0x10] sm:$0xff] %v1191
    %1352 = vst [vmem:[#allocation2 + $0x18] sm:$0xff] %v1193
    %1353 = vst [vmem:[#allocation2 + $0x20] sm:$0xff] %v1002
    %1354 = vst [vmem:[#allocation2 + $0x28] sm:$0xff] %v1004
    %1355 = vst [vmem:[#allocation2 + $0x30] sm:$0xff] %v1195
    %1356 = vst [vmem:[#allocation2 + $0x38] sm:$0xff] %v1197
    %1357 = vst [vmem:[#allocation2 + $0x40] sm:$0xff] %v1008
    %1358 = vst [vmem:[#allocation2 + $0x48] sm:$0xff] %v1010
    %1359 = vst [vmem:[#allocation2 + $0x50] sm:$0xff] %v1201
    %1360 = vst [vmem:[#allocation2 + $0x58] sm:$0xff] %v1203
    %1361 = vst [vmem:[#allocation2 + $0x60] sm:$0xff] %v1012
    %1362 = vst [vmem:[#allocation2 + $0x68] sm:$0xff] %v1014
    %1363 = vst [vmem:[#allocation2 + $0x70] sm:$0xff] %v1205
    %1364 = vst [vmem:[#allocation2 + $0x78] sm:$0xff] %v1207
    %1365 = vst [vmem:[#allocation2 + $0x80] sm:$0xff] %v1018
    %1366 = vst [vmem:[#allocation2 + $0x88] sm:$0xff] %v1020
    %1367 = vst [vmem:[#allocation2 + $0x90] sm:$0xff] %v1211
    %1368 = vst [vmem:[#allocation2 + $0x98] sm:$0xff] %v1213
    %1369 = vst [vmem:[#allocation2 + $0xa0] sm:$0xff] %v1022
    %1370 = vst [vmem:[#allocation2 + $0xa8] sm:$0xff] %v1024
    %1371 = vst [vmem:[#allocation2 + $0xb0] sm:$0xff] %v1215
    %1372 = vst [vmem:[#allocation2 + $0xb8] sm:$0xff] %v1217
    %1373 = vst [vmem:[#allocation2 + $0xc0] sm:$0xff] %v1028
    %1374 = vst [vmem:[#allocation2 + $0xc8] sm:$0xff] %v1030
    %1375 = vst [vmem:[#allocation2 + $0xd0] sm:$0xff] %v1221
    %1376 = vst [vmem:[#allocation2 + $0xd8] sm:$0xff] %v1223
    %1377 = vst [vmem:[#allocation2 + $0xe0] sm:$0xff] %v1032
    %1378 = vst [vmem:[#allocation2 + $0xe8] sm:$0xff] %v1034
    %1379 = vst [vmem:[#allocation2 + $0xf0] sm:$0xff] %v1225
    %1380 = vst [vmem:[#allocation2 + $0xf8] sm:$0xff] %v1227
    %1381 = vst [vmem:[#allocation2 + $0x100] sm:$0xff] %v1038
    %1382 = vst [vmem:[#allocation2 + $0x108] sm:$0xff] %v1040
    %1383 = vst [vmem:[#allocation2 + $0x110] sm:$0xff] %v1231
    %1384 = vst [vmem:[#allocation2 + $0x118] sm:$0xff] %v1233
    %1385 = vst [vmem:[#allocation2 + $0x120] sm:$0xff] %v1042
    %1386 = vst [vmem:[#allocation2 + $0x128] sm:$0xff] %v1044
    %1387 = vst [vmem:[#allocation2 + $0x130] sm:$0xff] %v1235
    %1388 = vst [vmem:[#allocation2 + $0x138] sm:$0xff] %v1237
    %1389 = vst [vmem:[#allocation2 + $0x140] sm:$0xff] %v1048
    %1390 = vst [vmem:[#allocation2 + $0x148] sm:$0xff] %v1050
    %1391 = vst [vmem:[#allocation2 + $0x150] sm:$0xff] %v1241
    %1392 = vst [vmem:[#allocation2 + $0x158] sm:$0xff] %v1243
    %1393 = vst [vmem:[#allocation2 + $0x160] sm:$0xff] %v1052
    %1394 = vst [vmem:[#allocation2 + $0x168] sm:$0xff] %v1054
    %1395 = vst [vmem:[#allocation2 + $0x170] sm:$0xff] %v1245
    %1396 = vst [vmem:[#allocation2 + $0x178] sm:$0xff] %v1247
    %1397 = vst [vmem:[#allocation2 + $0x180] sm:$0xff] %v1058
    %1398 = vst [vmem:[#allocation2 + $0x188] sm:$0xff] %v1060
    %1399 = vst [vmem:[#allocation2 + $0x190] sm:$0xff] %v1251
    %1400 = vst [vmem:[#allocation2 + $0x198] sm:$0xff] %v1253
    %1401 = vst [vmem:[#allocation2 + $0x1a0] sm:$0xff] %v1062
    %1402 = vst [vmem:[#allocation2 + $0x1a8] sm:$0xff] %v1064
    %1403 = vst [vmem:[#allocation2 + $0x1b0] sm:$0xff] %v1255
    %1404 = vst [vmem:[#allocation2 + $0x1b8] sm:$0xff] %v1257
    %1405 = vst [vmem:[#allocation2 + $0x1c0] sm:$0xff] %v1068
    %1406 = vst [vmem:[#allocation2 + $0x1c8] sm:$0xff] %v1070
    %1407 = vst [vmem:[#allocation2 + $0x1d0] sm:$0xff] %v1261
    %1408 = vst [vmem:[#allocation2 + $0x1d8] sm:$0xff] %v1263
    %1409 = vst [vmem:[#allocation2 + $0x1e0] sm:$0xff] %v1072
    %1410 = vst [vmem:[#allocation2 + $0x1e8] sm:$0xff] %v1074
    %1411 = vst [vmem:[#allocation2 + $0x1f0] sm:$0xff] %v1265
    %1412 = vst [vmem:[#allocation2 + $0x1f8] sm:$0xff] %v1267
    %1413 = vst [vmem:[#allocation2 + $0x200] sm:$0xff] %v1078
    %1414 = vst [vmem:[#allocation2 + $0x208] sm:$0xff] %v1080
    %1415 = vst [vmem:[#allocation2 + $0x210] sm:$0xff] %v1271
    %1416 = vst [vmem:[#allocation2 + $0x218] sm:$0xff] %v1273
    %1417 = vst [vmem:[#allocation2 + $0x220] sm:$0xff] %v1082
    %1418 = vst [vmem:[#allocation2 + $0x228] sm:$0xff] %v1084
    %1419 = vst [vmem:[#allocation2 + $0x230] sm:$0xff] %v1275
    %1420 = vst [vmem:[#allocation2 + $0x238] sm:$0xff] %v1277
    %1421 = vst [vmem:[#allocation2 + $0x240] sm:$0xff] %v1088
    %1422 = vst [vmem:[#allocation2 + $0x248] sm:$0xff] %v1090
    %1423 = vst [vmem:[#allocation2 + $0x250] sm:$0xff] %v1281
    %1424 = vst [vmem:[#allocation2 + $0x258] sm:$0xff] %v1283
    %1425 = vst [vmem:[#allocation2 + $0x260] sm:$0xff] %v1092
    %1426 = vst [vmem:[#allocation2 + $0x268] sm:$0xff] %v1094
    %1427 = vst [vmem:[#allocation2 + $0x270] sm:$0xff] %v1285
    %1428 = vst [vmem:[#allocation2 + $0x278] sm:$0xff] %v1287
    %1429 = vst [vmem:[#allocation2 + $0x280] sm:$0xff] %v1098
    %1430 = vst [vmem:[#allocation2 + $0x288] sm:$0xff] %v1100
    %1431 = vst [vmem:[#allocation2 + $0x290] sm:$0xff] %v1291
    %1432 = vst [vmem:[#allocation2 + $0x298] sm:$0xff] %v1293
    %1433 = vst [vmem:[#allocation2 + $0x2a0] sm:$0xff] %v1102
    %1434 = vst [vmem:[#allocation2 + $0x2a8] sm:$0xff] %v1104
    %1435 = vst [vmem:[#allocation2 + $0x2b0] sm:$0xff] %v1295
    %1436 = vst [vmem:[#allocation2 + $0x2b8] sm:$0xff] %v1297
    %1437 = vst [vmem:[#allocation2 + $0x2c0] sm:$0xff] %v1108
    %1438 = vst [vmem:[#allocation2 + $0x2c8] sm:$0xff] %v1110
    %1439 = vst [vmem:[#allocation2 + $0x2d0] sm:$0xff] %v1301
    %1440 = vst [vmem:[#allocation2 + $0x2d8] sm:$0xff] %v1303
    %1441 = vst [vmem:[#allocation2 + $0x2e0] sm:$0xff] %v1112
    %1442 = vst [vmem:[#allocation2 + $0x2e8] sm:$0xff] %v1114
    %1443 = vst [vmem:[#allocation2 + $0x2f0] sm:$0xff] %v1305
    %1444 = vst [vmem:[#allocation2 + $0x2f8] sm:$0xff] %v1307
    %1445 = vst [vmem:[#allocation2 + $0x300] sm:$0xff] %v1118
    %1446 = vst [vmem:[#allocation2 + $0x308] sm:$0xff] %v1120
    %1447 = vst [vmem:[#allocation2 + $0x310] sm:$0xff] %v1311
    %1448 = vst [vmem:[#allocation2 + $0x318] sm:$0xff] %v1313
    %1449 = vst [vmem:[#allocation2 + $0x320] sm:$0xff] %v1122
    %1450 = vst [vmem:[#allocation2 + $0x328] sm:$0xff] %v1124
    %1451 = vst [vmem:[#allocation2 + $0x330] sm:$0xff] %v1315
    %1452 = vst [vmem:[#allocation2 + $0x338] sm:$0xff] %v1317
    %1453 = vst [vmem:[#allocation2 + $0x340] sm:$0xff] %v1128
    %1454 = vst [vmem:[#allocation2 + $0x348] sm:$0xff] %v1130
    %1455 = vst [vmem:[#allocation2 + $0x350] sm:$0xff] %v1321
    %1456 = vst [vmem:[#allocation2 + $0x358] sm:$0xff] %v1323
    %1457 = vst [vmem:[#allocation2 + $0x360] sm:$0xff] %v1132
    %1458 = vst [vmem:[#allocation2 + $0x368] sm:$0xff] %v1134
    %1459 = vst [vmem:[#allocation2 + $0x370] sm:$0xff] %v1325
    %1460 = vst [vmem:[#allocation2 + $0x378] sm:$0xff] %v1327
    %1461 = vst [vmem:[#allocation2 + $0x380] sm:$0xff] %v1138
    %1462 = vst [vmem:[#allocation2 + $0x388] sm:$0xff] %v1140
    %1463 = vst [vmem:[#allocation2 + $0x390] sm:$0xff] %v1331
    %1464 = vst [vmem:[#allocation2 + $0x398] sm:$0xff] %v1333
    %1465 = vst [vmem:[#allocation2 + $0x3a0] sm:$0xff] %v1142
    %1466 = vst [vmem:[#allocation2 + $0x3a8] sm:$0xff] %v1144
    %1467 = vst [vmem:[#allocation2 + $0x3b0] sm:$0xff] %v1335
    %1468 = vst [vmem:[#allocation2 + $0x3b8] sm:$0xff] %v1337
    %1469 = vst [vmem:[#allocation2 + $0x3c0] sm:$0xff] %v1148
    %1470 = vst [vmem:[#allocation2 + $0x3c8] sm:$0xff] %v1150
    %1471 = vst [vmem:[#allocation2 + $0x3d0] sm:$0xff] %v1341
    %1472 = vst [vmem:[#allocation2 + $0x3d8] sm:$0xff] %v1343
    %1473 = vst [vmem:[#allocation2 + $0x3e0] sm:$0xff] %v1152
    %1474 = vst [vmem:[#allocation2 + $0x3e8] sm:$0xff] %v1154
    %1475 = vst [vmem:[#allocation2 + $0x3f0] sm:$0xff] %v1345
    %1476 = vst [vmem:[#allocation2 + $0x3f8] sm:$0xff] %v1347
    %v1477 = vld [vmem:[%s5] sm:$0xff]
    %v1478 = vld [vmem:[%s5 + $0x8] sm:$0xff]
    %v1479 = vld [vmem:[%s5 + $0x10] sm:$0xff]
    %v1480 = vld [vmem:[%s5 + $0x18] sm:$0xff]
    %v1481 = vld [vmem:[%s5 + $0x20] sm:$0xff]
    %v1482 = vld [vmem:[%s5 + $0x28] sm:$0xff]
    %v1483 = vld [vmem:[%s5 + $0x30] sm:$0xff]
    %v1484 = vld [vmem:[%s5 + $0x38] sm:$0xff]
    %v1485 = vld [vmem:[%s5 + $0x40] sm:$0xff]
    %v1486 = vld [vmem:[%s5 + $0x48] sm:$0xff]
    %v1487 = vld [vmem:[%s5 + $0x50] sm:$0xff]
    %v1488 = vld [vmem:[%s5 + $0x58] sm:$0xff]
    %v1489 = vld [vmem:[%s5 + $0x60] sm:$0xff]
    %v1490 = vld [vmem:[%s5 + $0x68] sm:$0xff]
    %v1491 = vld [vmem:[%s5 + $0x70] sm:$0xff]
    %v1492 = vld [vmem:[%s5 + $0x78] sm:$0xff]
    %v1493 = vld [vmem:[%s5 + $0x80] sm:$0xff]
    %v1494 = vld [vmem:[%s5 + $0x88] sm:$0xff]
    %v1495 = vld [vmem:[%s5 + $0x90] sm:$0xff]
    %v1496 = vld [vmem:[%s5 + $0x98] sm:$0xff]
    %v1497 = vld [vmem:[%s5 + $0xa0] sm:$0xff]
    %v1498 = vld [vmem:[%s5 + $0xa8] sm:$0xff]
    %v1499 = vld [vmem:[%s5 + $0xb0] sm:$0xff]
    %v1500 = vld [vmem:[%s5 + $0xb8] sm:$0xff]
    %v1501 = vld [vmem:[%s5 + $0xc0] sm:$0xff]
    %v1502 = vld [vmem:[%s5 + $0xc8] sm:$0xff]
    %v1503 = vld [vmem:[%s5 + $0xd0] sm:$0xff]
    %v1504 = vld [vmem:[%s5 + $0xd8] sm:$0xff]
    %v1505 = vld [vmem:[%s5 + $0xe0] sm:$0xff]
    %v1506 = vld [vmem:[%s5 + $0xe8] sm:$0xff]
    %v1507 = vld [vmem:[%s5 + $0xf0] sm:$0xff]
    %v1508 = vld [vmem:[%s5 + $0xf8] sm:$0xff]
    loop: start=0, step=1, limit=8
    $region42: #{cannolo_forward_windows.1} parent=1 // loop_pre_header
      _
    $region43: #{cannolo_forward_windows.1} parent=1 // loop_header
      %s1510 = sphi 0, %s1514
      %p1511 = scmp.ge.s32.totalorder %s1510, 8
      %v1515 = vphi 0, %v1921
      %v1516 = vphi 0, %v1922
      %v1517 = vphi 0.0, %v1909
      %v1518 = vphi 0.0, %v1910
      %v1519 = vphi 0.0, %v1911
      %v1520 = vphi 0.0, %v1912
    $region44: #{cannolo_forward_windows.1} parent=1 // loop_header_branch
      %1513 = sbr.rel (%p1511) target = $region48
    $region45: #{cannolo_forward_windows.1} parent=1 // loop_body
      %s1521 = smul.u32 %s1510, 32
      %s1522 = sshra.s32 %s1521, 3
      %s1523 = sand.u32 %s1521, 7
      %s1524 = smul.u32 %s1522, 4
      %s1525 = smul.addr %s1524, 8
      %s1526 = scalar_lea.vmem [#allocation2], %s1525
      %v1527 = vld [vmem:[%s1526] sm:$0xff]
      %v1528 = vld [vmem:[%s1526 + $0x8] sm:$0xff]
      %v1529 = vld [vmem:[%s1526 + $0x10] sm:$0xff]
      %v1530 = vld [vmem:[%s1526 + $0x18] sm:$0xff]
      %v1531 = vld [vmem:[%s1526 + $0x20] sm:$0xff]
      %v1532 = vld [vmem:[%s1526 + $0x28] sm:$0xff]
      %v1533 = vld [vmem:[%s1526 + $0x30] sm:$0xff]
      %v1534 = vld [vmem:[%s1526 + $0x38] sm:$0xff]
      %v1535 = vld [vmem:[%s1526 + $0x40] sm:$0xff]
      %v1536 = vld [vmem:[%s1526 + $0x48] sm:$0xff]
      %v1537 = vld [vmem:[%s1526 + $0x50] sm:$0xff]
      %v1538 = vld [vmem:[%s1526 + $0x58] sm:$0xff]
      %v1539 = vld [vmem:[%s1526 + $0x60] sm:$0xff]
      %v1540 = vld [vmem:[%s1526 + $0x68] sm:$0xff]
      %v1541 = vld [vmem:[%s1526 + $0x70] sm:$0xff]
      %v1542 = vld [vmem:[%s1526 + $0x78] sm:$0xff]
      %v1575 = vunpack.c.l.b16 %v1477
      %v1576 = vunpack.c.h.b16 %v1477
      %v1577 = vunpack.c.l.b16 %v1478
      %v1578 = vunpack.c.h.b16 %v1478
      %v1579 = vunpack.c.l.b16 %v1479
      %v1580 = vunpack.c.h.b16 %v1479
      %v1581 = vunpack.c.l.b16 %v1480
      %v1582 = vunpack.c.h.b16 %v1480
      %v1583 = vunpack.c.l.b16 %v1481
      %v1584 = vunpack.c.h.b16 %v1481
      %v1585 = vunpack.c.l.b16 %v1482
      %v1586 = vunpack.c.h.b16 %v1482
      %v1587 = vunpack.c.l.b16 %v1483
      %v1588 = vunpack.c.h.b16 %v1483
      %v1589 = vunpack.c.l.b16 %v1484
      %v1590 = vunpack.c.h.b16 %v1484
      %v1591 = vunpack.c.l.b16 %v1485
      %v1592 = vunpack.c.h.b16 %v1485
      %v1593 = vunpack.c.l.b16 %v1486
      %v1594 = vunpack.c.h.b16 %v1486
      %v1595 = vunpack.c.l.b16 %v1487
      %v1596 = vunpack.c.h.b16 %v1487
      %v1597 = vunpack.c.l.b16 %v1488
      %v1598 = vunpack.c.h.b16 %v1488
      %v1599 = vunpack.c.l.b16 %v1489
      %v1600 = vunpack.c.h.b16 %v1489
      %v1601 = vunpack.c.l.b16 %v1490
      %v1602 = vunpack.c.h.b16 %v1490
      %v1603 = vunpack.c.l.b16 %v1491
      %v1604 = vunpack.c.h.b16 %v1491
      %v1605 = vunpack.c.l.b16 %v1492
      %v1606 = vunpack.c.h.b16 %v1492
      %v1607 = vunpack.c.l.b16 %v1493
      %v1608 = vunpack.c.h.b16 %v1493
      %v1609 = vunpack.c.l.b16 %v1494
      %v1610 = vunpack.c.h.b16 %v1494
      %v1611 = vunpack.c.l.b16 %v1495
      %v1612 = vunpack.c.h.b16 %v1495
      %v1613 = vunpack.c.l.b16 %v1496
      %v1614 = vunpack.c.h.b16 %v1496
      %v1615 = vunpack.c.l.b16 %v1497
      %v1616 = vunpack.c.h.b16 %v1497
      %v1617 = vunpack.c.l.b16 %v1498
      %v1618 = vunpack.c.h.b16 %v1498
      %v1619 = vunpack.c.l.b16 %v1499
      %v1620 = vunpack.c.h.b16 %v1499
      %v1621 = vunpack.c.l.b16 %v1500
      %v1622 = vunpack.c.h.b16 %v1500
      %v1623 = vunpack.c.l.b16 %v1501
      %v1624 = vunpack.c.h.b16 %v1501
      %v1625 = vunpack.c.l.b16 %v1502
      %v1626 = vunpack.c.h.b16 %v1502
      %v1627 = vunpack.c.l.b16 %v1503
      %v1628 = vunpack.c.h.b16 %v1503
      %v1629 = vunpack.c.l.b16 %v1504
      %v1630 = vunpack.c.h.b16 %v1504
      %v1631 = vunpack.c.l.b16 %v1505
      %v1632 = vunpack.c.h.b16 %v1505
      %v1633 = vunpack.c.l.b16 %v1506
      %v1634 = vunpack.c.h.b16 %v1506
      %v1635 = vunpack.c.l.b16 %v1507
      %v1636 = vunpack.c.h.b16 %v1507
      %v1637 = vunpack.c.l.b16 %v1508
      %v1638 = vunpack.c.h.b16 %v1508
      %v1639 = vpack.c.b16 %v1579, %v1575
      %v1640 = vpack.c.b16 %v1580, %v1576
      %v1641 = vpack.c.b16 %v1581, %v1577
      %v1642 = vpack.c.b16 %v1582, %v1578
      %v1643 = vpack.c.b16 %v1587, %v1583
      %v1644 = vpack.c.b16 %v1588, %v1584
      %v1645 = vpack.c.b16 %v1589, %v1585
      %v1646 = vpack.c.b16 %v1590, %v1586
      %v1647 = vpack.c.b16 %v1595, %v1591
      %v1648 = vpack.c.b16 %v1596, %v1592
      %v1649 = vpack.c.b16 %v1597, %v1593
      %v1650 = vpack.c.b16 %v1598, %v1594
      %v1651 = vpack.c.b16 %v1603, %v1599
      %v1652 = vpack.c.b16 %v1604, %v1600
      %v1653 = vpack.c.b16 %v1605, %v1601
      %v1654 = vpack.c.b16 %v1606, %v1602
      %v1655 = vpack.c.b16 %v1611, %v1607
      %v1656 = vpack.c.b16 %v1612, %v1608
      %v1657 = vpack.c.b16 %v1613, %v1609
      %v1658 = vpack.c.b16 %v1614, %v1610
      %v1659 = vpack.c.b16 %v1619, %v1615
      %v1660 = vpack.c.b16 %v1620, %v1616
      %v1661 = vpack.c.b16 %v1621, %v1617
      %v1662 = vpack.c.b16 %v1622, %v1618
      %v1663 = vpack.c.b16 %v1627, %v1623
      %v1664 = vpack.c.b16 %v1628, %v1624
      %v1665 = vpack.c.b16 %v1629, %v1625
      %v1666 = vpack.c.b16 %v1630, %v1626
      %v1667 = vpack.c.b16 %v1635, %v1631
      %v1668 = vpack.c.b16 %v1636, %v1632
      %v1669 = vpack.c.b16 %v1637, %v1633
      %v1670 = vpack.c.b16 %v1638, %v1634
      %1703 = vmatprep.subr.bf16.mxu0 %v1668
      %1704 = vmatpush1.bf16.msra.mxu0 %v1667
      %1705 = vmatprep.subr.bf16.mxu0 %v1664
      %1706 = vmatpush1.bf16.msra.mxu0 %v1663
      %1707 = vmatprep.subr.bf16.mxu0 %v1660
      %1708 = vmatpush1.bf16.msra.mxu0 %v1659
      %1709 = vmatprep.subr.bf16.mxu0 %v1656
      %1710 = vmatpush1.bf16.msra.mxu0 %v1655
      %1711 = vmatprep.subr.bf16.mxu0 %v1652
      %1712 = vmatpush1.bf16.msra.mxu0 %v1651
      %1713 = vmatprep.subr.bf16.mxu0 %v1648
      %1714 = vmatpush1.bf16.msra.mxu0 %v1647
      %1715 = vmatprep.subr.bf16.mxu0 %v1644
      %1716 = vmatpush1.bf16.msra.mxu0 %v1643
      %1717 = vmatprep.subr.bf16.mxu0 %v1640
      %1718 = vmatpush1.bf16.msra.mxu0 %v1639
      %1719 = vmatprep.subr.bf16.mxu0 0
      %1720 = vmatpush2.bf16.msra.mxu0 0
      %1721 = vmatprep.subr.bf16.mxu0 0
      %1722 = vmatpush2.bf16.msra.mxu0 0
      %1723 = vmatprep.subr.bf16.mxu0 0
      %1724 = vmatpush2.bf16.msra.mxu0 0
      %1725 = vmatprep.subr.bf16.mxu0 0
      %1726 = vmatpush2.bf16.msra.mxu0 0
      %1727 = vmatprep.subr.bf16.mxu0 0
      %1728 = vmatpush2.bf16.msra.mxu0 0
      %1729 = vmatprep.subr.bf16.mxu0 0
      %1730 = vmatpush2.bf16.msra.mxu0 0
      %1731 = vmatprep.subr.bf16.mxu0 0
      %1732 = vmatpush2.bf16.msra.mxu0 0
      %1733 = vmatprep.subr.bf16.mxu0 0
      %1734 = vmatpush2.bf16.msra.mxu0 0
      %1735 = vmatprep.mubr.bf16.mxu0 0
      %1736 = vmatmul.mubr.bf16.gmra.mxu0 %v1515
      %v1737 = vpop.f32.mrf.mxu0
      %v1738 = vadd.f32 0.0, %v1737
      %v1739 = vpop.f32.mrf.mxu0
      %v1740 = vadd.f32 0.0, %v1739
      %v1741 = vpop.f32.mrf.mxu0
      %v1742 = vadd.f32 0.0, %v1741
      %v1743 = vpop.f32.mrf.mxu0
      %v1744 = vadd.f32 0.0, %v1743
      %1745 = vmatprep.mubr.bf16.mxu0 0
      %1746 = vmatmul.mubr.bf16.gmra.mxu0 %v1516
      %v1747 = vpop.f32.mrf.mxu0
      %v1748 = vadd.f32 0.0, %v1747
      %v1749 = vpop.f32.mrf.mxu0
      %v1750 = vadd.f32 0.0, %v1749
      %v1751 = vpop.f32.mrf.mxu0
      %v1752 = vadd.f32 0.0, %v1751
      %v1753 = vpop.f32.mrf.mxu0
      %v1754 = vadd.f32 0.0, %v1753
      %1755 = vdwg.mxu0
      %1756 = vmatprep.subr.bf16.mxu0 %v1670
      %1757 = vmatpush1.bf16.msra.mxu0 %v1669
      %1758 = vmatprep.subr.bf16.mxu0 %v1666
      %1759 = vmatpush1.bf16.msra.mxu0 %v1665
      %1760 = vmatprep.subr.bf16.mxu0 %v1662
      %1761 = vmatpush1.bf16.msra.mxu0 %v1661
      %1762 = vmatprep.subr.bf16.mxu0 %v1658
      %1763 = vmatpush1.bf16.msra.mxu0 %v1657
      %1764 = vmatprep.subr.bf16.mxu0 %v1654
      %1765 = vmatpush1.bf16.msra.mxu0 %v1653
      %1766 = vmatprep.subr.bf16.mxu0 %v1650
      %1767 = vmatpush1.bf16.msra.mxu0 %v1649
      %1768 = vmatprep.subr.bf16.mxu0 %v1646
      %1769 = vmatpush1.bf16.msra.mxu0 %v1645
      %1770 = vmatprep.subr.bf16.mxu0 %v1642
      %1771 = vmatpush1.bf16.msra.mxu0 %v1641
      %1772 = vmatprep.subr.bf16.mxu0 0
      %1773 = vmatpush2.bf16.msra.mxu0 0
      %1774 = vmatprep.subr.bf16.mxu0 0
      %1775 = vmatpush2.bf16.msra.mxu0 0
      %1776 = vmatprep.subr.bf16.mxu0 0
      %1777 = vmatpush2.bf16.msra.mxu0 0
      %1778 = vmatprep.subr.bf16.mxu0 0
      %1779 = vmatpush2.bf16.msra.mxu0 0
      %1780 = vmatprep.subr.bf16.mxu0 0
      %1781 = vmatpush2.bf16.msra.mxu0 0
      %1782 = vmatprep.subr.bf16.mxu0 0
      %1783 = vmatpush2.bf16.msra.mxu0 0
      %1784 = vmatprep.subr.bf16.mxu0 0
      %1785 = vmatpush2.bf16.msra.mxu0 0
      %1786 = vmatprep.subr.bf16.mxu0 0
      %1787 = vmatpush2.bf16.msra.mxu0 0
      %1788 = vmatprep.mubr.bf16.mxu0 0
      %1789 = vmatmul.mubr.bf16.gmra.mxu0 %v1515
      %v1790 = vpop.f32.mrf.mxu0
      %v1791 = vadd.f32 0.0, %v1790
      %v1792 = vpop.f32.mrf.mxu0
      %v1793 = vadd.f32 0.0, %v1792
      %v1794 = vpop.f32.mrf.mxu0
      %v1795 = vadd.f32 0.0, %v1794
      %v1796 = vpop.f32.mrf.mxu0
      %v1797 = vadd.f32 0.0, %v1796
      %1798 = vmatprep.mubr.bf16.mxu0 0
      %1799 = vmatmul.mubr.bf16.gmra.mxu0 %v1516
      %v1800 = vpop.f32.mrf.mxu0
      %v1801 = vadd.f32 0.0, %v1800
      %v1802 = vpop.f32.mrf.mxu0
      %v1803 = vadd.f32 0.0, %v1802
      %v1804 = vpop.f32.mrf.mxu0
      %v1805 = vadd.f32 0.0, %v1804
      %v1806 = vpop.f32.mrf.mxu0
      %v1807 = vadd.f32 0.0, %v1806
      %1808 = vdwg.mxu0
      %v1809 = vadd.f32 %v1527, %v1738
      %v1810 = vadd.f32 %v1528, %v1740
      %v1811 = vadd.f32 %v1529, %v1791
      %v1812 = vadd.f32 %v1530, %v1793
      %v1813 = vadd.f32 %v1531, %v1742
      %v1814 = vadd.f32 %v1532, %v1744
      %v1815 = vadd.f32 %v1533, %v1795
      %v1816 = vadd.f32 %v1534, %v1797
      %v1817 = vadd.f32 %v1535, %v1748
      %v1818 = vadd.f32 %v1536, %v1750
      %v1819 = vadd.f32 %v1537, %v1801
      %v1820 = vadd.f32 %v1538, %v1803
      %v1821 = vadd.f32 %v1539, %v1752
      %v1822 = vadd.f32 %v1540, %v1754
      %v1823 = vadd.f32 %v1541, %v1805
      %v1824 = vadd.f32 %v1542, %v1807
      %v1825 = vxor.u32 %v1809, 2147483648
      %v1826 = vxor.u32 %v1810, 2147483648
      %v1827 = vxor.u32 %v1811, 2147483648
      %v1828 = vxor.u32 %v1813, 2147483648
      %v1829 = vxor.u32 %v1814, 2147483648
      %v1830 = vxor.u32 %v1815, 2147483648
      %v1831 = vxor.u32 %v1817, 2147483648
      %v1832 = vxor.u32 %v1818, 2147483648
      %v1833 = vxor.u32 %v1819, 2147483648
      %v1834 = vxor.u32 %v1821, 2147483648
      %v1835 = vxor.u32 %v1822, 2147483648
      %v1836 = vxor.u32 %v1823, 2147483648
      %v1837 = vmul.f32 %v1825, 1.442695
      %v1838 = vpow.pop %v1837
      %v1839 = vmul.f32 %v1826, 1.442695
      %v1840 = vpow.pop %v1839
      %v1841 = vmul.f32 %v1827, 1.442695
      %v1842 = vpow.pop %v1841
      %v1843 = vmul.f32 %v1828, 1.442695
      %v1844 = vpow.pop %v1843
      %v1845 = vmul.f32 %v1829, 1.442695
      %v1846 = vpow.pop %v1845
      %v1847 = vmul.f32 %v1830, 1.442695
      %v1848 = vpow.pop %v1847
      %v1849 = vmul.f32 %v1831, 1.442695
      %v1850 = vpow.pop %v1849
      %v1851 = vmul.f32 %v1832, 1.442695
      %v1852 = vpow.pop %v1851
      %v1853 = vmul.f32 %v1833, 1.442695
      %v1854 = vpow.pop %v1853
      %v1855 = vmul.f32 %v1834, 1.442695
      %v1856 = vpow.pop %v1855
      %v1857 = vmul.f32 %v1835, 1.442695
      %v1858 = vpow.pop %v1857
      %v1859 = vmul.f32 %v1836, 1.442695
      %v1860 = vpow.pop %v1859
      %v1861 = vadd.f32 %v1838, 1.0
      %v1862 = vadd.f32 %v1840, 1.0
      %v1863 = vadd.f32 %v1842, 1.0
      %v1864 = vadd.f32 %v1844, 1.0
      %v1865 = vadd.f32 %v1846, 1.0
      %v1866 = vadd.f32 %v1848, 1.0
      %v1867 = vadd.f32 %v1850, 1.0
      %v1868 = vadd.f32 %v1852, 1.0
      %v1869 = vadd.f32 %v1854, 1.0
      %v1870 = vadd.f32 %v1856, 1.0
      %v1871 = vadd.f32 %v1858, 1.0
      %v1872 = vadd.f32 %v1860, 1.0
      %v1873 = vrcp.pop %v1861
      %v1874 = vmul.f32 1.0, %v1873
      %v1875 = vrcp.pop %v1862
      %v1876 = vmul.f32 1.0, %v1875
      %v1877 = vrcp.pop %v1863
      %v1878 = vmul.f32 1.0, %v1877
      %v1879 = vrcp.pop %v1864
      %v1880 = vmul.f32 1.0, %v1879
      %v1881 = vrcp.pop %v1865
      %v1882 = vmul.f32 1.0, %v1881
      %v1883 = vrcp.pop %v1866
      %v1884 = vmul.f32 1.0, %v1883
      %v1885 = vrcp.pop %v1867
      %v1886 = vmul.f32 1.0, %v1885
      %v1887 = vrcp.pop %v1868
      %v1888 = vmul.f32 1.0, %v1887
      %v1889 = vrcp.pop %v1869
      %v1890 = vmul.f32 1.0, %v1889
      %v1891 = vrcp.pop %v1870
      %v1892 = vmul.f32 1.0, %v1891
      %v1893 = vrcp.pop %v1871
      %v1894 = vmul.f32 1.0, %v1893
      %v1895 = vrcp.pop %v1872
      %v1896 = vmul.f32 1.0, %v1895
      %v1897 = vtanh.pop %v1812
      %v1898 = vtanh.pop %v1816
      %v1899 = vtanh.pop %v1820
      %v1900 = vtanh.pop %v1824
      %v1901 = vmul.f32 %v1876, %v1517
      %v1902 = vmul.f32 %v1882, %v1518
      %v1903 = vmul.f32 %v1888, %v1519
      %v1904 = vmul.f32 %v1894, %v1520
      %v1905 = vmul.f32 %v1874, %v1897
      %v1906 = vmul.f32 %v1880, %v1898
      %v1907 = vmul.f32 %v1886, %v1899
      %v1908 = vmul.f32 %v1892, %v1900
      %v1909 = vadd.f32 %v1901, %v1905
      %v1910 = vadd.f32 %v1902, %v1906
      %v1911 = vadd.f32 %v1903, %v1907
      %v1912 = vadd.f32 %v1904, %v1908
      %v1913 = vtanh.pop %v1909
      %v1914 = vtanh.pop %v1910
      %v1915 = vtanh.pop %v1911
      %v1916 = vtanh.pop %v1912
      %v1917 = vmul.f32 %v1878, %v1913
      %v1918 = vmul.f32 %v1884, %v1914
      %v1919 = vmul.f32 %v1890, %v1915
      %v1920 = vmul.f32 %v1896, %v1916
      %v1921 = vpack.c.bf16 %v1918, %v1917
      %v1922 = vpack.c.bf16 %v1920, %v1919
      %v1925 = vunpack.c.l.b16 %v1921
      %v1926 = vunpack.c.h.b16 %v1921
      %v1927 = vunpack.c.l.b16 %v1922
      %v1928 = vunpack.c.h.b16 %v1922
      %v1929 = vpack.c.b16 %v1925, %v1925
      %v1930 = vpack.c.b16 %v1926, %v1926
      %v1931 = vpack.c.b16 %v1927, %v1927
      %v1932 = vpack.c.b16 %v1928, %v1928
      %s1937 = smul.addr %s1522, 4
      %s1938 = scalar_lea.vmem [#allocation3], %s1937
      %1939 = vst [vmem:[%s1938] sm:$0xf] %v1929
      %1940 = vst [vmem:[%s1938 + $0x4] sm:$0xf] %v1930
      %1941 = vst [vmem:[%s1938 + $0x8] sm:$0xf] %v1931
      %1942 = vst [vmem:[%s1938 + $0xc] sm:$0xf] %v1932
    $region46: #{cannolo_forward_windows.1} parent=1 // loop_footer
      %s1514 = sadd.s32 1, %s1510
    $region47: #{cannolo_forward_windows.1} parent=1 // loop_footer_branch
      %1509 = sbr.rel target = $region43
    $region48: #{cannolo_forward_windows.1} parent=1 // loop_exit
      _
    %v1943 = vld [vmem:[#allocation3] sm:$0xf]
    %v1944 = vld [vmem:[#allocation3 + $0x4] sm:$0xf]
    %v1945 = vld [vmem:[#allocation3 + $0x8] sm:$0xf]
    %v1946 = vld [vmem:[#allocation3 + $0xc] sm:$0xf]
    %v1947 = vld [vmem:[#allocation3 + $0x10] sm:$0xf]
    %v1948 = vld [vmem:[#allocation3 + $0x14] sm:$0xf]
    %v1949 = vld [vmem:[#allocation3 + $0x18] sm:$0xf]
    %v1950 = vld [vmem:[#allocation3 + $0x1c] sm:$0xf]
    %v1951 = vld [vmem:[#allocation3 + $0x20] sm:$0xf]
    %v1952 = vld [vmem:[#allocation3 + $0x24] sm:$0xf]
    %v1953 = vld [vmem:[#allocation3 + $0x28] sm:$0xf]
    %v1954 = vld [vmem:[#allocation3 + $0x2c] sm:$0xf]
    %v1955 = vld [vmem:[#allocation3 + $0x30] sm:$0xf]
    %v1956 = vld [vmem:[#allocation3 + $0x34] sm:$0xf]
    %v1957 = vld [vmem:[#allocation3 + $0x38] sm:$0xf]
    %v1958 = vld [vmem:[#allocation3 + $0x3c] sm:$0xf]
    %v1959 = vld [vmem:[#allocation3 + $0x40] sm:$0xf]
    %v1960 = vld [vmem:[#allocation3 + $0x44] sm:$0xf]
    %v1961 = vld [vmem:[#allocation3 + $0x48] sm:$0xf]
    %v1962 = vld [vmem:[#allocation3 + $0x4c] sm:$0xf]
    %v1963 = vld [vmem:[#allocation3 + $0x50] sm:$0xf]
    %v1964 = vld [vmem:[#allocation3 + $0x54] sm:$0xf]
    %v1965 = vld [vmem:[#allocation3 + $0x58] sm:$0xf]
    %v1966 = vld [vmem:[#allocation3 + $0x5c] sm:$0xf]
    %v1967 = vld [vmem:[#allocation3 + $0x60] sm:$0xf]
    %v1968 = vld [vmem:[#allocation3 + $0x64] sm:$0xf]
    %v1969 = vld [vmem:[#allocation3 + $0x68] sm:$0xf]
    %v1970 = vld [vmem:[#allocation3 + $0x6c] sm:$0xf]
    %v1971 = vld [vmem:[#allocation3 + $0x70] sm:$0xf]
    %v1972 = vld [vmem:[#allocation3 + $0x74] sm:$0xf]
    %v1973 = vld [vmem:[#allocation3 + $0x78] sm:$0xf]
    %v1974 = vld [vmem:[#allocation3 + $0x7c] sm:$0xf]
    %v1975 = vld [vmem:[%s4] sm:$0xff]
    %v1976 = vld [vmem:[%s4 + $0x8] sm:$0xff]
    %v1977 = vld [vmem:[%s4 + $0x10] sm:$0xff]
    %v1978 = vld [vmem:[%s4 + $0x18] sm:$0xff]
    %v1979 = vld [vmem:[%s4 + $0x20] sm:$0xff]
    %v1980 = vld [vmem:[%s4 + $0x28] sm:$0xff]
    %v1981 = vld [vmem:[%s4 + $0x30] sm:$0xff]
    %v1982 = vld [vmem:[%s4 + $0x38] sm:$0xff]
    %v1983 = vld [vmem:[%s4 + $0x40] sm:$0xff]
    %v1984 = vld [vmem:[%s4 + $0x48] sm:$0xff]
    %v1985 = vld [vmem:[%s4 + $0x50] sm:$0xff]
    %v1986 = vld [vmem:[%s4 + $0x58] sm:$0xff]
    %v1987 = vld [vmem:[%s4 + $0x60] sm:$0xff]
    %v1988 = vld [vmem:[%s4 + $0x68] sm:$0xff]
    %v1989 = vld [vmem:[%s4 + $0x70] sm:$0xff]
    %v1990 = vld [vmem:[%s4 + $0x78] sm:$0xff]
    %v1991 = vld [vmem:[%s4 + $0x80] sm:$0xff]
    %v1992 = vld [vmem:[%s4 + $0x88] sm:$0xff]
    %v1993 = vld [vmem:[%s4 + $0x90] sm:$0xff]
    %v1994 = vld [vmem:[%s4 + $0x98] sm:$0xff]
    %v1995 = vld [vmem:[%s4 + $0xa0] sm:$0xff]
    %v1996 = vld [vmem:[%s4 + $0xa8] sm:$0xff]
    %v1997 = vld [vmem:[%s4 + $0xb0] sm:$0xff]
    %v1998 = vld [vmem:[%s4 + $0xb8] sm:$0xff]
    %v1999 = vld [vmem:[%s4 + $0xc0] sm:$0xff]
    %v2000 = vld [vmem:[%s4 + $0xc8] sm:$0xff]
    %v2001 = vld [vmem:[%s4 + $0xd0] sm:$0xff]
    %v2002 = vld [vmem:[%s4 + $0xd8] sm:$0xff]
    %v2003 = vld [vmem:[%s4 + $0xe0] sm:$0xff]
    %v2004 = vld [vmem:[%s4 + $0xe8] sm:$0xff]
    %v2005 = vld [vmem:[%s4 + $0xf0] sm:$0xff]
    %v2006 = vld [vmem:[%s4 + $0xf8] sm:$0xff]
    %s2007 = scalar_lea.vmem %s6, 4
    %v2008 = vld [vmem:[%s2007] sm:$0xf]
    %v2010 = vlaneseq
    %v2011 = vshrl.u32 %v2010, 7
    %v2012 = vsub.s32 0, %v2011
    %v2013 = vrot.slane %v2008, %v2012
    %v2014 = vlaneseq
    %v2015 = vshrl.u32 %v2014, 7
    %v2016 = vsub.s32 1, %v2015
    %v2017 = vrot.slane %v2008, %v2016
    %v2018 = vlaneseq
    %v2019 = vshrl.u32 %v2018, 7
    %v2020 = vsub.s32 2, %v2019
    %v2021 = vrot.slane %v2008, %v2020
    %v2022 = vlaneseq
    %v2023 = vshrl.u32 %v2022, 7
    %v2024 = vsub.s32 3, %v2023
    %v2025 = vrot.slane %v2008, %v2024
    %v2062 = vunpack.c.l.b16 %v1943
    %v2063 = vunpack.c.l.b16 %v1944
    %v2064 = vunpack.c.l.b16 %v1945
    %v2065 = vunpack.c.l.b16 %v1946
    %v2066 = vunpack.c.l.b16 %v1947
    %v2067 = vunpack.c.l.b16 %v1948
    %v2068 = vunpack.c.l.b16 %v1949
    %v2069 = vunpack.c.l.b16 %v1950
    %v2070 = vunpack.c.l.b16 %v1951
    %v2071 = vunpack.c.l.b16 %v1952
    %v2072 = vunpack.c.l.b16 %v1953
    %v2073 = vunpack.c.l.b16 %v1954
    %v2074 = vunpack.c.l.b16 %v1955
    %v2075 = vunpack.c.l.b16 %v1956
    %v2076 = vunpack.c.l.b16 %v1957
    %v2077 = vunpack.c.l.b16 %v1958
    %v2078 = vunpack.c.l.b16 %v1959
    %v2079 = vunpack.c.l.b16 %v1960
    %v2080 = vunpack.c.l.b16 %v1961
    %v2081 = vunpack.c.l.b16 %v1962
    %v2082 = vunpack.c.l.b16 %v1963
    %v2083 = vunpack.c.l.b16 %v1964
    %v2084 = vunpack.c.l.b16 %v1965
    %v2085 = vunpack.c.l.b16 %v1966
    %v2086 = vunpack.c.l.b16 %v1967
    %v2087 = vunpack.c.l.b16 %v1968
    %v2088 = vunpack.c.l.b16 %v1969
    %v2089 = vunpack.c.l.b16 %v1970
    %v2090 = vunpack.c.l.b16 %v1971
    %v2091 = vunpack.c.l.b16 %v1972
    %v2092 = vunpack.c.l.b16 %v1973
    %v2093 = vunpack.c.l.b16 %v1974
    %v2094 = vpack.c.b16 %v2063, %v2062
    %v2095 = vpack.c.b16 %v2065, %v2064
    %v2096 = vpack.c.b16 %v2067, %v2066
    %v2097 = vpack.c.b16 %v2069, %v2068
    %v2098 = vpack.c.b16 %v2071, %v2070
    %v2099 = vpack.c.b16 %v2073, %v2072
    %v2100 = vpack.c.b16 %v2075, %v2074
    %v2101 = vpack.c.b16 %v2077, %v2076
    %v2102 = vpack.c.b16 %v2079, %v2078
    %v2103 = vpack.c.b16 %v2081, %v2080
    %v2104 = vpack.c.b16 %v2083, %v2082
    %v2105 = vpack.c.b16 %v2085, %v2084
    %v2106 = vpack.c.b16 %v2087, %v2086
    %v2107 = vpack.c.b16 %v2089, %v2088
    %v2108 = vpack.c.b16 %v2091, %v2090
    %v2109 = vpack.c.b16 %v2093, %v2092
    %v2158 = vunpack.c.l.b16 %v1975
    %v2159 = vunpack.c.h.b16 %v1975
    %v2160 = vunpack.c.l.b16 %v1976
    %v2161 = vunpack.c.h.b16 %v1976
    %v2162 = vunpack.c.l.b16 %v1977
    %v2163 = vunpack.c.h.b16 %v1977
    %v2164 = vunpack.c.l.b16 %v1978
    %v2165 = vunpack.c.h.b16 %v1978
    %v2166 = vunpack.c.l.b16 %v1979
    %v2167 = vunpack.c.h.b16 %v1979
    %v2168 = vunpack.c.l.b16 %v1980
    %v2169 = vunpack.c.h.b16 %v1980
    %v2170 = vunpack.c.l.b16 %v1981
    %v2171 = vunpack.c.h.b16 %v1981
    %v2172 = vunpack.c.l.b16 %v1982
    %v2173 = vunpack.c.h.b16 %v1982
    %v2174 = vunpack.c.l.b16 %v1983
    %v2175 = vunpack.c.h.b16 %v1983
    %v2176 = vunpack.c.l.b16 %v1984
    %v2177 = vunpack.c.h.b16 %v1984
    %v2178 = vunpack.c.l.b16 %v1985
    %v2179 = vunpack.c.h.b16 %v1985
    %v2180 = vunpack.c.l.b16 %v1986
    %v2181 = vunpack.c.h.b16 %v1986
    %v2182 = vunpack.c.l.b16 %v1987
    %v2183 = vunpack.c.h.b16 %v1987
    %v2184 = vunpack.c.l.b16 %v1988
    %v2185 = vunpack.c.h.b16 %v1988
    %v2186 = vunpack.c.l.b16 %v1989
    %v2187 = vunpack.c.h.b16 %v1989
    %v2188 = vunpack.c.l.b16 %v1990
    %v2189 = vunpack.c.h.b16 %v1990
    %v2190 = vunpack.c.l.b16 %v1991
    %v2191 = vunpack.c.h.b16 %v1991
    %v2192 = vunpack.c.l.b16 %v1992
    %v2193 = vunpack.c.h.b16 %v1992
    %v2194 = vunpack.c.l.b16 %v1993
    %v2195 = vunpack.c.h.b16 %v1993
    %v2196 = vunpack.c.l.b16 %v1994
    %v2197 = vunpack.c.h.b16 %v1994
    %v2198 = vunpack.c.l.b16 %v1995
    %v2199 = vunpack.c.h.b16 %v1995
    %v2200 = vunpack.c.l.b16 %v1996
    %v2201 = vunpack.c.h.b16 %v1996
    %v2202 = vunpack.c.l.b16 %v1997
    %v2203 = vunpack.c.h.b16 %v1997
    %v2204 = vunpack.c.l.b16 %v1998
    %v2205 = vunpack.c.h.b16 %v1998
    %v2206 = vunpack.c.l.b16 %v1999
    %v2207 = vunpack.c.h.b16 %v1999
    %v2208 = vunpack.c.l.b16 %v2000
    %v2209 = vunpack.c.h.b16 %v2000
    %v2210 = vunpack.c.l.b16 %v2001
    %v2211 = vunpack.c.h.b16 %v2001
    %v2212 = vunpack.c.l.b16 %v2002
    %v2213 = vunpack.c.h.b16 %v2002
    %v2214 = vunpack.c.l.b16 %v2003
    %v2215 = vunpack.c.h.b16 %v2003
    %v2216 = vunpack.c.l.b16 %v2004
    %v2217 = vunpack.c.h.b16 %v2004
    %v2218 = vunpack.c.l.b16 %v2005
    %v2219 = vunpack.c.h.b16 %v2005
    %v2220 = vunpack.c.l.b16 %v2006
    %v2221 = vunpack.c.h.b16 %v2006
    %v2222 = vpack.c.b16 %v2162, %v2158
    %v2223 = vpack.c.b16 %v2163, %v2159
    %v2224 = vpack.c.b16 %v2164, %v2160
    %v2225 = vpack.c.b16 %v2165, %v2161
    %v2226 = vpack.c.b16 %v2170, %v2166
    %v2227 = vpack.c.b16 %v2171, %v2167
    %v2228 = vpack.c.b16 %v2172, %v2168
    %v2229 = vpack.c.b16 %v2173, %v2169
    %v2230 = vpack.c.b16 %v2178, %v2174
    %v2231 = vpack.c.b16 %v2179, %v2175
    %v2232 = vpack.c.b16 %v2180, %v2176
    %v2233 = vpack.c.b16 %v2181, %v2177
    %v2234 = vpack.c.b16 %v2186, %v2182
    %v2235 = vpack.c.b16 %v2187, %v2183
    %v2236 = vpack.c.b16 %v2188, %v2184
    %v2237 = vpack.c.b16 %v2189, %v2185
    %v2238 = vpack.c.b16 %v2194, %v2190
    %v2239 = vpack.c.b16 %v2195, %v2191
    %v2240 = vpack.c.b16 %v2196, %v2192
    %v2241 = vpack.c.b16 %v2197, %v2193
    %v2242 = vpack.c.b16 %v2202, %v2198
    %v2243 = vpack.c.b16 %v2203, %v2199
    %v2244 = vpack.c.b16 %v2204, %v2200
    %v2245 = vpack.c.b16 %v2205, %v2201
    %v2246 = vpack.c.b16 %v2210, %v2206
    %v2247 = vpack.c.b16 %v2211, %v2207
    %v2248 = vpack.c.b16 %v2212, %v2208
    %v2249 = vpack.c.b16 %v2213, %v2209
    %v2250 = vpack.c.b16 %v2218, %v2214
    %v2251 = vpack.c.b16 %v2219, %v2215
    %v2252 = vpack.c.b16 %v2220, %v2216
    %v2253 = vpack.c.b16 %v2221, %v2217
    %2286 = vmatprep.subr.bf16.mxu0 %v2251
    %2287 = vmatpush1.bf16.msra.mxu0 %v2250
    %2288 = vmatprep.subr.bf16.mxu0 %v2247
    %2289 = vmatpush1.bf16.msra.mxu0 %v2246
    %2290 = vmatprep.subr.bf16.mxu0 %v2243
    %2291 = vmatpush1.bf16.msra.mxu0 %v2242
    %2292 = vmatprep.subr.bf16.mxu0 %v2239
    %2293 = vmatpush1.bf16.msra.mxu0 %v2238
    %2294 = vmatprep.subr.bf16.mxu0 %v2235
    %2295 = vmatpush1.bf16.msra.mxu0 %v2234
    %2296 = vmatprep.subr.bf16.mxu0 %v2231
    %2297 = vmatpush1.bf16.msra.mxu0 %v2230
    %2298 = vmatprep.subr.bf16.mxu0 %v2227
    %2299 = vmatpush1.bf16.msra.mxu0 %v2226
    %2300 = vmatprep.subr.bf16.mxu0 %v2223
    %2301 = vmatpush1.bf16.msra.mxu0 %v2222
    %2302 = vmatprep.subr.bf16.mxu0 0
    %2303 = vmatpush2.bf16.msra.mxu0 0
    %2304 = vmatprep.subr.bf16.mxu0 0
    %2305 = vmatpush2.bf16.msra.mxu0 0
    %2306 = vmatprep.subr.bf16.mxu0 0
    %2307 = vmatpush2.bf16.msra.mxu0 0
    %2308 = vmatprep.subr.bf16.mxu0 0
    %2309 = vmatpush2.bf16.msra.mxu0 0
    %2310 = vmatprep.subr.bf16.mxu0 0
    %2311 = vmatpush2.bf16.msra.mxu0 0
    %2312 = vmatprep.subr.bf16.mxu0 0
    %2313 = vmatpush2.bf16.msra.mxu0 0
    %2314 = vmatprep.subr.bf16.mxu0 0
    %2315 = vmatpush2.bf16.msra.mxu0 0
    %2316 = vmatprep.subr.bf16.mxu0 0
    %2317 = vmatpush2.bf16.msra.mxu0 0
    %2318 = vmatprep.mubr.bf16.mxu0 0
    %2319 = vmatmul.mubr.bf16.gmra.mxu0 %v2094
    %v2320 = vpop.f32.mrf.mxu0
    %v2321 = vadd.f32 %v2013, %v2320
    %v2322 = vpop.f32.mrf.mxu0
    %v2323 = vadd.f32 %v2017, %v2322
    %v2324 = vpop.f32.mrf.mxu0
    %v2325 = vadd.f32 %v2013, %v2324
    %v2326 = vpop.f32.mrf.mxu0
    %v2327 = vadd.f32 %v2017, %v2326
    %2328 = vmatprep.mubr.bf16.mxu0 0
    %2329 = vmatmul.mubr.bf16.gmra.mxu0 %v2095
    %v2330 = vpop.f32.mrf.mxu0
    %v2331 = vadd.f32 %v2013, %v2330
    %v2332 = vpop.f32.mrf.mxu0
    %v2333 = vadd.f32 %v2017, %v2332
    %v2334 = vpop.f32.mrf.mxu0
    %v2335 = vadd.f32 %v2013, %v2334
    %v2336 = vpop.f32.mrf.mxu0
    %v2337 = vadd.f32 %v2017, %v2336
    %2338 = vmatprep.mubr.bf16.mxu0 0
    %2339 = vmatmul.mubr.bf16.gmra.mxu0 %v2096
    %v2340 = vpop.f32.mrf.mxu0
    %v2341 = vadd.f32 %v2013, %v2340
    %v2342 = vpop.f32.mrf.mxu0
    %v2343 = vadd.f32 %v2017, %v2342
    %v2344 = vpop.f32.mrf.mxu0
    %v2345 = vadd.f32 %v2013, %v2344
    %v2346 = vpop.f32.mrf.mxu0
    %v2347 = vadd.f32 %v2017, %v2346
    %2348 = vmatprep.mubr.bf16.mxu0 0
    %2349 = vmatmul.mubr.bf16.gmra.mxu0 %v2097
    %v2350 = vpop.f32.mrf.mxu0
    %v2351 = vadd.f32 %v2013, %v2350
    %v2352 = vpop.f32.mrf.mxu0
    %v2353 = vadd.f32 %v2017, %v2352
    %v2354 = vpop.f32.mrf.mxu0
    %v2355 = vadd.f32 %v2013, %v2354
    %v2356 = vpop.f32.mrf.mxu0
    %v2357 = vadd.f32 %v2017, %v2356
    %2358 = vmatprep.mubr.bf16.mxu0 0
    %2359 = vmatmul.mubr.bf16.gmra.mxu0 %v2098
    %v2360 = vpop.f32.mrf.mxu0
    %v2361 = vadd.f32 %v2013, %v2360
    %v2362 = vpop.f32.mrf.mxu0
    %v2363 = vadd.f32 %v2017, %v2362
    %v2364 = vpop.f32.mrf.mxu0
    %v2365 = vadd.f32 %v2013, %v2364
    %v2366 = vpop.f32.mrf.mxu0
    %v2367 = vadd.f32 %v2017, %v2366
    %2368 = vmatprep.mubr.bf16.mxu0 0
    %2369 = vmatmul.mubr.bf16.gmra.mxu0 %v2099
    %v2370 = vpop.f32.mrf.mxu0
    %v2371 = vadd.f32 %v2013, %v2370
    %v2372 = vpop.f32.mrf.mxu0
    %v2373 = vadd.f32 %v2017, %v2372
    %v2374 = vpop.f32.mrf.mxu0
    %v2375 = vadd.f32 %v2013, %v2374
    %v2376 = vpop.f32.mrf.mxu0
    %v2377 = vadd.f32 %v2017, %v2376
    %2378 = vmatprep.mubr.bf16.mxu0 0
    %2379 = vmatmul.mubr.bf16.gmra.mxu0 %v2100
    %v2380 = vpop.f32.mrf.mxu0
    %v2381 = vadd.f32 %v2013, %v2380
    %v2382 = vpop.f32.mrf.mxu0
    %v2383 = vadd.f32 %v2017, %v2382
    %v2384 = vpop.f32.mrf.mxu0
    %v2385 = vadd.f32 %v2013, %v2384
    %v2386 = vpop.f32.mrf.mxu0
    %v2387 = vadd.f32 %v2017, %v2386
    %2388 = vmatprep.mubr.bf16.mxu0 0
    %2389 = vmatmul.mubr.bf16.gmra.mxu0 %v2101
    %v2390 = vpop.f32.mrf.mxu0
    %v2391 = vadd.f32 %v2013, %v2390
    %v2392 = vpop.f32.mrf.mxu0
    %v2393 = vadd.f32 %v2017, %v2392
    %v2394 = vpop.f32.mrf.mxu0
    %v2395 = vadd.f32 %v2013, %v2394
    %v2396 = vpop.f32.mrf.mxu0
    %v2397 = vadd.f32 %v2017, %v2396
    %2398 = vmatprep.mubr.bf16.mxu0 0
    %2399 = vmatmul.mubr.bf16.gmra.mxu0 %v2102
    %v2400 = vpop.f32.mrf.mxu0
    %v2401 = vadd.f32 %v2013, %v2400
    %v2402 = vpop.f32.mrf.mxu0
    %v2403 = vadd.f32 %v2017, %v2402
    %v2404 = vpop.f32.mrf.mxu0
    %v2405 = vadd.f32 %v2013, %v2404
    %v2406 = vpop.f32.mrf.mxu0
    %v2407 = vadd.f32 %v2017, %v2406
    %2408 = vmatprep.mubr.bf16.mxu0 0
    %2409 = vmatmul.mubr.bf16.gmra.mxu0 %v2103
    %v2410 = vpop.f32.mrf.mxu0
    %v2411 = vadd.f32 %v2013, %v2410
    %v2412 = vpop.f32.mrf.mxu0
    %v2413 = vadd.f32 %v2017, %v2412
    %v2414 = vpop.f32.mrf.mxu0
    %v2415 = vadd.f32 %v2013, %v2414
    %v2416 = vpop.f32.mrf.mxu0
    %v2417 = vadd.f32 %v2017, %v2416
    %2418 = vmatprep.mubr.bf16.mxu0 0
    %2419 = vmatmul.mubr.bf16.gmra.mxu0 %v2104
    %v2420 = vpop.f32.mrf.mxu0
    %v2421 = vadd.f32 %v2013, %v2420
    %v2422 = vpop.f32.mrf.mxu0
    %v2423 = vadd.f32 %v2017, %v2422
    %v2424 = vpop.f32.mrf.mxu0
    %v2425 = vadd.f32 %v2013, %v2424
    %v2426 = vpop.f32.mrf.mxu0
    %v2427 = vadd.f32 %v2017, %v2426
    %2428 = vmatprep.mubr.bf16.mxu0 0
    %2429 = vmatmul.mubr.bf16.gmra.mxu0 %v2105
    %v2430 = vpop.f32.mrf.mxu0
    %v2431 = vadd.f32 %v2013, %v2430
    %v2432 = vpop.f32.mrf.mxu0
    %v2433 = vadd.f32 %v2017, %v2432
    %v2434 = vpop.f32.mrf.mxu0
    %v2435 = vadd.f32 %v2013, %v2434
    %v2436 = vpop.f32.mrf.mxu0
    %v2437 = vadd.f32 %v2017, %v2436
    %2438 = vmatprep.mubr.bf16.mxu0 0
    %2439 = vmatmul.mubr.bf16.gmra.mxu0 %v2106
    %v2440 = vpop.f32.mrf.mxu0
    %v2441 = vadd.f32 %v2013, %v2440
    %v2442 = vpop.f32.mrf.mxu0
    %v2443 = vadd.f32 %v2017, %v2442
    %v2444 = vpop.f32.mrf.mxu0
    %v2445 = vadd.f32 %v2013, %v2444
    %v2446 = vpop.f32.mrf.mxu0
    %v2447 = vadd.f32 %v2017, %v2446
    %2448 = vmatprep.mubr.bf16.mxu0 0
    %2449 = vmatmul.mubr.bf16.gmra.mxu0 %v2107
    %v2450 = vpop.f32.mrf.mxu0
    %v2451 = vadd.f32 %v2013, %v2450
    %v2452 = vpop.f32.mrf.mxu0
    %v2453 = vadd.f32 %v2017, %v2452
    %v2454 = vpop.f32.mrf.mxu0
    %v2455 = vadd.f32 %v2013, %v2454
    %v2456 = vpop.f32.mrf.mxu0
    %v2457 = vadd.f32 %v2017, %v2456
    %2458 = vmatprep.mubr.bf16.mxu0 0
    %2459 = vmatmul.mubr.bf16.gmra.mxu0 %v2108
    %v2460 = vpop.f32.mrf.mxu0
    %v2461 = vadd.f32 %v2013, %v2460
    %v2462 = vpop.f32.mrf.mxu0
    %v2463 = vadd.f32 %v2017, %v2462
    %v2464 = vpop.f32.mrf.mxu0
    %v2465 = vadd.f32 %v2013, %v2464
    %v2466 = vpop.f32.mrf.mxu0
    %v2467 = vadd.f32 %v2017, %v2466
    %2468 = vmatprep.mubr.bf16.mxu0 0
    %2469 = vmatmul.mubr.bf16.gmra.mxu0 %v2109
    %v2470 = vpop.f32.mrf.mxu0
    %v2471 = vadd.f32 %v2013, %v2470
    %v2472 = vpop.f32.mrf.mxu0
    %v2473 = vadd.f32 %v2017, %v2472
    %v2474 = vpop.f32.mrf.mxu0
    %v2475 = vadd.f32 %v2013, %v2474
    %v2476 = vpop.f32.mrf.mxu0
    %v2477 = vadd.f32 %v2017, %v2476
    %2478 = vdwg.mxu0
    %2479 = vmatprep.subr.bf16.mxu0 %v2253
    %2480 = vmatpush1.bf16.msra.mxu0 %v2252
    %2481 = vmatprep.subr.bf16.mxu0 %v2249
    %2482 = vmatpush1.bf16.msra.mxu0 %v2248
    %2483 = vmatprep.subr.bf16.mxu0 %v2245
    %2484 = vmatpush1.bf16.msra.mxu0 %v2244
    %2485 = vmatprep.subr.bf16.mxu0 %v2241
    %2486 = vmatpush1.bf16.msra.mxu0 %v2240
    %2487 = vmatprep.subr.bf16.mxu0 %v2237
    %2488 = vmatpush1.bf16.msra.mxu0 %v2236
    %2489 = vmatprep.subr.bf16.mxu0 %v2233
    %2490 = vmatpush1.bf16.msra.mxu0 %v2232
    %2491 = vmatprep.subr.bf16.mxu0 %v2229
    %2492 = vmatpush1.bf16.msra.mxu0 %v2228
    %2493 = vmatprep.subr.bf16.mxu0 %v2225
    %2494 = vmatpush1.bf16.msra.mxu0 %v2224
    %2495 = vmatprep.subr.bf16.mxu0 0
    %2496 = vmatpush2.bf16.msra.mxu0 0
    %2497 = vmatprep.subr.bf16.mxu0 0
    %2498 = vmatpush2.bf16.msra.mxu0 0
    %2499 = vmatprep.subr.bf16.mxu0 0
    %2500 = vmatpush2.bf16.msra.mxu0 0
    %2501 = vmatprep.subr.bf16.mxu0 0
    %2502 = vmatpush2.bf16.msra.mxu0 0
    %2503 = vmatprep.subr.bf16.mxu0 0
    %2504 = vmatpush2.bf16.msra.mxu0 0
    %2505 = vmatprep.subr.bf16.mxu0 0
    %2506 = vmatpush2.bf16.msra.mxu0 0
    %2507 = vmatprep.subr.bf16.mxu0 0
    %2508 = vmatpush2.bf16.msra.mxu0 0
    %2509 = vmatprep.subr.bf16.mxu0 0
    %2510 = vmatpush2.bf16.msra.mxu0 0
    %2511 = vmatprep.mubr.bf16.mxu0 0
    %2512 = vmatmul.mubr.bf16.gmra.mxu0 %v2094
    %v2513 = vpop.f32.mrf.mxu0
    %v2514 = vadd.f32 %v2021, %v2513
    %v2515 = vpop.f32.mrf.mxu0
    %v2516 = vadd.f32 %v2025, %v2515
    %v2517 = vpop.f32.mrf.mxu0
    %v2518 = vadd.f32 %v2021, %v2517
    %v2519 = vpop.f32.mrf.mxu0
    %v2520 = vadd.f32 %v2025, %v2519
    %2521 = vmatprep.mubr.bf16.mxu0 0
    %2522 = vmatmul.mubr.bf16.gmra.mxu0 %v2095
    %v2523 = vpop.f32.mrf.mxu0
    %v2524 = vadd.f32 %v2021, %v2523
    %v2525 = vpop.f32.mrf.mxu0
    %v2526 = vadd.f32 %v2025, %v2525
    %v2527 = vpop.f32.mrf.mxu0
    %v2528 = vadd.f32 %v2021, %v2527
    %v2529 = vpop.f32.mrf.mxu0
    %v2530 = vadd.f32 %v2025, %v2529
    %2531 = vmatprep.mubr.bf16.mxu0 0
    %2532 = vmatmul.mubr.bf16.gmra.mxu0 %v2096
    %v2533 = vpop.f32.mrf.mxu0
    %v2534 = vadd.f32 %v2021, %v2533
    %v2535 = vpop.f32.mrf.mxu0
    %v2536 = vadd.f32 %v2025, %v2535
    %v2537 = vpop.f32.mrf.mxu0
    %v2538 = vadd.f32 %v2021, %v2537
    %v2539 = vpop.f32.mrf.mxu0
    %v2540 = vadd.f32 %v2025, %v2539
    %2541 = vmatprep.mubr.bf16.mxu0 0
    %2542 = vmatmul.mubr.bf16.gmra.mxu0 %v2097
    %v2543 = vpop.f32.mrf.mxu0
    %v2544 = vadd.f32 %v2021, %v2543
    %v2545 = vpop.f32.mrf.mxu0
    %v2546 = vadd.f32 %v2025, %v2545
    %v2547 = vpop.f32.mrf.mxu0
    %v2548 = vadd.f32 %v2021, %v2547
    %v2549 = vpop.f32.mrf.mxu0
    %v2550 = vadd.f32 %v2025, %v2549
    %2551 = vmatprep.mubr.bf16.mxu0 0
    %2552 = vmatmul.mubr.bf16.gmra.mxu0 %v2098
    %v2553 = vpop.f32.mrf.mxu0
    %v2554 = vadd.f32 %v2021, %v2553
    %v2555 = vpop.f32.mrf.mxu0
    %v2556 = vadd.f32 %v2025, %v2555
    %v2557 = vpop.f32.mrf.mxu0
    %v2558 = vadd.f32 %v2021, %v2557
    %v2559 = vpop.f32.mrf.mxu0
    %v2560 = vadd.f32 %v2025, %v2559
    %2561 = vmatprep.mubr.bf16.mxu0 0
    %2562 = vmatmul.mubr.bf16.gmra.mxu0 %v2099
    %v2563 = vpop.f32.mrf.mxu0
    %v2564 = vadd.f32 %v2021, %v2563
    %v2565 = vpop.f32.mrf.mxu0
    %v2566 = vadd.f32 %v2025, %v2565
    %v2567 = vpop.f32.mrf.mxu0
    %v2568 = vadd.f32 %v2021, %v2567
    %v2569 = vpop.f32.mrf.mxu0
    %v2570 = vadd.f32 %v2025, %v2569
    %2571 = vmatprep.mubr.bf16.mxu0 0
    %2572 = vmatmul.mubr.bf16.gmra.mxu0 %v2100
    %v2573 = vpop.f32.mrf.mxu0
    %v2574 = vadd.f32 %v2021, %v2573
    %v2575 = vpop.f32.mrf.mxu0
    %v2576 = vadd.f32 %v2025, %v2575
    %v2577 = vpop.f32.mrf.mxu0
    %v2578 = vadd.f32 %v2021, %v2577
    %v2579 = vpop.f32.mrf.mxu0
    %v2580 = vadd.f32 %v2025, %v2579
    %2581 = vmatprep.mubr.bf16.mxu0 0
    %2582 = vmatmul.mubr.bf16.gmra.mxu0 %v2101
    %v2583 = vpop.f32.mrf.mxu0
    %v2584 = vadd.f32 %v2021, %v2583
    %v2585 = vpop.f32.mrf.mxu0
    %v2586 = vadd.f32 %v2025, %v2585
    %v2587 = vpop.f32.mrf.mxu0
    %v2588 = vadd.f32 %v2021, %v2587
    %v2589 = vpop.f32.mrf.mxu0
    %v2590 = vadd.f32 %v2025, %v2589
    %2591 = vmatprep.mubr.bf16.mxu0 0
    %2592 = vmatmul.mubr.bf16.gmra.mxu0 %v2102
    %v2593 = vpop.f32.mrf.mxu0
    %v2594 = vadd.f32 %v2021, %v2593
    %v2595 = vpop.f32.mrf.mxu0
    %v2596 = vadd.f32 %v2025, %v2595
    %v2597 = vpop.f32.mrf.mxu0
    %v2598 = vadd.f32 %v2021, %v2597
    %v2599 = vpop.f32.mrf.mxu0
    %v2600 = vadd.f32 %v2025, %v2599
    %2601 = vmatprep.mubr.bf16.mxu0 0
    %2602 = vmatmul.mubr.bf16.gmra.mxu0 %v2103
    %v2603 = vpop.f32.mrf.mxu0
    %v2604 = vadd.f32 %v2021, %v2603
    %v2605 = vpop.f32.mrf.mxu0
    %v2606 = vadd.f32 %v2025, %v2605
    %v2607 = vpop.f32.mrf.mxu0
    %v2608 = vadd.f32 %v2021, %v2607
    %v2609 = vpop.f32.mrf.mxu0
    %v2610 = vadd.f32 %v2025, %v2609
    %2611 = vmatprep.mubr.bf16.mxu0 0
    %2612 = vmatmul.mubr.bf16.gmra.mxu0 %v2104
    %v2613 = vpop.f32.mrf.mxu0
    %v2614 = vadd.f32 %v2021, %v2613
    %v2615 = vpop.f32.mrf.mxu0
    %v2616 = vadd.f32 %v2025, %v2615
    %v2617 = vpop.f32.mrf.mxu0
    %v2618 = vadd.f32 %v2021, %v2617
    %v2619 = vpop.f32.mrf.mxu0
    %v2620 = vadd.f32 %v2025, %v2619
    %2621 = vmatprep.mubr.bf16.mxu0 0
    %2622 = vmatmul.mubr.bf16.gmra.mxu0 %v2105
    %v2623 = vpop.f32.mrf.mxu0
    %v2624 = vadd.f32 %v2021, %v2623
    %v2625 = vpop.f32.mrf.mxu0
    %v2626 = vadd.f32 %v2025, %v2625
    %v2627 = vpop.f32.mrf.mxu0
    %v2628 = vadd.f32 %v2021, %v2627
    %v2629 = vpop.f32.mrf.mxu0
    %v2630 = vadd.f32 %v2025, %v2629
    %2631 = vmatprep.mubr.bf16.mxu0 0
    %2632 = vmatmul.mubr.bf16.gmra.mxu0 %v2106
    %v2633 = vpop.f32.mrf.mxu0
    %v2634 = vadd.f32 %v2021, %v2633
    %v2635 = vpop.f32.mrf.mxu0
    %v2636 = vadd.f32 %v2025, %v2635
    %v2637 = vpop.f32.mrf.mxu0
    %v2638 = vadd.f32 %v2021, %v2637
    %v2639 = vpop.f32.mrf.mxu0
    %v2640 = vadd.f32 %v2025, %v2639
    %2641 = vmatprep.mubr.bf16.mxu0 0
    %2642 = vmatmul.mubr.bf16.gmra.mxu0 %v2107
    %v2643 = vpop.f32.mrf.mxu0
    %v2644 = vadd.f32 %v2021, %v2643
    %v2645 = vpop.f32.mrf.mxu0
    %v2646 = vadd.f32 %v2025, %v2645
    %v2647 = vpop.f32.mrf.mxu0
    %v2648 = vadd.f32 %v2021, %v2647
    %v2649 = vpop.f32.mrf.mxu0
    %v2650 = vadd.f32 %v2025, %v2649
    %2651 = vmatprep.mubr.bf16.mxu0 0
    %2652 = vmatmul.mubr.bf16.gmra.mxu0 %v2108
    %v2653 = vpop.f32.mrf.mxu0
    %v2654 = vadd.f32 %v2021, %v2653
    %v2655 = vpop.f32.mrf.mxu0
    %v2656 = vadd.f32 %v2025, %v2655
    %v2657 = vpop.f32.mrf.mxu0
    %v2658 = vadd.f32 %v2021, %v2657
    %v2659 = vpop.f32.mrf.mxu0
    %v2660 = vadd.f32 %v2025, %v2659
    %2661 = vmatprep.mubr.bf16.mxu0 0
    %2662 = vmatmul.mubr.bf16.gmra.mxu0 %v2109
    %v2663 = vpop.f32.mrf.mxu0
    %v2664 = vadd.f32 %v2021, %v2663
    %v2665 = vpop.f32.mrf.mxu0
    %v2666 = vadd.f32 %v2025, %v2665
    %v2667 = vpop.f32.mrf.mxu0
    %v2668 = vadd.f32 %v2021, %v2667
    %v2669 = vpop.f32.mrf.mxu0
    %v2670 = vadd.f32 %v2025, %v2669
    %2671 = vdwg.mxu0
    %2672 = vst [vmem:[#allocation2] sm:$0xff] %v2321
    %2673 = vst [vmem:[#allocation2 + $0x8] sm:$0xff] %v2323
    %2674 = vst [vmem:[#allocation2 + $0x10] sm:$0xff] %v2514
    %2675 = vst [vmem:[#allocation2 + $0x18] sm:$0xff] %v2516
    %2676 = vst [vmem:[#allocation2 + $0x20] sm:$0xff] %v2325
    %2677 = vst [vmem:[#allocation2 + $0x28] sm:$0xff] %v2327
    %2678 = vst [vmem:[#allocation2 + $0x30] sm:$0xff] %v2518
    %2679 = vst [vmem:[#allocation2 + $0x38] sm:$0xff] %v2520
    %2680 = vst [vmem:[#allocation2 + $0x40] sm:$0xff] %v2331
    %2681 = vst [vmem:[#allocation2 + $0x48] sm:$0xff] %v2333
    %2682 = vst [vmem:[#allocation2 + $0x50] sm:$0xff] %v2524
    %2683 = vst [vmem:[#allocation2 + $0x58] sm:$0xff] %v2526
    %2684 = vst [vmem:[#allocation2 + $0x60] sm:$0xff] %v2335
    %2685 = vst [vmem:[#allocation2 + $0x68] sm:$0xff] %v2337
    %2686 = vst [vmem:[#allocation2 + $0x70] sm:$0xff] %v2528
    %2687 = vst [vmem:[#allocation2 + $0x78] sm:$0xff] %v2530
    %2688 = vst [vmem:[#allocation2 + $0x80] sm:$0xff] %v2341
    %2689 = vst [vmem:[#allocation2 + $0x88] sm:$0xff] %v2343
    %2690 = vst [vmem:[#allocation2 + $0x90] sm:$0xff] %v2534
    %2691 = vst [vmem:[#allocation2 + $0x98] sm:$0xff] %v2536
    %2692 = vst [vmem:[#allocation2 + $0xa0] sm:$0xff] %v2345
    %2693 = vst [vmem:[#allocation2 + $0xa8] sm:$0xff] %v2347
    %2694 = vst [vmem:[#allocation2 + $0xb0] sm:$0xff] %v2538
    %2695 = vst [vmem:[#allocation2 + $0xb8] sm:$0xff] %v2540
    %2696 = vst [vmem:[#allocation2 + $0xc0] sm:$0xff] %v2351
    %2697 = vst [vmem:[#allocation2 + $0xc8] sm:$0xff] %v2353
    %2698 = vst [vmem:[#allocation2 + $0xd0] sm:$0xff] %v2544
    %2699 = vst [vmem:[#allocation2 + $0xd8] sm:$0xff] %v2546
    %2700 = vst [vmem:[#allocation2 + $0xe0] sm:$0xff] %v2355
    %2701 = vst [vmem:[#allocation2 + $0xe8] sm:$0xff] %v2357
    %2702 = vst [vmem:[#allocation2 + $0xf0] sm:$0xff] %v2548
    %2703 = vst [vmem:[#allocation2 + $0xf8] sm:$0xff] %v2550
    %2704 = vst [vmem:[#allocation2 + $0x100] sm:$0xff] %v2361
    %2705 = vst [vmem:[#allocation2 + $0x108] sm:$0xff] %v2363
    %2706 = vst [vmem:[#allocation2 + $0x110] sm:$0xff] %v2554
    %2707 = vst [vmem:[#allocation2 + $0x118] sm:$0xff] %v2556
    %2708 = vst [vmem:[#allocation2 + $0x120] sm:$0xff] %v2365
    %2709 = vst [vmem:[#allocation2 + $0x128] sm:$0xff] %v2367
    %2710 = vst [vmem:[#allocation2 + $0x130] sm:$0xff] %v2558
    %2711 = vst [vmem:[#allocation2 + $0x138] sm:$0xff] %v2560
    %2712 = vst [vmem:[#allocation2 + $0x140] sm:$0xff] %v2371
    %2713 = vst [vmem:[#allocation2 + $0x148] sm:$0xff] %v2373
    %2714 = vst [vmem:[#allocation2 + $0x150] sm:$0xff] %v2564
    %2715 = vst [vmem:[#allocation2 + $0x158] sm:$0xff] %v2566
    %2716 = vst [vmem:[#allocation2 + $0x160] sm:$0xff] %v2375
    %2717 = vst [vmem:[#allocation2 + $0x168] sm:$0xff] %v2377
    %2718 = vst [vmem:[#allocation2 + $0x170] sm:$0xff] %v2568
    %2719 = vst [vmem:[#allocation2 + $0x178] sm:$0xff] %v2570
    %2720 = vst [vmem:[#allocation2 + $0x180] sm:$0xff] %v2381
    %2721 = vst [vmem:[#allocation2 + $0x188] sm:$0xff] %v2383
    %2722 = vst [vmem:[#allocation2 + $0x190] sm:$0xff] %v2574
    %2723 = vst [vmem:[#allocation2 + $0x198] sm:$0xff] %v2576
    %2724 = vst [vmem:[#allocation2 + $0x1a0] sm:$0xff] %v2385
    %2725 = vst [vmem:[#allocation2 + $0x1a8] sm:$0xff] %v2387
    %2726 = vst [vmem:[#allocation2 + $0x1b0] sm:$0xff] %v2578
    %2727 = vst [vmem:[#allocation2 + $0x1b8] sm:$0xff] %v2580
    %2728 = vst [vmem:[#allocation2 + $0x1c0] sm:$0xff] %v2391
    %2729 = vst [vmem:[#allocation2 + $0x1c8] sm:$0xff] %v2393
    %2730 = vst [vmem:[#allocation2 + $0x1d0] sm:$0xff] %v2584
    %2731 = vst [vmem:[#allocation2 + $0x1d8] sm:$0xff] %v2586
    %2732 = vst [vmem:[#allocation2 + $0x1e0] sm:$0xff] %v2395
    %2733 = vst [vmem:[#allocation2 + $0x1e8] sm:$0xff] %v2397
    %2734 = vst [vmem:[#allocation2 + $0x1f0] sm:$0xff] %v2588
    %2735 = vst [vmem:[#allocation2 + $0x1f8] sm:$0xff] %v2590
    %2736 = vst [vmem:[#allocation2 + $0x200] sm:$0xff] %v2401
    %2737 = vst [vmem:[#allocation2 + $0x208] sm:$0xff] %v2403
    %2738 = vst [vmem:[#allocation2 + $0x210] sm:$0xff] %v2594
    %2739 = vst [vmem:[#allocation2 + $0x218] sm:$0xff] %v2596
    %2740 = vst [vmem:[#allocation2 + $0x220] sm:$0xff] %v2405
    %2741 = vst [vmem:[#allocation2 + $0x228] sm:$0xff] %v2407
    %2742 = vst [vmem:[#allocation2 + $0x230] sm:$0xff] %v2598
    %2743 = vst [vmem:[#allocation2 + $0x238] sm:$0xff] %v2600
    %2744 = vst [vmem:[#allocation2 + $0x240] sm:$0xff] %v2411
    %2745 = vst [vmem:[#allocation2 + $0x248] sm:$0xff] %v2413
    %2746 = vst [vmem:[#allocation2 + $0x250] sm:$0xff] %v2604
    %2747 = vst [vmem:[#allocation2 + $0x258] sm:$0xff] %v2606
    %2748 = vst [vmem:[#allocation2 + $0x260] sm:$0xff] %v2415
    %2749 = vst [vmem:[#allocation2 + $0x268] sm:$0xff] %v2417
    %2750 = vst [vmem:[#allocation2 + $0x270] sm:$0xff] %v2608
    %2751 = vst [vmem:[#allocation2 + $0x278] sm:$0xff] %v2610
    %2752 = vst [vmem:[#allocation2 + $0x280] sm:$0xff] %v2421
    %2753 = vst [vmem:[#allocation2 + $0x288] sm:$0xff] %v2423
    %2754 = vst [vmem:[#allocation2 + $0x290] sm:$0xff] %v2614
    %2755 = vst [vmem:[#allocation2 + $0x298] sm:$0xff] %v2616
    %2756 = vst [vmem:[#allocation2 + $0x2a0] sm:$0xff] %v2425
    %2757 = vst [vmem:[#allocation2 + $0x2a8] sm:$0xff] %v2427
    %2758 = vst [vmem:[#allocation2 + $0x2b0] sm:$0xff] %v2618
    %2759 = vst [vmem:[#allocation2 + $0x2b8] sm:$0xff] %v2620
    %2760 = vst [vmem:[#allocation2 + $0x2c0] sm:$0xff] %v2431
    %2761 = vst [vmem:[#allocation2 + $0x2c8] sm:$0xff] %v2433
    %2762 = vst [vmem:[#allocation2 + $0x2d0] sm:$0xff] %v2624
    %2763 = vst [vmem:[#allocation2 + $0x2d8] sm:$0xff] %v2626
    %2764 = vst [vmem:[#allocation2 + $0x2e0] sm:$0xff] %v2435
    %2765 = vst [vmem:[#allocation2 + $0x2e8] sm:$0xff] %v2437
    %2766 = vst [vmem:[#allocation2 + $0x2f0] sm:$0xff] %v2628
    %2767 = vst [vmem:[#allocation2 + $0x2f8] sm:$0xff] %v2630
    %2768 = vst [vmem:[#allocation2 + $0x300] sm:$0xff] %v2441
    %2769 = vst [vmem:[#allocation2 + $0x308] sm:$0xff] %v2443
    %2770 = vst [vmem:[#allocation2 + $0x310] sm:$0xff] %v2634
    %2771 = vst [vmem:[#allocation2 + $0x318] sm:$0xff] %v2636
    %2772 = vst [vmem:[#allocation2 + $0x320] sm:$0xff] %v2445
    %2773 = vst [vmem:[#allocation2 + $0x328] sm:$0xff] %v2447
    %2774 = vst [vmem:[#allocation2 + $0x330] sm:$0xff] %v2638
    %2775 = vst [vmem:[#allocation2 + $0x338] sm:$0xff] %v2640
    %2776 = vst [vmem:[#allocation2 + $0x340] sm:$0xff] %v2451
    %2777 = vst [vmem:[#allocation2 + $0x348] sm:$0xff] %v2453
    %2778 = vst [vmem:[#allocation2 + $0x350] sm:$0xff] %v2644
    %2779 = vst [vmem:[#allocation2 + $0x358] sm:$0xff] %v2646
    %2780 = vst [vmem:[#allocation2 + $0x360] sm:$0xff] %v2455
    %2781 = vst [vmem:[#allocation2 + $0x368] sm:$0xff] %v2457
    %2782 = vst [vmem:[#allocation2 + $0x370] sm:$0xff] %v2648
    %2783 = vst [vmem:[#allocation2 + $0x378] sm:$0xff] %v2650
    %2784 = vst [vmem:[#allocation2 + $0x380] sm:$0xff] %v2461
    %2785 = vst [vmem:[#allocation2 + $0x388] sm:$0xff] %v2463
    %2786 = vst [vmem:[#allocation2 + $0x390] sm:$0xff] %v2654
    %2787 = vst [vmem:[#allocation2 + $0x398] sm:$0xff] %v2656
    %2788 = vst [vmem:[#allocation2 + $0x3a0] sm:$0xff] %v2465
    %2789 = vst [vmem:[#allocation2 + $0x3a8] sm:$0xff] %v2467
    %2790 = vst [vmem:[#allocation2 + $0x3b0] sm:$0xff] %v2658
    %2791 = vst [vmem:[#allocation2 + $0x3b8] sm:$0xff] %v2660
    %2792 = vst [vmem:[#allocation2 + $0x3c0] sm:$0xff] %v2471
    %2793 = vst [vmem:[#allocation2 + $0x3c8] sm:$0xff] %v2473
    %2794 = vst [vmem:[#allocation2 + $0x3d0] sm:$0xff] %v2664
    %2795 = vst [vmem:[#allocation2 + $0x3d8] sm:$0xff] %v2666
    %2796 = vst [vmem:[#allocation2 + $0x3e0] sm:$0xff] %v2475
    %2797 = vst [vmem:[#allocation2 + $0x3e8] sm:$0xff] %v2477
    %2798 = vst [vmem:[#allocation2 + $0x3f0] sm:$0xff] %v2668
    %2799 = vst [vmem:[#allocation2 + $0x3f8] sm:$0xff] %v2670
    %s2800 = scalar_lea.vmem %s5, 256
    %v2801 = vld [vmem:[%s2800] sm:$0xff]
    %v2802 = vld [vmem:[%s2800 + $0x8] sm:$0xff]
    %v2803 = vld [vmem:[%s2800 + $0x10] sm:$0xff]
    %v2804 = vld [vmem:[%s2800 + $0x18] sm:$0xff]
    %v2805 = vld [vmem:[%s2800 + $0x20] sm:$0xff]
    %v2806 = vld [vmem:[%s2800 + $0x28] sm:$0xff]
    %v2807 = vld [vmem:[%s2800 + $0x30] sm:$0xff]
    %v2808 = vld [vmem:[%s2800 + $0x38] sm:$0xff]
    %v2809 = vld [vmem:[%s2800 + $0x40] sm:$0xff]
    %v2810 = vld [vmem:[%s2800 + $0x48] sm:$0xff]
    %v2811 = vld [vmem:[%s2800 + $0x50] sm:$0xff]
    %v2812 = vld [vmem:[%s2800 + $0x58] sm:$0xff]
    %v2813 = vld [vmem:[%s2800 + $0x60] sm:$0xff]
    %v2814 = vld [vmem:[%s2800 + $0x68] sm:$0xff]
    %v2815 = vld [vmem:[%s2800 + $0x70] sm:$0xff]
    %v2816 = vld [vmem:[%s2800 + $0x78] sm:$0xff]
    %v2817 = vld [vmem:[%s2800 + $0x80] sm:$0xff]
    %v2818 = vld [vmem:[%s2800 + $0x88] sm:$0xff]
    %v2819 = vld [vmem:[%s2800 + $0x90] sm:$0xff]
    %v2820 = vld [vmem:[%s2800 + $0x98] sm:$0xff]
    %v2821 = vld [vmem:[%s2800 + $0xa0] sm:$0xff]
    %v2822 = vld [vmem:[%s2800 + $0xa8] sm:$0xff]
    %v2823 = vld [vmem:[%s2800 + $0xb0] sm:$0xff]
    %v2824 = vld [vmem:[%s2800 + $0xb8] sm:$0xff]
    %v2825 = vld [vmem:[%s2800 + $0xc0] sm:$0xff]
    %v2826 = vld [vmem:[%s2800 + $0xc8] sm:$0xff]
    %v2827 = vld [vmem:[%s2800 + $0xd0] sm:$0xff]
    %v2828 = vld [vmem:[%s2800 + $0xd8] sm:$0xff]
    %v2829 = vld [vmem:[%s2800 + $0xe0] sm:$0xff]
    %v2830 = vld [vmem:[%s2800 + $0xe8] sm:$0xff]
    %v2831 = vld [vmem:[%s2800 + $0xf0] sm:$0xff]
    %v2832 = vld [vmem:[%s2800 + $0xf8] sm:$0xff]
    loop: start=0, step=1, limit=8
    $region49: #{cannolo_forward_windows.1} parent=1 // loop_pre_header
      _
    $region50: #{cannolo_forward_windows.1} parent=1 // loop_header
      %s2834 = sphi 0, %s2838
      %p2835 = scmp.ge.s32.totalorder %s2834, 8
      %v2839 = vphi 0, %v3245
      %v2840 = vphi 0, %v3246
      %v2841 = vphi 0.0, %v3233
      %v2842 = vphi 0.0, %v3234
      %v2843 = vphi 0.0, %v3235
      %v2844 = vphi 0.0, %v3236
    $region51: #{cannolo_forward_windows.1} parent=1 // loop_header_branch
      %2837 = sbr.rel (%p2835) target = $region55
    $region52: #{cannolo_forward_windows.1} parent=1 // loop_body
      %s2845 = smul.u32 %s2834, 32
      %s2846 = sshra.s32 %s2845, 3
      %s2847 = sand.u32 %s2845, 7
      %s2848 = smul.u32 %s2846, 4
      %s2849 = smul.addr %s2848, 8
      %s2850 = scalar_lea.vmem [#allocation2], %s2849
      %v2851 = vld [vmem:[%s2850] sm:$0xff]
      %v2852 = vld [vmem:[%s2850 + $0x8] sm:$0xff]
      %v2853 = vld [vmem:[%s2850 + $0x10] sm:$0xff]
      %v2854 = vld [vmem:[%s2850 + $0x18] sm:$0xff]
      %v2855 = vld [vmem:[%s2850 + $0x20] sm:$0xff]
      %v2856 = vld [vmem:[%s2850 + $0x28] sm:$0xff]
      %v2857 = vld [vmem:[%s2850 + $0x30] sm:$0xff]
      %v2858 = vld [vmem:[%s2850 + $0x38] sm:$0xff]
      %v2859 = vld [vmem:[%s2850 + $0x40] sm:$0xff]
      %v2860 = vld [vmem:[%s2850 + $0x48] sm:$0xff]
      %v2861 = vld [vmem:[%s2850 + $0x50] sm:$0xff]
      %v2862 = vld [vmem:[%s2850 + $0x58] sm:$0xff]
      %v2863 = vld [vmem:[%s2850 + $0x60] sm:$0xff]
      %v2864 = vld [vmem:[%s2850 + $0x68] sm:$0xff]
      %v2865 = vld [vmem:[%s2850 + $0x70] sm:$0xff]
      %v2866 = vld [vmem:[%s2850 + $0x78] sm:$0xff]
      %v2899 = vunpack.c.l.b16 %v2801
      %v2900 = vunpack.c.h.b16 %v2801
      %v2901 = vunpack.c.l.b16 %v2802
      %v2902 = vunpack.c.h.b16 %v2802
      %v2903 = vunpack.c.l.b16 %v2803
      %v2904 = vunpack.c.h.b16 %v2803
      %v2905 = vunpack.c.l.b16 %v2804
      %v2906 = vunpack.c.h.b16 %v2804
      %v2907 = vunpack.c.l.b16 %v2805
      %v2908 = vunpack.c.h.b16 %v2805
      %v2909 = vunpack.c.l.b16 %v2806
      %v2910 = vunpack.c.h.b16 %v2806
      %v2911 = vunpack.c.l.b16 %v2807
      %v2912 = vunpack.c.h.b16 %v2807
      %v2913 = vunpack.c.l.b16 %v2808
      %v2914 = vunpack.c.h.b16 %v2808
      %v2915 = vunpack.c.l.b16 %v2809
      %v2916 = vunpack.c.h.b16 %v2809
      %v2917 = vunpack.c.l.b16 %v2810
      %v2918 = vunpack.c.h.b16 %v2810
      %v2919 = vunpack.c.l.b16 %v2811
      %v2920 = vunpack.c.h.b16 %v2811
      %v2921 = vunpack.c.l.b16 %v2812
      %v2922 = vunpack.c.h.b16 %v2812
      %v2923 = vunpack.c.l.b16 %v2813
      %v2924 = vunpack.c.h.b16 %v2813
      %v2925 = vunpack.c.l.b16 %v2814
      %v2926 = vunpack.c.h.b16 %v2814
      %v2927 = vunpack.c.l.b16 %v2815
      %v2928 = vunpack.c.h.b16 %v2815
      %v2929 = vunpack.c.l.b16 %v2816
      %v2930 = vunpack.c.h.b16 %v2816
      %v2931 = vunpack.c.l.b16 %v2817
      %v2932 = vunpack.c.h.b16 %v2817
      %v2933 = vunpack.c.l.b16 %v2818
      %v2934 = vunpack.c.h.b16 %v2818
      %v2935 = vunpack.c.l.b16 %v2819
      %v2936 = vunpack.c.h.b16 %v2819
      %v2937 = vunpack.c.l.b16 %v2820
      %v2938 = vunpack.c.h.b16 %v2820
      %v2939 = vunpack.c.l.b16 %v2821
      %v2940 = vunpack.c.h.b16 %v2821
      %v2941 = vunpack.c.l.b16 %v2822
      %v2942 = vunpack.c.h.b16 %v2822
      %v2943 = vunpack.c.l.b16 %v2823
      %v2944 = vunpack.c.h.b16 %v2823
      %v2945 = vunpack.c.l.b16 %v2824
      %v2946 = vunpack.c.h.b16 %v2824
      %v2947 = vunpack.c.l.b16 %v2825
      %v2948 = vunpack.c.h.b16 %v2825
      %v2949 = vunpack.c.l.b16 %v2826
      %v2950 = vunpack.c.h.b16 %v2826
      %v2951 = vunpack.c.l.b16 %v2827
      %v2952 = vunpack.c.h.b16 %v2827
      %v2953 = vunpack.c.l.b16 %v2828
      %v2954 = vunpack.c.h.b16 %v2828
      %v2955 = vunpack.c.l.b16 %v2829
      %v2956 = vunpack.c.h.b16 %v2829
      %v2957 = vunpack.c.l.b16 %v2830
      %v2958 = vunpack.c.h.b16 %v2830
      %v2959 = vunpack.c.l.b16 %v2831
      %v2960 = vunpack.c.h.b16 %v2831
      %v2961 = vunpack.c.l.b16 %v2832
      %v2962 = vunpack.c.h.b16 %v2832
      %v2963 = vpack.c.b16 %v2903, %v2899
      %v2964 = vpack.c.b16 %v2904, %v2900
      %v2965 = vpack.c.b16 %v2905, %v2901
      %v2966 = vpack.c.b16 %v2906, %v2902
      %v2967 = vpack.c.b16 %v2911, %v2907
      %v2968 = vpack.c.b16 %v2912, %v2908
      %v2969 = vpack.c.b16 %v2913, %v2909
      %v2970 = vpack.c.b16 %v2914, %v2910
      %v2971 = vpack.c.b16 %v2919, %v2915
      %v2972 = vpack.c.b16 %v2920, %v2916
      %v2973 = vpack.c.b16 %v2921, %v2917
      %v2974 = vpack.c.b16 %v2922, %v2918
      %v2975 = vpack.c.b16 %v2927, %v2923
      %v2976 = vpack.c.b16 %v2928, %v2924
      %v2977 = vpack.c.b16 %v2929, %v2925
      %v2978 = vpack.c.b16 %v2930, %v2926
      %v2979 = vpack.c.b16 %v2935, %v2931
      %v2980 = vpack.c.b16 %v2936, %v2932
      %v2981 = vpack.c.b16 %v2937, %v2933
      %v2982 = vpack.c.b16 %v2938, %v2934
      %v2983 = vpack.c.b16 %v2943, %v2939
      %v2984 = vpack.c.b16 %v2944, %v2940
      %v2985 = vpack.c.b16 %v2945, %v2941
      %v2986 = vpack.c.b16 %v2946, %v2942
      %v2987 = vpack.c.b16 %v2951, %v2947
      %v2988 = vpack.c.b16 %v2952, %v2948
      %v2989 = vpack.c.b16 %v2953, %v2949
      %v2990 = vpack.c.b16 %v2954, %v2950
      %v2991 = vpack.c.b16 %v2959, %v2955
      %v2992 = vpack.c.b16 %v2960, %v2956
      %v2993 = vpack.c.b16 %v2961, %v2957
      %v2994 = vpack.c.b16 %v2962, %v2958
      %3027 = vmatprep.subr.bf16.mxu0 %v2992
      %3028 = vmatpush1.bf16.msra.mxu0 %v2991
      %3029 = vmatprep.subr.bf16.mxu0 %v2988
      %3030 = vmatpush1.bf16.msra.mxu0 %v2987
      %3031 = vmatprep.subr.bf16.mxu0 %v2984
      %3032 = vmatpush1.bf16.msra.mxu0 %v2983
      %3033 = vmatprep.subr.bf16.mxu0 %v2980
      %3034 = vmatpush1.bf16.msra.mxu0 %v2979
      %3035 = vmatprep.subr.bf16.mxu0 %v2976
      %3036 = vmatpush1.bf16.msra.mxu0 %v2975
      %3037 = vmatprep.subr.bf16.mxu0 %v2972
      %3038 = vmatpush1.bf16.msra.mxu0 %v2971
      %3039 = vmatprep.subr.bf16.mxu0 %v2968
      %3040 = vmatpush1.bf16.msra.mxu0 %v2967
      %3041 = vmatprep.subr.bf16.mxu0 %v2964
      %3042 = vmatpush1.bf16.msra.mxu0 %v2963
      %3043 = vmatprep.subr.bf16.mxu0 0
      %3044 = vmatpush2.bf16.msra.mxu0 0
      %3045 = vmatprep.subr.bf16.mxu0 0
      %3046 = vmatpush2.bf16.msra.mxu0 0
      %3047 = vmatprep.subr.bf16.mxu0 0
      %3048 = vmatpush2.bf16.msra.mxu0 0
      %3049 = vmatprep.subr.bf16.mxu0 0
      %3050 = vmatpush2.bf16.msra.mxu0 0
      %3051 = vmatprep.subr.bf16.mxu0 0
      %3052 = vmatpush2.bf16.msra.mxu0 0
      %3053 = vmatprep.subr.bf16.mxu0 0
      %3054 = vmatpush2.bf16.msra.mxu0 0
      %3055 = vmatprep.subr.bf16.mxu0 0
      %3056 = vmatpush2.bf16.msra.mxu0 0
      %3057 = vmatprep.subr.bf16.mxu0 0
      %3058 = vmatpush2.bf16.msra.mxu0 0
      %3059 = vmatprep.mubr.bf16.mxu0 0
      %3060 = vmatmul.mubr.bf16.gmra.mxu0 %v2839
      %v3061 = vpop.f32.mrf.mxu0
      %v3062 = vadd.f32 0.0, %v3061
      %v3063 = vpop.f32.mrf.mxu0
      %v3064 = vadd.f32 0.0, %v3063
      %v3065 = vpop.f32.mrf.mxu0
      %v3066 = vadd.f32 0.0, %v3065
      %v3067 = vpop.f32.mrf.mxu0
      %v3068 = vadd.f32 0.0, %v3067
      %3069 = vmatprep.mubr.bf16.mxu0 0
      %3070 = vmatmul.mubr.bf16.gmra.mxu0 %v2840
      %v3071 = vpop.f32.mrf.mxu0
      %v3072 = vadd.f32 0.0, %v3071
      %v3073 = vpop.f32.mrf.mxu0
      %v3074 = vadd.f32 0.0, %v3073
      %v3075 = vpop.f32.mrf.mxu0
      %v3076 = vadd.f32 0.0, %v3075
      %v3077 = vpop.f32.mrf.mxu0
      %v3078 = vadd.f32 0.0, %v3077
      %3079 = vdwg.mxu0
      %3080 = vmatprep.subr.bf16.mxu0 %v2994
      %3081 = vmatpush1.bf16.msra.mxu0 %v2993
      %3082 = vmatprep.subr.bf16.mxu0 %v2990
      %3083 = vmatpush1.bf16.msra.mxu0 %v2989
      %3084 = vmatprep.subr.bf16.mxu0 %v2986
      %3085 = vmatpush1.bf16.msra.mxu0 %v2985
      %3086 = vmatprep.subr.bf16.mxu0 %v2982
      %3087 = vmatpush1.bf16.msra.mxu0 %v2981
      %3088 = vmatprep.subr.bf16.mxu0 %v2978
      %3089 = vmatpush1.bf16.msra.mxu0 %v2977
      %3090 = vmatprep.subr.bf16.mxu0 %v2974
      %3091 = vmatpush1.bf16.msra.mxu0 %v2973
      %3092 = vmatprep.subr.bf16.mxu0 %v2970
      %3093 = vmatpush1.bf16.msra.mxu0 %v2969
      %3094 = vmatprep.subr.bf16.mxu0 %v2966
      %3095 = vmatpush1.bf16.msra.mxu0 %v2965
      %3096 = vmatprep.subr.bf16.mxu0 0
      %3097 = vmatpush2.bf16.msra.mxu0 0
      %3098 = vmatprep.subr.bf16.mxu0 0
      %3099 = vmatpush2.bf16.msra.mxu0 0
      %3100 = vmatprep.subr.bf16.mxu0 0
      %3101 = vmatpush2.bf16.msra.mxu0 0
      %3102 = vmatprep.subr.bf16.mxu0 0
      %3103 = vmatpush2.bf16.msra.mxu0 0
      %3104 = vmatprep.subr.bf16.mxu0 0
      %3105 = vmatpush2.bf16.msra.mxu0 0
      %3106 = vmatprep.subr.bf16.mxu0 0
      %3107 = vmatpush2.bf16.msra.mxu0 0
      %3108 = vmatprep.subr.bf16.mxu0 0
      %3109 = vmatpush2.bf16.msra.mxu0 0
      %3110 = vmatprep.subr.bf16.mxu0 0
      %3111 = vmatpush2.bf16.msra.mxu0 0
      %3112 = vmatprep.mubr.bf16.mxu0 0
      %3113 = vmatmul.mubr.bf16.gmra.mxu0 %v2839
      %v3114 = vpop.f32.mrf.mxu0
      %v3115 = vadd.f32 0.0, %v3114
      %v3116 = vpop.f32.mrf.mxu0
      %v3117 = vadd.f32 0.0, %v3116
      %v3118 = vpop.f32.mrf.mxu0
      %v3119 = vadd.f32 0.0, %v3118
      %v3120 = vpop.f32.mrf.mxu0
      %v3121 = vadd.f32 0.0, %v3120
      %3122 = vmatprep.mubr.bf16.mxu0 0
      %3123 = vmatmul.mubr.bf16.gmra.mxu0 %v2840
      %v3124 = vpop.f32.mrf.mxu0
      %v3125 = vadd.f32 0.0, %v3124
      %v3126 = vpop.f32.mrf.mxu0
      %v3127 = vadd.f32 0.0, %v3126
      %v3128 = vpop.f32.mrf.mxu0
      %v3129 = vadd.f32 0.0, %v3128
      %v3130 = vpop.f32.mrf.mxu0
      %v3131 = vadd.f32 0.0, %v3130
      %3132 = vdwg.mxu0
      %v3133 = vadd.f32 %v2851, %v3062
      %v3134 = vadd.f32 %v2852, %v3064
      %v3135 = vadd.f32 %v2853, %v3115
      %v3136 = vadd.f32 %v2854, %v3117
      %v3137 = vadd.f32 %v2855, %v3066
      %v3138 = vadd.f32 %v2856, %v3068
      %v3139 = vadd.f32 %v2857, %v3119
      %v3140 = vadd.f32 %v2858, %v3121
      %v3141 = vadd.f32 %v2859, %v3072
      %v3142 = vadd.f32 %v2860, %v3074
      %v3143 = vadd.f32 %v2861, %v3125
      %v3144 = vadd.f32 %v2862, %v3127
      %v3145 = vadd.f32 %v2863, %v3076
      %v3146 = vadd.f32 %v2864, %v3078
      %v3147 = vadd.f32 %v2865, %v3129
      %v3148 = vadd.f32 %v2866, %v3131
      %v3149 = vxor.u32 %v3133, 2147483648
      %v3150 = vxor.u32 %v3134, 2147483648
      %v3151 = vxor.u32 %v3135, 2147483648
      %v3152 = vxor.u32 %v3137, 2147483648
      %v3153 = vxor.u32 %v3138, 2147483648
      %v3154 = vxor.u32 %v3139, 2147483648
      %v3155 = vxor.u32 %v3141, 2147483648
      %v3156 = vxor.u32 %v3142, 2147483648
      %v3157 = vxor.u32 %v3143, 2147483648
      %v3158 = vxor.u32 %v3145, 2147483648
      %v3159 = vxor.u32 %v3146, 2147483648
      %v3160 = vxor.u32 %v3147, 2147483648
      %v3161 = vmul.f32 %v3149, 1.442695
      %v3162 = vpow.pop %v3161
      %v3163 = vmul.f32 %v3150, 1.442695
      %v3164 = vpow.pop %v3163
      %v3165 = vmul.f32 %v3151, 1.442695
      %v3166 = vpow.pop %v3165
      %v3167 = vmul.f32 %v3152, 1.442695
      %v3168 = vpow.pop %v3167
      %v3169 = vmul.f32 %v3153, 1.442695
      %v3170 = vpow.pop %v3169
      %v3171 = vmul.f32 %v3154, 1.442695
      %v3172 = vpow.pop %v3171
      %v3173 = vmul.f32 %v3155, 1.442695
      %v3174 = vpow.pop %v3173
      %v3175 = vmul.f32 %v3156, 1.442695
      %v3176 = vpow.pop %v3175
      %v3177 = vmul.f32 %v3157, 1.442695
      %v3178 = vpow.pop %v3177
      %v3179 = vmul.f32 %v3158, 1.442695
      %v3180 = vpow.pop %v3179
      %v3181 = vmul.f32 %v3159, 1.442695
      %v3182 = vpow.pop %v3181
      %v3183 = vmul.f32 %v3160, 1.442695
      %v3184 = vpow.pop %v3183
      %v3185 = vadd.f32 %v3162, 1.0
      %v3186 = vadd.f32 %v3164, 1.0
      %v3187 = vadd.f32 %v3166, 1.0
      %v3188 = vadd.f32 %v3168, 1.0
      %v3189 = vadd.f32 %v3170, 1.0
      %v3190 = vadd.f32 %v3172, 1.0
      %v3191 = vadd.f32 %v3174, 1.0
      %v3192 = vadd.f32 %v3176, 1.0
      %v3193 = vadd.f32 %v3178, 1.0
      %v3194 = vadd.f32 %v3180, 1.0
      %v3195 = vadd.f32 %v3182, 1.0
      %v3196 = vadd.f32 %v3184, 1.0
      %v3197 = vrcp.pop %v3185
      %v3198 = vmul.f32 1.0, %v3197
      %v3199 = vrcp.pop %v3186
      %v3200 = vmul.f32 1.0, %v3199
      %v3201 = vrcp.pop %v3187
      %v3202 = vmul.f32 1.0, %v3201
      %v3203 = vrcp.pop %v3188
      %v3204 = vmul.f32 1.0, %v3203
      %v3205 = vrcp.pop %v3189
      %v3206 = vmul.f32 1.0, %v3205
      %v3207 = vrcp.pop %v3190
      %v3208 = vmul.f32 1.0, %v3207
      %v3209 = vrcp.pop %v3191
      %v3210 = vmul.f32 1.0, %v3209
      %v3211 = vrcp.pop %v3192
      %v3212 = vmul.f32 1.0, %v3211
      %v3213 = vrcp.pop %v3193
      %v3214 = vmul.f32 1.0, %v3213
      %v3215 = vrcp.pop %v3194
      %v3216 = vmul.f32 1.0, %v3215
      %v3217 = vrcp.pop %v3195
      %v3218 = vmul.f32 1.0, %v3217
      %v3219 = vrcp.pop %v3196
      %v3220 = vmul.f32 1.0, %v3219
      %v3221 = vtanh.pop %v3136
      %v3222 = vtanh.pop %v3140
      %v3223 = vtanh.pop %v3144
      %v3224 = vtanh.pop %v3148
      %v3225 = vmul.f32 %v3200, %v2841
      %v3226 = vmul.f32 %v3206, %v2842
      %v3227 = vmul.f32 %v3212, %v2843
      %v3228 = vmul.f32 %v3218, %v2844
      %v3229 = vmul.f32 %v3198, %v3221
      %v3230 = vmul.f32 %v3204, %v3222
      %v3231 = vmul.f32 %v3210, %v3223
      %v3232 = vmul.f32 %v3216, %v3224
      %v3233 = vadd.f32 %v3225, %v3229
      %v3234 = vadd.f32 %v3226, %v3230
      %v3235 = vadd.f32 %v3227, %v3231
      %v3236 = vadd.f32 %v3228, %v3232
      %v3237 = vtanh.pop %v3233
      %v3238 = vtanh.pop %v3234
      %v3239 = vtanh.pop %v3235
      %v3240 = vtanh.pop %v3236
      %v3241 = vmul.f32 %v3202, %v3237
      %v3242 = vmul.f32 %v3208, %v3238
      %v3243 = vmul.f32 %v3214, %v3239
      %v3244 = vmul.f32 %v3220, %v3240
      %v3245 = vpack.c.bf16 %v3242, %v3241
      %v3246 = vpack.c.bf16 %v3244, %v3243
      %v3249 = vunpack.c.l.b16 %v3245
      %v3250 = vunpack.c.h.b16 %v3245
      %v3251 = vunpack.c.l.b16 %v3246
      %v3252 = vunpack.c.h.b16 %v3246
      %v3253 = vpack.c.b16 %v3249, %v3249
      %v3254 = vpack.c.b16 %v3250, %v3250
      %v3255 = vpack.c.b16 %v3251, %v3251
      %v3256 = vpack.c.b16 %v3252, %v3252
      %s3261 = smul.addr %s2846, 4
      %s3262 = scalar_lea.vmem [#allocation4], %s3261
      %3263 = vst [vmem:[%s3262] sm:$0xf] %v3253
      %3264 = vst [vmem:[%s3262 + $0x4] sm:$0xf] %v3254
      %3265 = vst [vmem:[%s3262 + $0x8] sm:$0xf] %v3255
      %3266 = vst [vmem:[%s3262 + $0xc] sm:$0xf] %v3256
    $region53: #{cannolo_forward_windows.1} parent=1 // loop_footer
      %s2838 = sadd.s32 1, %s2834
    $region54: #{cannolo_forward_windows.1} parent=1 // loop_footer_branch
      %2833 = sbr.rel target = $region50
    $region55: #{cannolo_forward_windows.1} parent=1 // loop_exit
      _
    %v3267 = vld [vmem:[#allocation4] sm:$0xf]
    %v3268 = vld [vmem:[#allocation4 + $0x4] sm:$0xf]
    %v3269 = vld [vmem:[#allocation4 + $0x8] sm:$0xf]
    %v3270 = vld [vmem:[#allocation4 + $0xc] sm:$0xf]
    %v3271 = vld [vmem:[#allocation4 + $0x10] sm:$0xf]
    %v3272 = vld [vmem:[#allocation4 + $0x14] sm:$0xf]
    %v3273 = vld [vmem:[#allocation4 + $0x18] sm:$0xf]
    %v3274 = vld [vmem:[#allocation4 + $0x1c] sm:$0xf]
    %v3275 = vld [vmem:[#allocation4 + $0x20] sm:$0xf]
    %v3276 = vld [vmem:[#allocation4 + $0x24] sm:$0xf]
    %v3277 = vld [vmem:[#allocation4 + $0x28] sm:$0xf]
    %v3278 = vld [vmem:[#allocation4 + $0x2c] sm:$0xf]
    %v3279 = vld [vmem:[#allocation4 + $0x30] sm:$0xf]
    %v3280 = vld [vmem:[#allocation4 + $0x34] sm:$0xf]
    %v3281 = vld [vmem:[#allocation4 + $0x38] sm:$0xf]
    %v3282 = vld [vmem:[#allocation4 + $0x3c] sm:$0xf]
    %v3283 = vld [vmem:[#allocation4 + $0x40] sm:$0xf]
    %v3284 = vld [vmem:[#allocation4 + $0x44] sm:$0xf]
    %v3285 = vld [vmem:[#allocation4 + $0x48] sm:$0xf]
    %v3286 = vld [vmem:[#allocation4 + $0x4c] sm:$0xf]
    %v3287 = vld [vmem:[#allocation4 + $0x50] sm:$0xf]
    %v3288 = vld [vmem:[#allocation4 + $0x54] sm:$0xf]
    %v3289 = vld [vmem:[#allocation4 + $0x58] sm:$0xf]
    %v3290 = vld [vmem:[#allocation4 + $0x5c] sm:$0xf]
    %v3291 = vld [vmem:[#allocation4 + $0x60] sm:$0xf]
    %v3292 = vld [vmem:[#allocation4 + $0x64] sm:$0xf]
    %v3293 = vld [vmem:[#allocation4 + $0x68] sm:$0xf]
    %v3294 = vld [vmem:[#allocation4 + $0x6c] sm:$0xf]
    %v3295 = vld [vmem:[#allocation4 + $0x70] sm:$0xf]
    %v3296 = vld [vmem:[#allocation4 + $0x74] sm:$0xf]
    %v3297 = vld [vmem:[#allocation4 + $0x78] sm:$0xf]
    %v3298 = vld [vmem:[#allocation4 + $0x7c] sm:$0xf]
    %s3299 = scalar_lea.vmem %s4, 256
    %v3300 = vld [vmem:[%s3299] sm:$0xff]
    %v3301 = vld [vmem:[%s3299 + $0x8] sm:$0xff]
    %v3302 = vld [vmem:[%s3299 + $0x10] sm:$0xff]
    %v3303 = vld [vmem:[%s3299 + $0x18] sm:$0xff]
    %v3304 = vld [vmem:[%s3299 + $0x20] sm:$0xff]
    %v3305 = vld [vmem:[%s3299 + $0x28] sm:$0xff]
    %v3306 = vld [vmem:[%s3299 + $0x30] sm:$0xff]
    %v3307 = vld [vmem:[%s3299 + $0x38] sm:$0xff]
    %v3308 = vld [vmem:[%s3299 + $0x40] sm:$0xff]
    %v3309 = vld [vmem:[%s3299 + $0x48] sm:$0xff]
    %v3310 = vld [vmem:[%s3299 + $0x50] sm:$0xff]
    %v3311 = vld [vmem:[%s3299 + $0x58] sm:$0xff]
    %v3312 = vld [vmem:[%s3299 + $0x60] sm:$0xff]
    %v3313 = vld [vmem:[%s3299 + $0x68] sm:$0xff]
    %v3314 = vld [vmem:[%s3299 + $0x70] sm:$0xff]
    %v3315 = vld [vmem:[%s3299 + $0x78] sm:$0xff]
    %v3316 = vld [vmem:[%s3299 + $0x80] sm:$0xff]
    %v3317 = vld [vmem:[%s3299 + $0x88] sm:$0xff]
    %v3318 = vld [vmem:[%s3299 + $0x90] sm:$0xff]
    %v3319 = vld [vmem:[%s3299 + $0x98] sm:$0xff]
    %v3320 = vld [vmem:[%s3299 + $0xa0] sm:$0xff]
    %v3321 = vld [vmem:[%s3299 + $0xa8] sm:$0xff]
    %v3322 = vld [vmem:[%s3299 + $0xb0] sm:$0xff]
    %v3323 = vld [vmem:[%s3299 + $0xb8] sm:$0xff]
    %v3324 = vld [vmem:[%s3299 + $0xc0] sm:$0xff]
    %v3325 = vld [vmem:[%s3299 + $0xc8] sm:$0xff]
    %v3326 = vld [vmem:[%s3299 + $0xd0] sm:$0xff]
    %v3327 = vld [vmem:[%s3299 + $0xd8] sm:$0xff]
    %v3328 = vld [vmem:[%s3299 + $0xe0] sm:$0xff]
    %v3329 = vld [vmem:[%s3299 + $0xe8] sm:$0xff]
    %v3330 = vld [vmem:[%s3299 + $0xf0] sm:$0xff]
    %v3331 = vld [vmem:[%s3299 + $0xf8] sm:$0xff]
    %s3332 = scalar_lea.vmem %s6, 8
    %v3333 = vld [vmem:[%s3332] sm:$0xf]
    %v3335 = vlaneseq
    %v3336 = vshrl.u32 %v3335, 7
    %v3337 = vsub.s32 0, %v3336
    %v3338 = vrot.slane %v3333, %v3337
    %v3339 = vlaneseq
    %v3340 = vshrl.u32 %v3339, 7
    %v3341 = vsub.s32 1, %v3340
    %v3342 = vrot.slane %v3333, %v3341
    %v3343 = vlaneseq
    %v3344 = vshrl.u32 %v3343, 7
    %v3345 = vsub.s32 2, %v3344
    %v3346 = vrot.slane %v3333, %v3345
    %v3347 = vlaneseq
    %v3348 = vshrl.u32 %v3347, 7
    %v3349 = vsub.s32 3, %v3348
    %v3350 = vrot.slane %v3333, %v3349
    %v3387 = vunpack.c.l.b16 %v3267
    %v3388 = vunpack.c.l.b16 %v3268
    %v3389 = vunpack.c.l.b16 %v3269
    %v3390 = vunpack.c.l.b16 %v3270
    %v3391 = vunpack.c.l.b16 %v3271
    %v3392 = vunpack.c.l.b16 %v3272
    %v3393 = vunpack.c.l.b16 %v3273
    %v3394 = vunpack.c.l.b16 %v3274
    %v3395 = vunpack.c.l.b16 %v3275
    %v3396 = vunpack.c.l.b16 %v3276
    %v3397 = vunpack.c.l.b16 %v3277
    %v3398 = vunpack.c.l.b16 %v3278
    %v3399 = vunpack.c.l.b16 %v3279
    %v3400 = vunpack.c.l.b16 %v3280
    %v3401 = vunpack.c.l.b16 %v3281
    %v3402 = vunpack.c.l.b16 %v3282
    %v3403 = vunpack.c.l.b16 %v3283
    %v3404 = vunpack.c.l.b16 %v3284
    %v3405 = vunpack.c.l.b16 %v3285
    %v3406 = vunpack.c.l.b16 %v3286
    %v3407 = vunpack.c.l.b16 %v3287
    %v3408 = vunpack.c.l.b16 %v3288
    %v3409 = vunpack.c.l.b16 %v3289
    %v3410 = vunpack.c.l.b16 %v3290
    %v3411 = vunpack.c.l.b16 %v3291
    %v3412 = vunpack.c.l.b16 %v3292
    %v3413 = vunpack.c.l.b16 %v3293
    %v3414 = vunpack.c.l.b16 %v3294
    %v3415 = vunpack.c.l.b16 %v3295
    %v3416 = vunpack.c.l.b16 %v3296
    %v3417 = vunpack.c.l.b16 %v3297
    %v3418 = vunpack.c.l.b16 %v3298
    %v3419 = vpack.c.b16 %v3388, %v3387
    %v3420 = vpack.c.b16 %v3390, %v3389
    %v3421 = vpack.c.b16 %v3392, %v3391
    %v3422 = vpack.c.b16 %v3394, %v3393
    %v3423 = vpack.c.b16 %v3396, %v3395
    %v3424 = vpack.c.b16 %v3398, %v3397
    %v3425 = vpack.c.b16 %v3400, %v3399
    %v3426 = vpack.c.b16 %v3402, %v3401
    %v3427 = vpack.c.b16 %v3404, %v3403
    %v3428 = vpack.c.b16 %v3406, %v3405
    %v3429 = vpack.c.b16 %v3408, %v3407
    %v3430 = vpack.c.b16 %v3410, %v3409
    %v3431 = vpack.c.b16 %v3412, %v3411
    %v3432 = vpack.c.b16 %v3414, %v3413
    %v3433 = vpack.c.b16 %v3416, %v3415
    %v3434 = vpack.c.b16 %v3418, %v3417
    %v3483 = vunpack.c.l.b16 %v3300
    %v3484 = vunpack.c.h.b16 %v3300
    %v3485 = vunpack.c.l.b16 %v3301
    %v3486 = vunpack.c.h.b16 %v3301
    %v3487 = vunpack.c.l.b16 %v3302
    %v3488 = vunpack.c.h.b16 %v3302
    %v3489 = vunpack.c.l.b16 %v3303
    %v3490 = vunpack.c.h.b16 %v3303
    %v3491 = vunpack.c.l.b16 %v3304
    %v3492 = vunpack.c.h.b16 %v3304
    %v3493 = vunpack.c.l.b16 %v3305
    %v3494 = vunpack.c.h.b16 %v3305
    %v3495 = vunpack.c.l.b16 %v3306
    %v3496 = vunpack.c.h.b16 %v3306
    %v3497 = vunpack.c.l.b16 %v3307
    %v3498 = vunpack.c.h.b16 %v3307
    %v3499 = vunpack.c.l.b16 %v3308
    %v3500 = vunpack.c.h.b16 %v3308
    %v3501 = vunpack.c.l.b16 %v3309
    %v3502 = vunpack.c.h.b16 %v3309
    %v3503 = vunpack.c.l.b16 %v3310
    %v3504 = vunpack.c.h.b16 %v3310
    %v3505 = vunpack.c.l.b16 %v3311
    %v3506 = vunpack.c.h.b16 %v3311
    %v3507 = vunpack.c.l.b16 %v3312
    %v3508 = vunpack.c.h.b16 %v3312
    %v3509 = vunpack.c.l.b16 %v3313
    %v3510 = vunpack.c.h.b16 %v3313
    %v3511 = vunpack.c.l.b16 %v3314
    %v3512 = vunpack.c.h.b16 %v3314
    %v3513 = vunpack.c.l.b16 %v3315
    %v3514 = vunpack.c.h.b16 %v3315
    %v3515 = vunpack.c.l.b16 %v3316
    %v3516 = vunpack.c.h.b16 %v3316
    %v3517 = vunpack.c.l.b16 %v3317
    %v3518 = vunpack.c.h.b16 %v3317
    %v3519 = vunpack.c.l.b16 %v3318
    %v3520 = vunpack.c.h.b16 %v3318
    %v3521 = vunpack.c.l.b16 %v3319
    %v3522 = vunpack.c.h.b16 %v3319
    %v3523 = vunpack.c.l.b16 %v3320
    %v3524 = vunpack.c.h.b16 %v3320
    %v3525 = vunpack.c.l.b16 %v3321
    %v3526 = vunpack.c.h.b16 %v3321
    %v3527 = vunpack.c.l.b16 %v3322
    %v3528 = vunpack.c.h.b16 %v3322
    %v3529 = vunpack.c.l.b16 %v3323
    %v3530 = vunpack.c.h.b16 %v3323
    %v3531 = vunpack.c.l.b16 %v3324
    %v3532 = vunpack.c.h.b16 %v3324
    %v3533 = vunpack.c.l.b16 %v3325
    %v3534 = vunpack.c.h.b16 %v3325
    %v3535 = vunpack.c.l.b16 %v3326
    %v3536 = vunpack.c.h.b16 %v3326
    %v3537 = vunpack.c.l.b16 %v3327
    %v3538 = vunpack.c.h.b16 %v3327
    %v3539 = vunpack.c.l.b16 %v3328
    %v3540 = vunpack.c.h.b16 %v3328
    %v3541 = vunpack.c.l.b16 %v3329
    %v3542 = vunpack.c.h.b16 %v3329
    %v3543 = vunpack.c.l.b16 %v3330
    %v3544 = vunpack.c.h.b16 %v3330
    %v3545 = vunpack.c.l.b16 %v3331
    %v3546 = vunpack.c.h.b16 %v3331
    %v3547 = vpack.c.b16 %v3487, %v3483
    %v3548 = vpack.c.b16 %v3488, %v3484
    %v3549 = vpack.c.b16 %v3489, %v3485
    %v3550 = vpack.c.b16 %v3490, %v3486
    %v3551 = vpack.c.b16 %v3495, %v3491
    %v3552 = vpack.c.b16 %v3496, %v3492
    %v3553 = vpack.c.b16 %v3497, %v3493
    %v3554 = vpack.c.b16 %v3498, %v3494
    %v3555 = vpack.c.b16 %v3503, %v3499
    %v3556 = vpack.c.b16 %v3504, %v3500
    %v3557 = vpack.c.b16 %v3505, %v3501
    %v3558 = vpack.c.b16 %v3506, %v3502
    %v3559 = vpack.c.b16 %v3511, %v3507
    %v3560 = vpack.c.b16 %v3512, %v3508
    %v3561 = vpack.c.b16 %v3513, %v3509
    %v3562 = vpack.c.b16 %v3514, %v3510
    %v3563 = vpack.c.b16 %v3519, %v3515
    %v3564 = vpack.c.b16 %v3520, %v3516
    %v3565 = vpack.c.b16 %v3521, %v3517
    %v3566 = vpack.c.b16 %v3522, %v3518
    %v3567 = vpack.c.b16 %v3527, %v3523
    %v3568 = vpack.c.b16 %v3528, %v3524
    %v3569 = vpack.c.b16 %v3529, %v3525
    %v3570 = vpack.c.b16 %v3530, %v3526
    %v3571 = vpack.c.b16 %v3535, %v3531
    %v3572 = vpack.c.b16 %v3536, %v3532
    %v3573 = vpack.c.b16 %v3537, %v3533
    %v3574 = vpack.c.b16 %v3538, %v3534
    %v3575 = vpack.c.b16 %v3543, %v3539
    %v3576 = vpack.c.b16 %v3544, %v3540
    %v3577 = vpack.c.b16 %v3545, %v3541
    %v3578 = vpack.c.b16 %v3546, %v3542
    %3611 = vmatprep.subr.bf16.mxu0 %v3576
    %3612 = vmatpush1.bf16.msra.mxu0 %v3575
    %3613 = vmatprep.subr.bf16.mxu0 %v3572
    %3614 = vmatpush1.bf16.msra.mxu0 %v3571
    %3615 = vmatprep.subr.bf16.mxu0 %v3568
    %3616 = vmatpush1.bf16.msra.mxu0 %v3567
    %3617 = vmatprep.subr.bf16.mxu0 %v3564
    %3618 = vmatpush1.bf16.msra.mxu0 %v3563
    %3619 = vmatprep.subr.bf16.mxu0 %v3560
    %3620 = vmatpush1.bf16.msra.mxu0 %v3559
    %3621 = vmatprep.subr.bf16.mxu0 %v3556
    %3622 = vmatpush1.bf16.msra.mxu0 %v3555
    %3623 = vmatprep.subr.bf16.mxu0 %v3552
    %3624 = vmatpush1.bf16.msra.mxu0 %v3551
    %3625 = vmatprep.subr.bf16.mxu0 %v3548
    %3626 = vmatpush1.bf16.msra.mxu0 %v3547
    %3627 = vmatprep.subr.bf16.mxu0 0
    %3628 = vmatpush2.bf16.msra.mxu0 0
    %3629 = vmatprep.subr.bf16.mxu0 0
    %3630 = vmatpush2.bf16.msra.mxu0 0
    %3631 = vmatprep.subr.bf16.mxu0 0
    %3632 = vmatpush2.bf16.msra.mxu0 0
    %3633 = vmatprep.subr.bf16.mxu0 0
    %3634 = vmatpush2.bf16.msra.mxu0 0
    %3635 = vmatprep.subr.bf16.mxu0 0
    %3636 = vmatpush2.bf16.msra.mxu0 0
    %3637 = vmatprep.subr.bf16.mxu0 0
    %3638 = vmatpush2.bf16.msra.mxu0 0
    %3639 = vmatprep.subr.bf16.mxu0 0
    %3640 = vmatpush2.bf16.msra.mxu0 0
    %3641 = vmatprep.subr.bf16.mxu0 0
    %3642 = vmatpush2.bf16.msra.mxu0 0
    %3643 = vmatprep.mubr.bf16.mxu0 0
    %3644 = vmatmul.mubr.bf16.gmra.mxu0 %v3419
    %v3645 = vpop.f32.mrf.mxu0
    %v3646 = vadd.f32 %v3338, %v3645
    %v3647 = vpop.f32.mrf.mxu0
    %v3648 = vadd.f32 %v3342, %v3647
    %v3649 = vpop.f32.mrf.mxu0
    %v3650 = vadd.f32 %v3338, %v3649
    %v3651 = vpop.f32.mrf.mxu0
    %v3652 = vadd.f32 %v3342, %v3651
    %3653 = vmatprep.mubr.bf16.mxu0 0
    %3654 = vmatmul.mubr.bf16.gmra.mxu0 %v3420
    %v3655 = vpop.f32.mrf.mxu0
    %v3656 = vadd.f32 %v3338, %v3655
    %v3657 = vpop.f32.mrf.mxu0
    %v3658 = vadd.f32 %v3342, %v3657
    %v3659 = vpop.f32.mrf.mxu0
    %v3660 = vadd.f32 %v3338, %v3659
    %v3661 = vpop.f32.mrf.mxu0
    %v3662 = vadd.f32 %v3342, %v3661
    %3663 = vmatprep.mubr.bf16.mxu0 0
    %3664 = vmatmul.mubr.bf16.gmra.mxu0 %v3421
    %v3665 = vpop.f32.mrf.mxu0
    %v3666 = vadd.f32 %v3338, %v3665
    %v3667 = vpop.f32.mrf.mxu0
    %v3668 = vadd.f32 %v3342, %v3667
    %v3669 = vpop.f32.mrf.mxu0
    %v3670 = vadd.f32 %v3338, %v3669
    %v3671 = vpop.f32.mrf.mxu0
    %v3672 = vadd.f32 %v3342, %v3671
    %3673 = vmatprep.mubr.bf16.mxu0 0
    %3674 = vmatmul.mubr.bf16.gmra.mxu0 %v3422
    %v3675 = vpop.f32.mrf.mxu0
    %v3676 = vadd.f32 %v3338, %v3675
    %v3677 = vpop.f32.mrf.mxu0
    %v3678 = vadd.f32 %v3342, %v3677
    %v3679 = vpop.f32.mrf.mxu0
    %v3680 = vadd.f32 %v3338, %v3679
    %v3681 = vpop.f32.mrf.mxu0
    %v3682 = vadd.f32 %v3342, %v3681
    %3683 = vmatprep.mubr.bf16.mxu0 0
    %3684 = vmatmul.mubr.bf16.gmra.mxu0 %v3423
    %v3685 = vpop.f32.mrf.mxu0
    %v3686 = vadd.f32 %v3338, %v3685
    %v3687 = vpop.f32.mrf.mxu0
    %v3688 = vadd.f32 %v3342, %v3687
    %v3689 = vpop.f32.mrf.mxu0
    %v3690 = vadd.f32 %v3338, %v3689
    %v3691 = vpop.f32.mrf.mxu0
    %v3692 = vadd.f32 %v3342, %v3691
    %3693 = vmatprep.mubr.bf16.mxu0 0
    %3694 = vmatmul.mubr.bf16.gmra.mxu0 %v3424
    %v3695 = vpop.f32.mrf.mxu0
    %v3696 = vadd.f32 %v3338, %v3695
    %v3697 = vpop.f32.mrf.mxu0
    %v3698 = vadd.f32 %v3342, %v3697
    %v3699 = vpop.f32.mrf.mxu0
    %v3700 = vadd.f32 %v3338, %v3699
    %v3701 = vpop.f32.mrf.mxu0
    %v3702 = vadd.f32 %v3342, %v3701
    %3703 = vmatprep.mubr.bf16.mxu0 0
    %3704 = vmatmul.mubr.bf16.gmra.mxu0 %v3425
    %v3705 = vpop.f32.mrf.mxu0
    %v3706 = vadd.f32 %v3338, %v3705
    %v3707 = vpop.f32.mrf.mxu0
    %v3708 = vadd.f32 %v3342, %v3707
    %v3709 = vpop.f32.mrf.mxu0
    %v3710 = vadd.f32 %v3338, %v3709
    %v3711 = vpop.f32.mrf.mxu0
    %v3712 = vadd.f32 %v3342, %v3711
    %3713 = vmatprep.mubr.bf16.mxu0 0
    %3714 = vmatmul.mubr.bf16.gmra.mxu0 %v3426
    %v3715 = vpop.f32.mrf.mxu0
    %v3716 = vadd.f32 %v3338, %v3715
    %v3717 = vpop.f32.mrf.mxu0
    %v3718 = vadd.f32 %v3342, %v3717
    %v3719 = vpop.f32.mrf.mxu0
    %v3720 = vadd.f32 %v3338, %v3719
    %v3721 = vpop.f32.mrf.mxu0
    %v3722 = vadd.f32 %v3342, %v3721
    %3723 = vmatprep.mubr.bf16.mxu0 0
    %3724 = vmatmul.mubr.bf16.gmra.mxu0 %v3427
    %v3725 = vpop.f32.mrf.mxu0
    %v3726 = vadd.f32 %v3338, %v3725
    %v3727 = vpop.f32.mrf.mxu0
    %v3728 = vadd.f32 %v3342, %v3727
    %v3729 = vpop.f32.mrf.mxu0
    %v3730 = vadd.f32 %v3338, %v3729
    %v3731 = vpop.f32.mrf.mxu0
    %v3732 = vadd.f32 %v3342, %v3731
    %3733 = vmatprep.mubr.bf16.mxu0 0
    %3734 = vmatmul.mubr.bf16.gmra.mxu0 %v3428
    %v3735 = vpop.f32.mrf.mxu0
    %v3736 = vadd.f32 %v3338, %v3735
    %v3737 = vpop.f32.mrf.mxu0
    %v3738 = vadd.f32 %v3342, %v3737
    %v3739 = vpop.f32.mrf.mxu0
    %v3740 = vadd.f32 %v3338, %v3739
    %v3741 = vpop.f32.mrf.mxu0
    %v3742 = vadd.f32 %v3342, %v3741
    %3743 = vmatprep.mubr.bf16.mxu0 0
    %3744 = vmatmul.mubr.bf16.gmra.mxu0 %v3429
    %v3745 = vpop.f32.mrf.mxu0
    %v3746 = vadd.f32 %v3338, %v3745
    %v3747 = vpop.f32.mrf.mxu0
    %v3748 = vadd.f32 %v3342, %v3747
    %v3749 = vpop.f32.mrf.mxu0
    %v3750 = vadd.f32 %v3338, %v3749
    %v3751 = vpop.f32.mrf.mxu0
    %v3752 = vadd.f32 %v3342, %v3751
    %3753 = vmatprep.mubr.bf16.mxu0 0
    %3754 = vmatmul.mubr.bf16.gmra.mxu0 %v3430
    %v3755 = vpop.f32.mrf.mxu0
    %v3756 = vadd.f32 %v3338, %v3755
    %v3757 = vpop.f32.mrf.mxu0
    %v3758 = vadd.f32 %v3342, %v3757
    %v3759 = vpop.f32.mrf.mxu0
    %v3760 = vadd.f32 %v3338, %v3759
    %v3761 = vpop.f32.mrf.mxu0
    %v3762 = vadd.f32 %v3342, %v3761
    %3763 = vmatprep.mubr.bf16.mxu0 0
    %3764 = vmatmul.mubr.bf16.gmra.mxu0 %v3431
    %v3765 = vpop.f32.mrf.mxu0
    %v3766 = vadd.f32 %v3338, %v3765
    %v3767 = vpop.f32.mrf.mxu0
    %v3768 = vadd.f32 %v3342, %v3767
    %v3769 = vpop.f32.mrf.mxu0
    %v3770 = vadd.f32 %v3338, %v3769
    %v3771 = vpop.f32.mrf.mxu0
    %v3772 = vadd.f32 %v3342, %v3771
    %3773 = vmatprep.mubr.bf16.mxu0 0
    %3774 = vmatmul.mubr.bf16.gmra.mxu0 %v3432
    %v3775 = vpop.f32.mrf.mxu0
    %v3776 = vadd.f32 %v3338, %v3775
    %v3777 = vpop.f32.mrf.mxu0
    %v3778 = vadd.f32 %v3342, %v3777
    %v3779 = vpop.f32.mrf.mxu0
    %v3780 = vadd.f32 %v3338, %v3779
    %v3781 = vpop.f32.mrf.mxu0
    %v3782 = vadd.f32 %v3342, %v3781
    %3783 = vmatprep.mubr.bf16.mxu0 0
    %3784 = vmatmul.mubr.bf16.gmra.mxu0 %v3433
    %v3785 = vpop.f32.mrf.mxu0
    %v3786 = vadd.f32 %v3338, %v3785
    %v3787 = vpop.f32.mrf.mxu0
    %v3788 = vadd.f32 %v3342, %v3787
    %v3789 = vpop.f32.mrf.mxu0
    %v3790 = vadd.f32 %v3338, %v3789
    %v3791 = vpop.f32.mrf.mxu0
    %v3792 = vadd.f32 %v3342, %v3791
    %3793 = vmatprep.mubr.bf16.mxu0 0
    %3794 = vmatmul.mubr.bf16.gmra.mxu0 %v3434
    %v3795 = vpop.f32.mrf.mxu0
    %v3796 = vadd.f32 %v3338, %v3795
    %v3797 = vpop.f32.mrf.mxu0
    %v3798 = vadd.f32 %v3342, %v3797
    %v3799 = vpop.f32.mrf.mxu0
    %v3800 = vadd.f32 %v3338, %v3799
    %v3801 = vpop.f32.mrf.mxu0
    %v3802 = vadd.f32 %v3342, %v3801
    %3803 = vdwg.mxu0
    %3804 = vmatprep.subr.bf16.mxu0 %v3578
    %3805 = vmatpush1.bf16.msra.mxu0 %v3577
    %3806 = vmatprep.subr.bf16.mxu0 %v3574
    %3807 = vmatpush1.bf16.msra.mxu0 %v3573
    %3808 = vmatprep.subr.bf16.mxu0 %v3570
    %3809 = vmatpush1.bf16.msra.mxu0 %v3569
    %3810 = vmatprep.subr.bf16.mxu0 %v3566
    %3811 = vmatpush1.bf16.msra.mxu0 %v3565
    %3812 = vmatprep.subr.bf16.mxu0 %v3562
    %3813 = vmatpush1.bf16.msra.mxu0 %v3561
    %3814 = vmatprep.subr.bf16.mxu0 %v3558
    %3815 = vmatpush1.bf16.msra.mxu0 %v3557
    %3816 = vmatprep.subr.bf16.mxu0 %v3554
    %3817 = vmatpush1.bf16.msra.mxu0 %v3553
    %3818 = vmatprep.subr.bf16.mxu0 %v3550
    %3819 = vmatpush1.bf16.msra.mxu0 %v3549
    %3820 = vmatprep.subr.bf16.mxu0 0
    %3821 = vmatpush2.bf16.msra.mxu0 0
    %3822 = vmatprep.subr.bf16.mxu0 0
    %3823 = vmatpush2.bf16.msra.mxu0 0
    %3824 = vmatprep.subr.bf16.mxu0 0
    %3825 = vmatpush2.bf16.msra.mxu0 0
    %3826 = vmatprep.subr.bf16.mxu0 0
    %3827 = vmatpush2.bf16.msra.mxu0 0
    %3828 = vmatprep.subr.bf16.mxu0 0
    %3829 = vmatpush2.bf16.msra.mxu0 0
    %3830 = vmatprep.subr.bf16.mxu0 0
    %3831 = vmatpush2.bf16.msra.mxu0 0
    %3832 = vmatprep.subr.bf16.mxu0 0
    %3833 = vmatpush2.bf16.msra.mxu0 0
    %3834 = vmatprep.subr.bf16.mxu0 0
    %3835 = vmatpush2.bf16.msra.mxu0 0
    %3836 = vmatprep.mubr.bf16.mxu0 0
    %3837 = vmatmul.mubr.bf16.gmra.mxu0 %v3419
    %v3838 = vpop.f32.mrf.mxu0
    %v3839 = vadd.f32 %v3346, %v3838
    %v3840 = vpop.f32.mrf.mxu0
    %v3841 = vadd.f32 %v3350, %v3840
    %v3842 = vpop.f32.mrf.mxu0
    %v3843 = vadd.f32 %v3346, %v3842
    %v3844 = vpop.f32.mrf.mxu0
    %v3845 = vadd.f32 %v3350, %v3844
    %3846 = vmatprep.mubr.bf16.mxu0 0
    %3847 = vmatmul.mubr.bf16.gmra.mxu0 %v3420
    %v3848 = vpop.f32.mrf.mxu0
    %v3849 = vadd.f32 %v3346, %v3848
    %v3850 = vpop.f32.mrf.mxu0
    %v3851 = vadd.f32 %v3350, %v3850
    %v3852 = vpop.f32.mrf.mxu0
    %v3853 = vadd.f32 %v3346, %v3852
    %v3854 = vpop.f32.mrf.mxu0
    %v3855 = vadd.f32 %v3350, %v3854
    %3856 = vmatprep.mubr.bf16.mxu0 0
    %3857 = vmatmul.mubr.bf16.gmra.mxu0 %v3421
    %v3858 = vpop.f32.mrf.mxu0
    %v3859 = vadd.f32 %v3346, %v3858
    %v3860 = vpop.f32.mrf.mxu0
    %v3861 = vadd.f32 %v3350, %v3860
    %v3862 = vpop.f32.mrf.mxu0
    %v3863 = vadd.f32 %v3346, %v3862
    %v3864 = vpop.f32.mrf.mxu0
    %v3865 = vadd.f32 %v3350, %v3864
    %3866 = vmatprep.mubr.bf16.mxu0 0
    %3867 = vmatmul.mubr.bf16.gmra.mxu0 %v3422
    %v3868 = vpop.f32.mrf.mxu0
    %v3869 = vadd.f32 %v3346, %v3868
    %v3870 = vpop.f32.mrf.mxu0
    %v3871 = vadd.f32 %v3350, %v3870
    %v3872 = vpop.f32.mrf.mxu0
    %v3873 = vadd.f32 %v3346, %v3872
    %v3874 = vpop.f32.mrf.mxu0
    %v3875 = vadd.f32 %v3350, %v3874
    %3876 = vmatprep.mubr.bf16.mxu0 0
    %3877 = vmatmul.mubr.bf16.gmra.mxu0 %v3423
    %v3878 = vpop.f32.mrf.mxu0
    %v3879 = vadd.f32 %v3346, %v3878
    %v3880 = vpop.f32.mrf.mxu0
    %v3881 = vadd.f32 %v3350, %v3880
    %v3882 = vpop.f32.mrf.mxu0
    %v3883 = vadd.f32 %v3346, %v3882
    %v3884 = vpop.f32.mrf.mxu0
    %v3885 = vadd.f32 %v3350, %v3884
    %3886 = vmatprep.mubr.bf16.mxu0 0
    %3887 = vmatmul.mubr.bf16.gmra.mxu0 %v3424
    %v3888 = vpop.f32.mrf.mxu0
    %v3889 = vadd.f32 %v3346, %v3888
    %v3890 = vpop.f32.mrf.mxu0
    %v3891 = vadd.f32 %v3350, %v3890
    %v3892 = vpop.f32.mrf.mxu0
    %v3893 = vadd.f32 %v3346, %v3892
    %v3894 = vpop.f32.mrf.mxu0
    %v3895 = vadd.f32 %v3350, %v3894
    %3896 = vmatprep.mubr.bf16.mxu0 0
    %3897 = vmatmul.mubr.bf16.gmra.mxu0 %v3425
    %v3898 = vpop.f32.mrf.mxu0
    %v3899 = vadd.f32 %v3346, %v3898
    %v3900 = vpop.f32.mrf.mxu0
    %v3901 = vadd.f32 %v3350, %v3900
    %v3902 = vpop.f32.mrf.mxu0
    %v3903 = vadd.f32 %v3346, %v3902
    %v3904 = vpop.f32.mrf.mxu0
    %v3905 = vadd.f32 %v3350, %v3904
    %3906 = vmatprep.mubr.bf16.mxu0 0
    %3907 = vmatmul.mubr.bf16.gmra.mxu0 %v3426
    %v3908 = vpop.f32.mrf.mxu0
    %v3909 = vadd.f32 %v3346, %v3908
    %v3910 = vpop.f32.mrf.mxu0
    %v3911 = vadd.f32 %v3350, %v3910
    %v3912 = vpop.f32.mrf.mxu0
    %v3913 = vadd.f32 %v3346, %v3912
    %v3914 = vpop.f32.mrf.mxu0
    %v3915 = vadd.f32 %v3350, %v3914
    %3916 = vmatprep.mubr.bf16.mxu0 0
    %3917 = vmatmul.mubr.bf16.gmra.mxu0 %v3427
    %v3918 = vpop.f32.mrf.mxu0
    %v3919 = vadd.f32 %v3346, %v3918
    %v3920 = vpop.f32.mrf.mxu0
    %v3921 = vadd.f32 %v3350, %v3920
    %v3922 = vpop.f32.mrf.mxu0
    %v3923 = vadd.f32 %v3346, %v3922
    %v3924 = vpop.f32.mrf.mxu0
    %v3925 = vadd.f32 %v3350, %v3924
    %3926 = vmatprep.mubr.bf16.mxu0 0
    %3927 = vmatmul.mubr.bf16.gmra.mxu0 %v3428
    %v3928 = vpop.f32.mrf.mxu0
    %v3929 = vadd.f32 %v3346, %v3928
    %v3930 = vpop.f32.mrf.mxu0
    %v3931 = vadd.f32 %v3350, %v3930
    %v3932 = vpop.f32.mrf.mxu0
    %v3933 = vadd.f32 %v3346, %v3932
    %v3934 = vpop.f32.mrf.mxu0
    %v3935 = vadd.f32 %v3350, %v3934
    %3936 = vmatprep.mubr.bf16.mxu0 0
    %3937 = vmatmul.mubr.bf16.gmra.mxu0 %v3429
    %v3938 = vpop.f32.mrf.mxu0
    %v3939 = vadd.f32 %v3346, %v3938
    %v3940 = vpop.f32.mrf.mxu0
    %v3941 = vadd.f32 %v3350, %v3940
    %v3942 = vpop.f32.mrf.mxu0
    %v3943 = vadd.f32 %v3346, %v3942
    %v3944 = vpop.f32.mrf.mxu0
    %v3945 = vadd.f32 %v3350, %v3944
    %3946 = vmatprep.mubr.bf16.mxu0 0
    %3947 = vmatmul.mubr.bf16.gmra.mxu0 %v3430
    %v3948 = vpop.f32.mrf.mxu0
    %v3949 = vadd.f32 %v3346, %v3948
    %v3950 = vpop.f32.mrf.mxu0
    %v3951 = vadd.f32 %v3350, %v3950
    %v3952 = vpop.f32.mrf.mxu0
    %v3953 = vadd.f32 %v3346, %v3952
    %v3954 = vpop.f32.mrf.mxu0
    %v3955 = vadd.f32 %v3350, %v3954
    %3956 = vmatprep.mubr.bf16.mxu0 0
    %3957 = vmatmul.mubr.bf16.gmra.mxu0 %v3431
    %v3958 = vpop.f32.mrf.mxu0
    %v3959 = vadd.f32 %v3346, %v3958
    %v3960 = vpop.f32.mrf.mxu0
    %v3961 = vadd.f32 %v3350, %v3960
    %v3962 = vpop.f32.mrf.mxu0
    %v3963 = vadd.f32 %v3346, %v3962
    %v3964 = vpop.f32.mrf.mxu0
    %v3965 = vadd.f32 %v3350, %v3964
    %3966 = vmatprep.mubr.bf16.mxu0 0
    %3967 = vmatmul.mubr.bf16.gmra.mxu0 %v3432
    %v3968 = vpop.f32.mrf.mxu0
    %v3969 = vadd.f32 %v3346, %v3968
    %v3970 = vpop.f32.mrf.mxu0
    %v3971 = vadd.f32 %v3350, %v3970
    %v3972 = vpop.f32.mrf.mxu0
    %v3973 = vadd.f32 %v3346, %v3972
    %v3974 = vpop.f32.mrf.mxu0
    %v3975 = vadd.f32 %v3350, %v3974
    %3976 = vmatprep.mubr.bf16.mxu0 0
    %3977 = vmatmul.mubr.bf16.gmra.mxu0 %v3433
    %v3978 = vpop.f32.mrf.mxu0
    %v3979 = vadd.f32 %v3346, %v3978
    %v3980 = vpop.f32.mrf.mxu0
    %v3981 = vadd.f32 %v3350, %v3980
    %v3982 = vpop.f32.mrf.mxu0
    %v3983 = vadd.f32 %v3346, %v3982
    %v3984 = vpop.f32.mrf.mxu0
    %v3985 = vadd.f32 %v3350, %v3984
    %3986 = vmatprep.mubr.bf16.mxu0 0
    %3987 = vmatmul.mubr.bf16.gmra.mxu0 %v3434
    %v3988 = vpop.f32.mrf.mxu0
    %v3989 = vadd.f32 %v3346, %v3988
    %v3990 = vpop.f32.mrf.mxu0
    %v3991 = vadd.f32 %v3350, %v3990
    %v3992 = vpop.f32.mrf.mxu0
    %v3993 = vadd.f32 %v3346, %v3992
    %v3994 = vpop.f32.mrf.mxu0
    %v3995 = vadd.f32 %v3350, %v3994
    %3996 = vdwg.mxu0
    %3997 = vst [vmem:[#allocation2] sm:$0xff] %v3646
    %3998 = vst [vmem:[#allocation2 + $0x8] sm:$0xff] %v3648
    %3999 = vst [vmem:[#allocation2 + $0x10] sm:$0xff] %v3839
    %4000 = vst [vmem:[#allocation2 + $0x18] sm:$0xff] %v3841
    %4001 = vst [vmem:[#allocation2 + $0x20] sm:$0xff] %v3650
    %4002 = vst [vmem:[#allocation2 + $0x28] sm:$0xff] %v3652
    %4003 = vst [vmem:[#allocation2 + $0x30] sm:$0xff] %v3843
    %4004 = vst [vmem:[#allocation2 + $0x38] sm:$0xff] %v3845
    %4005 = vst [vmem:[#allocation2 + $0x40] sm:$0xff] %v3656
    %4006 = vst [vmem:[#allocation2 + $0x48] sm:$0xff] %v3658
    %4007 = vst [vmem:[#allocation2 + $0x50] sm:$0xff] %v3849
    %4008 = vst [vmem:[#allocation2 + $0x58] sm:$0xff] %v3851
    %4009 = vst [vmem:[#allocation2 + $0x60] sm:$0xff] %v3660
    %4010 = vst [vmem:[#allocation2 + $0x68] sm:$0xff] %v3662
    %4011 = vst [vmem:[#allocation2 + $0x70] sm:$0xff] %v3853
    %4012 = vst [vmem:[#allocation2 + $0x78] sm:$0xff] %v3855
    %4013 = vst [vmem:[#allocation2 + $0x80] sm:$0xff] %v3666
    %4014 = vst [vmem:[#allocation2 + $0x88] sm:$0xff] %v3668
    %4015 = vst [vmem:[#allocation2 + $0x90] sm:$0xff] %v3859
    %4016 = vst [vmem:[#allocation2 + $0x98] sm:$0xff] %v3861
    %4017 = vst [vmem:[#allocation2 + $0xa0] sm:$0xff] %v3670
    %4018 = vst [vmem:[#allocation2 + $0xa8] sm:$0xff] %v3672
    %4019 = vst [vmem:[#allocation2 + $0xb0] sm:$0xff] %v3863
    %4020 = vst [vmem:[#allocation2 + $0xb8] sm:$0xff] %v3865
    %4021 = vst [vmem:[#allocation2 + $0xc0] sm:$0xff] %v3676
    %4022 = vst [vmem:[#allocation2 + $0xc8] sm:$0xff] %v3678
    %4023 = vst [vmem:[#allocation2 + $0xd0] sm:$0xff] %v3869
    %4024 = vst [vmem:[#allocation2 + $0xd8] sm:$0xff] %v3871
    %4025 = vst [vmem:[#allocation2 + $0xe0] sm:$0xff] %v3680
    %4026 = vst [vmem:[#allocation2 + $0xe8] sm:$0xff] %v3682
    %4027 = vst [vmem:[#allocation2 + $0xf0] sm:$0xff] %v3873
    %4028 = vst [vmem:[#allocation2 + $0xf8] sm:$0xff] %v3875
    %4029 = vst [vmem:[#allocation2 + $0x100] sm:$0xff] %v3686
    %4030 = vst [vmem:[#allocation2 + $0x108] sm:$0xff] %v3688
    %4031 = vst [vmem:[#allocation2 + $0x110] sm:$0xff] %v3879
    %4032 = vst [vmem:[#allocation2 + $0x118] sm:$0xff] %v3881
    %4033 = vst [vmem:[#allocation2 + $0x120] sm:$0xff] %v3690
    %4034 = vst [vmem:[#allocation2 + $0x128] sm:$0xff] %v3692
    %4035 = vst [vmem:[#allocation2 + $0x130] sm:$0xff] %v3883
    %4036 = vst [vmem:[#allocation2 + $0x138] sm:$0xff] %v3885
    %4037 = vst [vmem:[#allocation2 + $0x140] sm:$0xff] %v3696
    %4038 = vst [vmem:[#allocation2 + $0x148] sm:$0xff] %v3698
    %4039 = vst [vmem:[#allocation2 + $0x150] sm:$0xff] %v3889
    %4040 = vst [vmem:[#allocation2 + $0x158] sm:$0xff] %v3891
    %4041 = vst [vmem:[#allocation2 + $0x160] sm:$0xff] %v3700
    %4042 = vst [vmem:[#allocation2 + $0x168] sm:$0xff] %v3702
    %4043 = vst [vmem:[#allocation2 + $0x170] sm:$0xff] %v3893
    %4044 = vst [vmem:[#allocation2 + $0x178] sm:$0xff] %v3895
    %4045 = vst [vmem:[#allocation2 + $0x180] sm:$0xff] %v3706
    %4046 = vst [vmem:[#allocation2 + $0x188] sm:$0xff] %v3708
    %4047 = vst [vmem:[#allocation2 + $0x190] sm:$0xff] %v3899
    %4048 = vst [vmem:[#allocation2 + $0x198] sm:$0xff] %v3901
    %4049 = vst [vmem:[#allocation2 + $0x1a0] sm:$0xff] %v3710
    %4050 = vst [vmem:[#allocation2 + $0x1a8] sm:$0xff] %v3712
    %4051 = vst [vmem:[#allocation2 + $0x1b0] sm:$0xff] %v3903
    %4052 = vst [vmem:[#allocation2 + $0x1b8] sm:$0xff] %v3905
    %4053 = vst [vmem:[#allocation2 + $0x1c0] sm:$0xff] %v3716
    %4054 = vst [vmem:[#allocation2 + $0x1c8] sm:$0xff] %v3718
    %4055 = vst [vmem:[#allocation2 + $0x1d0] sm:$0xff] %v3909
    %4056 = vst [vmem:[#allocation2 + $0x1d8] sm:$0xff] %v3911
    %4057 = vst [vmem:[#allocation2 + $0x1e0] sm:$0xff] %v3720
    %4058 = vst [vmem:[#allocation2 + $0x1e8] sm:$0xff] %v3722
    %4059 = vst [vmem:[#allocation2 + $0x1f0] sm:$0xff] %v3913
    %4060 = vst [vmem:[#allocation2 + $0x1f8] sm:$0xff] %v3915
    %4061 = vst [vmem:[#allocation2 + $0x200] sm:$0xff] %v3726
    %4062 = vst [vmem:[#allocation2 + $0x208] sm:$0xff] %v3728
    %4063 = vst [vmem:[#allocation2 + $0x210] sm:$0xff] %v3919
    %4064 = vst [vmem:[#allocation2 + $0x218] sm:$0xff] %v3921
    %4065 = vst [vmem:[#allocation2 + $0x220] sm:$0xff] %v3730
    %4066 = vst [vmem:[#allocation2 + $0x228] sm:$0xff] %v3732
    %4067 = vst [vmem:[#allocation2 + $0x230] sm:$0xff] %v3923
    %4068 = vst [vmem:[#allocation2 + $0x238] sm:$0xff] %v3925
    %4069 = vst [vmem:[#allocation2 + $0x240] sm:$0xff] %v3736
    %4070 = vst [vmem:[#allocation2 + $0x248] sm:$0xff] %v3738
    %4071 = vst [vmem:[#allocation2 + $0x250] sm:$0xff] %v3929
    %4072 = vst [vmem:[#allocation2 + $0x258] sm:$0xff] %v3931
    %4073 = vst [vmem:[#allocation2 + $0x260] sm:$0xff] %v3740
    %4074 = vst [vmem:[#allocation2 + $0x268] sm:$0xff] %v3742
    %4075 = vst [vmem:[#allocation2 + $0x270] sm:$0xff] %v3933
    %4076 = vst [vmem:[#allocation2 + $0x278] sm:$0xff] %v3935
    %4077 = vst [vmem:[#allocation2 + $0x280] sm:$0xff] %v3746
    %4078 = vst [vmem:[#allocation2 + $0x288] sm:$0xff] %v3748
    %4079 = vst [vmem:[#allocation2 + $0x290] sm:$0xff] %v3939
    %4080 = vst [vmem:[#allocation2 + $0x298] sm:$0xff] %v3941
    %4081 = vst [vmem:[#allocation2 + $0x2a0] sm:$0xff] %v3750
    %4082 = vst [vmem:[#allocation2 + $0x2a8] sm:$0xff] %v3752
    %4083 = vst [vmem:[#allocation2 + $0x2b0] sm:$0xff] %v3943
    %4084 = vst [vmem:[#allocation2 + $0x2b8] sm:$0xff] %v3945
    %4085 = vst [vmem:[#allocation2 + $0x2c0] sm:$0xff] %v3756
    %4086 = vst [vmem:[#allocation2 + $0x2c8] sm:$0xff] %v3758
    %4087 = vst [vmem:[#allocation2 + $0x2d0] sm:$0xff] %v3949
    %4088 = vst [vmem:[#allocation2 + $0x2d8] sm:$0xff] %v3951
    %4089 = vst [vmem:[#allocation2 + $0x2e0] sm:$0xff] %v3760
    %4090 = vst [vmem:[#allocation2 + $0x2e8] sm:$0xff] %v3762
    %4091 = vst [vmem:[#allocation2 + $0x2f0] sm:$0xff] %v3953
    %4092 = vst [vmem:[#allocation2 + $0x2f8] sm:$0xff] %v3955
    %4093 = vst [vmem:[#allocation2 + $0x300] sm:$0xff] %v3766
    %4094 = vst [vmem:[#allocation2 + $0x308] sm:$0xff] %v3768
    %4095 = vst [vmem:[#allocation2 + $0x310] sm:$0xff] %v3959
    %4096 = vst [vmem:[#allocation2 + $0x318] sm:$0xff] %v3961
    %4097 = vst [vmem:[#allocation2 + $0x320] sm:$0xff] %v3770
    %4098 = vst [vmem:[#allocation2 + $0x328] sm:$0xff] %v3772
    %4099 = vst [vmem:[#allocation2 + $0x330] sm:$0xff] %v3963
    %4100 = vst [vmem:[#allocation2 + $0x338] sm:$0xff] %v3965
    %4101 = vst [vmem:[#allocation2 + $0x340] sm:$0xff] %v3776
    %4102 = vst [vmem:[#allocation2 + $0x348] sm:$0xff] %v3778
    %4103 = vst [vmem:[#allocation2 + $0x350] sm:$0xff] %v3969
    %4104 = vst [vmem:[#allocation2 + $0x358] sm:$0xff] %v3971
    %4105 = vst [vmem:[#allocation2 + $0x360] sm:$0xff] %v3780
    %4106 = vst [vmem:[#allocation2 + $0x368] sm:$0xff] %v3782
    %4107 = vst [vmem:[#allocation2 + $0x370] sm:$0xff] %v3973
    %4108 = vst [vmem:[#allocation2 + $0x378] sm:$0xff] %v3975
    %4109 = vst [vmem:[#allocation2 + $0x380] sm:$0xff] %v3786
    %4110 = vst [vmem:[#allocation2 + $0x388] sm:$0xff] %v3788
    %4111 = vst [vmem:[#allocation2 + $0x390] sm:$0xff] %v3979
    %4112 = vst [vmem:[#allocation2 + $0x398] sm:$0xff] %v3981
    %4113 = vst [vmem:[#allocation2 + $0x3a0] sm:$0xff] %v3790
    %4114 = vst [vmem:[#allocation2 + $0x3a8] sm:$0xff] %v3792
    %4115 = vst [vmem:[#allocation2 + $0x3b0] sm:$0xff] %v3983
    %4116 = vst [vmem:[#allocation2 + $0x3b8] sm:$0xff] %v3985
    %4117 = vst [vmem:[#allocation2 + $0x3c0] sm:$0xff] %v3796
    %4118 = vst [vmem:[#allocation2 + $0x3c8] sm:$0xff] %v3798
    %4119 = vst [vmem:[#allocation2 + $0x3d0] sm:$0xff] %v3989
    %4120 = vst [vmem:[#allocation2 + $0x3d8] sm:$0xff] %v3991
    %4121 = vst [vmem:[#allocation2 + $0x3e0] sm:$0xff] %v3800
    %4122 = vst [vmem:[#allocation2 + $0x3e8] sm:$0xff] %v3802
    %4123 = vst [vmem:[#allocation2 + $0x3f0] sm:$0xff] %v3993
    %4124 = vst [vmem:[#allocation2 + $0x3f8] sm:$0xff] %v3995
    %s4125 = scalar_lea.vmem %s5, 512
    %v4126 = vld [vmem:[%s4125] sm:$0xff]
    %v4127 = vld [vmem:[%s4125 + $0x8] sm:$0xff]
    %v4128 = vld [vmem:[%s4125 + $0x10] sm:$0xff]
    %v4129 = vld [vmem:[%s4125 + $0x18] sm:$0xff]
    %v4130 = vld [vmem:[%s4125 + $0x20] sm:$0xff]
    %v4131 = vld [vmem:[%s4125 + $0x28] sm:$0xff]
    %v4132 = vld [vmem:[%s4125 + $0x30] sm:$0xff]
    %v4133 = vld [vmem:[%s4125 + $0x38] sm:$0xff]
    %v4134 = vld [vmem:[%s4125 + $0x40] sm:$0xff]
    %v4135 = vld [vmem:[%s4125 + $0x48] sm:$0xff]
    %v4136 = vld [vmem:[%s4125 + $0x50] sm:$0xff]
    %v4137 = vld [vmem:[%s4125 + $0x58] sm:$0xff]
    %v4138 = vld [vmem:[%s4125 + $0x60] sm:$0xff]
    %v4139 = vld [vmem:[%s4125 + $0x68] sm:$0xff]
    %v4140 = vld [vmem:[%s4125 + $0x70] sm:$0xff]
    %v4141 = vld [vmem:[%s4125 + $0x78] sm:$0xff]
    %v4142 = vld [vmem:[%s4125 + $0x80] sm:$0xff]
    %v4143 = vld [vmem:[%s4125 + $0x88] sm:$0xff]
    %v4144 = vld [vmem:[%s4125 + $0x90] sm:$0xff]
    %v4145 = vld [vmem:[%s4125 + $0x98] sm:$0xff]
    %v4146 = vld [vmem:[%s4125 + $0xa0] sm:$0xff]
    %v4147 = vld [vmem:[%s4125 + $0xa8] sm:$0xff]
    %v4148 = vld [vmem:[%s4125 + $0xb0] sm:$0xff]
    %v4149 = vld [vmem:[%s4125 + $0xb8] sm:$0xff]
    %v4150 = vld [vmem:[%s4125 + $0xc0] sm:$0xff]
    %v4151 = vld [vmem:[%s4125 + $0xc8] sm:$0xff]
    %v4152 = vld [vmem:[%s4125 + $0xd0] sm:$0xff]
    %v4153 = vld [vmem:[%s4125 + $0xd8] sm:$0xff]
    %v4154 = vld [vmem:[%s4125 + $0xe0] sm:$0xff]
    %v4155 = vld [vmem:[%s4125 + $0xe8] sm:$0xff]
    %v4156 = vld [vmem:[%s4125 + $0xf0] sm:$0xff]
    %v4157 = vld [vmem:[%s4125 + $0xf8] sm:$0xff]
    loop: start=0, step=1, limit=8
    $region56: #{cannolo_forward_windows.1} parent=1 // loop_pre_header
      _
    $region57: #{cannolo_forward_windows.1} parent=1 // loop_header
      %s4159 = sphi 0, %s4163
      %p4160 = scmp.ge.s32.totalorder %s4159, 8
      %v4164 = vphi 0, %v4570
      %v4165 = vphi 0, %v4571
      %v4166 = vphi 0.0, %v4558
      %v4167 = vphi 0.0, %v4559
      %v4168 = vphi 0.0, %v4560
      %v4169 = vphi 0.0, %v4561
    $region58: #{cannolo_forward_windows.1} parent=1 // loop_header_branch
      %4162 = sbr.rel (%p4160) target = $region62
    $region59: #{cannolo_forward_windows.1} parent=1 // loop_body
      %s4170 = smul.u32 %s4159, 32
      %s4171 = sshra.s32 %s4170, 3
      %s4172 = sand.u32 %s4170, 7
      %s4173 = smul.u32 %s4171, 4
      %s4174 = smul.addr %s4173, 8
      %s4175 = scalar_lea.vmem [#allocation2], %s4174
      %v4176 = vld [vmem:[%s4175] sm:$0xff]
      %v4177 = vld [vmem:[%s4175 + $0x8] sm:$0xff]
      %v4178 = vld [vmem:[%s4175 + $0x10] sm:$0xff]
      %v4179 = vld [vmem:[%s4175 + $0x18] sm:$0xff]
      %v4180 = vld [vmem:[%s4175 + $0x20] sm:$0xff]
      %v4181 = vld [vmem:[%s4175 + $0x28] sm:$0xff]
      %v4182 = vld [vmem:[%s4175 + $0x30] sm:$0xff]
      %v4183 = vld [vmem:[%s4175 + $0x38] sm:$0xff]
      %v4184 = vld [vmem:[%s4175 + $0x40] sm:$0xff]
      %v4185 = vld [vmem:[%s4175 + $0x48] sm:$0xff]
      %v4186 = vld [vmem:[%s4175 + $0x50] sm:$0xff]
      %v4187 = vld [vmem:[%s4175 + $0x58] sm:$0xff]
      %v4188 = vld [vmem:[%s4175 + $0x60] sm:$0xff]
      %v4189 = vld [vmem:[%s4175 + $0x68] sm:$0xff]
      %v4190 = vld [vmem:[%s4175 + $0x70] sm:$0xff]
      %v4191 = vld [vmem:[%s4175 + $0x78] sm:$0xff]
      %v4224 = vunpack.c.l.b16 %v4126
      %v4225 = vunpack.c.h.b16 %v4126
      %v4226 = vunpack.c.l.b16 %v4127
      %v4227 = vunpack.c.h.b16 %v4127
      %v4228 = vunpack.c.l.b16 %v4128
      %v4229 = vunpack.c.h.b16 %v4128
      %v4230 = vunpack.c.l.b16 %v4129
      %v4231 = vunpack.c.h.b16 %v4129
      %v4232 = vunpack.c.l.b16 %v4130
      %v4233 = vunpack.c.h.b16 %v4130
      %v4234 = vunpack.c.l.b16 %v4131
      %v4235 = vunpack.c.h.b16 %v4131
      %v4236 = vunpack.c.l.b16 %v4132
      %v4237 = vunpack.c.h.b16 %v4132
      %v4238 = vunpack.c.l.b16 %v4133
      %v4239 = vunpack.c.h.b16 %v4133
      %v4240 = vunpack.c.l.b16 %v4134
      %v4241 = vunpack.c.h.b16 %v4134
      %v4242 = vunpack.c.l.b16 %v4135
      %v4243 = vunpack.c.h.b16 %v4135
      %v4244 = vunpack.c.l.b16 %v4136
      %v4245 = vunpack.c.h.b16 %v4136
      %v4246 = vunpack.c.l.b16 %v4137
      %v4247 = vunpack.c.h.b16 %v4137
      %v4248 = vunpack.c.l.b16 %v4138
      %v4249 = vunpack.c.h.b16 %v4138
      %v4250 = vunpack.c.l.b16 %v4139
      %v4251 = vunpack.c.h.b16 %v4139
      %v4252 = vunpack.c.l.b16 %v4140
      %v4253 = vunpack.c.h.b16 %v4140
      %v4254 = vunpack.c.l.b16 %v4141
      %v4255 = vunpack.c.h.b16 %v4141
      %v4256 = vunpack.c.l.b16 %v4142
      %v4257 = vunpack.c.h.b16 %v4142
      %v4258 = vunpack.c.l.b16 %v4143
      %v4259 = vunpack.c.h.b16 %v4143
      %v4260 = vunpack.c.l.b16 %v4144
      %v4261 = vunpack.c.h.b16 %v4144
      %v4262 = vunpack.c.l.b16 %v4145
      %v4263 = vunpack.c.h.b16 %v4145
      %v4264 = vunpack.c.l.b16 %v4146
      %v4265 = vunpack.c.h.b16 %v4146
      %v4266 = vunpack.c.l.b16 %v4147
      %v4267 = vunpack.c.h.b16 %v4147
      %v4268 = vunpack.c.l.b16 %v4148
      %v4269 = vunpack.c.h.b16 %v4148
      %v4270 = vunpack.c.l.b16 %v4149
      %v4271 = vunpack.c.h.b16 %v4149
      %v4272 = vunpack.c.l.b16 %v4150
      %v4273 = vunpack.c.h.b16 %v4150
      %v4274 = vunpack.c.l.b16 %v4151
      %v4275 = vunpack.c.h.b16 %v4151
      %v4276 = vunpack.c.l.b16 %v4152
      %v4277 = vunpack.c.h.b16 %v4152
      %v4278 = vunpack.c.l.b16 %v4153
      %v4279 = vunpack.c.h.b16 %v4153
      %v4280 = vunpack.c.l.b16 %v4154
      %v4281 = vunpack.c.h.b16 %v4154
      %v4282 = vunpack.c.l.b16 %v4155
      %v4283 = vunpack.c.h.b16 %v4155
      %v4284 = vunpack.c.l.b16 %v4156
      %v4285 = vunpack.c.h.b16 %v4156
      %v4286 = vunpack.c.l.b16 %v4157
      %v4287 = vunpack.c.h.b16 %v4157
      %v4288 = vpack.c.b16 %v4228, %v4224
      %v4289 = vpack.c.b16 %v4229, %v4225
      %v4290 = vpack.c.b16 %v4230, %v4226
      %v4291 = vpack.c.b16 %v4231, %v4227
      %v4292 = vpack.c.b16 %v4236, %v4232
      %v4293 = vpack.c.b16 %v4237, %v4233
      %v4294 = vpack.c.b16 %v4238, %v4234
      %v4295 = vpack.c.b16 %v4239, %v4235
      %v4296 = vpack.c.b16 %v4244, %v4240
      %v4297 = vpack.c.b16 %v4245, %v4241
      %v4298 = vpack.c.b16 %v4246, %v4242
      %v4299 = vpack.c.b16 %v4247, %v4243
      %v4300 = vpack.c.b16 %v4252, %v4248
      %v4301 = vpack.c.b16 %v4253, %v4249
      %v4302 = vpack.c.b16 %v4254, %v4250
      %v4303 = vpack.c.b16 %v4255, %v4251
      %v4304 = vpack.c.b16 %v4260, %v4256
      %v4305 = vpack.c.b16 %v4261, %v4257
      %v4306 = vpack.c.b16 %v4262, %v4258
      %v4307 = vpack.c.b16 %v4263, %v4259
      %v4308 = vpack.c.b16 %v4268, %v4264
      %v4309 = vpack.c.b16 %v4269, %v4265
      %v4310 = vpack.c.b16 %v4270, %v4266
      %v4311 = vpack.c.b16 %v4271, %v4267
      %v4312 = vpack.c.b16 %v4276, %v4272
      %v4313 = vpack.c.b16 %v4277, %v4273
      %v4314 = vpack.c.b16 %v4278, %v4274
      %v4315 = vpack.c.b16 %v4279, %v4275
      %v4316 = vpack.c.b16 %v4284, %v4280
      %v4317 = vpack.c.b16 %v4285, %v4281
      %v4318 = vpack.c.b16 %v4286, %v4282
      %v4319 = vpack.c.b16 %v4287, %v4283
      %4352 = vmatprep.subr.bf16.mxu0 %v4317
      %4353 = vmatpush1.bf16.msra.mxu0 %v4316
      %4354 = vmatprep.subr.bf16.mxu0 %v4313
      %4355 = vmatpush1.bf16.msra.mxu0 %v4312
      %4356 = vmatprep.subr.bf16.mxu0 %v4309
      %4357 = vmatpush1.bf16.msra.mxu0 %v4308
      %4358 = vmatprep.subr.bf16.mxu0 %v4305
      %4359 = vmatpush1.bf16.msra.mxu0 %v4304
      %4360 = vmatprep.subr.bf16.mxu0 %v4301
      %4361 = vmatpush1.bf16.msra.mxu0 %v4300
      %4362 = vmatprep.subr.bf16.mxu0 %v4297
      %4363 = vmatpush1.bf16.msra.mxu0 %v4296
      %4364 = vmatprep.subr.bf16.mxu0 %v4293
      %4365 = vmatpush1.bf16.msra.mxu0 %v4292
      %4366 = vmatprep.subr.bf16.mxu0 %v4289
      %4367 = vmatpush1.bf16.msra.mxu0 %v4288
      %4368 = vmatprep.subr.bf16.mxu0 0
      %4369 = vmatpush2.bf16.msra.mxu0 0
      %4370 = vmatprep.subr.bf16.mxu0 0
      %4371 = vmatpush2.bf16.msra.mxu0 0
      %4372 = vmatprep.subr.bf16.mxu0 0
      %4373 = vmatpush2.bf16.msra.mxu0 0
      %4374 = vmatprep.subr.bf16.mxu0 0
      %4375 = vmatpush2.bf16.msra.mxu0 0
      %4376 = vmatprep.subr.bf16.mxu0 0
      %4377 = vmatpush2.bf16.msra.mxu0 0
      %4378 = vmatprep.subr.bf16.mxu0 0
      %4379 = vmatpush2.bf16.msra.mxu0 0
      %4380 = vmatprep.subr.bf16.mxu0 0
      %4381 = vmatpush2.bf16.msra.mxu0 0
      %4382 = vmatprep.subr.bf16.mxu0 0
      %4383 = vmatpush2.bf16.msra.mxu0 0
      %4384 = vmatprep.mubr.bf16.mxu0 0
      %4385 = vmatmul.mubr.bf16.gmra.mxu0 %v4164
      %v4386 = vpop.f32.mrf.mxu0
      %v4387 = vadd.f32 0.0, %v4386
      %v4388 = vpop.f32.mrf.mxu0
      %v4389 = vadd.f32 0.0, %v4388
      %v4390 = vpop.f32.mrf.mxu0
      %v4391 = vadd.f32 0.0, %v4390
      %v4392 = vpop.f32.mrf.mxu0
      %v4393 = vadd.f32 0.0, %v4392
      %4394 = vmatprep.mubr.bf16.mxu0 0
      %4395 = vmatmul.mubr.bf16.gmra.mxu0 %v4165
      %v4396 = vpop.f32.mrf.mxu0
      %v4397 = vadd.f32 0.0, %v4396
      %v4398 = vpop.f32.mrf.mxu0
      %v4399 = vadd.f32 0.0, %v4398
      %v4400 = vpop.f32.mrf.mxu0
      %v4401 = vadd.f32 0.0, %v4400
      %v4402 = vpop.f32.mrf.mxu0
      %v4403 = vadd.f32 0.0, %v4402
      %4404 = vdwg.mxu0
      %4405 = vmatprep.subr.bf16.mxu0 %v4319
      %4406 = vmatpush1.bf16.msra.mxu0 %v4318
      %4407 = vmatprep.subr.bf16.mxu0 %v4315
      %4408 = vmatpush1.bf16.msra.mxu0 %v4314
      %4409 = vmatprep.subr.bf16.mxu0 %v4311
      %4410 = vmatpush1.bf16.msra.mxu0 %v4310
      %4411 = vmatprep.subr.bf16.mxu0 %v4307
      %4412 = vmatpush1.bf16.msra.mxu0 %v4306
      %4413 = vmatprep.subr.bf16.mxu0 %v4303
      %4414 = vmatpush1.bf16.msra.mxu0 %v4302
      %4415 = vmatprep.subr.bf16.mxu0 %v4299
      %4416 = vmatpush1.bf16.msra.mxu0 %v4298
      %4417 = vmatprep.subr.bf16.mxu0 %v4295
      %4418 = vmatpush1.bf16.msra.mxu0 %v4294
      %4419 = vmatprep.subr.bf16.mxu0 %v4291
      %4420 = vmatpush1.bf16.msra.mxu0 %v4290
      %4421 = vmatprep.subr.bf16.mxu0 0
      %4422 = vmatpush2.bf16.msra.mxu0 0
      %4423 = vmatprep.subr.bf16.mxu0 0
      %4424 = vmatpush2.bf16.msra.mxu0 0
      %4425 = vmatprep.subr.bf16.mxu0 0
      %4426 = vmatpush2.bf16.msra.mxu0 0
      %4427 = vmatprep.subr.bf16.mxu0 0
      %4428 = vmatpush2.bf16.msra.mxu0 0
      %4429 = vmatprep.subr.bf16.mxu0 0
      %4430 = vmatpush2.bf16.msra.mxu0 0
      %4431 = vmatprep.subr.bf16.mxu0 0
      %4432 = vmatpush2.bf16.msra.mxu0 0
      %4433 = vmatprep.subr.bf16.mxu0 0
      %4434 = vmatpush2.bf16.msra.mxu0 0
      %4435 = vmatprep.subr.bf16.mxu0 0
      %4436 = vmatpush2.bf16.msra.mxu0 0
      %4437 = vmatprep.mubr.bf16.mxu0 0
      %4438 = vmatmul.mubr.bf16.gmra.mxu0 %v4164
      %v4439 = vpop.f32.mrf.mxu0
      %v4440 = vadd.f32 0.0, %v4439
      %v4441 = vpop.f32.mrf.mxu0
      %v4442 = vadd.f32 0.0, %v4441
      %v4443 = vpop.f32.mrf.mxu0
      %v4444 = vadd.f32 0.0, %v4443
      %v4445 = vpop.f32.mrf.mxu0
      %v4446 = vadd.f32 0.0, %v4445
      %4447 = vmatprep.mubr.bf16.mxu0 0
      %4448 = vmatmul.mubr.bf16.gmra.mxu0 %v4165
      %v4449 = vpop.f32.mrf.mxu0
      %v4450 = vadd.f32 0.0, %v4449
      %v4451 = vpop.f32.mrf.mxu0
      %v4452 = vadd.f32 0.0, %v4451
      %v4453 = vpop.f32.mrf.mxu0
      %v4454 = vadd.f32 0.0, %v4453
      %v4455 = vpop.f32.mrf.mxu0
      %v4456 = vadd.f32 0.0, %v4455
      %4457 = vdwg.mxu0
      %v4458 = vadd.f32 %v4176, %v4387
      %v4459 = vadd.f32 %v4177, %v4389
      %v4460 = vadd.f32 %v4178, %v4440
      %v4461 = vadd.f32 %v4179, %v4442
      %v4462 = vadd.f32 %v4180, %v4391
      %v4463 = vadd.f32 %v4181, %v4393
      %v4464 = vadd.f32 %v4182, %v4444
      %v4465 = vadd.f32 %v4183, %v4446
      %v4466 = vadd.f32 %v4184, %v4397
      %v4467 = vadd.f32 %v4185, %v4399
      %v4468 = vadd.f32 %v4186, %v4450
      %v4469 = vadd.f32 %v4187, %v4452
      %v4470 = vadd.f32 %v4188, %v4401
      %v4471 = vadd.f32 %v4189, %v4403
      %v4472 = vadd.f32 %v4190, %v4454
      %v4473 = vadd.f32 %v4191, %v4456
      %v4474 = vxor.u32 %v4458, 2147483648
      %v4475 = vxor.u32 %v4459, 2147483648
      %v4476 = vxor.u32 %v4460, 2147483648
      %v4477 = vxor.u32 %v4462, 2147483648
      %v4478 = vxor.u32 %v4463, 2147483648
      %v4479 = vxor.u32 %v4464, 2147483648
      %v4480 = vxor.u32 %v4466, 2147483648
      %v4481 = vxor.u32 %v4467, 2147483648
      %v4482 = vxor.u32 %v4468, 2147483648
      %v4483 = vxor.u32 %v4470, 2147483648
      %v4484 = vxor.u32 %v4471, 2147483648
      %v4485 = vxor.u32 %v4472, 2147483648
      %v4486 = vmul.f32 %v4474, 1.442695
      %v4487 = vpow.pop %v4486
      %v4488 = vmul.f32 %v4475, 1.442695
      %v4489 = vpow.pop %v4488
      %v4490 = vmul.f32 %v4476, 1.442695
      %v4491 = vpow.pop %v4490
      %v4492 = vmul.f32 %v4477, 1.442695
      %v4493 = vpow.pop %v4492
      %v4494 = vmul.f32 %v4478, 1.442695
      %v4495 = vpow.pop %v4494
      %v4496 = vmul.f32 %v4479, 1.442695
      %v4497 = vpow.pop %v4496
      %v4498 = vmul.f32 %v4480, 1.442695
      %v4499 = vpow.pop %v4498
      %v4500 = vmul.f32 %v4481, 1.442695
      %v4501 = vpow.pop %v4500
      %v4502 = vmul.f32 %v4482, 1.442695
      %v4503 = vpow.pop %v4502
      %v4504 = vmul.f32 %v4483, 1.442695
      %v4505 = vpow.pop %v4504
      %v4506 = vmul.f32 %v4484, 1.442695
      %v4507 = vpow.pop %v4506
      %v4508 = vmul.f32 %v4485, 1.442695
      %v4509 = vpow.pop %v4508
      %v4510 = vadd.f32 %v4487, 1.0
      %v4511 = vadd.f32 %v4489, 1.0
      %v4512 = vadd.f32 %v4491, 1.0
      %v4513 = vadd.f32 %v4493, 1.0
      %v4514 = vadd.f32 %v4495, 1.0
      %v4515 = vadd.f32 %v4497, 1.0
      %v4516 = vadd.f32 %v4499, 1.0
      %v4517 = vadd.f32 %v4501, 1.0
      %v4518 = vadd.f32 %v4503, 1.0
      %v4519 = vadd.f32 %v4505, 1.0
      %v4520 = vadd.f32 %v4507, 1.0
      %v4521 = vadd.f32 %v4509, 1.0
      %v4522 = vrcp.pop %v4510
      %v4523 = vmul.f32 1.0, %v4522
      %v4524 = vrcp.pop %v4511
      %v4525 = vmul.f32 1.0, %v4524
      %v4526 = vrcp.pop %v4512
      %v4527 = vmul.f32 1.0, %v4526
      %v4528 = vrcp.pop %v4513
      %v4529 = vmul.f32 1.0, %v4528
      %v4530 = vrcp.pop %v4514
      %v4531 = vmul.f32 1.0, %v4530
      %v4532 = vrcp.pop %v4515
      %v4533 = vmul.f32 1.0, %v4532
      %v4534 = vrcp.pop %v4516
      %v4535 = vmul.f32 1.0, %v4534
      %v4536 = vrcp.pop %v4517
      %v4537 = vmul.f32 1.0, %v4536
      %v4538 = vrcp.pop %v4518
      %v4539 = vmul.f32 1.0, %v4538
      %v4540 = vrcp.pop %v4519
      %v4541 = vmul.f32 1.0, %v4540
      %v4542 = vrcp.pop %v4520
      %v4543 = vmul.f32 1.0, %v4542
      %v4544 = vrcp.pop %v4521
      %v4545 = vmul.f32 1.0, %v4544
      %v4546 = vtanh.pop %v4461
      %v4547 = vtanh.pop %v4465
      %v4548 = vtanh.pop %v4469
      %v4549 = vtanh.pop %v4473
      %v4550 = vmul.f32 %v4525, %v4166
      %v4551 = vmul.f32 %v4531, %v4167
      %v4552 = vmul.f32 %v4537, %v4168
      %v4553 = vmul.f32 %v4543, %v4169
      %v4554 = vmul.f32 %v4523, %v4546
      %v4555 = vmul.f32 %v4529, %v4547
      %v4556 = vmul.f32 %v4535, %v4548
      %v4557 = vmul.f32 %v4541, %v4549
      %v4558 = vadd.f32 %v4550, %v4554
      %v4559 = vadd.f32 %v4551, %v4555
      %v4560 = vadd.f32 %v4552, %v4556
      %v4561 = vadd.f32 %v4553, %v4557
      %v4562 = vtanh.pop %v4558
      %v4563 = vtanh.pop %v4559
      %v4564 = vtanh.pop %v4560
      %v4565 = vtanh.pop %v4561
      %v4566 = vmul.f32 %v4527, %v4562
      %v4567 = vmul.f32 %v4533, %v4563
      %v4568 = vmul.f32 %v4539, %v4564
      %v4569 = vmul.f32 %v4545, %v4565
      %v4570 = vpack.c.bf16 %v4567, %v4566
      %v4571 = vpack.c.bf16 %v4569, %v4568
      %v4574 = vunpack.c.l.b16 %v4570
      %v4575 = vunpack.c.h.b16 %v4570
      %v4576 = vunpack.c.l.b16 %v4571
      %v4577 = vunpack.c.h.b16 %v4571
      %v4578 = vpack.c.b16 %v4574, %v4574
      %v4579 = vpack.c.b16 %v4575, %v4575
      %v4580 = vpack.c.b16 %v4576, %v4576
      %v4581 = vpack.c.b16 %v4577, %v4577
      %s4586 = smul.addr %s4171, 4
      %s4587 = scalar_lea.vmem [#allocation3], %s4586
      %4588 = vst [vmem:[%s4587] sm:$0xf] %v4578
      %4589 = vst [vmem:[%s4587 + $0x4] sm:$0xf] %v4579
      %4590 = vst [vmem:[%s4587 + $0x8] sm:$0xf] %v4580
      %4591 = vst [vmem:[%s4587 + $0xc] sm:$0xf] %v4581
    $region60: #{cannolo_forward_windows.1} parent=1 // loop_footer
      %s4163 = sadd.s32 1, %s4159
    $region61: #{cannolo_forward_windows.1} parent=1 // loop_footer_branch
      %4158 = sbr.rel target = $region57
    $region62: #{cannolo_forward_windows.1} parent=1 // loop_exit
      _
    %v4592 = vld [vmem:[#allocation3] sm:$0xf]
    %v4593 = vld [vmem:[#allocation3 + $0x4] sm:$0xf]
    %v4594 = vld [vmem:[#allocation3 + $0x8] sm:$0xf]
    %v4595 = vld [vmem:[#allocation3 + $0xc] sm:$0xf]
    %v4596 = vld [vmem:[#allocation3 + $0x10] sm:$0xf]
    %v4597 = vld [vmem:[#allocation3 + $0x14] sm:$0xf]
    %v4598 = vld [vmem:[#allocation3 + $0x18] sm:$0xf]
    %v4599 = vld [vmem:[#allocation3 + $0x1c] sm:$0xf]
    %v4600 = vld [vmem:[#allocation3 + $0x20] sm:$0xf]
    %v4601 = vld [vmem:[#allocation3 + $0x24] sm:$0xf]
    %v4602 = vld [vmem:[#allocation3 + $0x28] sm:$0xf]
    %v4603 = vld [vmem:[#allocation3 + $0x2c] sm:$0xf]
    %v4604 = vld [vmem:[#allocation3 + $0x30] sm:$0xf]
    %v4605 = vld [vmem:[#allocation3 + $0x34] sm:$0xf]
    %v4606 = vld [vmem:[#allocation3 + $0x38] sm:$0xf]
    %v4607 = vld [vmem:[#allocation3 + $0x3c] sm:$0xf]
    %v4608 = vld [vmem:[#allocation3 + $0x40] sm:$0xf]
    %v4609 = vld [vmem:[#allocation3 + $0x44] sm:$0xf]
    %v4610 = vld [vmem:[#allocation3 + $0x48] sm:$0xf]
    %v4611 = vld [vmem:[#allocation3 + $0x4c] sm:$0xf]
    %v4612 = vld [vmem:[#allocation3 + $0x50] sm:$0xf]
    %v4613 = vld [vmem:[#allocation3 + $0x54] sm:$0xf]
    %v4614 = vld [vmem:[#allocation3 + $0x58] sm:$0xf]
    %v4615 = vld [vmem:[#allocation3 + $0x5c] sm:$0xf]
    %v4616 = vld [vmem:[#allocation3 + $0x60] sm:$0xf]
    %v4617 = vld [vmem:[#allocation3 + $0x64] sm:$0xf]
    %v4618 = vld [vmem:[#allocation3 + $0x68] sm:$0xf]
    %v4619 = vld [vmem:[#allocation3 + $0x6c] sm:$0xf]
    %v4620 = vld [vmem:[#allocation3 + $0x70] sm:$0xf]
    %v4621 = vld [vmem:[#allocation3 + $0x74] sm:$0xf]
    %v4622 = vld [vmem:[#allocation3 + $0x78] sm:$0xf]
    %v4623 = vld [vmem:[#allocation3 + $0x7c] sm:$0xf]
    %s4624 = scalar_lea.vmem %s4, 512
    %v4625 = vld [vmem:[%s4624] sm:$0xff]
    %v4626 = vld [vmem:[%s4624 + $0x8] sm:$0xff]
    %v4627 = vld [vmem:[%s4624 + $0x10] sm:$0xff]
    %v4628 = vld [vmem:[%s4624 + $0x18] sm:$0xff]
    %v4629 = vld [vmem:[%s4624 + $0x20] sm:$0xff]
    %v4630 = vld [vmem:[%s4624 + $0x28] sm:$0xff]
    %v4631 = vld [vmem:[%s4624 + $0x30] sm:$0xff]
    %v4632 = vld [vmem:[%s4624 + $0x38] sm:$0xff]
    %v4633 = vld [vmem:[%s4624 + $0x40] sm:$0xff]
    %v4634 = vld [vmem:[%s4624 + $0x48] sm:$0xff]
    %v4635 = vld [vmem:[%s4624 + $0x50] sm:$0xff]
    %v4636 = vld [vmem:[%s4624 + $0x58] sm:$0xff]
    %v4637 = vld [vmem:[%s4624 + $0x60] sm:$0xff]
    %v4638 = vld [vmem:[%s4624 + $0x68] sm:$0xff]
    %v4639 = vld [vmem:[%s4624 + $0x70] sm:$0xff]
    %v4640 = vld [vmem:[%s4624 + $0x78] sm:$0xff]
    %v4641 = vld [vmem:[%s4624 + $0x80] sm:$0xff]
    %v4642 = vld [vmem:[%s4624 + $0x88] sm:$0xff]
    %v4643 = vld [vmem:[%s4624 + $0x90] sm:$0xff]
    %v4644 = vld [vmem:[%s4624 + $0x98] sm:$0xff]
    %v4645 = vld [vmem:[%s4624 + $0xa0] sm:$0xff]
    %v4646 = vld [vmem:[%s4624 + $0xa8] sm:$0xff]
    %v4647 = vld [vmem:[%s4624 + $0xb0] sm:$0xff]
    %v4648 = vld [vmem:[%s4624 + $0xb8] sm:$0xff]
    %v4649 = vld [vmem:[%s4624 + $0xc0] sm:$0xff]
    %v4650 = vld [vmem:[%s4624 + $0xc8] sm:$0xff]
    %v4651 = vld [vmem:[%s4624 + $0xd0] sm:$0xff]
    %v4652 = vld [vmem:[%s4624 + $0xd8] sm:$0xff]
    %v4653 = vld [vmem:[%s4624 + $0xe0] sm:$0xff]
    %v4654 = vld [vmem:[%s4624 + $0xe8] sm:$0xff]
    %v4655 = vld [vmem:[%s4624 + $0xf0] sm:$0xff]
    %v4656 = vld [vmem:[%s4624 + $0xf8] sm:$0xff]
    %s4657 = scalar_lea.vmem %s6, 12
    %v4658 = vld [vmem:[%s4657] sm:$0xf]
    %v4660 = vlaneseq
    %v4661 = vshrl.u32 %v4660, 7
    %v4662 = vsub.s32 0, %v4661
    %v4663 = vrot.slane %v4658, %v4662
    %v4664 = vlaneseq
    %v4665 = vshrl.u32 %v4664, 7
    %v4666 = vsub.s32 1, %v4665
    %v4667 = vrot.slane %v4658, %v4666
    %v4668 = vlaneseq
    %v4669 = vshrl.u32 %v4668, 7
    %v4670 = vsub.s32 2, %v4669
    %v4671 = vrot.slane %v4658, %v4670
    %v4672 = vlaneseq
    %v4673 = vshrl.u32 %v4672, 7
    %v4674 = vsub.s32 3, %v4673
    %v4675 = vrot.slane %v4658, %v4674
    %v4712 = vunpack.c.l.b16 %v4592
    %v4713 = vunpack.c.l.b16 %v4593
    %v4714 = vunpack.c.l.b16 %v4594
    %v4715 = vunpack.c.l.b16 %v4595
    %v4716 = vunpack.c.l.b16 %v4596
    %v4717 = vunpack.c.l.b16 %v4597
    %v4718 = vunpack.c.l.b16 %v4598
    %v4719 = vunpack.c.l.b16 %v4599
    %v4720 = vunpack.c.l.b16 %v4600
    %v4721 = vunpack.c.l.b16 %v4601
    %v4722 = vunpack.c.l.b16 %v4602
    %v4723 = vunpack.c.l.b16 %v4603
    %v4724 = vunpack.c.l.b16 %v4604
    %v4725 = vunpack.c.l.b16 %v4605
    %v4726 = vunpack.c.l.b16 %v4606
    %v4727 = vunpack.c.l.b16 %v4607
    %v4728 = vunpack.c.l.b16 %v4608
    %v4729 = vunpack.c.l.b16 %v4609
    %v4730 = vunpack.c.l.b16 %v4610
    %v4731 = vunpack.c.l.b16 %v4611
    %v4732 = vunpack.c.l.b16 %v4612
    %v4733 = vunpack.c.l.b16 %v4613
    %v4734 = vunpack.c.l.b16 %v4614
    %v4735 = vunpack.c.l.b16 %v4615
    %v4736 = vunpack.c.l.b16 %v4616
    %v4737 = vunpack.c.l.b16 %v4617
    %v4738 = vunpack.c.l.b16 %v4618
    %v4739 = vunpack.c.l.b16 %v4619
    %v4740 = vunpack.c.l.b16 %v4620
    %v4741 = vunpack.c.l.b16 %v4621
    %v4742 = vunpack.c.l.b16 %v4622
    %v4743 = vunpack.c.l.b16 %v4623
    %v4744 = vpack.c.b16 %v4713, %v4712
    %v4745 = vpack.c.b16 %v4715, %v4714
    %v4746 = vpack.c.b16 %v4717, %v4716
    %v4747 = vpack.c.b16 %v4719, %v4718
    %v4748 = vpack.c.b16 %v4721, %v4720
    %v4749 = vpack.c.b16 %v4723, %v4722
    %v4750 = vpack.c.b16 %v4725, %v4724
    %v4751 = vpack.c.b16 %v4727, %v4726
    %v4752 = vpack.c.b16 %v4729, %v4728
    %v4753 = vpack.c.b16 %v4731, %v4730
    %v4754 = vpack.c.b16 %v4733, %v4732
    %v4755 = vpack.c.b16 %v4735, %v4734
    %v4756 = vpack.c.b16 %v4737, %v4736
    %v4757 = vpack.c.b16 %v4739, %v4738
    %v4758 = vpack.c.b16 %v4741, %v4740
    %v4759 = vpack.c.b16 %v4743, %v4742
    %v4808 = vunpack.c.l.b16 %v4625
    %v4809 = vunpack.c.h.b16 %v4625
    %v4810 = vunpack.c.l.b16 %v4626
    %v4811 = vunpack.c.h.b16 %v4626
    %v4812 = vunpack.c.l.b16 %v4627
    %v4813 = vunpack.c.h.b16 %v4627
    %v4814 = vunpack.c.l.b16 %v4628
    %v4815 = vunpack.c.h.b16 %v4628
    %v4816 = vunpack.c.l.b16 %v4629
    %v4817 = vunpack.c.h.b16 %v4629
    %v4818 = vunpack.c.l.b16 %v4630
    %v4819 = vunpack.c.h.b16 %v4630
    %v4820 = vunpack.c.l.b16 %v4631
    %v4821 = vunpack.c.h.b16 %v4631
    %v4822 = vunpack.c.l.b16 %v4632
    %v4823 = vunpack.c.h.b16 %v4632
    %v4824 = vunpack.c.l.b16 %v4633
    %v4825 = vunpack.c.h.b16 %v4633
    %v4826 = vunpack.c.l.b16 %v4634
    %v4827 = vunpack.c.h.b16 %v4634
    %v4828 = vunpack.c.l.b16 %v4635
    %v4829 = vunpack.c.h.b16 %v4635
    %v4830 = vunpack.c.l.b16 %v4636
    %v4831 = vunpack.c.h.b16 %v4636
    %v4832 = vunpack.c.l.b16 %v4637
    %v4833 = vunpack.c.h.b16 %v4637
    %v4834 = vunpack.c.l.b16 %v4638
    %v4835 = vunpack.c.h.b16 %v4638
    %v4836 = vunpack.c.l.b16 %v4639
    %v4837 = vunpack.c.h.b16 %v4639
    %v4838 = vunpack.c.l.b16 %v4640
    %v4839 = vunpack.c.h.b16 %v4640
    %v4840 = vunpack.c.l.b16 %v4641
    %v4841 = vunpack.c.h.b16 %v4641
    %v4842 = vunpack.c.l.b16 %v4642
    %v4843 = vunpack.c.h.b16 %v4642
    %v4844 = vunpack.c.l.b16 %v4643
    %v4845 = vunpack.c.h.b16 %v4643
    %v4846 = vunpack.c.l.b16 %v4644
    %v4847 = vunpack.c.h.b16 %v4644
    %v4848 = vunpack.c.l.b16 %v4645
    %v4849 = vunpack.c.h.b16 %v4645
    %v4850 = vunpack.c.l.b16 %v4646
    %v4851 = vunpack.c.h.b16 %v4646
    %v4852 = vunpack.c.l.b16 %v4647
    %v4853 = vunpack.c.h.b16 %v4647
    %v4854 = vunpack.c.l.b16 %v4648
    %v4855 = vunpack.c.h.b16 %v4648
    %v4856 = vunpack.c.l.b16 %v4649
    %v4857 = vunpack.c.h.b16 %v4649
    %v4858 = vunpack.c.l.b16 %v4650
    %v4859 = vunpack.c.h.b16 %v4650
    %v4860 = vunpack.c.l.b16 %v4651
    %v4861 = vunpack.c.h.b16 %v4651
    %v4862 = vunpack.c.l.b16 %v4652
    %v4863 = vunpack.c.h.b16 %v4652
    %v4864 = vunpack.c.l.b16 %v4653
    %v4865 = vunpack.c.h.b16 %v4653
    %v4866 = vunpack.c.l.b16 %v4654
    %v4867 = vunpack.c.h.b16 %v4654
    %v4868 = vunpack.c.l.b16 %v4655
    %v4869 = vunpack.c.h.b16 %v4655
    %v4870 = vunpack.c.l.b16 %v4656
    %v4871 = vunpack.c.h.b16 %v4656
    %v4872 = vpack.c.b16 %v4812, %v4808
    %v4873 = vpack.c.b16 %v4813, %v4809
    %v4874 = vpack.c.b16 %v4814, %v4810
    %v4875 = vpack.c.b16 %v4815, %v4811
    %v4876 = vpack.c.b16 %v4820, %v4816
    %v4877 = vpack.c.b16 %v4821, %v4817
    %v4878 = vpack.c.b16 %v4822, %v4818
    %v4879 = vpack.c.b16 %v4823, %v4819
    %v4880 = vpack.c.b16 %v4828, %v4824
    %v4881 = vpack.c.b16 %v4829, %v4825
    %v4882 = vpack.c.b16 %v4830, %v4826
    %v4883 = vpack.c.b16 %v4831, %v4827
    %v4884 = vpack.c.b16 %v4836, %v4832
    %v4885 = vpack.c.b16 %v4837, %v4833
    %v4886 = vpack.c.b16 %v4838, %v4834
    %v4887 = vpack.c.b16 %v4839, %v4835
    %v4888 = vpack.c.b16 %v4844, %v4840
    %v4889 = vpack.c.b16 %v4845, %v4841
    %v4890 = vpack.c.b16 %v4846, %v4842
    %v4891 = vpack.c.b16 %v4847, %v4843
    %v4892 = vpack.c.b16 %v4852, %v4848
    %v4893 = vpack.c.b16 %v4853, %v4849
    %v4894 = vpack.c.b16 %v4854, %v4850
    %v4895 = vpack.c.b16 %v4855, %v4851
    %v4896 = vpack.c.b16 %v4860, %v4856
    %v4897 = vpack.c.b16 %v4861, %v4857
    %v4898 = vpack.c.b16 %v4862, %v4858
    %v4899 = vpack.c.b16 %v4863, %v4859
    %v4900 = vpack.c.b16 %v4868, %v4864
    %v4901 = vpack.c.b16 %v4869, %v4865
    %v4902 = vpack.c.b16 %v4870, %v4866
    %v4903 = vpack.c.b16 %v4871, %v4867
    %4936 = vmatprep.subr.bf16.mxu0 %v4901
    %4937 = vmatpush1.bf16.msra.mxu0 %v4900
    %4938 = vmatprep.subr.bf16.mxu0 %v4897
    %4939 = vmatpush1.bf16.msra.mxu0 %v4896
    %4940 = vmatprep.subr.bf16.mxu0 %v4893
    %4941 = vmatpush1.bf16.msra.mxu0 %v4892
    %4942 = vmatprep.subr.bf16.mxu0 %v4889
    %4943 = vmatpush1.bf16.msra.mxu0 %v4888
    %4944 = vmatprep.subr.bf16.mxu0 %v4885
    %4945 = vmatpush1.bf16.msra.mxu0 %v4884
    %4946 = vmatprep.subr.bf16.mxu0 %v4881
    %4947 = vmatpush1.bf16.msra.mxu0 %v4880
    %4948 = vmatprep.subr.bf16.mxu0 %v4877
    %4949 = vmatpush1.bf16.msra.mxu0 %v4876
    %4950 = vmatprep.subr.bf16.mxu0 %v4873
    %4951 = vmatpush1.bf16.msra.mxu0 %v4872
    %4952 = vmatprep.subr.bf16.mxu0 0
    %4953 = vmatpush2.bf16.msra.mxu0 0
    %4954 = vmatprep.subr.bf16.mxu0 0
    %4955 = vmatpush2.bf16.msra.mxu0 0
    %4956 = vmatprep.subr.bf16.mxu0 0
    %4957 = vmatpush2.bf16.msra.mxu0 0
    %4958 = vmatprep.subr.bf16.mxu0 0
    %4959 = vmatpush2.bf16.msra.mxu0 0
    %4960 = vmatprep.subr.bf16.mxu0 0
    %4961 = vmatpush2.bf16.msra.mxu0 0
    %4962 = vmatprep.subr.bf16.mxu0 0
    %4963 = vmatpush2.bf16.msra.mxu0 0
    %4964 = vmatprep.subr.bf16.mxu0 0
    %4965 = vmatpush2.bf16.msra.mxu0 0
    %4966 = vmatprep.subr.bf16.mxu0 0
    %4967 = vmatpush2.bf16.msra.mxu0 0
    %4968 = vmatprep.mubr.bf16.mxu0 0
    %4969 = vmatmul.mubr.bf16.gmra.mxu0 %v4744
    %v4970 = vpop.f32.mrf.mxu0
    %v4971 = vadd.f32 %v4663, %v4970
    %v4972 = vpop.f32.mrf.mxu0
    %v4973 = vadd.f32 %v4667, %v4972
    %v4974 = vpop.f32.mrf.mxu0
    %v4975 = vadd.f32 %v4663, %v4974
    %v4976 = vpop.f32.mrf.mxu0
    %v4977 = vadd.f32 %v4667, %v4976
    %4978 = vmatprep.mubr.bf16.mxu0 0
    %4979 = vmatmul.mubr.bf16.gmra.mxu0 %v4745
    %v4980 = vpop.f32.mrf.mxu0
    %v4981 = vadd.f32 %v4663, %v4980
    %v4982 = vpop.f32.mrf.mxu0
    %v4983 = vadd.f32 %v4667, %v4982
    %v4984 = vpop.f32.mrf.mxu0
    %v4985 = vadd.f32 %v4663, %v4984
    %v4986 = vpop.f32.mrf.mxu0
    %v4987 = vadd.f32 %v4667, %v4986
    %4988 = vmatprep.mubr.bf16.mxu0 0
    %4989 = vmatmul.mubr.bf16.gmra.mxu0 %v4746
    %v4990 = vpop.f32.mrf.mxu0
    %v4991 = vadd.f32 %v4663, %v4990
    %v4992 = vpop.f32.mrf.mxu0
    %v4993 = vadd.f32 %v4667, %v4992
    %v4994 = vpop.f32.mrf.mxu0
    %v4995 = vadd.f32 %v4663, %v4994
    %v4996 = vpop.f32.mrf.mxu0
    %v4997 = vadd.f32 %v4667, %v4996
    %4998 = vmatprep.mubr.bf16.mxu0 0
    %4999 = vmatmul.mubr.bf16.gmra.mxu0 %v4747
    %v5000 = vpop.f32.mrf.mxu0
    %v5001 = vadd.f32 %v4663, %v5000
    %v5002 = vpop.f32.mrf.mxu0
    %v5003 = vadd.f32 %v4667, %v5002
    %v5004 = vpop.f32.mrf.mxu0
    %v5005 = vadd.f32 %v4663, %v5004
    %v5006 = vpop.f32.mrf.mxu0
    %v5007 = vadd.f32 %v4667, %v5006
    %5008 = vmatprep.mubr.bf16.mxu0 0
    %5009 = vmatmul.mubr.bf16.gmra.mxu0 %v4748
    %v5010 = vpop.f32.mrf.mxu0
    %v5011 = vadd.f32 %v4663, %v5010
    %v5012 = vpop.f32.mrf.mxu0
    %v5013 = vadd.f32 %v4667, %v5012
    %v5014 = vpop.f32.mrf.mxu0
    %v5015 = vadd.f32 %v4663, %v5014
    %v5016 = vpop.f32.mrf.mxu0
    %v5017 = vadd.f32 %v4667, %v5016
    %5018 = vmatprep.mubr.bf16.mxu0 0
    %5019 = vmatmul.mubr.bf16.gmra.mxu0 %v4749
    %v5020 = vpop.f32.mrf.mxu0
    %v5021 = vadd.f32 %v4663, %v5020
    %v5022 = vpop.f32.mrf.mxu0
    %v5023 = vadd.f32 %v4667, %v5022
    %v5024 = vpop.f32.mrf.mxu0
    %v5025 = vadd.f32 %v4663, %v5024
    %v5026 = vpop.f32.mrf.mxu0
    %v5027 = vadd.f32 %v4667, %v5026
    %5028 = vmatprep.mubr.bf16.mxu0 0
    %5029 = vmatmul.mubr.bf16.gmra.mxu0 %v4750
    %v5030 = vpop.f32.mrf.mxu0
    %v5031 = vadd.f32 %v4663, %v5030
    %v5032 = vpop.f32.mrf.mxu0
    %v5033 = vadd.f32 %v4667, %v5032
    %v5034 = vpop.f32.mrf.mxu0
    %v5035 = vadd.f32 %v4663, %v5034
    %v5036 = vpop.f32.mrf.mxu0
    %v5037 = vadd.f32 %v4667, %v5036
    %5038 = vmatprep.mubr.bf16.mxu0 0
    %5039 = vmatmul.mubr.bf16.gmra.mxu0 %v4751
    %v5040 = vpop.f32.mrf.mxu0
    %v5041 = vadd.f32 %v4663, %v5040
    %v5042 = vpop.f32.mrf.mxu0
    %v5043 = vadd.f32 %v4667, %v5042
    %v5044 = vpop.f32.mrf.mxu0
    %v5045 = vadd.f32 %v4663, %v5044
    %v5046 = vpop.f32.mrf.mxu0
    %v5047 = vadd.f32 %v4667, %v5046
    %5048 = vmatprep.mubr.bf16.mxu0 0
    %5049 = vmatmul.mubr.bf16.gmra.mxu0 %v4752
    %v5050 = vpop.f32.mrf.mxu0
    %v5051 = vadd.f32 %v4663, %v5050
    %v5052 = vpop.f32.mrf.mxu0
    %v5053 = vadd.f32 %v4667, %v5052
    %v5054 = vpop.f32.mrf.mxu0
    %v5055 = vadd.f32 %v4663, %v5054
    %v5056 = vpop.f32.mrf.mxu0
    %v5057 = vadd.f32 %v4667, %v5056
    %5058 = vmatprep.mubr.bf16.mxu0 0
    %5059 = vmatmul.mubr.bf16.gmra.mxu0 %v4753
    %v5060 = vpop.f32.mrf.mxu0
    %v5061 = vadd.f32 %v4663, %v5060
    %v5062 = vpop.f32.mrf.mxu0
    %v5063 = vadd.f32 %v4667, %v5062
    %v5064 = vpop.f32.mrf.mxu0
    %v5065 = vadd.f32 %v4663, %v5064
    %v5066 = vpop.f32.mrf.mxu0
    %v5067 = vadd.f32 %v4667, %v5066
    %5068 = vmatprep.mubr.bf16.mxu0 0
    %5069 = vmatmul.mubr.bf16.gmra.mxu0 %v4754
    %v5070 = vpop.f32.mrf.mxu0
    %v5071 = vadd.f32 %v4663, %v5070
    %v5072 = vpop.f32.mrf.mxu0
    %v5073 = vadd.f32 %v4667, %v5072
    %v5074 = vpop.f32.mrf.mxu0
    %v5075 = vadd.f32 %v4663, %v5074
    %v5076 = vpop.f32.mrf.mxu0
    %v5077 = vadd.f32 %v4667, %v5076
    %5078 = vmatprep.mubr.bf16.mxu0 0
    %5079 = vmatmul.mubr.bf16.gmra.mxu0 %v4755
    %v5080 = vpop.f32.mrf.mxu0
    %v5081 = vadd.f32 %v4663, %v5080
    %v5082 = vpop.f32.mrf.mxu0
    %v5083 = vadd.f32 %v4667, %v5082
    %v5084 = vpop.f32.mrf.mxu0
    %v5085 = vadd.f32 %v4663, %v5084
    %v5086 = vpop.f32.mrf.mxu0
    %v5087 = vadd.f32 %v4667, %v5086
    %5088 = vmatprep.mubr.bf16.mxu0 0
    %5089 = vmatmul.mubr.bf16.gmra.mxu0 %v4756
    %v5090 = vpop.f32.mrf.mxu0
    %v5091 = vadd.f32 %v4663, %v5090
    %v5092 = vpop.f32.mrf.mxu0
    %v5093 = vadd.f32 %v4667, %v5092
    %v5094 = vpop.f32.mrf.mxu0
    %v5095 = vadd.f32 %v4663, %v5094
    %v5096 = vpop.f32.mrf.mxu0
    %v5097 = vadd.f32 %v4667, %v5096
    %5098 = vmatprep.mubr.bf16.mxu0 0
    %5099 = vmatmul.mubr.bf16.gmra.mxu0 %v4757
    %v5100 = vpop.f32.mrf.mxu0
    %v5101 = vadd.f32 %v4663, %v5100
    %v5102 = vpop.f32.mrf.mxu0
    %v5103 = vadd.f32 %v4667, %v5102
    %v5104 = vpop.f32.mrf.mxu0
    %v5105 = vadd.f32 %v4663, %v5104
    %v5106 = vpop.f32.mrf.mxu0
    %v5107 = vadd.f32 %v4667, %v5106
    %5108 = vmatprep.mubr.bf16.mxu0 0
    %5109 = vmatmul.mubr.bf16.gmra.mxu0 %v4758
    %v5110 = vpop.f32.mrf.mxu0
    %v5111 = vadd.f32 %v4663, %v5110
    %v5112 = vpop.f32.mrf.mxu0
    %v5113 = vadd.f32 %v4667, %v5112
    %v5114 = vpop.f32.mrf.mxu0
    %v5115 = vadd.f32 %v4663, %v5114
    %v5116 = vpop.f32.mrf.mxu0
    %v5117 = vadd.f32 %v4667, %v5116
    %5118 = vmatprep.mubr.bf16.mxu0 0
    %5119 = vmatmul.mubr.bf16.gmra.mxu0 %v4759
    %v5120 = vpop.f32.mrf.mxu0
    %v5121 = vadd.f32 %v4663, %v5120
    %v5122 = vpop.f32.mrf.mxu0
    %v5123 = vadd.f32 %v4667, %v5122
    %v5124 = vpop.f32.mrf.mxu0
    %v5125 = vadd.f32 %v4663, %v5124
    %v5126 = vpop.f32.mrf.mxu0
    %v5127 = vadd.f32 %v4667, %v5126
    %5128 = vdwg.mxu0
    %5129 = vmatprep.subr.bf16.mxu0 %v4903
    %5130 = vmatpush1.bf16.msra.mxu0 %v4902
    %5131 = vmatprep.subr.bf16.mxu0 %v4899
    %5132 = vmatpush1.bf16.msra.mxu0 %v4898
    %5133 = vmatprep.subr.bf16.mxu0 %v4895
    %5134 = vmatpush1.bf16.msra.mxu0 %v4894
    %5135 = vmatprep.subr.bf16.mxu0 %v4891
    %5136 = vmatpush1.bf16.msra.mxu0 %v4890
    %5137 = vmatprep.subr.bf16.mxu0 %v4887
    %5138 = vmatpush1.bf16.msra.mxu0 %v4886
    %5139 = vmatprep.subr.bf16.mxu0 %v4883
    %5140 = vmatpush1.bf16.msra.mxu0 %v4882
    %5141 = vmatprep.subr.bf16.mxu0 %v4879
    %5142 = vmatpush1.bf16.msra.mxu0 %v4878
    %5143 = vmatprep.subr.bf16.mxu0 %v4875
    %5144 = vmatpush1.bf16.msra.mxu0 %v4874
    %5145 = vmatprep.subr.bf16.mxu0 0
    %5146 = vmatpush2.bf16.msra.mxu0 0
    %5147 = vmatprep.subr.bf16.mxu0 0
    %5148 = vmatpush2.bf16.msra.mxu0 0
    %5149 = vmatprep.subr.bf16.mxu0 0
    %5150 = vmatpush2.bf16.msra.mxu0 0
    %5151 = vmatprep.subr.bf16.mxu0 0
    %5152 = vmatpush2.bf16.msra.mxu0 0
    %5153 = vmatprep.subr.bf16.mxu0 0
    %5154 = vmatpush2.bf16.msra.mxu0 0
    %5155 = vmatprep.subr.bf16.mxu0 0
    %5156 = vmatpush2.bf16.msra.mxu0 0
    %5157 = vmatprep.subr.bf16.mxu0 0
    %5158 = vmatpush2.bf16.msra.mxu0 0
    %5159 = vmatprep.subr.bf16.mxu0 0
    %5160 = vmatpush2.bf16.msra.mxu0 0
    %5161 = vmatprep.mubr.bf16.mxu0 0
    %5162 = vmatmul.mubr.bf16.gmra.mxu0 %v4744
    %v5163 = vpop.f32.mrf.mxu0
    %v5164 = vadd.f32 %v4671, %v5163
    %v5165 = vpop.f32.mrf.mxu0
    %v5166 = vadd.f32 %v4675, %v5165
    %v5167 = vpop.f32.mrf.mxu0
    %v5168 = vadd.f32 %v4671, %v5167
    %v5169 = vpop.f32.mrf.mxu0
    %v5170 = vadd.f32 %v4675, %v5169
    %5171 = vmatprep.mubr.bf16.mxu0 0
    %5172 = vmatmul.mubr.bf16.gmra.mxu0 %v4745
    %v5173 = vpop.f32.mrf.mxu0
    %v5174 = vadd.f32 %v4671, %v5173
    %v5175 = vpop.f32.mrf.mxu0
    %v5176 = vadd.f32 %v4675, %v5175
    %v5177 = vpop.f32.mrf.mxu0
    %v5178 = vadd.f32 %v4671, %v5177
    %v5179 = vpop.f32.mrf.mxu0
    %v5180 = vadd.f32 %v4675, %v5179
    %5181 = vmatprep.mubr.bf16.mxu0 0
    %5182 = vmatmul.mubr.bf16.gmra.mxu0 %v4746
    %v5183 = vpop.f32.mrf.mxu0
    %v5184 = vadd.f32 %v4671, %v5183
    %v5185 = vpop.f32.mrf.mxu0
    %v5186 = vadd.f32 %v4675, %v5185
    %v5187 = vpop.f32.mrf.mxu0
    %v5188 = vadd.f32 %v4671, %v5187
    %v5189 = vpop.f32.mrf.mxu0
    %v5190 = vadd.f32 %v4675, %v5189
    %5191 = vmatprep.mubr.bf16.mxu0 0
    %5192 = vmatmul.mubr.bf16.gmra.mxu0 %v4747
    %v5193 = vpop.f32.mrf.mxu0
    %v5194 = vadd.f32 %v4671, %v5193
    %v5195 = vpop.f32.mrf.mxu0
    %v5196 = vadd.f32 %v4675, %v5195
    %v5197 = vpop.f32.mrf.mxu0
    %v5198 = vadd.f32 %v4671, %v5197
    %v5199 = vpop.f32.mrf.mxu0
    %v5200 = vadd.f32 %v4675, %v5199
    %5201 = vmatprep.mubr.bf16.mxu0 0
    %5202 = vmatmul.mubr.bf16.gmra.mxu0 %v4748
    %v5203 = vpop.f32.mrf.mxu0
    %v5204 = vadd.f32 %v4671, %v5203
    %v5205 = vpop.f32.mrf.mxu0
    %v5206 = vadd.f32 %v4675, %v5205
    %v5207 = vpop.f32.mrf.mxu0
    %v5208 = vadd.f32 %v4671, %v5207
    %v5209 = vpop.f32.mrf.mxu0
    %v5210 = vadd.f32 %v4675, %v5209
    %5211 = vmatprep.mubr.bf16.mxu0 0
    %5212 = vmatmul.mubr.bf16.gmra.mxu0 %v4749
    %v5213 = vpop.f32.mrf.mxu0
    %v5214 = vadd.f32 %v4671, %v5213
    %v5215 = vpop.f32.mrf.mxu0
    %v5216 = vadd.f32 %v4675, %v5215
    %v5217 = vpop.f32.mrf.mxu0
    %v5218 = vadd.f32 %v4671, %v5217
    %v5219 = vpop.f32.mrf.mxu0
    %v5220 = vadd.f32 %v4675, %v5219
    %5221 = vmatprep.mubr.bf16.mxu0 0
    %5222 = vmatmul.mubr.bf16.gmra.mxu0 %v4750
    %v5223 = vpop.f32.mrf.mxu0
    %v5224 = vadd.f32 %v4671, %v5223
    %v5225 = vpop.f32.mrf.mxu0
    %v5226 = vadd.f32 %v4675, %v5225
    %v5227 = vpop.f32.mrf.mxu0
    %v5228 = vadd.f32 %v4671, %v5227
    %v5229 = vpop.f32.mrf.mxu0
    %v5230 = vadd.f32 %v4675, %v5229
    %5231 = vmatprep.mubr.bf16.mxu0 0
    %5232 = vmatmul.mubr.bf16.gmra.mxu0 %v4751
    %v5233 = vpop.f32.mrf.mxu0
    %v5234 = vadd.f32 %v4671, %v5233
    %v5235 = vpop.f32.mrf.mxu0
    %v5236 = vadd.f32 %v4675, %v5235
    %v5237 = vpop.f32.mrf.mxu0
    %v5238 = vadd.f32 %v4671, %v5237
    %v5239 = vpop.f32.mrf.mxu0
    %v5240 = vadd.f32 %v4675, %v5239
    %5241 = vmatprep.mubr.bf16.mxu0 0
    %5242 = vmatmul.mubr.bf16.gmra.mxu0 %v4752
    %v5243 = vpop.f32.mrf.mxu0
    %v5244 = vadd.f32 %v4671, %v5243
    %v5245 = vpop.f32.mrf.mxu0
    %v5246 = vadd.f32 %v4675, %v5245
    %v5247 = vpop.f32.mrf.mxu0
    %v5248 = vadd.f32 %v4671, %v5247
    %v5249 = vpop.f32.mrf.mxu0
    %v5250 = vadd.f32 %v4675, %v5249
    %5251 = vmatprep.mubr.bf16.mxu0 0
    %5252 = vmatmul.mubr.bf16.gmra.mxu0 %v4753
    %v5253 = vpop.f32.mrf.mxu0
    %v5254 = vadd.f32 %v4671, %v5253
    %v5255 = vpop.f32.mrf.mxu0
    %v5256 = vadd.f32 %v4675, %v5255
    %v5257 = vpop.f32.mrf.mxu0
    %v5258 = vadd.f32 %v4671, %v5257
    %v5259 = vpop.f32.mrf.mxu0
    %v5260 = vadd.f32 %v4675, %v5259
    %5261 = vmatprep.mubr.bf16.mxu0 0
    %5262 = vmatmul.mubr.bf16.gmra.mxu0 %v4754
    %v5263 = vpop.f32.mrf.mxu0
    %v5264 = vadd.f32 %v4671, %v5263
    %v5265 = vpop.f32.mrf.mxu0
    %v5266 = vadd.f32 %v4675, %v5265
    %v5267 = vpop.f32.mrf.mxu0
    %v5268 = vadd.f32 %v4671, %v5267
    %v5269 = vpop.f32.mrf.mxu0
    %v5270 = vadd.f32 %v4675, %v5269
    %5271 = vmatprep.mubr.bf16.mxu0 0
    %5272 = vmatmul.mubr.bf16.gmra.mxu0 %v4755
    %v5273 = vpop.f32.mrf.mxu0
    %v5274 = vadd.f32 %v4671, %v5273
    %v5275 = vpop.f32.mrf.mxu0
    %v5276 = vadd.f32 %v4675, %v5275
    %v5277 = vpop.f32.mrf.mxu0
    %v5278 = vadd.f32 %v4671, %v5277
    %v5279 = vpop.f32.mrf.mxu0
    %v5280 = vadd.f32 %v4675, %v5279
    %5281 = vmatprep.mubr.bf16.mxu0 0
    %5282 = vmatmul.mubr.bf16.gmra.mxu0 %v4756
    %v5283 = vpop.f32.mrf.mxu0
    %v5284 = vadd.f32 %v4671, %v5283
    %v5285 = vpop.f32.mrf.mxu0
    %v5286 = vadd.f32 %v4675, %v5285
    %v5287 = vpop.f32.mrf.mxu0
    %v5288 = vadd.f32 %v4671, %v5287
    %v5289 = vpop.f32.mrf.mxu0
    %v5290 = vadd.f32 %v4675, %v5289
    %5291 = vmatprep.mubr.bf16.mxu0 0
    %5292 = vmatmul.mubr.bf16.gmra.mxu0 %v4757
    %v5293 = vpop.f32.mrf.mxu0
    %v5294 = vadd.f32 %v4671, %v5293
    %v5295 = vpop.f32.mrf.mxu0
    %v5296 = vadd.f32 %v4675, %v5295
    %v5297 = vpop.f32.mrf.mxu0
    %v5298 = vadd.f32 %v4671, %v5297
    %v5299 = vpop.f32.mrf.mxu0
    %v5300 = vadd.f32 %v4675, %v5299
    %5301 = vmatprep.mubr.bf16.mxu0 0
    %5302 = vmatmul.mubr.bf16.gmra.mxu0 %v4758
    %v5303 = vpop.f32.mrf.mxu0
    %v5304 = vadd.f32 %v4671, %v5303
    %v5305 = vpop.f32.mrf.mxu0
    %v5306 = vadd.f32 %v4675, %v5305
    %v5307 = vpop.f32.mrf.mxu0
    %v5308 = vadd.f32 %v4671, %v5307
    %v5309 = vpop.f32.mrf.mxu0
    %v5310 = vadd.f32 %v4675, %v5309
    %5311 = vmatprep.mubr.bf16.mxu0 0
    %5312 = vmatmul.mubr.bf16.gmra.mxu0 %v4759
    %v5313 = vpop.f32.mrf.mxu0
    %v5314 = vadd.f32 %v4671, %v5313
    %v5315 = vpop.f32.mrf.mxu0
    %v5316 = vadd.f32 %v4675, %v5315
    %v5317 = vpop.f32.mrf.mxu0
    %v5318 = vadd.f32 %v4671, %v5317
    %v5319 = vpop.f32.mrf.mxu0
    %v5320 = vadd.f32 %v4675, %v5319
    %5321 = vdwg.mxu0
    %5322 = vst [vmem:[#allocation2] sm:$0xff] %v4971
    %5323 = vst [vmem:[#allocation2 + $0x8] sm:$0xff] %v4973
    %5324 = vst [vmem:[#allocation2 + $0x10] sm:$0xff] %v5164
    %5325 = vst [vmem:[#allocation2 + $0x18] sm:$0xff] %v5166
    %5326 = vst [vmem:[#allocation2 + $0x20] sm:$0xff] %v4975
    %5327 = vst [vmem:[#allocation2 + $0x28] sm:$0xff] %v4977
    %5328 = vst [vmem:[#allocation2 + $0x30] sm:$0xff] %v5168
    %5329 = vst [vmem:[#allocation2 + $0x38] sm:$0xff] %v5170
    %5330 = vst [vmem:[#allocation2 + $0x40] sm:$0xff] %v4981
    %5331 = vst [vmem:[#allocation2 + $0x48] sm:$0xff] %v4983
    %5332 = vst [vmem:[#allocation2 + $0x50] sm:$0xff] %v5174
    %5333 = vst [vmem:[#allocation2 + $0x58] sm:$0xff] %v5176
    %5334 = vst [vmem:[#allocation2 + $0x60] sm:$0xff] %v4985
    %5335 = vst [vmem:[#allocation2 + $0x68] sm:$0xff] %v4987
    %5336 = vst [vmem:[#allocation2 + $0x70] sm:$0xff] %v5178
    %5337 = vst [vmem:[#allocation2 + $0x78] sm:$0xff] %v5180
    %5338 = vst [vmem:[#allocation2 + $0x80] sm:$0xff] %v4991
    %5339 = vst [vmem:[#allocation2 + $0x88] sm:$0xff] %v4993
    %5340 = vst [vmem:[#allocation2 + $0x90] sm:$0xff] %v5184
    %5341 = vst [vmem:[#allocation2 + $0x98] sm:$0xff] %v5186
    %5342 = vst [vmem:[#allocation2 + $0xa0] sm:$0xff] %v4995
    %5343 = vst [vmem:[#allocation2 + $0xa8] sm:$0xff] %v4997
    %5344 = vst [vmem:[#allocation2 + $0xb0] sm:$0xff] %v5188
    %5345 = vst [vmem:[#allocation2 + $0xb8] sm:$0xff] %v5190
    %5346 = vst [vmem:[#allocation2 + $0xc0] sm:$0xff] %v5001
    %5347 = vst [vmem:[#allocation2 + $0xc8] sm:$0xff] %v5003
    %5348 = vst [vmem:[#allocation2 + $0xd0] sm:$0xff] %v5194
    %5349 = vst [vmem:[#allocation2 + $0xd8] sm:$0xff] %v5196
    %5350 = vst [vmem:[#allocation2 + $0xe0] sm:$0xff] %v5005
    %5351 = vst [vmem:[#allocation2 + $0xe8] sm:$0xff] %v5007
    %5352 = vst [vmem:[#allocation2 + $0xf0] sm:$0xff] %v5198
    %5353 = vst [vmem:[#allocation2 + $0xf8] sm:$0xff] %v5200
    %5354 = vst [vmem:[#allocation2 + $0x100] sm:$0xff] %v5011
    %5355 = vst [vmem:[#allocation2 + $0x108] sm:$0xff] %v5013
    %5356 = vst [vmem:[#allocation2 + $0x110] sm:$0xff] %v5204
    %5357 = vst [vmem:[#allocation2 + $0x118] sm:$0xff] %v5206
    %5358 = vst [vmem:[#allocation2 + $0x120] sm:$0xff] %v5015
    %5359 = vst [vmem:[#allocation2 + $0x128] sm:$0xff] %v5017
    %5360 = vst [vmem:[#allocation2 + $0x130] sm:$0xff] %v5208
    %5361 = vst [vmem:[#allocation2 + $0x138] sm:$0xff] %v5210
    %5362 = vst [vmem:[#allocation2 + $0x140] sm:$0xff] %v5021
    %5363 = vst [vmem:[#allocation2 + $0x148] sm:$0xff] %v5023
    %5364 = vst [vmem:[#allocation2 + $0x150] sm:$0xff] %v5214
    %5365 = vst [vmem:[#allocation2 + $0x158] sm:$0xff] %v5216
    %5366 = vst [vmem:[#allocation2 + $0x160] sm:$0xff] %v5025
    %5367 = vst [vmem:[#allocation2 + $0x168] sm:$0xff] %v5027
    %5368 = vst [vmem:[#allocation2 + $0x170] sm:$0xff] %v5218
    %5369 = vst [vmem:[#allocation2 + $0x178] sm:$0xff] %v5220
    %5370 = vst [vmem:[#allocation2 + $0x180] sm:$0xff] %v5031
    %5371 = vst [vmem:[#allocation2 + $0x188] sm:$0xff] %v5033
    %5372 = vst [vmem:[#allocation2 + $0x190] sm:$0xff] %v5224
    %5373 = vst [vmem:[#allocation2 + $0x198] sm:$0xff] %v5226
    %5374 = vst [vmem:[#allocation2 + $0x1a0] sm:$0xff] %v5035
    %5375 = vst [vmem:[#allocation2 + $0x1a8] sm:$0xff] %v5037
    %5376 = vst [vmem:[#allocation2 + $0x1b0] sm:$0xff] %v5228
    %5377 = vst [vmem:[#allocation2 + $0x1b8] sm:$0xff] %v5230
    %5378 = vst [vmem:[#allocation2 + $0x1c0] sm:$0xff] %v5041
    %5379 = vst [vmem:[#allocation2 + $0x1c8] sm:$0xff] %v5043
    %5380 = vst [vmem:[#allocation2 + $0x1d0] sm:$0xff] %v5234
    %5381 = vst [vmem:[#allocation2 + $0x1d8] sm:$0xff] %v5236
    %5382 = vst [vmem:[#allocation2 + $0x1e0] sm:$0xff] %v5045
    %5383 = vst [vmem:[#allocation2 + $0x1e8] sm:$0xff] %v5047
    %5384 = vst [vmem:[#allocation2 + $0x1f0] sm:$0xff] %v5238
    %5385 = vst [vmem:[#allocation2 + $0x1f8] sm:$0xff] %v5240
    %5386 = vst [vmem:[#allocation2 + $0x200] sm:$0xff] %v5051
    %5387 = vst [vmem:[#allocation2 + $0x208] sm:$0xff] %v5053
    %5388 = vst [vmem:[#allocation2 + $0x210] sm:$0xff] %v5244
    %5389 = vst [vmem:[#allocation2 + $0x218] sm:$0xff] %v5246
    %5390 = vst [vmem:[#allocation2 + $0x220] sm:$0xff] %v5055
    %5391 = vst [vmem:[#allocation2 + $0x228] sm:$0xff] %v5057
    %5392 = vst [vmem:[#allocation2 + $0x230] sm:$0xff] %v5248
    %5393 = vst [vmem:[#allocation2 + $0x238] sm:$0xff] %v5250
    %5394 = vst [vmem:[#allocation2 + $0x240] sm:$0xff] %v5061
    %5395 = vst [vmem:[#allocation2 + $0x248] sm:$0xff] %v5063
    %5396 = vst [vmem:[#allocation2 + $0x250] sm:$0xff] %v5254
    %5397 = vst [vmem:[#allocation2 + $0x258] sm:$0xff] %v5256
    %5398 = vst [vmem:[#allocation2 + $0x260] sm:$0xff] %v5065
    %5399 = vst [vmem:[#allocation2 + $0x268] sm:$0xff] %v5067
    %5400 = vst [vmem:[#allocation2 + $0x270] sm:$0xff] %v5258
    %5401 = vst [vmem:[#allocation2 + $0x278] sm:$0xff] %v5260
    %5402 = vst [vmem:[#allocation2 + $0x280] sm:$0xff] %v5071
    %5403 = vst [vmem:[#allocation2 + $0x288] sm:$0xff] %v5073
    %5404 = vst [vmem:[#allocation2 + $0x290] sm:$0xff] %v5264
    %5405 = vst [vmem:[#allocation2 + $0x298] sm:$0xff] %v5266
    %5406 = vst [vmem:[#allocation2 + $0x2a0] sm:$0xff] %v5075
    %5407 = vst [vmem:[#allocation2 + $0x2a8] sm:$0xff] %v5077
    %5408 = vst [vmem:[#allocation2 + $0x2b0] sm:$0xff] %v5268
    %5409 = vst [vmem:[#allocation2 + $0x2b8] sm:$0xff] %v5270
    %5410 = vst [vmem:[#allocation2 + $0x2c0] sm:$0xff] %v5081
    %5411 = vst [vmem:[#allocation2 + $0x2c8] sm:$0xff] %v5083
    %5412 = vst [vmem:[#allocation2 + $0x2d0] sm:$0xff] %v5274
    %5413 = vst [vmem:[#allocation2 + $0x2d8] sm:$0xff] %v5276
    %5414 = vst [vmem:[#allocation2 + $0x2e0] sm:$0xff] %v5085
    %5415 = vst [vmem:[#allocation2 + $0x2e8] sm:$0xff] %v5087
    %5416 = vst [vmem:[#allocation2 + $0x2f0] sm:$0xff] %v5278
    %5417 = vst [vmem:[#allocation2 + $0x2f8] sm:$0xff] %v5280
    %5418 = vst [vmem:[#allocation2 + $0x300] sm:$0xff] %v5091
    %5419 = vst [vmem:[#allocation2 + $0x308] sm:$0xff] %v5093
    %5420 = vst [vmem:[#allocation2 + $0x310] sm:$0xff] %v5284
    %5421 = vst [vmem:[#allocation2 + $0x318] sm:$0xff] %v5286
    %5422 = vst [vmem:[#allocation2 + $0x320] sm:$0xff] %v5095
    %5423 = vst [vmem:[#allocation2 + $0x328] sm:$0xff] %v5097
    %5424 = vst [vmem:[#allocation2 + $0x330] sm:$0xff] %v5288
    %5425 = vst [vmem:[#allocation2 + $0x338] sm:$0xff] %v5290
    %5426 = vst [vmem:[#allocation2 + $0x340] sm:$0xff] %v5101
    %5427 = vst [vmem:[#allocation2 + $0x348] sm:$0xff] %v5103
    %5428 = vst [vmem:[#allocation2 + $0x350] sm:$0xff] %v5294
    %5429 = vst [vmem:[#allocation2 + $0x358] sm:$0xff] %v5296
    %5430 = vst [vmem:[#allocation2 + $0x360] sm:$0xff] %v5105
    %5431 = vst [vmem:[#allocation2 + $0x368] sm:$0xff] %v5107
    %5432 = vst [vmem:[#allocation2 + $0x370] sm:$0xff] %v5298
    %5433 = vst [vmem:[#allocation2 + $0x378] sm:$0xff] %v5300
    %5434 = vst [vmem:[#allocation2 + $0x380] sm:$0xff] %v5111
    %5435 = vst [vmem:[#allocation2 + $0x388] sm:$0xff] %v5113
    %5436 = vst [vmem:[#allocation2 + $0x390] sm:$0xff] %v5304
    %5437 = vst [vmem:[#allocation2 + $0x398] sm:$0xff] %v5306
    %5438 = vst [vmem:[#allocation2 + $0x3a0] sm:$0xff] %v5115
    %5439 = vst [vmem:[#allocation2 + $0x3a8] sm:$0xff] %v5117
    %5440 = vst [vmem:[#allocation2 + $0x3b0] sm:$0xff] %v5308
    %5441 = vst [vmem:[#allocation2 + $0x3b8] sm:$0xff] %v5310
    %5442 = vst [vmem:[#allocation2 + $0x3c0] sm:$0xff] %v5121
    %5443 = vst [vmem:[#allocation2 + $0x3c8] sm:$0xff] %v5123
    %5444 = vst [vmem:[#allocation2 + $0x3d0] sm:$0xff] %v5314
    %5445 = vst [vmem:[#allocation2 + $0x3d8] sm:$0xff] %v5316
    %5446 = vst [vmem:[#allocation2 + $0x3e0] sm:$0xff] %v5125
    %5447 = vst [vmem:[#allocation2 + $0x3e8] sm:$0xff] %v5127
    %5448 = vst [vmem:[#allocation2 + $0x3f0] sm:$0xff] %v5318
    %5449 = vst [vmem:[#allocation2 + $0x3f8] sm:$0xff] %v5320
    %s5450 = scalar_lea.vmem %s5, 768
    %v5451 = vld [vmem:[%s5450] sm:$0xff]
    %v5452 = vld [vmem:[%s5450 + $0x8] sm:$0xff]
    %v5453 = vld [vmem:[%s5450 + $0x10] sm:$0xff]
    %v5454 = vld [vmem:[%s5450 + $0x18] sm:$0xff]
    %v5455 = vld [vmem:[%s5450 + $0x20] sm:$0xff]
    %v5456 = vld [vmem:[%s5450 + $0x28] sm:$0xff]
    %v5457 = vld [vmem:[%s5450 + $0x30] sm:$0xff]
    %v5458 = vld [vmem:[%s5450 + $0x38] sm:$0xff]
    %v5459 = vld [vmem:[%s5450 + $0x40] sm:$0xff]
    %v5460 = vld [vmem:[%s5450 + $0x48] sm:$0xff]
    %v5461 = vld [vmem:[%s5450 + $0x50] sm:$0xff]
    %v5462 = vld [vmem:[%s5450 + $0x58] sm:$0xff]
    %v5463 = vld [vmem:[%s5450 + $0x60] sm:$0xff]
    %v5464 = vld [vmem:[%s5450 + $0x68] sm:$0xff]
    %v5465 = vld [vmem:[%s5450 + $0x70] sm:$0xff]
    %v5466 = vld [vmem:[%s5450 + $0x78] sm:$0xff]
    %v5467 = vld [vmem:[%s5450 + $0x80] sm:$0xff]
    %v5468 = vld [vmem:[%s5450 + $0x88] sm:$0xff]
    %v5469 = vld [vmem:[%s5450 + $0x90] sm:$0xff]
    %v5470 = vld [vmem:[%s5450 + $0x98] sm:$0xff]
    %v5471 = vld [vmem:[%s5450 + $0xa0] sm:$0xff]
    %v5472 = vld [vmem:[%s5450 + $0xa8] sm:$0xff]
    %v5473 = vld [vmem:[%s5450 + $0xb0] sm:$0xff]
    %v5474 = vld [vmem:[%s5450 + $0xb8] sm:$0xff]
    %v5475 = vld [vmem:[%s5450 + $0xc0] sm:$0xff]
    %v5476 = vld [vmem:[%s5450 + $0xc8] sm:$0xff]
    %v5477 = vld [vmem:[%s5450 + $0xd0] sm:$0xff]
    %v5478 = vld [vmem:[%s5450 + $0xd8] sm:$0xff]
    %v5479 = vld [vmem:[%s5450 + $0xe0] sm:$0xff]
    %v5480 = vld [vmem:[%s5450 + $0xe8] sm:$0xff]
    %v5481 = vld [vmem:[%s5450 + $0xf0] sm:$0xff]
    %v5482 = vld [vmem:[%s5450 + $0xf8] sm:$0xff]
    loop: start=0, step=1, limit=8
    $region63: #{cannolo_forward_windows.1} parent=1 // loop_pre_header
      _
    $region64: #{cannolo_forward_windows.1} parent=1 // loop_header
      %s5484 = sphi 0, %s5488
      %p5485 = scmp.ge.s32.totalorder %s5484, 8
      %v5489 = vphi 0, %v5895
      %v5490 = vphi 0, %v5896
      %v5491 = vphi 0.0, %v5883
      %v5492 = vphi 0.0, %v5884
      %v5493 = vphi 0.0, %v5885
      %v5494 = vphi 0.0, %v5886
    $region65: #{cannolo_forward_windows.1} parent=1 // loop_header_branch
      %5487 = sbr.rel (%p5485) target = $region69
    $region66: #{cannolo_forward_windows.1} parent=1 // loop_body
      %s5495 = smul.u32 %s5484, 32
      %s5496 = sshra.s32 %s5495, 3
      %s5497 = sand.u32 %s5495, 7
      %s5498 = smul.u32 %s5496, 4
      %s5499 = smul.addr %s5498, 8
      %s5500 = scalar_lea.vmem [#allocation2], %s5499
      %v5501 = vld [vmem:[%s5500] sm:$0xff]
      %v5502 = vld [vmem:[%s5500 + $0x8] sm:$0xff]
      %v5503 = vld [vmem:[%s5500 + $0x10] sm:$0xff]
      %v5504 = vld [vmem:[%s5500 + $0x18] sm:$0xff]
      %v5505 = vld [vmem:[%s5500 + $0x20] sm:$0xff]
      %v5506 = vld [vmem:[%s5500 + $0x28] sm:$0xff]
      %v5507 = vld [vmem:[%s5500 + $0x30] sm:$0xff]
      %v5508 = vld [vmem:[%s5500 + $0x38] sm:$0xff]
      %v5509 = vld [vmem:[%s5500 + $0x40] sm:$0xff]
      %v5510 = vld [vmem:[%s5500 + $0x48] sm:$0xff]
      %v5511 = vld [vmem:[%s5500 + $0x50] sm:$0xff]
      %v5512 = vld [vmem:[%s5500 + $0x58] sm:$0xff]
      %v5513 = vld [vmem:[%s5500 + $0x60] sm:$0xff]
      %v5514 = vld [vmem:[%s5500 + $0x68] sm:$0xff]
      %v5515 = vld [vmem:[%s5500 + $0x70] sm:$0xff]
      %v5516 = vld [vmem:[%s5500 + $0x78] sm:$0xff]
      %v5549 = vunpack.c.l.b16 %v5451
      %v5550 = vunpack.c.h.b16 %v5451
      %v5551 = vunpack.c.l.b16 %v5452
      %v5552 = vunpack.c.h.b16 %v5452
      %v5553 = vunpack.c.l.b16 %v5453
      %v5554 = vunpack.c.h.b16 %v5453
      %v5555 = vunpack.c.l.b16 %v5454
      %v5556 = vunpack.c.h.b16 %v5454
      %v5557 = vunpack.c.l.b16 %v5455
      %v5558 = vunpack.c.h.b16 %v5455
      %v5559 = vunpack.c.l.b16 %v5456
      %v5560 = vunpack.c.h.b16 %v5456
      %v5561 = vunpack.c.l.b16 %v5457
      %v5562 = vunpack.c.h.b16 %v5457
      %v5563 = vunpack.c.l.b16 %v5458
      %v5564 = vunpack.c.h.b16 %v5458
      %v5565 = vunpack.c.l.b16 %v5459
      %v5566 = vunpack.c.h.b16 %v5459
      %v5567 = vunpack.c.l.b16 %v5460
      %v5568 = vunpack.c.h.b16 %v5460
      %v5569 = vunpack.c.l.b16 %v5461
      %v5570 = vunpack.c.h.b16 %v5461
      %v5571 = vunpack.c.l.b16 %v5462
      %v5572 = vunpack.c.h.b16 %v5462
      %v5573 = vunpack.c.l.b16 %v5463
      %v5574 = vunpack.c.h.b16 %v5463
      %v5575 = vunpack.c.l.b16 %v5464
      %v5576 = vunpack.c.h.b16 %v5464
      %v5577 = vunpack.c.l.b16 %v5465
      %v5578 = vunpack.c.h.b16 %v5465
      %v5579 = vunpack.c.l.b16 %v5466
      %v5580 = vunpack.c.h.b16 %v5466
      %v5581 = vunpack.c.l.b16 %v5467
      %v5582 = vunpack.c.h.b16 %v5467
      %v5583 = vunpack.c.l.b16 %v5468
      %v5584 = vunpack.c.h.b16 %v5468
      %v5585 = vunpack.c.l.b16 %v5469
      %v5586 = vunpack.c.h.b16 %v5469
      %v5587 = vunpack.c.l.b16 %v5470
      %v5588 = vunpack.c.h.b16 %v5470
      %v5589 = vunpack.c.l.b16 %v5471
      %v5590 = vunpack.c.h.b16 %v5471
      %v5591 = vunpack.c.l.b16 %v5472
      %v5592 = vunpack.c.h.b16 %v5472
      %v5593 = vunpack.c.l.b16 %v5473
      %v5594 = vunpack.c.h.b16 %v5473
      %v5595 = vunpack.c.l.b16 %v5474
      %v5596 = vunpack.c.h.b16 %v5474
      %v5597 = vunpack.c.l.b16 %v5475
      %v5598 = vunpack.c.h.b16 %v5475
      %v5599 = vunpack.c.l.b16 %v5476
      %v5600 = vunpack.c.h.b16 %v5476
      %v5601 = vunpack.c.l.b16 %v5477
      %v5602 = vunpack.c.h.b16 %v5477
      %v5603 = vunpack.c.l.b16 %v5478
      %v5604 = vunpack.c.h.b16 %v5478
      %v5605 = vunpack.c.l.b16 %v5479
      %v5606 = vunpack.c.h.b16 %v5479
      %v5607 = vunpack.c.l.b16 %v5480
      %v5608 = vunpack.c.h.b16 %v5480
      %v5609 = vunpack.c.l.b16 %v5481
      %v5610 = vunpack.c.h.b16 %v5481
      %v5611 = vunpack.c.l.b16 %v5482
      %v5612 = vunpack.c.h.b16 %v5482
      %v5613 = vpack.c.b16 %v5553, %v5549
      %v5614 = vpack.c.b16 %v5554, %v5550
      %v5615 = vpack.c.b16 %v5555, %v5551
      %v5616 = vpack.c.b16 %v5556, %v5552
      %v5617 = vpack.c.b16 %v5561, %v5557
      %v5618 = vpack.c.b16 %v5562, %v5558
      %v5619 = vpack.c.b16 %v5563, %v5559
      %v5620 = vpack.c.b16 %v5564, %v5560
      %v5621 = vpack.c.b16 %v5569, %v5565
      %v5622 = vpack.c.b16 %v5570, %v5566
      %v5623 = vpack.c.b16 %v5571, %v5567
      %v5624 = vpack.c.b16 %v5572, %v5568
      %v5625 = vpack.c.b16 %v5577, %v5573
      %v5626 = vpack.c.b16 %v5578, %v5574
      %v5627 = vpack.c.b16 %v5579, %v5575
      %v5628 = vpack.c.b16 %v5580, %v5576
      %v5629 = vpack.c.b16 %v5585, %v5581
      %v5630 = vpack.c.b16 %v5586, %v5582
      %v5631 = vpack.c.b16 %v5587, %v5583
      %v5632 = vpack.c.b16 %v5588, %v5584
      %v5633 = vpack.c.b16 %v5593, %v5589
      %v5634 = vpack.c.b16 %v5594, %v5590
      %v5635 = vpack.c.b16 %v5595, %v5591
      %v5636 = vpack.c.b16 %v5596, %v5592
      %v5637 = vpack.c.b16 %v5601, %v5597
      %v5638 = vpack.c.b16 %v5602, %v5598
      %v5639 = vpack.c.b16 %v5603, %v5599
      %v5640 = vpack.c.b16 %v5604, %v5600
      %v5641 = vpack.c.b16 %v5609, %v5605
      %v5642 = vpack.c.b16 %v5610, %v5606
      %v5643 = vpack.c.b16 %v5611, %v5607
      %v5644 = vpack.c.b16 %v5612, %v5608
      %5677 = vmatprep.subr.bf16.mxu0 %v5642
      %5678 = vmatpush1.bf16.msra.mxu0 %v5641
      %5679 = vmatprep.subr.bf16.mxu0 %v5638
      %5680 = vmatpush1.bf16.msra.mxu0 %v5637
      %5681 = vmatprep.subr.bf16.mxu0 %v5634
      %5682 = vmatpush1.bf16.msra.mxu0 %v5633
      %5683 = vmatprep.subr.bf16.mxu0 %v5630
      %5684 = vmatpush1.bf16.msra.mxu0 %v5629
      %5685 = vmatprep.subr.bf16.mxu0 %v5626
      %5686 = vmatpush1.bf16.msra.mxu0 %v5625
      %5687 = vmatprep.subr.bf16.mxu0 %v5622
      %5688 = vmatpush1.bf16.msra.mxu0 %v5621
      %5689 = vmatprep.subr.bf16.mxu0 %v5618
      %5690 = vmatpush1.bf16.msra.mxu0 %v5617
      %5691 = vmatprep.subr.bf16.mxu0 %v5614
      %5692 = vmatpush1.bf16.msra.mxu0 %v5613
      %5693 = vmatprep.subr.bf16.mxu0 0
      %5694 = vmatpush2.bf16.msra.mxu0 0
      %5695 = vmatprep.subr.bf16.mxu0 0
      %5696 = vmatpush2.bf16.msra.mxu0 0
      %5697 = vmatprep.subr.bf16.mxu0 0
      %5698 = vmatpush2.bf16.msra.mxu0 0
      %5699 = vmatprep.subr.bf16.mxu0 0
      %5700 = vmatpush2.bf16.msra.mxu0 0
      %5701 = vmatprep.subr.bf16.mxu0 0
      %5702 = vmatpush2.bf16.msra.mxu0 0
      %5703 = vmatprep.subr.bf16.mxu0 0
      %5704 = vmatpush2.bf16.msra.mxu0 0
      %5705 = vmatprep.subr.bf16.mxu0 0
      %5706 = vmatpush2.bf16.msra.mxu0 0
      %5707 = vmatprep.subr.bf16.mxu0 0
      %5708 = vmatpush2.bf16.msra.mxu0 0
      %5709 = vmatprep.mubr.bf16.mxu0 0
      %5710 = vmatmul.mubr.bf16.gmra.mxu0 %v5489
      %v5711 = vpop.f32.mrf.mxu0
      %v5712 = vadd.f32 0.0, %v5711
      %v5713 = vpop.f32.mrf.mxu0
      %v5714 = vadd.f32 0.0, %v5713
      %v5715 = vpop.f32.mrf.mxu0
      %v5716 = vadd.f32 0.0, %v5715
      %v5717 = vpop.f32.mrf.mxu0
      %v5718 = vadd.f32 0.0, %v5717
      %5719 = vmatprep.mubr.bf16.mxu0 0
      %5720 = vmatmul.mubr.bf16.gmra.mxu0 %v5490
      %v5721 = vpop.f32.mrf.mxu0
      %v5722 = vadd.f32 0.0, %v5721
      %v5723 = vpop.f32.mrf.mxu0
      %v5724 = vadd.f32 0.0, %v5723
      %v5725 = vpop.f32.mrf.mxu0
      %v5726 = vadd.f32 0.0, %v5725
      %v5727 = vpop.f32.mrf.mxu0
      %v5728 = vadd.f32 0.0, %v5727
      %5729 = vdwg.mxu0
      %5730 = vmatprep.subr.bf16.mxu0 %v5644
      %5731 = vmatpush1.bf16.msra.mxu0 %v5643
      %5732 = vmatprep.subr.bf16.mxu0 %v5640
      %5733 = vmatpush1.bf16.msra.mxu0 %v5639
      %5734 = vmatprep.subr.bf16.mxu0 %v5636
      %5735 = vmatpush1.bf16.msra.mxu0 %v5635
      %5736 = vmatprep.subr.bf16.mxu0 %v5632
      %5737 = vmatpush1.bf16.msra.mxu0 %v5631
      %5738 = vmatprep.subr.bf16.mxu0 %v5628
      %5739 = vmatpush1.bf16.msra.mxu0 %v5627
      %5740 = vmatprep.subr.bf16.mxu0 %v5624
      %5741 = vmatpush1.bf16.msra.mxu0 %v5623
      %5742 = vmatprep.subr.bf16.mxu0 %v5620
      %5743 = vmatpush1.bf16.msra.mxu0 %v5619
      %5744 = vmatprep.subr.bf16.mxu0 %v5616
      %5745 = vmatpush1.bf16.msra.mxu0 %v5615
      %5746 = vmatprep.subr.bf16.mxu0 0
      %5747 = vmatpush2.bf16.msra.mxu0 0
      %5748 = vmatprep.subr.bf16.mxu0 0
      %5749 = vmatpush2.bf16.msra.mxu0 0
      %5750 = vmatprep.subr.bf16.mxu0 0
      %5751 = vmatpush2.bf16.msra.mxu0 0
      %5752 = vmatprep.subr.bf16.mxu0 0
      %5753 = vmatpush2.bf16.msra.mxu0 0
      %5754 = vmatprep.subr.bf16.mxu0 0
      %5755 = vmatpush2.bf16.msra.mxu0 0
      %5756 = vmatprep.subr.bf16.mxu0 0
      %5757 = vmatpush2.bf16.msra.mxu0 0
      %5758 = vmatprep.subr.bf16.mxu0 0
      %5759 = vmatpush2.bf16.msra.mxu0 0
      %5760 = vmatprep.subr.bf16.mxu0 0
      %5761 = vmatpush2.bf16.msra.mxu0 0
      %5762 = vmatprep.mubr.bf16.mxu0 0
      %5763 = vmatmul.mubr.bf16.gmra.mxu0 %v5489
      %v5764 = vpop.f32.mrf.mxu0
      %v5765 = vadd.f32 0.0, %v5764
      %v5766 = vpop.f32.mrf.mxu0
      %v5767 = vadd.f32 0.0, %v5766
      %v5768 = vpop.f32.mrf.mxu0
      %v5769 = vadd.f32 0.0, %v5768
      %v5770 = vpop.f32.mrf.mxu0
      %v5771 = vadd.f32 0.0, %v5770
      %5772 = vmatprep.mubr.bf16.mxu0 0
      %5773 = vmatmul.mubr.bf16.gmra.mxu0 %v5490
      %v5774 = vpop.f32.mrf.mxu0
      %v5775 = vadd.f32 0.0, %v5774
      %v5776 = vpop.f32.mrf.mxu0
      %v5777 = vadd.f32 0.0, %v5776
      %v5778 = vpop.f32.mrf.mxu0
      %v5779 = vadd.f32 0.0, %v5778
      %v5780 = vpop.f32.mrf.mxu0
      %v5781 = vadd.f32 0.0, %v5780
      %5782 = vdwg.mxu0
      %v5783 = vadd.f32 %v5501, %v5712
      %v5784 = vadd.f32 %v5502, %v5714
      %v5785 = vadd.f32 %v5503, %v5765
      %v5786 = vadd.f32 %v5504, %v5767
      %v5787 = vadd.f32 %v5505, %v5716
      %v5788 = vadd.f32 %v5506, %v5718
      %v5789 = vadd.f32 %v5507, %v5769
      %v5790 = vadd.f32 %v5508, %v5771
      %v5791 = vadd.f32 %v5509, %v5722
      %v5792 = vadd.f32 %v5510, %v5724
      %v5793 = vadd.f32 %v5511, %v5775
      %v5794 = vadd.f32 %v5512, %v5777
      %v5795 = vadd.f32 %v5513, %v5726
      %v5796 = vadd.f32 %v5514, %v5728
      %v5797 = vadd.f32 %v5515, %v5779
      %v5798 = vadd.f32 %v5516, %v5781
      %v5799 = vxor.u32 %v5783, 2147483648
      %v5800 = vxor.u32 %v5784, 2147483648
      %v5801 = vxor.u32 %v5785, 2147483648
      %v5802 = vxor.u32 %v5787, 2147483648
      %v5803 = vxor.u32 %v5788, 2147483648
      %v5804 = vxor.u32 %v5789, 2147483648
      %v5805 = vxor.u32 %v5791, 2147483648
      %v5806 = vxor.u32 %v5792, 2147483648
      %v5807 = vxor.u32 %v5793, 2147483648
      %v5808 = vxor.u32 %v5795, 2147483648
      %v5809 = vxor.u32 %v5796, 2147483648
      %v5810 = vxor.u32 %v5797, 2147483648
      %v5811 = vmul.f32 %v5799, 1.442695
      %v5812 = vpow.pop %v5811
      %v5813 = vmul.f32 %v5800, 1.442695
      %v5814 = vpow.pop %v5813
      %v5815 = vmul.f32 %v5801, 1.442695
      %v5816 = vpow.pop %v5815
      %v5817 = vmul.f32 %v5802, 1.442695
      %v5818 = vpow.pop %v5817
      %v5819 = vmul.f32 %v5803, 1.442695
      %v5820 = vpow.pop %v5819
      %v5821 = vmul.f32 %v5804, 1.442695
      %v5822 = vpow.pop %v5821
      %v5823 = vmul.f32 %v5805, 1.442695
      %v5824 = vpow.pop %v5823
      %v5825 = vmul.f32 %v5806, 1.442695
      %v5826 = vpow.pop %v5825
      %v5827 = vmul.f32 %v5807, 1.442695
      %v5828 = vpow.pop %v5827
      %v5829 = vmul.f32 %v5808, 1.442695
      %v5830 = vpow.pop %v5829
      %v5831 = vmul.f32 %v5809, 1.442695
      %v5832 = vpow.pop %v5831
      %v5833 = vmul.f32 %v5810, 1.442695
      %v5834 = vpow.pop %v5833
      %v5835 = vadd.f32 %v5812, 1.0
      %v5836 = vadd.f32 %v5814, 1.0
      %v5837 = vadd.f32 %v5816, 1.0
      %v5838 = vadd.f32 %v5818, 1.0
      %v5839 = vadd.f32 %v5820, 1.0
      %v5840 = vadd.f32 %v5822, 1.0
      %v5841 = vadd.f32 %v5824, 1.0
      %v5842 = vadd.f32 %v5826, 1.0
      %v5843 = vadd.f32 %v5828, 1.0
      %v5844 = vadd.f32 %v5830, 1.0
      %v5845 = vadd.f32 %v5832, 1.0
      %v5846 = vadd.f32 %v5834, 1.0
      %v5847 = vrcp.pop %v5835
      %v5848 = vmul.f32 1.0, %v5847
      %v5849 = vrcp.pop %v5836
      %v5850 = vmul.f32 1.0, %v5849
      %v5851 = vrcp.pop %v5837
      %v5852 = vmul.f32 1.0, %v5851
      %v5853 = vrcp.pop %v5838
      %v5854 = vmul.f32 1.0, %v5853
      %v5855 = vrcp.pop %v5839
      %v5856 = vmul.f32 1.0, %v5855
      %v5857 = vrcp.pop %v5840
      %v5858 = vmul.f32 1.0, %v5857
      %v5859 = vrcp.pop %v5841
      %v5860 = vmul.f32 1.0, %v5859
      %v5861 = vrcp.pop %v5842
      %v5862 = vmul.f32 1.0, %v5861
      %v5863 = vrcp.pop %v5843
      %v5864 = vmul.f32 1.0, %v5863
      %v5865 = vrcp.pop %v5844
      %v5866 = vmul.f32 1.0, %v5865
      %v5867 = vrcp.pop %v5845
      %v5868 = vmul.f32 1.0, %v5867
      %v5869 = vrcp.pop %v5846
      %v5870 = vmul.f32 1.0, %v5869
      %v5871 = vtanh.pop %v5786
      %v5872 = vtanh.pop %v5790
      %v5873 = vtanh.pop %v5794
      %v5874 = vtanh.pop %v5798
      %v5875 = vmul.f32 %v5850, %v5491
      %v5876 = vmul.f32 %v5856, %v5492
      %v5877 = vmul.f32 %v5862, %v5493
      %v5878 = vmul.f32 %v5868, %v5494
      %v5879 = vmul.f32 %v5848, %v5871
      %v5880 = vmul.f32 %v5854, %v5872
      %v5881 = vmul.f32 %v5860, %v5873
      %v5882 = vmul.f32 %v5866, %v5874
      %v5883 = vadd.f32 %v5875, %v5879
      %v5884 = vadd.f32 %v5876, %v5880
      %v5885 = vadd.f32 %v5877, %v5881
      %v5886 = vadd.f32 %v5878, %v5882
      %v5887 = vtanh.pop %v5883
      %v5888 = vtanh.pop %v5884
      %v5889 = vtanh.pop %v5885
      %v5890 = vtanh.pop %v5886
      %v5891 = vmul.f32 %v5852, %v5887
      %v5892 = vmul.f32 %v5858, %v5888
      %v5893 = vmul.f32 %v5864, %v5889
      %v5894 = vmul.f32 %v5870, %v5890
      %v5895 = vpack.c.bf16 %v5892, %v5891
      %v5896 = vpack.c.bf16 %v5894, %v5893
      %v5899 = vunpack.c.l.b16 %v5895
      %v5900 = vunpack.c.h.b16 %v5895
      %v5901 = vunpack.c.l.b16 %v5896
      %v5902 = vunpack.c.h.b16 %v5896
      %v5903 = vpack.c.b16 %v5899, %v5899
      %v5904 = vpack.c.b16 %v5900, %v5900
      %v5905 = vpack.c.b16 %v5901, %v5901
      %v5906 = vpack.c.b16 %v5902, %v5902
      %s5911 = smul.addr %s5496, 4
      %s5912 = scalar_lea.vmem [#allocation4], %s5911
      %5913 = vst [vmem:[%s5912] sm:$0xf] %v5903
      %5914 = vst [vmem:[%s5912 + $0x4] sm:$0xf] %v5904
      %5915 = vst [vmem:[%s5912 + $0x8] sm:$0xf] %v5905
      %5916 = vst [vmem:[%s5912 + $0xc] sm:$0xf] %v5906
    $region67: #{cannolo_forward_windows.1} parent=1 // loop_footer
      %s5488 = sadd.s32 1, %s5484
    $region68: #{cannolo_forward_windows.1} parent=1 // loop_footer_branch
      %5483 = sbr.rel target = $region64
    $region69: #{cannolo_forward_windows.1} parent=1 // loop_exit
      _
    %v5917 = vld [vmem:[#allocation4] sm:$0xf]
    %v5918 = vld [vmem:[#allocation4 + $0x4] sm:$0xf]
    %v5919 = vld [vmem:[#allocation4 + $0x8] sm:$0xf]
    %v5920 = vld [vmem:[#allocation4 + $0xc] sm:$0xf]
    %v5921 = vld [vmem:[#allocation4 + $0x10] sm:$0xf]
    %v5922 = vld [vmem:[#allocation4 + $0x14] sm:$0xf]
    %v5923 = vld [vmem:[#allocation4 + $0x18] sm:$0xf]
    %v5924 = vld [vmem:[#allocation4 + $0x1c] sm:$0xf]
    %v5925 = vld [vmem:[#allocation4 + $0x20] sm:$0xf]
    %v5926 = vld [vmem:[#allocation4 + $0x24] sm:$0xf]
    %v5927 = vld [vmem:[#allocation4 + $0x28] sm:$0xf]
    %v5928 = vld [vmem:[#allocation4 + $0x2c] sm:$0xf]
    %v5929 = vld [vmem:[#allocation4 + $0x30] sm:$0xf]
    %v5930 = vld [vmem:[#allocation4 + $0x34] sm:$0xf]
    %v5931 = vld [vmem:[#allocation4 + $0x38] sm:$0xf]
    %v5932 = vld [vmem:[#allocation4 + $0x3c] sm:$0xf]
    %v5933 = vld [vmem:[#allocation4 + $0x40] sm:$0xf]
    %v5934 = vld [vmem:[#allocation4 + $0x44] sm:$0xf]
    %v5935 = vld [vmem:[#allocation4 + $0x48] sm:$0xf]
    %v5936 = vld [vmem:[#allocation4 + $0x4c] sm:$0xf]
    %v5937 = vld [vmem:[#allocation4 + $0x50] sm:$0xf]
    %v5938 = vld [vmem:[#allocation4 + $0x54] sm:$0xf]
    %v5939 = vld [vmem:[#allocation4 + $0x58] sm:$0xf]
    %v5940 = vld [vmem:[#allocation4 + $0x5c] sm:$0xf]
    %v5941 = vld [vmem:[#allocation4 + $0x60] sm:$0xf]
    %v5942 = vld [vmem:[#allocation4 + $0x64] sm:$0xf]
    %v5943 = vld [vmem:[#allocation4 + $0x68] sm:$0xf]
    %v5944 = vld [vmem:[#allocation4 + $0x6c] sm:$0xf]
    %v5945 = vld [vmem:[#allocation4 + $0x70] sm:$0xf]
    %v5946 = vld [vmem:[#allocation4 + $0x74] sm:$0xf]
    %v5947 = vld [vmem:[#allocation4 + $0x78] sm:$0xf]
    %v5948 = vld [vmem:[#allocation4 + $0x7c] sm:$0xf]
    %v5949 = vld [vmem:[#allocation5] sm:$0xf]
    %v5950 = vld [vmem:[#allocation5 + $0x4] sm:$0xf]
    %v5951 = vld [vmem:[#allocation5 + $0x8] sm:$0xf]
    %v5952 = vld [vmem:[#allocation5 + $0xc] sm:$0xf]
    %v5953 = vld [vmem:[#allocation5 + $0x10] sm:$0xf]
    %v5954 = vld [vmem:[#allocation5 + $0x14] sm:$0xf]
    %v5955 = vld [vmem:[#allocation5 + $0x18] sm:$0xf]
    %v5956 = vld [vmem:[#allocation5 + $0x1c] sm:$0xf]
    %v5957 = vld [vmem:[#allocation5 + $0x20] sm:$0xf]
    %v5958 = vld [vmem:[#allocation5 + $0x24] sm:$0xf]
    %v5959 = vld [vmem:[#allocation5 + $0x28] sm:$0xf]
    %v5960 = vld [vmem:[#allocation5 + $0x2c] sm:$0xf]
    %v5961 = vld [vmem:[#allocation5 + $0x30] sm:$0xf]
    %v5962 = vld [vmem:[#allocation5 + $0x34] sm:$0xf]
    %v5963 = vld [vmem:[#allocation5 + $0x38] sm:$0xf]
    %v5964 = vld [vmem:[#allocation5 + $0x3c] sm:$0xf]
    %v5965 = vld [vmem:[%s8] sm:$0x1]
    %v5967 = vlaneseq
    %v5968 = vshrl.u32 %v5967, 7
    %v5969 = vsub.s32 0, %v5968
    %v5970 = vrot.slane %v5965, %v5969
    %v6004 = vunpack.c.l.b16 %v5917
    %v6005 = vunpack.c.l.b16 %v5918
    %v6006 = vunpack.c.l.b16 %v5919
    %v6007 = vunpack.c.l.b16 %v5920
    %v6008 = vunpack.c.l.b16 %v5921
    %v6009 = vunpack.c.l.b16 %v5922
    %v6010 = vunpack.c.l.b16 %v5923
    %v6011 = vunpack.c.l.b16 %v5924
    %v6012 = vunpack.c.l.b16 %v5925
    %v6013 = vunpack.c.l.b16 %v5926
    %v6014 = vunpack.c.l.b16 %v5927
    %v6015 = vunpack.c.l.b16 %v5928
    %v6016 = vunpack.c.l.b16 %v5929
    %v6017 = vunpack.c.l.b16 %v5930
    %v6018 = vunpack.c.l.b16 %v5931
    %v6019 = vunpack.c.l.b16 %v5932
    %v6020 = vunpack.c.l.b16 %v5933
    %v6021 = vunpack.c.l.b16 %v5934
    %v6022 = vunpack.c.l.b16 %v5935
    %v6023 = vunpack.c.l.b16 %v5936
    %v6024 = vunpack.c.l.b16 %v5937
    %v6025 = vunpack.c.l.b16 %v5938
    %v6026 = vunpack.c.l.b16 %v5939
    %v6027 = vunpack.c.l.b16 %v5940
    %v6028 = vunpack.c.l.b16 %v5941
    %v6029 = vunpack.c.l.b16 %v5942
    %v6030 = vunpack.c.l.b16 %v5943
    %v6031 = vunpack.c.l.b16 %v5944
    %v6032 = vunpack.c.l.b16 %v5945
    %v6033 = vunpack.c.l.b16 %v5946
    %v6034 = vunpack.c.l.b16 %v5947
    %v6035 = vunpack.c.l.b16 %v5948
    %v6036 = vpack.c.b16 %v6005, %v6004
    %v6037 = vpack.c.b16 %v6007, %v6006
    %v6038 = vpack.c.b16 %v6009, %v6008
    %v6039 = vpack.c.b16 %v6011, %v6010
    %v6040 = vpack.c.b16 %v6013, %v6012
    %v6041 = vpack.c.b16 %v6015, %v6014
    %v6042 = vpack.c.b16 %v6017, %v6016
    %v6043 = vpack.c.b16 %v6019, %v6018
    %v6044 = vpack.c.b16 %v6021, %v6020
    %v6045 = vpack.c.b16 %v6023, %v6022
    %v6046 = vpack.c.b16 %v6025, %v6024
    %v6047 = vpack.c.b16 %v6027, %v6026
    %v6048 = vpack.c.b16 %v6029, %v6028
    %v6049 = vpack.c.b16 %v6031, %v6030
    %v6050 = vpack.c.b16 %v6033, %v6032
    %v6051 = vpack.c.b16 %v6035, %v6034
    %v6084 = vunpack.c.l.b16 %v5949
    %v6085 = vunpack.c.l.b16 %v5950
    %v6086 = vunpack.c.l.b16 %v5951
    %v6087 = vunpack.c.l.b16 %v5952
    %v6088 = vunpack.c.l.b16 %v5953
    %v6089 = vunpack.c.l.b16 %v5954
    %v6090 = vunpack.c.l.b16 %v5955
    %v6091 = vunpack.c.l.b16 %v5956
    %v6092 = vunpack.c.l.b16 %v5957
    %v6093 = vunpack.c.l.b16 %v5958
    %v6094 = vunpack.c.l.b16 %v5959
    %v6095 = vunpack.c.l.b16 %v5960
    %v6096 = vunpack.c.l.b16 %v5961
    %v6097 = vunpack.c.l.b16 %v5962
    %v6098 = vunpack.c.l.b16 %v5963
    %v6099 = vunpack.c.l.b16 %v5964
    %v6100 = vpack.c.b16 %v6085, %v6084
    %v6101 = vpack.c.b16 %v6087, %v6086
    %v6102 = vpack.c.b16 %v6089, %v6088
    %v6103 = vpack.c.b16 %v6091, %v6090
    %v6104 = vpack.c.b16 %v6093, %v6092
    %v6105 = vpack.c.b16 %v6095, %v6094
    %v6106 = vpack.c.b16 %v6097, %v6096
    %v6107 = vpack.c.b16 %v6099, %v6098
    %6116 = vmatprep.subr.bf16.mxu0 0
    %6117 = vmatpush1.bf16.msra.mxu0 %v6107
    %6118 = vmatprep.subr.bf16.mxu0 0
    %6119 = vmatpush1.bf16.msra.mxu0 %v6106
    %6120 = vmatprep.subr.bf16.mxu0 0
    %6121 = vmatpush1.bf16.msra.mxu0 %v6105
    %6122 = vmatprep.subr.bf16.mxu0 0
    %6123 = vmatpush1.bf16.msra.mxu0 %v6104
    %6124 = vmatprep.subr.bf16.mxu0 0
    %6125 = vmatpush1.bf16.msra.mxu0 %v6103
    %6126 = vmatprep.subr.bf16.mxu0 0
    %6127 = vmatpush1.bf16.msra.mxu0 %v6102
    %6128 = vmatprep.subr.bf16.mxu0 0
    %6129 = vmatpush1.bf16.msra.mxu0 %v6101
    %6130 = vmatprep.subr.bf16.mxu0 0
    %6131 = vmatpush1.bf16.msra.mxu0 %v6100
    %6132 = vmatprep.subr.bf16.mxu0 0
    %6133 = vmatpush2.bf16.msra.mxu0 0
    %6134 = vmatprep.subr.bf16.mxu0 0
    %6135 = vmatpush2.bf16.msra.mxu0 0
    %6136 = vmatprep.subr.bf16.mxu0 0
    %6137 = vmatpush2.bf16.msra.mxu0 0
    %6138 = vmatprep.subr.bf16.mxu0 0
    %6139 = vmatpush2.bf16.msra.mxu0 0
    %6140 = vmatprep.subr.bf16.mxu0 0
    %6141 = vmatpush2.bf16.msra.mxu0 0
    %6142 = vmatprep.subr.bf16.mxu0 0
    %6143 = vmatpush2.bf16.msra.mxu0 0
    %6144 = vmatprep.subr.bf16.mxu0 0
    %6145 = vmatpush2.bf16.msra.mxu0 0
    %6146 = vmatprep.subr.bf16.mxu0 0
    %6147 = vmatpush2.bf16.msra.mxu0 0
    %6148 = vmatprep.mubr.bf16.mxu0 0
    %6149 = vmatmul.mubr.bf16.gmra.mxu0 %v6036
    %v6150 = vpop.f32.mrf.mxu0
    %v6151 = vadd.f32 %v5970, %v6150
    %v6152 = vpop.f32.mrf.mxu0
    %v6153 = vpop.f32.mrf.mxu0
    %v6154 = vadd.f32 %v5970, %v6153
    %v6155 = vpop.f32.mrf.mxu0
    %6156 = vmatprep.mubr.bf16.mxu0 0
    %6157 = vmatmul.mubr.bf16.gmra.mxu0 %v6037
    %v6158 = vpop.f32.mrf.mxu0
    %v6159 = vadd.f32 %v5970, %v6158
    %v6160 = vpop.f32.mrf.mxu0
    %v6161 = vpop.f32.mrf.mxu0
    %v6162 = vadd.f32 %v5970, %v6161
    %v6163 = vpop.f32.mrf.mxu0
    %6164 = vmatprep.mubr.bf16.mxu0 0
    %6165 = vmatmul.mubr.bf16.gmra.mxu0 %v6038
    %v6166 = vpop.f32.mrf.mxu0
    %v6167 = vadd.f32 %v5970, %v6166
    %v6168 = vpop.f32.mrf.mxu0
    %v6169 = vpop.f32.mrf.mxu0
    %v6170 = vadd.f32 %v5970, %v6169
    %v6171 = vpop.f32.mrf.mxu0
    %6172 = vmatprep.mubr.bf16.mxu0 0
    %6173 = vmatmul.mubr.bf16.gmra.mxu0 %v6039
    %v6174 = vpop.f32.mrf.mxu0
    %v6175 = vadd.f32 %v5970, %v6174
    %v6176 = vpop.f32.mrf.mxu0
    %v6177 = vpop.f32.mrf.mxu0
    %v6178 = vadd.f32 %v5970, %v6177
    %v6179 = vpop.f32.mrf.mxu0
    %6180 = vmatprep.mubr.bf16.mxu0 0
    %6181 = vmatmul.mubr.bf16.gmra.mxu0 %v6040
    %v6182 = vpop.f32.mrf.mxu0
    %v6183 = vadd.f32 %v5970, %v6182
    %v6184 = vpop.f32.mrf.mxu0
    %v6185 = vpop.f32.mrf.mxu0
    %v6186 = vadd.f32 %v5970, %v6185
    %v6187 = vpop.f32.mrf.mxu0
    %6188 = vmatprep.mubr.bf16.mxu0 0
    %6189 = vmatmul.mubr.bf16.gmra.mxu0 %v6041
    %v6190 = vpop.f32.mrf.mxu0
    %v6191 = vadd.f32 %v5970, %v6190
    %v6192 = vpop.f32.mrf.mxu0
    %v6193 = vpop.f32.mrf.mxu0
    %v6194 = vadd.f32 %v5970, %v6193
    %v6195 = vpop.f32.mrf.mxu0
    %6196 = vmatprep.mubr.bf16.mxu0 0
    %6197 = vmatmul.mubr.bf16.gmra.mxu0 %v6042
    %v6198 = vpop.f32.mrf.mxu0
    %v6199 = vadd.f32 %v5970, %v6198
    %v6200 = vpop.f32.mrf.mxu0
    %v6201 = vpop.f32.mrf.mxu0
    %v6202 = vadd.f32 %v5970, %v6201
    %v6203 = vpop.f32.mrf.mxu0
    %6204 = vmatprep.mubr.bf16.mxu0 0
    %6205 = vmatmul.mubr.bf16.gmra.mxu0 %v6043
    %v6206 = vpop.f32.mrf.mxu0
    %v6207 = vadd.f32 %v5970, %v6206
    %v6208 = vpop.f32.mrf.mxu0
    %v6209 = vpop.f32.mrf.mxu0
    %v6210 = vadd.f32 %v5970, %v6209
    %v6211 = vpop.f32.mrf.mxu0
    %6212 = vmatprep.mubr.bf16.mxu0 0
    %6213 = vmatmul.mubr.bf16.gmra.mxu0 %v6044
    %v6214 = vpop.f32.mrf.mxu0
    %v6215 = vadd.f32 %v5970, %v6214
    %v6216 = vpop.f32.mrf.mxu0
    %v6217 = vpop.f32.mrf.mxu0
    %v6218 = vadd.f32 %v5970, %v6217
    %v6219 = vpop.f32.mrf.mxu0
    %6220 = vmatprep.mubr.bf16.mxu0 0
    %6221 = vmatmul.mubr.bf16.gmra.mxu0 %v6045
    %v6222 = vpop.f32.mrf.mxu0
    %v6223 = vadd.f32 %v5970, %v6222
    %v6224 = vpop.f32.mrf.mxu0
    %v6225 = vpop.f32.mrf.mxu0
    %v6226 = vadd.f32 %v5970, %v6225
    %v6227 = vpop.f32.mrf.mxu0
    %6228 = vmatprep.mubr.bf16.mxu0 0
    %6229 = vmatmul.mubr.bf16.gmra.mxu0 %v6046
    %v6230 = vpop.f32.mrf.mxu0
    %v6231 = vadd.f32 %v5970, %v6230
    %v6232 = vpop.f32.mrf.mxu0
    %v6233 = vpop.f32.mrf.mxu0
    %v6234 = vadd.f32 %v5970, %v6233
    %v6235 = vpop.f32.mrf.mxu0
    %6236 = vmatprep.mubr.bf16.mxu0 0
    %6237 = vmatmul.mubr.bf16.gmra.mxu0 %v6047
    %v6238 = vpop.f32.mrf.mxu0
    %v6239 = vadd.f32 %v5970, %v6238
    %v6240 = vpop.f32.mrf.mxu0
    %v6241 = vpop.f32.mrf.mxu0
    %v6242 = vadd.f32 %v5970, %v6241
    %v6243 = vpop.f32.mrf.mxu0
    %6244 = vmatprep.mubr.bf16.mxu0 0
    %6245 = vmatmul.mubr.bf16.gmra.mxu0 %v6048
    %v6246 = vpop.f32.mrf.mxu0
    %v6247 = vadd.f32 %v5970, %v6246
    %v6248 = vpop.f32.mrf.mxu0
    %v6249 = vpop.f32.mrf.mxu0
    %v6250 = vadd.f32 %v5970, %v6249
    %v6251 = vpop.f32.mrf.mxu0
    %6252 = vmatprep.mubr.bf16.mxu0 0
    %6253 = vmatmul.mubr.bf16.gmra.mxu0 %v6049
    %v6254 = vpop.f32.mrf.mxu0
    %v6255 = vadd.f32 %v5970, %v6254
    %v6256 = vpop.f32.mrf.mxu0
    %v6257 = vpop.f32.mrf.mxu0
    %v6258 = vadd.f32 %v5970, %v6257
    %v6259 = vpop.f32.mrf.mxu0
    %6260 = vmatprep.mubr.bf16.mxu0 0
    %6261 = vmatmul.mubr.bf16.gmra.mxu0 %v6050
    %v6262 = vpop.f32.mrf.mxu0
    %v6263 = vadd.f32 %v5970, %v6262
    %v6264 = vpop.f32.mrf.mxu0
    %v6265 = vpop.f32.mrf.mxu0
    %v6266 = vadd.f32 %v5970, %v6265
    %v6267 = vpop.f32.mrf.mxu0
    %6268 = vmatprep.mubr.bf16.mxu0 0
    %6269 = vmatmul.mubr.bf16.gmra.mxu0 %v6051
    %v6270 = vpop.f32.mrf.mxu0
    %v6271 = vadd.f32 %v5970, %v6270
    %v6272 = vpop.f32.mrf.mxu0
    %v6273 = vpop.f32.mrf.mxu0
    %v6274 = vadd.f32 %v5970, %v6273
    %v6275 = vpop.f32.mrf.mxu0
    %6276 = vdwg.mxu0
    %v6277 = vxor.u32 %v6151, 2147483648
    %v6278 = vxor.u32 %v6154, 2147483648
    %v6279 = vxor.u32 %v6159, 2147483648
    %v6280 = vxor.u32 %v6162, 2147483648
    %v6281 = vxor.u32 %v6167, 2147483648
    %v6282 = vxor.u32 %v6170, 2147483648
    %v6283 = vxor.u32 %v6175, 2147483648
    %v6284 = vxor.u32 %v6178, 2147483648
    %v6285 = vxor.u32 %v6183, 2147483648
    %v6286 = vxor.u32 %v6186, 2147483648
    %v6287 = vxor.u32 %v6191, 2147483648
    %v6288 = vxor.u32 %v6194, 2147483648
    %v6289 = vxor.u32 %v6199, 2147483648
    %v6290 = vxor.u32 %v6202, 2147483648
    %v6291 = vxor.u32 %v6207, 2147483648
    %v6292 = vxor.u32 %v6210, 2147483648
    %v6293 = vxor.u32 %v6215, 2147483648
    %v6294 = vxor.u32 %v6218, 2147483648
    %v6295 = vxor.u32 %v6223, 2147483648
    %v6296 = vxor.u32 %v6226, 2147483648
    %v6297 = vxor.u32 %v6231, 2147483648
    %v6298 = vxor.u32 %v6234, 2147483648
    %v6299 = vxor.u32 %v6239, 2147483648
    %v6300 = vxor.u32 %v6242, 2147483648
    %v6301 = vxor.u32 %v6247, 2147483648
    %v6302 = vxor.u32 %v6250, 2147483648
    %v6303 = vxor.u32 %v6255, 2147483648
    %v6304 = vxor.u32 %v6258, 2147483648
    %v6305 = vxor.u32 %v6263, 2147483648
    %v6306 = vxor.u32 %v6266, 2147483648
    %v6307 = vxor.u32 %v6271, 2147483648
    %v6308 = vxor.u32 %v6274, 2147483648
    %v6309 = vmul.f32 %v6277, 1.442695
    %v6310 = vpow.pop %v6309
    %v6311 = vmul.f32 %v6278, 1.442695
    %v6312 = vpow.pop %v6311
    %v6313 = vmul.f32 %v6279, 1.442695
    %v6314 = vpow.pop %v6313
    %v6315 = vmul.f32 %v6280, 1.442695
    %v6316 = vpow.pop %v6315
    %v6317 = vmul.f32 %v6281, 1.442695
    %v6318 = vpow.pop %v6317
    %v6319 = vmul.f32 %v6282, 1.442695
    %v6320 = vpow.pop %v6319
    %v6321 = vmul.f32 %v6283, 1.442695
    %v6322 = vpow.pop %v6321
    %v6323 = vmul.f32 %v6284, 1.442695
    %v6324 = vpow.pop %v6323
    %v6325 = vmul.f32 %v6285, 1.442695
    %v6326 = vpow.pop %v6325
    %v6327 = vmul.f32 %v6286, 1.442695
    %v6328 = vpow.pop %v6327
    %v6329 = vmul.f32 %v6287, 1.442695
    %v6330 = vpow.pop %v6329
    %v6331 = vmul.f32 %v6288, 1.442695
    %v6332 = vpow.pop %v6331
    %v6333 = vmul.f32 %v6289, 1.442695
    %v6334 = vpow.pop %v6333
    %v6335 = vmul.f32 %v6290, 1.442695
    %v6336 = vpow.pop %v6335
    %v6337 = vmul.f32 %v6291, 1.442695
    %v6338 = vpow.pop %v6337
    %v6339 = vmul.f32 %v6292, 1.442695
    %v6340 = vpow.pop %v6339
    %v6341 = vmul.f32 %v6293, 1.442695
    %v6342 = vpow.pop %v6341
    %v6343 = vmul.f32 %v6294, 1.442695
    %v6344 = vpow.pop %v6343
    %v6345 = vmul.f32 %v6295, 1.442695
    %v6346 = vpow.pop %v6345
    %v6347 = vmul.f32 %v6296, 1.442695
    %v6348 = vpow.pop %v6347
    %v6349 = vmul.f32 %v6297, 1.442695
    %v6350 = vpow.pop %v6349
    %v6351 = vmul.f32 %v6298, 1.442695
    %v6352 = vpow.pop %v6351
    %v6353 = vmul.f32 %v6299, 1.442695
    %v6354 = vpow.pop %v6353
    %v6355 = vmul.f32 %v6300, 1.442695
    %v6356 = vpow.pop %v6355
    %v6357 = vmul.f32 %v6301, 1.442695
    %v6358 = vpow.pop %v6357
    %v6359 = vmul.f32 %v6302, 1.442695
    %v6360 = vpow.pop %v6359
    %v6361 = vmul.f32 %v6303, 1.442695
    %v6362 = vpow.pop %v6361
    %v6363 = vmul.f32 %v6304, 1.442695
    %v6364 = vpow.pop %v6363
    %v6365 = vmul.f32 %v6305, 1.442695
    %v6366 = vpow.pop %v6365
    %v6367 = vmul.f32 %v6306, 1.442695
    %v6368 = vpow.pop %v6367
    %v6369 = vmul.f32 %v6307, 1.442695
    %v6370 = vpow.pop %v6369
    %v6371 = vmul.f32 %v6308, 1.442695
    %v6372 = vpow.pop %v6371
    %v6373 = vadd.f32 %v6310, 1.0
    %v6374 = vadd.f32 %v6312, 1.0
    %v6375 = vadd.f32 %v6314, 1.0
    %v6376 = vadd.f32 %v6316, 1.0
    %v6377 = vadd.f32 %v6318, 1.0
    %v6378 = vadd.f32 %v6320, 1.0
    %v6379 = vadd.f32 %v6322, 1.0
    %v6380 = vadd.f32 %v6324, 1.0
    %v6381 = vadd.f32 %v6326, 1.0
    %v6382 = vadd.f32 %v6328, 1.0
    %v6383 = vadd.f32 %v6330, 1.0
    %v6384 = vadd.f32 %v6332, 1.0
    %v6385 = vadd.f32 %v6334, 1.0
    %v6386 = vadd.f32 %v6336, 1.0
    %v6387 = vadd.f32 %v6338, 1.0
    %v6388 = vadd.f32 %v6340, 1.0
    %v6389 = vadd.f32 %v6342, 1.0
    %v6390 = vadd.f32 %v6344, 1.0
    %v6391 = vadd.f32 %v6346, 1.0
    %v6392 = vadd.f32 %v6348, 1.0
    %v6393 = vadd.f32 %v6350, 1.0
    %v6394 = vadd.f32 %v6352, 1.0
    %v6395 = vadd.f32 %v6354, 1.0
    %v6396 = vadd.f32 %v6356, 1.0
    %v6397 = vadd.f32 %v6358, 1.0
    %v6398 = vadd.f32 %v6360, 1.0
    %v6399 = vadd.f32 %v6362, 1.0
    %v6400 = vadd.f32 %v6364, 1.0
    %v6401 = vadd.f32 %v6366, 1.0
    %v6402 = vadd.f32 %v6368, 1.0
    %v6403 = vadd.f32 %v6370, 1.0
    %v6404 = vadd.f32 %v6372, 1.0
    %v6405 = vrcp.pop %v6373
    %v6406 = vmul.f32 1.0, %v6405
    %v6407 = vrcp.pop %v6374
    %v6408 = vmul.f32 1.0, %v6407
    %v6409 = vrcp.pop %v6375
    %v6410 = vmul.f32 1.0, %v6409
    %v6411 = vrcp.pop %v6376
    %v6412 = vmul.f32 1.0, %v6411
    %v6413 = vrcp.pop %v6377
    %v6414 = vmul.f32 1.0, %v6413
    %v6415 = vrcp.pop %v6378
    %v6416 = vmul.f32 1.0, %v6415
    %v6417 = vrcp.pop %v6379
    %v6418 = vmul.f32 1.0, %v6417
    %v6419 = vrcp.pop %v6380
    %v6420 = vmul.f32 1.0, %v6419
    %v6421 = vrcp.pop %v6381
    %v6422 = vmul.f32 1.0, %v6421
    %v6423 = vrcp.pop %v6382
    %v6424 = vmul.f32 1.0, %v6423
    %v6425 = vrcp.pop %v6383
    %v6426 = vmul.f32 1.0, %v6425
    %v6427 = vrcp.pop %v6384
    %v6428 = vmul.f32 1.0, %v6427
    %v6429 = vrcp.pop %v6385
    %v6430 = vmul.f32 1.0, %v6429
    %v6431 = vrcp.pop %v6386
    %v6432 = vmul.f32 1.0, %v6431
    %v6433 = vrcp.pop %v6387
    %v6434 = vmul.f32 1.0, %v6433
    %v6435 = vrcp.pop %v6388
    %v6436 = vmul.f32 1.0, %v6435
    %v6437 = vrcp.pop %v6389
    %v6438 = vmul.f32 1.0, %v6437
    %v6439 = vrcp.pop %v6390
    %v6440 = vmul.f32 1.0, %v6439
    %v6441 = vrcp.pop %v6391
    %v6442 = vmul.f32 1.0, %v6441
    %v6443 = vrcp.pop %v6392
    %v6444 = vmul.f32 1.0, %v6443
    %v6445 = vrcp.pop %v6393
    %v6446 = vmul.f32 1.0, %v6445
    %v6447 = vrcp.pop %v6394
    %v6448 = vmul.f32 1.0, %v6447
    %v6449 = vrcp.pop %v6395
    %v6450 = vmul.f32 1.0, %v6449
    %v6451 = vrcp.pop %v6396
    %v6452 = vmul.f32 1.0, %v6451
    %v6453 = vrcp.pop %v6397
    %v6454 = vmul.f32 1.0, %v6453
    %v6455 = vrcp.pop %v6398
    %v6456 = vmul.f32 1.0, %v6455
    %v6457 = vrcp.pop %v6399
    %v6458 = vmul.f32 1.0, %v6457
    %v6459 = vrcp.pop %v6400
    %v6460 = vmul.f32 1.0, %v6459
    %v6461 = vrcp.pop %v6401
    %v6462 = vmul.f32 1.0, %v6461
    %v6463 = vrcp.pop %v6402
    %v6464 = vmul.f32 1.0, %v6463
    %v6465 = vrcp.pop %v6403
    %v6466 = vmul.f32 1.0, %v6465
    %v6467 = vrcp.pop %v6404
    %v6468 = vmul.f32 1.0, %v6467
    %v6469 = vpack.c.bf16 %v6408, %v6406
    %v6470 = vpack.c.bf16 %v6412, %v6410
    %v6471 = vpack.c.bf16 %v6416, %v6414
    %v6472 = vpack.c.bf16 %v6420, %v6418
    %v6473 = vpack.c.bf16 %v6424, %v6422
    %v6474 = vpack.c.bf16 %v6428, %v6426
    %v6475 = vpack.c.bf16 %v6432, %v6430
    %v6476 = vpack.c.bf16 %v6436, %v6434
    %v6477 = vpack.c.bf16 %v6440, %v6438
    %v6478 = vpack.c.bf16 %v6444, %v6442
    %v6479 = vpack.c.bf16 %v6448, %v6446
    %v6480 = vpack.c.bf16 %v6452, %v6450
    %v6481 = vpack.c.bf16 %v6456, %v6454
    %v6482 = vpack.c.bf16 %v6460, %v6458
    %v6483 = vpack.c.bf16 %v6464, %v6462
    %v6484 = vpack.c.bf16 %v6468, %v6466
    %v6501 = vunpack.c.l.b16 %v6469
    %v6502 = vunpack.c.h.b16 %v6469
    %v6503 = vunpack.c.l.b16 %v6470
    %v6504 = vunpack.c.h.b16 %v6470
    %v6505 = vunpack.c.l.b16 %v6471
    %v6506 = vunpack.c.h.b16 %v6471
    %v6507 = vunpack.c.l.b16 %v6472
    %v6508 = vunpack.c.h.b16 %v6472
    %v6509 = vunpack.c.l.b16 %v6473
    %v6510 = vunpack.c.h.b16 %v6473
    %v6511 = vunpack.c.l.b16 %v6474
    %v6512 = vunpack.c.h.b16 %v6474
    %v6513 = vunpack.c.l.b16 %v6475
    %v6514 = vunpack.c.h.b16 %v6475
    %v6515 = vunpack.c.l.b16 %v6476
    %v6516 = vunpack.c.h.b16 %v6476
    %v6517 = vunpack.c.l.b16 %v6477
    %v6518 = vunpack.c.h.b16 %v6477
    %v6519 = vunpack.c.l.b16 %v6478
    %v6520 = vunpack.c.h.b16 %v6478
    %v6521 = vunpack.c.l.b16 %v6479
    %v6522 = vunpack.c.h.b16 %v6479
    %v6523 = vunpack.c.l.b16 %v6480
    %v6524 = vunpack.c.h.b16 %v6480
    %v6525 = vunpack.c.l.b16 %v6481
    %v6526 = vunpack.c.h.b16 %v6481
    %v6527 = vunpack.c.l.b16 %v6482
    %v6528 = vunpack.c.h.b16 %v6482
    %v6529 = vunpack.c.l.b16 %v6483
    %v6530 = vunpack.c.h.b16 %v6483
    %v6531 = vunpack.c.l.b16 %v6484
    %v6532 = vunpack.c.h.b16 %v6484
    %v6533 = vpack.c.b16 %v6501, %v6501
    %v6534 = vpack.c.b16 %v6502, %v6502
    %v6535 = vpack.c.b16 %v6503, %v6503
    %v6536 = vpack.c.b16 %v6504, %v6504
    %v6537 = vpack.c.b16 %v6505, %v6505
    %v6538 = vpack.c.b16 %v6506, %v6506
    %v6539 = vpack.c.b16 %v6507, %v6507
    %v6540 = vpack.c.b16 %v6508, %v6508
    %v6541 = vpack.c.b16 %v6509, %v6509
    %v6542 = vpack.c.b16 %v6510, %v6510
    %v6543 = vpack.c.b16 %v6511, %v6511
    %v6544 = vpack.c.b16 %v6512, %v6512
    %v6545 = vpack.c.b16 %v6513, %v6513
    %v6546 = vpack.c.b16 %v6514, %v6514
    %v6547 = vpack.c.b16 %v6515, %v6515
    %v6548 = vpack.c.b16 %v6516, %v6516
    %v6549 = vpack.c.b16 %v6517, %v6517
    %v6550 = vpack.c.b16 %v6518, %v6518
    %v6551 = vpack.c.b16 %v6519, %v6519
    %v6552 = vpack.c.b16 %v6520, %v6520
    %v6553 = vpack.c.b16 %v6521, %v6521
    %v6554 = vpack.c.b16 %v6522, %v6522
    %v6555 = vpack.c.b16 %v6523, %v6523
    %v6556 = vpack.c.b16 %v6524, %v6524
    %v6557 = vpack.c.b16 %v6525, %v6525
    %v6558 = vpack.c.b16 %v6526, %v6526
    %v6559 = vpack.c.b16 %v6527, %v6527
    %v6560 = vpack.c.b16 %v6528, %v6528
    %v6561 = vpack.c.b16 %v6529, %v6529
    %v6562 = vpack.c.b16 %v6530, %v6530
    %v6563 = vpack.c.b16 %v6531, %v6531
    %v6564 = vpack.c.b16 %v6532, %v6532
    %6597 = vst [vmem:[%s9] sm:$0xf] %v6533
    %6598 = vst [vmem:[%s9 + $0x4] sm:$0xf] %v6534
    %6599 = vst [vmem:[%s9 + $0x8] sm:$0xf] %v6535
    %6600 = vst [vmem:[%s9 + $0xc] sm:$0xf] %v6536
    %6601 = vst [vmem:[%s9 + $0x10] sm:$0xf] %v6537
    %6602 = vst [vmem:[%s9 + $0x14] sm:$0xf] %v6538
    %6603 = vst [vmem:[%s9 + $0x18] sm:$0xf] %v6539
    %6604 = vst [vmem:[%s9 + $0x1c] sm:$0xf] %v6540
    %6605 = vst [vmem:[%s9 + $0x20] sm:$0xf] %v6541
    %6606 = vst [vmem:[%s9 + $0x24] sm:$0xf] %v6542
    %6607 = vst [vmem:[%s9 + $0x28] sm:$0xf] %v6543
    %6608 = vst [vmem:[%s9 + $0x2c] sm:$0xf] %v6544
    %6609 = vst [vmem:[%s9 + $0x30] sm:$0xf] %v6545
    %6610 = vst [vmem:[%s9 + $0x34] sm:$0xf] %v6546
    %6611 = vst [vmem:[%s9 + $0x38] sm:$0xf] %v6547
    %6612 = vst [vmem:[%s9 + $0x3c] sm:$0xf] %v6548
    %6613 = vst [vmem:[%s9 + $0x40] sm:$0xf] %v6549
    %6614 = vst [vmem:[%s9 + $0x44] sm:$0xf] %v6550
    %6615 = vst [vmem:[%s9 + $0x48] sm:$0xf] %v6551
    %6616 = vst [vmem:[%s9 + $0x4c] sm:$0xf] %v6552
    %6617 = vst [vmem:[%s9 + $0x50] sm:$0xf] %v6553
    %6618 = vst [vmem:[%s9 + $0x54] sm:$0xf] %v6554
    %6619 = vst [vmem:[%s9 + $0x58] sm:$0xf] %v6555
    %6620 = vst [vmem:[%s9 + $0x5c] sm:$0xf] %v6556
    %6621 = vst [vmem:[%s9 + $0x60] sm:$0xf] %v6557
    %6622 = vst [vmem:[%s9 + $0x64] sm:$0xf] %v6558
    %6623 = vst [vmem:[%s9 + $0x68] sm:$0xf] %v6559
    %6624 = vst [vmem:[%s9 + $0x6c] sm:$0xf] %v6560
    %6625 = vst [vmem:[%s9 + $0x70] sm:$0xf] %v6561
    %6626 = vst [vmem:[%s9 + $0x74] sm:$0xf] %v6562
    %6627 = vst [vmem:[%s9 + $0x78] sm:$0xf] %v6563
    %6628 = vst [vmem:[%s9 + $0x7c] sm:$0xf] %v6564
    // Predicated region
    $region70: #{cannolo_forward_windows.1} parent=1 // pred_check
      _
    $region71: #{cannolo_forward_windows.1} parent=1 // pred_check_branch
      %6630 = sbr.rel (0) target = $region73
    $region72: #{cannolo_forward_windows.1} parent=1 // pred_region
      _
    $region73: #{cannolo_forward_windows.1} parent=1 // pred_fallthru
      _
    // Predicated region
    $region74: #{cannolo_forward_windows.1} parent=1 // pred_check
      _
    $region75: #{cannolo_forward_windows.1} parent=1 // pred_check_branch
      %6632 = sbr.rel (0) target = $region77
    $region76: #{cannolo_forward_windows.1} parent=1 // pred_region
      _
    $region77: #{cannolo_forward_windows.1} parent=1 // pred_fallthru
      _
    %6633 = vsyncpa [#allocation6], 1

</llo_original>
